<compile_context>
chip_gen: v6e
topology: v6e:2x2x1
jax: 0.10.0
libtpu: 0.0.40
codegen_flags: <defaults>
</compile_context>

<pallas_src>
import functools

import jax
import jax.numpy as jnp
from jax.experimental import pallas as pl
from jax.experimental.pallas import tpu as pltpu


def _encoding_block_end_kernel(
    x_ref, w1_ref, b1_ref, w2_ref, b2_ref, w3_ref, b3_ref, w4_ref, b4_ref,
    alpha_ref, o_ref,
    pad1_ref, col1_ref, pad_ref, col_ref,
    *, H, W, Cin):
    """One batch element: conv1..conv4 fully fused in VMEM.

    x_ref    : (1, H, W, Cin)        input tile (VMEM)
    w*_ref   : (9*Cin_l, Cout_l)     im2col weight matrices (VMEM)
    b*_ref   : (1, Cout_l)           biases (VMEM)
    alpha_ref: (1, 1)                shared PReLU slope (SMEM scalar)
    o_ref    : (1, H, W, 128)        output tile
    pad1_ref : (H+2, W+2, Cin)       zero-padded layer-1 input (scratch)
    col1_ref : (H, W, 9*Cin)         layer-1 im2col slab (scratch)
    pad_ref  : (H+2, W+2, 64)        zero-padded 64-ch activation (scratch)
    col_ref  : (H, W, 576)           64-ch im2col slab (scratch)
    """
    alpha = alpha_ref[0, 0]

    def prelu(y):
        return jnp.where(y >= 0.0, y, alpha * y)

    def im2col(src_pad_ref, dst_col_ref, cin):
        # Build the (H, W, 9*cin) slab once; taps are tap-major, channel-minor
        # so the weight matrix is just w_hwio.reshape(9*cin, cout).
        xp = src_pad_ref[...]                          # (H+2, W+2, cin)
        for dy in range(3):
            for dx in range(3):
                t = dy * 3 + dx
                dst_col_ref[:, :, t * cin:(t + 1) * cin] = xp[dy:dy + H, dx:dx + W, :]

    # ---- layer 1: c_in -> 64, PReLU --------------------------------------
    pad1_ref[...] = jnp.zeros_like(pad1_ref)
    pad1_ref[1:H + 1, 1:W + 1, :] = x_ref[0]
    im2col(pad1_ref, col1_ref, Cin)
    a = jnp.dot(col1_ref[...].reshape(H * W, 9 * Cin), w1_ref[...],
                preferred_element_type=jnp.float32)
    a = prelu(a + b1_ref[...])                         # (H*W, 64)

    # ---- layers 2 & 3: 64 -> 64, PReLU -----------------------------------
    pad_ref[...] = jnp.zeros_like(pad_ref)             # borders stay zero below
    for w_ref, b_ref in ((w2_ref, b2_ref), (w3_ref, b3_ref)):
        pad_ref[1:H + 1, 1:W + 1, :] = a.reshape(H, W, 64)
        im2col(pad_ref, col_ref, 64)
        a = jnp.dot(col_ref[...].reshape(H * W, 9 * 64), w_ref[...],
                    preferred_element_type=jnp.float32)
        a = prelu(a + b_ref[...])

    # ---- layer 4: 64 -> 128, no activation --------------------------------
    pad_ref[1:H + 1, 1:W + 1, :] = a.reshape(H, W, 64)
    im2col(pad_ref, col_ref, 64)
    f = jnp.dot(col_ref[...].reshape(H * W, 9 * 64), w4_ref[...],
                preferred_element_type=jnp.float32)
    f = f + b4_ref[...]                                # (H*W, 128)
    o_ref[...] = f.reshape(1, H, W, 128).astype(o_ref.dtype)


def encoding_block_end_forward(x_nchw, params, alpha):
    """Forward pass. Input NCHW (PyTorch convention), output NCHW."""
    x = jnp.transpose(x_nchw, (0, 2, 3, 1))            # NCHW -> NHWC
    N, H, W, Cin = x.shape
    (w1, b1), (w2, b2), (w3, b3), (w4, b4) = params

    # HWIO -> (9*Cin, Cout) matrices matching the im2col tap ordering.
    w1m = w1.reshape(9 * Cin, 64)
    w2m = w2.reshape(9 * 64, 64)
    w3m = w3.reshape(9 * 64, 64)
    w4m = w4.reshape(9 * 64, 128)
    b1m, b2m, b3m, b4m = (b.reshape(1, -1) for b in (b1, b2, b3, b4))
    alpha2d = jnp.asarray(alpha, jnp.float32).reshape(1, 1)

    kern = functools.partial(_encoding_block_end_kernel, H=H, W=W, Cin=Cin)
    full2d = lambda n: (0, 0)

    # TODO(synk): for large H (>=128-ish) add a halo'd row-tile grid axis so the
    # fused VMEM scratch stays under the v7x 64 MiB / default scoped VMEM limits.
    f_e = pl.pallas_call(
        kern,
        out_shape=jax.ShapeDtypeStruct((N, H, W, 128), x.dtype),
        grid=(N,),
        in_specs=[
            pl.BlockSpec((1, H, W, Cin), lambda n: (n, 0, 0, 0)),
            pl.BlockSpec((9 * Cin, 64), full2d),
            pl.BlockSpec((1, 64), full2d),
            pl.BlockSpec((9 * 64, 64), full2d),
            pl.BlockSpec((1, 64), full2d),
            pl.BlockSpec((9 * 64, 64), full2d),
            pl.BlockSpec((1, 64), full2d),
            pl.BlockSpec((9 * 64, 128), full2d),
            pl.BlockSpec((1, 128), full2d),
            pl.BlockSpec(memory_space=pltpu.MemorySpace.SMEM),
        ],
        out_specs=pl.BlockSpec((1, H, W, 128), lambda n: (n, 0, 0, 0)),
        scratch_shapes=[
            pltpu.VMEM((H + 2, W + 2, Cin), jnp.float32),
            pltpu.VMEM((H, W, 9 * Cin), jnp.float32),
            pltpu.VMEM((H + 2, W + 2, 64), jnp.float32),
            pltpu.VMEM((H, W, 9 * 64), jnp.float32),
        ],
        compiler_params=pltpu.CompilerParams(
            dimension_semantics=("parallel",),
        ),
    )(x, w1m, b1m, w2m, b2m, w3m, b3m, w4m, b4m, alpha2d)

    return jnp.transpose(f_e, (0, 3, 1, 2))            # NHWC -> NCHW


def init_params(key, c_in):
    """Deterministic synthetic parameters (xavier_normal weights, like reset_parameters)."""
    chans = [(c_in, 64), (64, 64), (64, 64), (64, 128)]
    params = []
    for i, (ci, co) in enumerate(chans):
        kw, kb = jax.random.split(jax.random.fold_in(key, i))
        fan_in, fan_out = ci * 9, co * 9
        std = (2.0 / (fan_in + fan_out)) ** 0.5              # xavier_normal_
        w = std * jax.random.normal(kw, (3, 3, ci, co), jnp.float32)   # HWIO
        bound = 1.0 / (fan_in ** 0.5)                         # default Conv2d bias init
        b = jax.random.uniform(kb, (co,), jnp.float32, -bound, bound)
        params.append((w, b))
    alpha = jnp.float32(0.25)                                 # nn.PReLU() default
    return params, alpha


def _reference_forward(x_nchw, params, alpha):
    """Pure-JAX reference (lax conv, default precision) for a correctness check."""
    x = jnp.transpose(x_nchw, (0, 2, 3, 1))
    dn = jax.lax.conv_dimension_numbers(x.shape, params[0][0].shape,
                                        ("NHWC", "HWIO", "NHWC"))

    def conv(h, w, b):
        y = jax.lax.conv_general_dilated(
            h, w, window_strides=(1, 1), padding="SAME", dimension_numbers=dn)
        return y + b.reshape(1, 1, 1, -1)

    def prelu(y):
        return jnp.where(y >= 0.0, y, alpha * y)

    (w1, b1), (w2, b2), (w3, b3), (w4, b4) = params
    h = prelu(conv(x, w1, b1))
    h = prelu(conv(h, w2, b2))
    h = prelu(conv(h, w3, b3))
    h = conv(h, w4, b4)
    return jnp.transpose(h, (0, 3, 1, 2))


if __name__ == "__main__":
    key = jax.random.PRNGKey(0)
    k_x, k_p = jax.random.split(key)

    N, C_IN, H, W = 2, 8, 16, 16          # small shapes; module scales to c_in=64
    x = jax.random.normal(k_x, (N, C_IN, H, W), jnp.float32)   # NCHW input

    params, alpha = init_params(k_p, C_IN)

    out = jax.block_until_ready(encoding_block_end_forward(x, params, alpha))
    assert out.shape == (N, 128, H, W), out.shape

    ref = jax.block_until_ready(_reference_forward(x, params, alpha))
    max_err = float(jnp.max(jnp.abs(out - ref)))
    assert jnp.allclose(out, ref, rtol=2e-2, atol=2e-2), max_err

    print("KERNEL_OK")
</pallas_src>

<mosaic_0001>
module attributes {stable_mosaic.version = 11 : i64} {
  func.func @_encoding_block_end_kernel(%arg0: i32, %arg1: memref<1x16x16x8xf32, #tpu.memory_space<vmem>>, %arg2: memref<72x64xf32, #tpu.memory_space<vmem>>, %arg3: memref<1x64xf32, #tpu.memory_space<vmem>>, %arg4: memref<576x64xf32, #tpu.memory_space<vmem>>, %arg5: memref<1x64xf32, #tpu.memory_space<vmem>>, %arg6: memref<576x64xf32, #tpu.memory_space<vmem>>, %arg7: memref<1x64xf32, #tpu.memory_space<vmem>>, %arg8: memref<576x128xf32, #tpu.memory_space<vmem>>, %arg9: memref<1x128xf32, #tpu.memory_space<vmem>>, %arg10: memref<1x1xf32, #tpu.memory_space<smem>>, %arg11: memref<1x16x16x128xf32, #tpu.memory_space<vmem>>, %arg12: memref<18x18x8xf32, #tpu.memory_space<vmem>>, %arg13: memref<16x16x72xf32, #tpu.memory_space<vmem>>, %arg14: memref<18x18x64xf32, #tpu.memory_space<vmem>>, %arg15: memref<16x16x576xf32, #tpu.memory_space<vmem>>) attributes {dimension_semantics = [#tpu.dimension_semantics<parallel>], iteration_bounds = array<i64: 2>, scalar_prefetch = 0 : i64, scratch_operands = 4 : i64, tpu.core_type = #tpu.core_type<tc>, window_params = [{transform_indices = @transform_0, window_bounds = array<i64: 1, 16, 16, 8>}, {pipeline_mode = #tpu.pipeline_mode<synchronous>, transform_indices = @transform_1, window_bounds = array<i64: 72, 64>}, {pipeline_mode = #tpu.pipeline_mode<synchronous>, transform_indices = @transform_2, window_bounds = array<i64: 1, 64>}, {pipeline_mode = #tpu.pipeline_mode<synchronous>, transform_indices = @transform_3, window_bounds = array<i64: 576, 64>}, {pipeline_mode = #tpu.pipeline_mode<synchronous>, transform_indices = @transform_4, window_bounds = array<i64: 1, 64>}, {pipeline_mode = #tpu.pipeline_mode<synchronous>, transform_indices = @transform_5, window_bounds = array<i64: 576, 64>}, {pipeline_mode = #tpu.pipeline_mode<synchronous>, transform_indices = @transform_6, window_bounds = array<i64: 1, 64>}, {pipeline_mode = #tpu.pipeline_mode<synchronous>, transform_indices = @transform_7, window_bounds = array<i64: 576, 128>}, {pipeline_mode = #tpu.pipeline_mode<synchronous>, transform_indices = @transform_8, window_bounds = array<i64: 1, 128>}, {transform_indices = @transform_9, window_bounds = array<i64: 1, 1>}, {transform_indices = @transform_10, window_bounds = array<i64: 1, 16, 16, 128>}]} {
    %c0 = arith.constant 0 : index
    %c0_0 = arith.constant 0 : index
    %0 = memref.load %arg10[%c0, %c0_0] : memref<1x1xf32, #tpu.memory_space<smem>>
    %cst = arith.constant 0.000000e+00 : f32
    %1 = vector.broadcast %cst : f32 to vector<18x18x8xf32>
    %c0_1 = arith.constant 0 : index
    %c0_2 = arith.constant 0 : index
    %c0_3 = arith.constant 0 : index
    %2 = vector.load %arg12[%c0_1, %c0_2, %c0_3] : memref<18x18x8xf32, #tpu.memory_space<vmem>>, vector<18x18x8xf32>
    tpu.vector_store %arg12[%c0_1, %c0_2, %c0_3], %1 {strides = array<i32>} : memref<18x18x8xf32, #tpu.memory_space<vmem>>, vector<18x18x8xf32>,
    %c0_4 = arith.constant 0 : index
    %c0_5 = arith.constant 0 : index
    %c0_6 = arith.constant 0 : index
    %c0_7 = arith.constant 0 : index
    %3 = vector.load %arg1[%c0_4, %c0_5, %c0_6, %c0_7] : memref<1x16x16x8xf32, #tpu.memory_space<vmem>>, vector<1x16x16x8xf32>
    %4 = vector.shape_cast %3 : vector<1x16x16x8xf32> to vector<16x16x8xf32>
    %c1 = arith.constant 1 : index
    %c1_8 = arith.constant 1 : index
    %c0_9 = arith.constant 0 : index
    %5 = vector.load %arg12[%c1, %c1_8, %c0_9] : memref<18x18x8xf32, #tpu.memory_space<vmem>>, vector<16x16x8xf32>
    tpu.vector_store %arg12[%c1, %c1_8, %c0_9], %4 {strides = array<i32>} : memref<18x18x8xf32, #tpu.memory_space<vmem>>, vector<16x16x8xf32>,
    %c0_10 = arith.constant 0 : index
    %c0_11 = arith.constant 0 : index
    %c0_12 = arith.constant 0 : index
    %6 = vector.load %arg12[%c0_10, %c0_11, %c0_12] : memref<18x18x8xf32, #tpu.memory_space<vmem>>, vector<18x18x8xf32>
    %7 = vector.extract_strided_slice %6 {offsets = [0, 0, 0], sizes = [16, 16, 8], strides = [1, 1, 1]} : vector<18x18x8xf32> to vector<16x16x8xf32>
    %c0_13 = arith.constant 0 : index
    %c0_14 = arith.constant 0 : index
    %c0_15 = arith.constant 0 : index
    %8 = vector.load %arg13[%c0_13, %c0_14, %c0_15] : memref<16x16x72xf32, #tpu.memory_space<vmem>>, vector<16x16x8xf32>
    tpu.vector_store %arg13[%c0_13, %c0_14, %c0_15], %7 {strides = array<i32>} : memref<16x16x72xf32, #tpu.memory_space<vmem>>, vector<16x16x8xf32>,
    %9 = vector.extract_strided_slice %6 {offsets = [0, 1, 0], sizes = [16, 16, 8], strides = [1, 1, 1]} : vector<18x18x8xf32> to vector<16x16x8xf32>
    %c0_16 = arith.constant 0 : index
    %c0_17 = arith.constant 0 : index
    %c8 = arith.constant 8 : index
    %10 = vector.load %arg13[%c0_16, %c0_17, %c8] : memref<16x16x72xf32, #tpu.memory_space<vmem>>, vector<16x16x8xf32>
    tpu.vector_store %arg13[%c0_16, %c0_17, %c8], %9 {strides = array<i32>} : memref<16x16x72xf32, #tpu.memory_space<vmem>>, vector<16x16x8xf32>,
    %11 = vector.extract_strided_slice %6 {offsets = [0, 2, 0], sizes = [16, 16, 8], strides = [1, 1, 1]} : vector<18x18x8xf32> to vector<16x16x8xf32>
    %c0_18 = arith.constant 0 : index
    %c0_19 = arith.constant 0 : index
    %c16 = arith.constant 16 : index
    %12 = vector.load %arg13[%c0_18, %c0_19, %c16] : memref<16x16x72xf32, #tpu.memory_space<vmem>>, vector<16x16x8xf32>
    tpu.vector_store %arg13[%c0_18, %c0_19, %c16], %11 {strides = array<i32>} : memref<16x16x72xf32, #tpu.memory_space<vmem>>, vector<16x16x8xf32>,
    %13 = vector.extract_strided_slice %6 {offsets = [1, 0, 0], sizes = [16, 16, 8], strides = [1, 1, 1]} : vector<18x18x8xf32> to vector<16x16x8xf32>
    %c0_20 = arith.constant 0 : index
    %c0_21 = arith.constant 0 : index
    %c24 = arith.constant 24 : index
    %14 = vector.load %arg13[%c0_20, %c0_21, %c24] : memref<16x16x72xf32, #tpu.memory_space<vmem>>, vector<16x16x8xf32>
    tpu.vector_store %arg13[%c0_20, %c0_21, %c24], %13 {strides = array<i32>} : memref<16x16x72xf32, #tpu.memory_space<vmem>>, vector<16x16x8xf32>,
    %15 = vector.extract_strided_slice %6 {offsets = [1, 1, 0], sizes = [16, 16, 8], strides = [1, 1, 1]} : vector<18x18x8xf32> to vector<16x16x8xf32>
    %c0_22 = arith.constant 0 : index
    %c0_23 = arith.constant 0 : index
    %c32 = arith.constant 32 : index
    %16 = vector.load %arg13[%c0_22, %c0_23, %c32] : memref<16x16x72xf32, #tpu.memory_space<vmem>>, vector<16x16x8xf32>
    tpu.vector_store %arg13[%c0_22, %c0_23, %c32], %15 {strides = array<i32>} : memref<16x16x72xf32, #tpu.memory_space<vmem>>, vector<16x16x8xf32>,
    %17 = vector.extract_strided_slice %6 {offsets = [1, 2, 0], sizes = [16, 16, 8], strides = [1, 1, 1]} : vector<18x18x8xf32> to vector<16x16x8xf32>
    %c0_24 = arith.constant 0 : index
    %c0_25 = arith.constant 0 : index
    %c40 = arith.constant 40 : index
    %18 = vector.load %arg13[%c0_24, %c0_25, %c40] : memref<16x16x72xf32, #tpu.memory_space<vmem>>, vector<16x16x8xf32>
    tpu.vector_store %arg13[%c0_24, %c0_25, %c40], %17 {strides = array<i32>} : memref<16x16x72xf32, #tpu.memory_space<vmem>>, vector<16x16x8xf32>,
    %19 = vector.extract_strided_slice %6 {offsets = [2, 0, 0], sizes = [16, 16, 8], strides = [1, 1, 1]} : vector<18x18x8xf32> to vector<16x16x8xf32>
    %c0_26 = arith.constant 0 : index
    %c0_27 = arith.constant 0 : index
    %c48 = arith.constant 48 : index
    %20 = vector.load %arg13[%c0_26, %c0_27, %c48] : memref<16x16x72xf32, #tpu.memory_space<vmem>>, vector<16x16x8xf32>
    tpu.vector_store %arg13[%c0_26, %c0_27, %c48], %19 {strides = array<i32>} : memref<16x16x72xf32, #tpu.memory_space<vmem>>, vector<16x16x8xf32>,
    %21 = vector.extract_strided_slice %6 {offsets = [2, 1, 0], sizes = [16, 16, 8], strides = [1, 1, 1]} : vector<18x18x8xf32> to vector<16x16x8xf32>
    %c0_28 = arith.constant 0 : index
    %c0_29 = arith.constant 0 : index
    %c56 = arith.constant 56 : index
    %22 = vector.load %arg13[%c0_28, %c0_29, %c56] : memref<16x16x72xf32, #tpu.memory_space<vmem>>, vector<16x16x8xf32>
    tpu.vector_store %arg13[%c0_28, %c0_29, %c56], %21 {strides = array<i32>} : memref<16x16x72xf32, #tpu.memory_space<vmem>>, vector<16x16x8xf32>,
    %23 = vector.extract_strided_slice %6 {offsets = [2, 2, 0], sizes = [16, 16, 8], strides = [1, 1, 1]} : vector<18x18x8xf32> to vector<16x16x8xf32>
    %c0_30 = arith.constant 0 : index
    %c0_31 = arith.constant 0 : index
    %c64 = arith.constant 64 : index
    %24 = vector.load %arg13[%c0_30, %c0_31, %c64] : memref<16x16x72xf32, #tpu.memory_space<vmem>>, vector<16x16x8xf32>
    tpu.vector_store %arg13[%c0_30, %c0_31, %c64], %23 {strides = array<i32>} : memref<16x16x72xf32, #tpu.memory_space<vmem>>, vector<16x16x8xf32>,
    %c0_32 = arith.constant 0 : index
    %c0_33 = arith.constant 0 : index
    %c0_34 = arith.constant 0 : index
    %25 = vector.load %arg13[%c0_32, %c0_33, %c0_34] : memref<16x16x72xf32, #tpu.memory_space<vmem>>, vector<16x16x72xf32>
    %26 = vector.shape_cast %25 : vector<16x16x72xf32> to vector<256x72xf32>
    %c0_35 = arith.constant 0 : index
    %c0_36 = arith.constant 0 : index
    %27 = vector.load %arg2[%c0_35, %c0_36] : memref<72x64xf32, #tpu.memory_space<vmem>>, vector<72x64xf32>
    %cst_37 = arith.constant dense<0.000000e+00> : vector<256x64xf32>
    %28 = tpu.matmul %26, %27, %cst_37 {dimension_numbers = #tpu.dot_dimension_numbers<[1], [0], [0], [1], [0, 0, 1, 1], [], []>} : vector<256x72xf32>, vector<72x64xf32>, vector<256x64xf32> -> vector<256x64xf32>
    %c0_38 = arith.constant 0 : index
    %c0_39 = arith.constant 0 : index
    %29 = vector.load %arg3[%c0_38, %c0_39] : memref<1x64xf32, #tpu.memory_space<vmem>>, vector<1x64xf32>
    %30 = vector.broadcast %29 : vector<1x64xf32> to vector<256x64xf32>
    %31 = arith.addf %28, %30 : vector<256x64xf32>
    %cst_40 = arith.constant 0.000000e+00 : f32
    %32 = vector.broadcast %cst_40 : f32 to vector<256x64xf32>
    %33 = arith.cmpf oge, %31, %32 : vector<256x64xf32>
    %34 = vector.broadcast %0 : f32 to vector<256x64xf32>
    %35 = arith.mulf %34, %31 : vector<256x64xf32>
    %36 = arith.select %33, %31, %35 : vector<256x64xi1>, vector<256x64xf32>
    %cst_41 = arith.constant 0.000000e+00 : f32
    %37 = vector.broadcast %cst_41 : f32 to vector<18x18x64xf32>
    %c0_42 = arith.constant 0 : index
    %c0_43 = arith.constant 0 : index
    %c0_44 = arith.constant 0 : index
    %38 = vector.load %arg14[%c0_42, %c0_43, %c0_44] : memref<18x18x64xf32, #tpu.memory_space<vmem>>, vector<18x18x64xf32>
    tpu.vector_store %arg14[%c0_42, %c0_43, %c0_44], %37 {strides = array<i32>} : memref<18x18x64xf32, #tpu.memory_space<vmem>>, vector<18x18x64xf32>,
    %39 = vector.shape_cast %36 : vector<256x64xf32> to vector<16x16x64xf32>
    %c1_45 = arith.constant 1 : index
    %c1_46 = arith.constant 1 : index
    %c0_47 = arith.constant 0 : index
    %40 = vector.load %arg14[%c1_45, %c1_46, %c0_47] : memref<18x18x64xf32, #tpu.memory_space<vmem>>, vector<16x16x64xf32>
    tpu.vector_store %arg14[%c1_45, %c1_46, %c0_47], %39 {strides = array<i32>} : memref<18x18x64xf32, #tpu.memory_space<vmem>>, vector<16x16x64xf32>,
    %c0_48 = arith.constant 0 : index
    %c0_49 = arith.constant 0 : index
    %c0_50 = arith.constant 0 : index
    %41 = vector.load %arg14[%c0_48, %c0_49, %c0_50] : memref<18x18x64xf32, #tpu.memory_space<vmem>>, vector<18x18x64xf32>
    %42 = vector.extract_strided_slice %41 {offsets = [0, 0, 0], sizes = [16, 16, 64], strides = [1, 1, 1]} : vector<18x18x64xf32> to vector<16x16x64xf32>
    %c0_51 = arith.constant 0 : index
    %c0_52 = arith.constant 0 : index
    %c0_53 = arith.constant 0 : index
    %43 = vector.load %arg15[%c0_51, %c0_52, %c0_53] : memref<16x16x576xf32, #tpu.memory_space<vmem>>, vector<16x16x64xf32>
    tpu.vector_store %arg15[%c0_51, %c0_52, %c0_53], %42 {strides = array<i32>} : memref<16x16x576xf32, #tpu.memory_space<vmem>>, vector<16x16x64xf32>,
    %44 = vector.extract_strided_slice %41 {offsets = [0, 1, 0], sizes = [16, 16, 64], strides = [1, 1, 1]} : vector<18x18x64xf32> to vector<16x16x64xf32>
    %c0_54 = arith.constant 0 : index
    %c0_55 = arith.constant 0 : index
    %c64_56 = arith.constant 64 : index
    %45 = vector.load %arg15[%c0_54, %c0_55, %c64_56] : memref<16x16x576xf32, #tpu.memory_space<vmem>>, vector<16x16x64xf32>
    tpu.vector_store %arg15[%c0_54, %c0_55, %c64_56], %44 {strides = array<i32>} : memref<16x16x576xf32, #tpu.memory_space<vmem>>, vector<16x16x64xf32>,
    %46 = vector.extract_strided_slice %41 {offsets = [0, 2, 0], sizes = [16, 16, 64], strides = [1, 1, 1]} : vector<18x18x64xf32> to vector<16x16x64xf32>
    %c0_57 = arith.constant 0 : index
    %c0_58 = arith.constant 0 : index
    %c128 = arith.constant 128 : index
    %47 = vector.load %arg15[%c0_57, %c0_58, %c128] : memref<16x16x576xf32, #tpu.memory_space<vmem>>, vector<16x16x64xf32>
    tpu.vector_store %arg15[%c0_57, %c0_58, %c128], %46 {strides = array<i32>} : memref<16x16x576xf32, #tpu.memory_space<vmem>>, vector<16x16x64xf32>,
    %48 = vector.extract_strided_slice %41 {offsets = [1, 0, 0], sizes = [16, 16, 64], strides = [1, 1, 1]} : vector<18x18x64xf32> to vector<16x16x64xf32>
    %c0_59 = arith.constant 0 : index
    %c0_60 = arith.constant 0 : index
    %c192 = arith.constant 192 : index
    %49 = vector.load %arg15[%c0_59, %c0_60, %c192] : memref<16x16x576xf32, #tpu.memory_space<vmem>>, vector<16x16x64xf32>
    tpu.vector_store %arg15[%c0_59, %c0_60, %c192], %48 {strides = array<i32>} : memref<16x16x576xf32, #tpu.memory_space<vmem>>, vector<16x16x64xf32>,
    %50 = vector.extract_strided_slice %41 {offsets = [1, 1, 0], sizes = [16, 16, 64], strides = [1, 1, 1]} : vector<18x18x64xf32> to vector<16x16x64xf32>
    %c0_61 = arith.constant 0 : index
    %c0_62 = arith.constant 0 : index
    %c256 = arith.constant 256 : index
    %51 = vector.load %arg15[%c0_61, %c0_62, %c256] : memref<16x16x576xf32, #tpu.memory_space<vmem>>, vector<16x16x64xf32>
    tpu.vector_store %arg15[%c0_61, %c0_62, %c256], %50 {strides = array<i32>} : memref<16x16x576xf32, #tpu.memory_space<vmem>>, vector<16x16x64xf32>,
    %52 = vector.extract_strided_slice %41 {offsets = [1, 2, 0], sizes = [16, 16, 64], strides = [1, 1, 1]} : vector<18x18x64xf32> to vector<16x16x64xf32>
    %c0_63 = arith.constant 0 : index
    %c0_64 = arith.constant 0 : index
    %c320 = arith.constant 320 : index
    %53 = vector.load %arg15[%c0_63, %c0_64, %c320] : memref<16x16x576xf32, #tpu.memory_space<vmem>>, vector<16x16x64xf32>
    tpu.vector_store %arg15[%c0_63, %c0_64, %c320], %52 {strides = array<i32>} : memref<16x16x576xf32, #tpu.memory_space<vmem>>, vector<16x16x64xf32>,
    %54 = vector.extract_strided_slice %41 {offsets = [2, 0, 0], sizes = [16, 16, 64], strides = [1, 1, 1]} : vector<18x18x64xf32> to vector<16x16x64xf32>
    %c0_65 = arith.constant 0 : index
    %c0_66 = arith.constant 0 : index
    %c384 = arith.constant 384 : index
    %55 = vector.load %arg15[%c0_65, %c0_66, %c384] : memref<16x16x576xf32, #tpu.memory_space<vmem>>, vector<16x16x64xf32>
    tpu.vector_store %arg15[%c0_65, %c0_66, %c384], %54 {strides = array<i32>} : memref<16x16x576xf32, #tpu.memory_space<vmem>>, vector<16x16x64xf32>,
    %56 = vector.extract_strided_slice %41 {offsets = [2, 1, 0], sizes = [16, 16, 64], strides = [1, 1, 1]} : vector<18x18x64xf32> to vector<16x16x64xf32>
    %c0_67 = arith.constant 0 : index
    %c0_68 = arith.constant 0 : index
    %c448 = arith.constant 448 : index
    %57 = vector.load %arg15[%c0_67, %c0_68, %c448] : memref<16x16x576xf32, #tpu.memory_space<vmem>>, vector<16x16x64xf32>
    tpu.vector_store %arg15[%c0_67, %c0_68, %c448], %56 {strides = array<i32>} : memref<16x16x576xf32, #tpu.memory_space<vmem>>, vector<16x16x64xf32>,
    %58 = vector.extract_strided_slice %41 {offsets = [2, 2, 0], sizes = [16, 16, 64], strides = [1, 1, 1]} : vector<18x18x64xf32> to vector<16x16x64xf32>
    %c0_69 = arith.constant 0 : index
    %c0_70 = arith.constant 0 : index
    %c512 = arith.constant 512 : index
    %59 = vector.load %arg15[%c0_69, %c0_70, %c512] : memref<16x16x576xf32, #tpu.memory_space<vmem>>, vector<16x16x64xf32>
    tpu.vector_store %arg15[%c0_69, %c0_70, %c512], %58 {strides = array<i32>} : memref<16x16x576xf32, #tpu.memory_space<vmem>>, vector<16x16x64xf32>,
    %c0_71 = arith.constant 0 : index
    %c0_72 = arith.constant 0 : index
    %c0_73 = arith.constant 0 : index
    %60 = vector.load %arg15[%c0_71, %c0_72, %c0_73] : memref<16x16x576xf32, #tpu.memory_space<vmem>>, vector<16x16x576xf32>
    %61 = vector.shape_cast %60 : vector<16x16x576xf32> to vector<256x576xf32>
    %c0_74 = arith.constant 0 : index
    %c0_75 = arith.constant 0 : index
    %62 = vector.load %arg4[%c0_74, %c0_75] : memref<576x64xf32, #tpu.memory_space<vmem>>, vector<576x64xf32>
    %cst_76 = arith.constant dense<0.000000e+00> : vector<256x64xf32>
    %63 = tpu.matmul %61, %62, %cst_76 {dimension_numbers = #tpu.dot_dimension_numbers<[1], [0], [0], [1], [0, 0, 1, 1], [], []>} : vector<256x576xf32>, vector<576x64xf32>, vector<256x64xf32> -> vector<256x64xf32>
    %c0_77 = arith.constant 0 : index
    %c0_78 = arith.constant 0 : index
    %64 = vector.load %arg5[%c0_77, %c0_78] : memref<1x64xf32, #tpu.memory_space<vmem>>, vector<1x64xf32>
    %65 = vector.broadcast %64 : vector<1x64xf32> to vector<256x64xf32>
    %66 = arith.addf %63, %65 : vector<256x64xf32>
    %cst_79 = arith.constant 0.000000e+00 : f32
    %67 = vector.broadcast %cst_79 : f32 to vector<256x64xf32>
    %68 = arith.cmpf oge, %66, %67 : vector<256x64xf32>
    %69 = vector.broadcast %0 : f32 to vector<256x64xf32>
    %70 = arith.mulf %69, %66 : vector<256x64xf32>
    %71 = arith.select %68, %66, %70 : vector<256x64xi1>, vector<256x64xf32>
    %72 = vector.shape_cast %71 : vector<256x64xf32> to vector<16x16x64xf32>
    %c1_80 = arith.constant 1 : index
    %c1_81 = arith.constant 1 : index
    %c0_82 = arith.constant 0 : index
    %73 = vector.load %arg14[%c1_80, %c1_81, %c0_82] : memref<18x18x64xf32, #tpu.memory_space<vmem>>, vector<16x16x64xf32>
    tpu.vector_store %arg14[%c1_80, %c1_81, %c0_82], %72 {strides = array<i32>} : memref<18x18x64xf32, #tpu.memory_space<vmem>>, vector<16x16x64xf32>,
    %c0_83 = arith.constant 0 : index
    %c0_84 = arith.constant 0 : index
    %c0_85 = arith.constant 0 : index
    %74 = vector.load %arg14[%c0_83, %c0_84, %c0_85] : memref<18x18x64xf32, #tpu.memory_space<vmem>>, vector<18x18x64xf32>
    %75 = vector.extract_strided_slice %74 {offsets = [0, 0, 0], sizes = [16, 16, 64], strides = [1, 1, 1]} : vector<18x18x64xf32> to vector<16x16x64xf32>
    %c0_86 = arith.constant 0 : index
    %c0_87 = arith.constant 0 : index
    %c0_88 = arith.constant 0 : index
    %76 = vector.load %arg15[%c0_86, %c0_87, %c0_88] : memref<16x16x576xf32, #tpu.memory_space<vmem>>, vector<16x16x64xf32>
    tpu.vector_store %arg15[%c0_86, %c0_87, %c0_88], %75 {strides = array<i32>} : memref<16x16x576xf32, #tpu.memory_space<vmem>>, vector<16x16x64xf32>,
    %77 = vector.extract_strided_slice %74 {offsets = [0, 1, 0], sizes = [16, 16, 64], strides = [1, 1, 1]} : vector<18x18x64xf32> to vector<16x16x64xf32>
    %c0_89 = arith.constant 0 : index
    %c0_90 = arith.constant 0 : index
    %c64_91 = arith.constant 64 : index
    %78 = vector.load %arg15[%c0_89, %c0_90, %c64_91] : memref<16x16x576xf32, #tpu.memory_space<vmem>>, vector<16x16x64xf32>
    tpu.vector_store %arg15[%c0_89, %c0_90, %c64_91], %77 {strides = array<i32>} : memref<16x16x576xf32, #tpu.memory_space<vmem>>, vector<16x16x64xf32>,
    %79 = vector.extract_strided_slice %74 {offsets = [0, 2, 0], sizes = [16, 16, 64], strides = [1, 1, 1]} : vector<18x18x64xf32> to vector<16x16x64xf32>
    %c0_92 = arith.constant 0 : index
    %c0_93 = arith.constant 0 : index
    %c128_94 = arith.constant 128 : index
    %80 = vector.load %arg15[%c0_92, %c0_93, %c128_94] : memref<16x16x576xf32, #tpu.memory_space<vmem>>, vector<16x16x64xf32>
    tpu.vector_store %arg15[%c0_92, %c0_93, %c128_94], %79 {strides = array<i32>} : memref<16x16x576xf32, #tpu.memory_space<vmem>>, vector<16x16x64xf32>,
    %81 = vector.extract_strided_slice %74 {offsets = [1, 0, 0], sizes = [16, 16, 64], strides = [1, 1, 1]} : vector<18x18x64xf32> to vector<16x16x64xf32>
    %c0_95 = arith.constant 0 : index
    %c0_96 = arith.constant 0 : index
    %c192_97 = arith.constant 192 : index
    %82 = vector.load %arg15[%c0_95, %c0_96, %c192_97] : memref<16x16x576xf32, #tpu.memory_space<vmem>>, vector<16x16x64xf32>
    tpu.vector_store %arg15[%c0_95, %c0_96, %c192_97], %81 {strides = array<i32>} : memref<16x16x576xf32, #tpu.memory_space<vmem>>, vector<16x16x64xf32>,
    %83 = vector.extract_strided_slice %74 {offsets = [1, 1, 0], sizes = [16, 16, 64], strides = [1, 1, 1]} : vector<18x18x64xf32> to vector<16x16x64xf32>
    %c0_98 = arith.constant 0 : index
    %c0_99 = arith.constant 0 : index
    %c256_100 = arith.constant 256 : index
    %84 = vector.load %arg15[%c0_98, %c0_99, %c256_100] : memref<16x16x576xf32, #tpu.memory_space<vmem>>, vector<16x16x64xf32>
    tpu.vector_store %arg15[%c0_98, %c0_99, %c256_100], %83 {strides = array<i32>} : memref<16x16x576xf32, #tpu.memory_space<vmem>>, vector<16x16x64xf32>,
    %85 = vector.extract_strided_slice %74 {offsets = [1, 2, 0], sizes = [16, 16, 64], strides = [1, 1, 1]} : vector<18x18x64xf32> to vector<16x16x64xf32>
    %c0_101 = arith.constant 0 : index
    %c0_102 = arith.constant 0 : index
    %c320_103 = arith.constant 320 : index
    %86 = vector.load %arg15[%c0_101, %c0_102, %c320_103] : memref<16x16x576xf32, #tpu.memory_space<vmem>>, vector<16x16x64xf32>
    tpu.vector_store %arg15[%c0_101, %c0_102, %c320_103], %85 {strides = array<i32>} : memref<16x16x576xf32, #tpu.memory_space<vmem>>, vector<16x16x64xf32>,
    %87 = vector.extract_strided_slice %74 {offsets = [2, 0, 0], sizes = [16, 16, 64], strides = [1, 1, 1]} : vector<18x18x64xf32> to vector<16x16x64xf32>
    %c0_104 = arith.constant 0 : index
    %c0_105 = arith.constant 0 : index
    %c384_106 = arith.constant 384 : index
    %88 = vector.load %arg15[%c0_104, %c0_105, %c384_106] : memref<16x16x576xf32, #tpu.memory_space<vmem>>, vector<16x16x64xf32>
    tpu.vector_store %arg15[%c0_104, %c0_105, %c384_106], %87 {strides = array<i32>} : memref<16x16x576xf32, #tpu.memory_space<vmem>>, vector<16x16x64xf32>,
    %89 = vector.extract_strided_slice %74 {offsets = [2, 1, 0], sizes = [16, 16, 64], strides = [1, 1, 1]} : vector<18x18x64xf32> to vector<16x16x64xf32>
    %c0_107 = arith.constant 0 : index
    %c0_108 = arith.constant 0 : index
    %c448_109 = arith.constant 448 : index
    %90 = vector.load %arg15[%c0_107, %c0_108, %c448_109] : memref<16x16x576xf32, #tpu.memory_space<vmem>>, vector<16x16x64xf32>
    tpu.vector_store %arg15[%c0_107, %c0_108, %c448_109], %89 {strides = array<i32>} : memref<16x16x576xf32, #tpu.memory_space<vmem>>, vector<16x16x64xf32>,
    %91 = vector.extract_strided_slice %74 {offsets = [2, 2, 0], sizes = [16, 16, 64], strides = [1, 1, 1]} : vector<18x18x64xf32> to vector<16x16x64xf32>
    %c0_110 = arith.constant 0 : index
    %c0_111 = arith.constant 0 : index
    %c512_112 = arith.constant 512 : index
    %92 = vector.load %arg15[%c0_110, %c0_111, %c512_112] : memref<16x16x576xf32, #tpu.memory_space<vmem>>, vector<16x16x64xf32>
    tpu.vector_store %arg15[%c0_110, %c0_111, %c512_112], %91 {strides = array<i32>} : memref<16x16x576xf32, #tpu.memory_space<vmem>>, vector<16x16x64xf32>,
    %c0_113 = arith.constant 0 : index
    %c0_114 = arith.constant 0 : index
    %c0_115 = arith.constant 0 : index
    %93 = vector.load %arg15[%c0_113, %c0_114, %c0_115] : memref<16x16x576xf32, #tpu.memory_space<vmem>>, vector<16x16x576xf32>
    %94 = vector.shape_cast %93 : vector<16x16x576xf32> to vector<256x576xf32>
    %c0_116 = arith.constant 0 : index
    %c0_117 = arith.constant 0 : index
    %95 = vector.load %arg6[%c0_116, %c0_117] : memref<576x64xf32, #tpu.memory_space<vmem>>, vector<576x64xf32>
    %cst_118 = arith.constant dense<0.000000e+00> : vector<256x64xf32>
    %96 = tpu.matmul %94, %95, %cst_118 {dimension_numbers = #tpu.dot_dimension_numbers<[1], [0], [0], [1], [0, 0, 1, 1], [], []>} : vector<256x576xf32>, vector<576x64xf32>, vector<256x64xf32> -> vector<256x64xf32>
    %c0_119 = arith.constant 0 : index
    %c0_120 = arith.constant 0 : index
    %97 = vector.load %arg7[%c0_119, %c0_120] : memref<1x64xf32, #tpu.memory_space<vmem>>, vector<1x64xf32>
    %98 = vector.broadcast %97 : vector<1x64xf32> to vector<256x64xf32>
    %99 = arith.addf %96, %98 : vector<256x64xf32>
    %cst_121 = arith.constant 0.000000e+00 : f32
    %100 = vector.broadcast %cst_121 : f32 to vector<256x64xf32>
    %101 = arith.cmpf oge, %99, %100 : vector<256x64xf32>
    %102 = vector.broadcast %0 : f32 to vector<256x64xf32>
    %103 = arith.mulf %102, %99 : vector<256x64xf32>
    %104 = arith.select %101, %99, %103 : vector<256x64xi1>, vector<256x64xf32>
    %105 = vector.shape_cast %104 : vector<256x64xf32> to vector<16x16x64xf32>
    %c1_122 = arith.constant 1 : index
    %c1_123 = arith.constant 1 : index
    %c0_124 = arith.constant 0 : index
    %106 = vector.load %arg14[%c1_122, %c1_123, %c0_124] : memref<18x18x64xf32, #tpu.memory_space<vmem>>, vector<16x16x64xf32>
    tpu.vector_store %arg14[%c1_122, %c1_123, %c0_124], %105 {strides = array<i32>} : memref<18x18x64xf32, #tpu.memory_space<vmem>>, vector<16x16x64xf32>,
    %c0_125 = arith.constant 0 : index
    %c0_126 = arith.constant 0 : index
    %c0_127 = arith.constant 0 : index
    %107 = vector.load %arg14[%c0_125, %c0_126, %c0_127] : memref<18x18x64xf32, #tpu.memory_space<vmem>>, vector<18x18x64xf32>
    %108 = vector.extract_strided_slice %107 {offsets = [0, 0, 0], sizes = [16, 16, 64], strides = [1, 1, 1]} : vector<18x18x64xf32> to vector<16x16x64xf32>
    %c0_128 = arith.constant 0 : index
    %c0_129 = arith.constant 0 : index
    %c0_130 = arith.constant 0 : index
    %109 = vector.load %arg15[%c0_128, %c0_129, %c0_130] : memref<16x16x576xf32, #tpu.memory_space<vmem>>, vector<16x16x64xf32>
    tpu.vector_store %arg15[%c0_128, %c0_129, %c0_130], %108 {strides = array<i32>} : memref<16x16x576xf32, #tpu.memory_space<vmem>>, vector<16x16x64xf32>,
    %110 = vector.extract_strided_slice %107 {offsets = [0, 1, 0], sizes = [16, 16, 64], strides = [1, 1, 1]} : vector<18x18x64xf32> to vector<16x16x64xf32>
    %c0_131 = arith.constant 0 : index
    %c0_132 = arith.constant 0 : index
    %c64_133 = arith.constant 64 : index
    %111 = vector.load %arg15[%c0_131, %c0_132, %c64_133] : memref<16x16x576xf32, #tpu.memory_space<vmem>>, vector<16x16x64xf32>
    tpu.vector_store %arg15[%c0_131, %c0_132, %c64_133], %110 {strides = array<i32>} : memref<16x16x576xf32, #tpu.memory_space<vmem>>, vector<16x16x64xf32>,
    %112 = vector.extract_strided_slice %107 {offsets = [0, 2, 0], sizes = [16, 16, 64], strides = [1, 1, 1]} : vector<18x18x64xf32> to vector<16x16x64xf32>
    %c0_134 = arith.constant 0 : index
    %c0_135 = arith.constant 0 : index
    %c128_136 = arith.constant 128 : index
    %113 = vector.load %arg15[%c0_134, %c0_135, %c128_136] : memref<16x16x576xf32, #tpu.memory_space<vmem>>, vector<16x16x64xf32>
    tpu.vector_store %arg15[%c0_134, %c0_135, %c128_136], %112 {strides = array<i32>} : memref<16x16x576xf32, #tpu.memory_space<vmem>>, vector<16x16x64xf32>,
    %114 = vector.extract_strided_slice %107 {offsets = [1, 0, 0], sizes = [16, 16, 64], strides = [1, 1, 1]} : vector<18x18x64xf32> to vector<16x16x64xf32>
    %c0_137 = arith.constant 0 : index
    %c0_138 = arith.constant 0 : index
    %c192_139 = arith.constant 192 : index
    %115 = vector.load %arg15[%c0_137, %c0_138, %c192_139] : memref<16x16x576xf32, #tpu.memory_space<vmem>>, vector<16x16x64xf32>
    tpu.vector_store %arg15[%c0_137, %c0_138, %c192_139], %114 {strides = array<i32>} : memref<16x16x576xf32, #tpu.memory_space<vmem>>, vector<16x16x64xf32>,
    %116 = vector.extract_strided_slice %107 {offsets = [1, 1, 0], sizes = [16, 16, 64], strides = [1, 1, 1]} : vector<18x18x64xf32> to vector<16x16x64xf32>
    %c0_140 = arith.constant 0 : index
    %c0_141 = arith.constant 0 : index
    %c256_142 = arith.constant 256 : index
    %117 = vector.load %arg15[%c0_140, %c0_141, %c256_142] : memref<16x16x576xf32, #tpu.memory_space<vmem>>, vector<16x16x64xf32>
    tpu.vector_store %arg15[%c0_140, %c0_141, %c256_142], %116 {strides = array<i32>} : memref<16x16x576xf32, #tpu.memory_space<vmem>>, vector<16x16x64xf32>,
    %118 = vector.extract_strided_slice %107 {offsets = [1, 2, 0], sizes = [16, 16, 64], strides = [1, 1, 1]} : vector<18x18x64xf32> to vector<16x16x64xf32>
    %c0_143 = arith.constant 0 : index
    %c0_144 = arith.constant 0 : index
    %c320_145 = arith.constant 320 : index
    %119 = vector.load %arg15[%c0_143, %c0_144, %c320_145] : memref<16x16x576xf32, #tpu.memory_space<vmem>>, vector<16x16x64xf32>
    tpu.vector_store %arg15[%c0_143, %c0_144, %c320_145], %118 {strides = array<i32>} : memref<16x16x576xf32, #tpu.memory_space<vmem>>, vector<16x16x64xf32>,
    %120 = vector.extract_strided_slice %107 {offsets = [2, 0, 0], sizes = [16, 16, 64], strides = [1, 1, 1]} : vector<18x18x64xf32> to vector<16x16x64xf32>
    %c0_146 = arith.constant 0 : index
    %c0_147 = arith.constant 0 : index
    %c384_148 = arith.constant 384 : index
    %121 = vector.load %arg15[%c0_146, %c0_147, %c384_148] : memref<16x16x576xf32, #tpu.memory_space<vmem>>, vector<16x16x64xf32>
    tpu.vector_store %arg15[%c0_146, %c0_147, %c384_148], %120 {strides = array<i32>} : memref<16x16x576xf32, #tpu.memory_space<vmem>>, vector<16x16x64xf32>,
    %122 = vector.extract_strided_slice %107 {offsets = [2, 1, 0], sizes = [16, 16, 64], strides = [1, 1, 1]} : vector<18x18x64xf32> to vector<16x16x64xf32>
    %c0_149 = arith.constant 0 : index
    %c0_150 = arith.constant 0 : index
    %c448_151 = arith.constant 448 : index
    %123 = vector.load %arg15[%c0_149, %c0_150, %c448_151] : memref<16x16x576xf32, #tpu.memory_space<vmem>>, vector<16x16x64xf32>
    tpu.vector_store %arg15[%c0_149, %c0_150, %c448_151], %122 {strides = array<i32>} : memref<16x16x576xf32, #tpu.memory_space<vmem>>, vector<16x16x64xf32>,
    %124 = vector.extract_strided_slice %107 {offsets = [2, 2, 0], sizes = [16, 16, 64], strides = [1, 1, 1]} : vector<18x18x64xf32> to vector<16x16x64xf32>
    %c0_152 = arith.constant 0 : index
    %c0_153 = arith.constant 0 : index
    %c512_154 = arith.constant 512 : index
    %125 = vector.load %arg15[%c0_152, %c0_153, %c512_154] : memref<16x16x576xf32, #tpu.memory_space<vmem>>, vector<16x16x64xf32>
    tpu.vector_store %arg15[%c0_152, %c0_153, %c512_154], %124 {strides = array<i32>} : memref<16x16x576xf32, #tpu.memory_space<vmem>>, vector<16x16x64xf32>,
    %c0_155 = arith.constant 0 : index
    %c0_156 = arith.constant 0 : index
    %c0_157 = arith.constant 0 : index
    %126 = vector.load %arg15[%c0_155, %c0_156, %c0_157] : memref<16x16x576xf32, #tpu.memory_space<vmem>>, vector<16x16x576xf32>
    %127 = vector.shape_cast %126 : vector<16x16x576xf32> to vector<256x576xf32>
    %c0_158 = arith.constant 0 : index
    %c0_159 = arith.constant 0 : index
    %128 = vector.load %arg8[%c0_158, %c0_159] : memref<576x128xf32, #tpu.memory_space<vmem>>, vector<576x128xf32>
    %cst_160 = arith.constant dense<0.000000e+00> : vector<256x128xf32>
    %129 = tpu.matmul %127, %128, %cst_160 {dimension_numbers = #tpu.dot_dimension_numbers<[1], [0], [0], [1], [0, 0, 1, 1], [], []>} : vector<256x576xf32>, vector<576x128xf32>, vector<256x128xf32> -> vector<256x128xf32>
    %c0_161 = arith.constant 0 : index
    %c0_162 = arith.constant 0 : index
    %130 = vector.load %arg9[%c0_161, %c0_162] : memref<1x128xf32, #tpu.memory_space<vmem>>, vector<1x128xf32>
    %131 = vector.broadcast %130 : vector<1x128xf32> to vector<256x128xf32>
    %132 = arith.addf %129, %131 : vector<256x128xf32>
    %133 = vector.shape_cast %132 : vector<256x128xf32> to vector<1x16x16x128xf32>
    %c0_163 = arith.constant 0 : index
    %c0_164 = arith.constant 0 : index
    %c0_165 = arith.constant 0 : index
    %c0_166 = arith.constant 0 : index
    %134 = vector.load %arg11[%c0_163, %c0_164, %c0_165, %c0_166] : memref<1x16x16x128xf32, #tpu.memory_space<vmem>>, vector<1x16x16x128xf32>
    tpu.vector_store %arg11[%c0_163, %c0_164, %c0_165, %c0_166], %133 {strides = array<i32>} : memref<1x16x16x128xf32, #tpu.memory_space<vmem>>, vector<1x16x16x128xf32>,
    return
  }
  func.func @transform_0(%arg0: i32) -> (i32, i32, i32, i32) {
    %c0_i32 = arith.constant 0 : i32
    %c0_i32_0 = arith.constant 0 : i32
    %c0_i32_1 = arith.constant 0 : i32
    %c0_i32_2 = arith.constant 0 : i32
    return %arg0, %c0_i32, %c0_i32_0, %c0_i32_1 : i32, i32, i32, i32
  }
  func.func @transform_1(%arg0: i32) -> (i32, i32) {
    %c0_i32 = arith.constant 0 : i32
    %c0_i32_0 = arith.constant 0 : i32
    %c0_i32_1 = arith.constant 0 : i32
    return %c0_i32, %c0_i32_0 : i32, i32
  }
  func.func @transform_2(%arg0: i32) -> (i32, i32) {
    %c0_i32 = arith.constant 0 : i32
    %c0_i32_0 = arith.constant 0 : i32
    %c0_i32_1 = arith.constant 0 : i32
    return %c0_i32, %c0_i32_0 : i32, i32
  }
  func.func @transform_3(%arg0: i32) -> (i32, i32) {
    %c0_i32 = arith.constant 0 : i32
    %c0_i32_0 = arith.constant 0 : i32
    %c0_i32_1 = arith.constant 0 : i32
    return %c0_i32, %c0_i32_0 : i32, i32
  }
  func.func @transform_4(%arg0: i32) -> (i32, i32) {
    %c0_i32 = arith.constant 0 : i32
    %c0_i32_0 = arith.constant 0 : i32
    %c0_i32_1 = arith.constant 0 : i32
    return %c0_i32, %c0_i32_0 : i32, i32
  }
  func.func @transform_5(%arg0: i32) -> (i32, i32) {
    %c0_i32 = arith.constant 0 : i32
    %c0_i32_0 = arith.constant 0 : i32
    %c0_i32_1 = arith.constant 0 : i32
    return %c0_i32, %c0_i32_0 : i32, i32
  }
  func.func @transform_6(%arg0: i32) -> (i32, i32) {
    %c0_i32 = arith.constant 0 : i32
    %c0_i32_0 = arith.constant 0 : i32
    %c0_i32_1 = arith.constant 0 : i32
    return %c0_i32, %c0_i32_0 : i32, i32
  }
  func.func @transform_7(%arg0: i32) -> (i32, i32) {
    %c0_i32 = arith.constant 0 : i32
    %c0_i32_0 = arith.constant 0 : i32
    %c0_i32_1 = arith.constant 0 : i32
    return %c0_i32, %c0_i32_0 : i32, i32
  }
  func.func @transform_8(%arg0: i32) -> (i32, i32) {
    %c0_i32 = arith.constant 0 : i32
    %c0_i32_0 = arith.constant 0 : i32
    %c0_i32_1 = arith.constant 0 : i32
    return %c0_i32, %c0_i32_0 : i32, i32
  }
  func.func @transform_9(%arg0: i32) -> (i32, i32) {
    %c0_i32 = arith.constant 0 : i32
    %c0_i32_0 = arith.constant 0 : i32
    %c0_i32_1 = arith.constant 0 : i32
    return %c0_i32, %c0_i32_0 : i32, i32
  }
  func.func @transform_10(%arg0: i32) -> (i32, i32, i32, i32) {
    %c0_i32 = arith.constant 0 : i32
    %c0_i32_0 = arith.constant 0 : i32
    %c0_i32_1 = arith.constant 0 : i32
    %c0_i32_2 = arith.constant 0 : i32
    return %arg0, %c0_i32, %c0_i32_0, %c0_i32_1 : i32, i32, i32, i32
  }
}

</mosaic_0001>

<llo_original>
// kernel: tpu_custom_call.1
$region0: #{tpu_custom_call.1}
  #allocation0 [shape = 'u32[]', space=smem, size = 0x4, offset = 0x4, fixed_abs, tag = 'smem constant byte address 0x4 - core index']
  #allocation1 [shape = 'u32[144,128]{1,0:T(1,128)}', space=vmem, size = 0x12000, scoped, tag = 'internal scratch']
  #allocation2 [shape = 'f32[18,18,8]{2,1,0:T(8,128)}', space=vmem, size = 0x36000, scoped, tag = 'scratch operand']
  #allocation3 [shape = 'f32[16,16,72]{2,1,0:T(8,128)}', space=vmem, size = 0x20000, scoped, tag = 'scratch operand']
  #allocation4 [shape = 'f32[18,18,64]{2,1,0:T(8,128)}', space=vmem, size = 0x36000, scoped, tag = 'scratch operand']
  #allocation5 [shape = 'f32[16,16,576]{2,1,0:T(8,128)}', space=vmem, size = 0xa0000, scoped, tag = 'scratch operand']
  #allocation6 [shape = 'f32[1,1]{1,0:T(1,128)S(6)}', space=smem, size = 0x200, scoped, tag = 'scoped memory for tpu_custom_call.1']
  %s0 = inlined_call_operand.vmem [shape: f32[2,16,16,8], index: 0, kind: input, shape index: {}]
  %s1 = inlined_call_operand.vmem [shape: f32[72,64], index: 1, kind: input, shape index: {}]
  %s2 = inlined_call_operand.vmem [shape: f32[1,64], index: 2, kind: input, shape index: {}]
  %s3 = inlined_call_operand.vmem [shape: f32[576,64], index: 3, kind: input, shape index: {}]
  %s4 = inlined_call_operand.vmem [shape: f32[1,64], index: 4, kind: input, shape index: {}]
  %s5 = inlined_call_operand.vmem [shape: f32[576,64], index: 5, kind: input, shape index: {}]
  %s6 = inlined_call_operand.vmem [shape: f32[1,64], index: 6, kind: input, shape index: {}]
  %s7 = inlined_call_operand.vmem [shape: f32[576,128], index: 7, kind: input, shape index: {}]
  %s8 = inlined_call_operand.vmem [shape: f32[1,128], index: 8, kind: input, shape index: {}]
  %s9 = inlined_call_operand.<no memory space> [shape: f32[1,1], index: 9, kind: input, shape index: {}]
  %s10 = inlined_call_operand.hbm [shape: f32[2,16,16,128], index: 10, kind: output, shape index: {}]
  %s11 = sld [smem:[#allocation0]]
  $region73: #{tpu_custom_call.1} parent=0
    _
  %s13 = ssub.s32 1, %s11
  %s14 = scalar_select 0, %s13, %s11
  %15 = sst [smem:[#allocation6]] %s9
  $region1: #{tpu_custom_call.1} parent=0
    #allocation7 [shape = 'u8[262144]{0}', space=vmem, size = 0x40000, scoped, tag = 'output window, operand 0']
    #allocation8 [shape = 's32[2]{0}', space=sflag, size = 0x8, scoped, tag = 'scoped memory for tpu_custom_call.1']
    %16 = vsyncpa [#allocation8], 0
    %s17 = scalar_lea.sflag [#allocation8], 1
    %18 = vsyncpa %s17, 0
    loop: start=0, step=1, limit=4
    $region2: #{tpu_custom_call.1} parent=1 // loop_pre_header
      _
    $region3: #{tpu_custom_call.1} parent=1 // loop_header
      %s20 = sphi 0, %s24
      %p21 = scmp.ge.s32.totalorder %s20, 4
      %s30 = sphi 0, %s32
      %s33 = sphi 0, %s30
      %s34 = sphi 0, %s33
      %s50 = sphi 0, %s34
      %s54 = sphi 0, %s54
      %s56 = sphi 0, %s54
      %s57 = sphi 0, %s56
      %s71 = sphi 0, %s57
      %s75 = sphi 0, %s75
      %s77 = sphi 0, %s75
      %s78 = sphi 0, %s77
      %s92 = sphi 0, %s78
      %s96 = sphi 0, %s96
      %s98 = sphi 0, %s96
      %s99 = sphi 0, %s98
      %s113 = sphi 0, %s99
      %s117 = sphi 0, %s117
      %s119 = sphi 0, %s117
      %s120 = sphi 0, %s119
      %s134 = sphi 0, %s120
      %s138 = sphi 0, %s138
      %s140 = sphi 0, %s138
      %s141 = sphi 0, %s140
      %s155 = sphi 0, %s141
      %s159 = sphi 0, %s159
      %s161 = sphi 0, %s159
      %s162 = sphi 0, %s161
      %s176 = sphi 0, %s162
      %s180 = sphi 0, %s180
      %s182 = sphi 0, %s180
      %s183 = sphi 0, %s182
      %s197 = sphi 0, %s183
      %s201 = sphi 0, %s201
      %s203 = sphi 0, %s201
      %s204 = sphi 0, %s203
      %s218 = sphi 0, %s204
      %s222 = sphi 0, %s222
      %s224 = sphi 0, %s222
      %s225 = sphi 0, %s224
      %s239 = sphi 0, %s225
      %s245 = sphi 0, %s247
      %s248 = sphi 0, %s245
      %s249 = sphi 0, %s248
      %s265 = sphi 0, %s249
    $region4: #{tpu_custom_call.1} parent=1 // loop_header_branch
      %23 = sbr.rel (%p21) target = $region8
    $region5: #{tpu_custom_call.1} parent=1 // loop_body
      %s25 = ssub.s32 %s20, 1
      %s26 = ssub.s32 %s20, 2
      %s27 = sadd.s32 %s20, 1
      %s28 = ssub.s32 %s20, %s27
      %p29 = scmp.eq.s32.totalorder %s28, 0
      %s31 = sadd.s32 %s30, 1
      %s32 = scalar_select %p29, %s30, %s31
      %p35 = pneg %p29
      %p36 = scmp.eq.s32.totalorder %s20, 1
      %p37 = por %p35, %p36
      %p38 = scmp.ne.s32.totalorder %s30, %s33
      %p39 = scmp.eq.s32.totalorder %s20, 0
      %p40 = por %p38, %p39
      %p41 = scmp.ne.s32.totalorder %s30, %s33
      %p42 = scmp.eq.s32.totalorder %s25, 1
      %p43 = por %p41, %p42
      %p44 = scmp.ne.s32.totalorder %s33, %s34
      %p45 = scmp.eq.s32.totalorder %s25, 0
      %p46 = por %p44, %p45
      %p47 = scmp.ne.s32.totalorder %s33, %s34
      %p48 = scmp.eq.s32.totalorder %s26, 1
      %p49 = por %p47, %p48
      %p51 = scmp.ne.s32.totalorder %s34, %s50
      %p52 = scmp.eq.s32.totalorder %s26, 0
      %p53 = por %p51, %p52
      %s55 = sadd.s32 %s54, 1
      %p58 = scmp.eq.s32.totalorder %s20, 1
      %p59 = scmp.ne.s32.totalorder %s54, %s56
      %p60 = scmp.eq.s32.totalorder %s20, 0
      %p61 = por %p59, %p60
      %p62 = scmp.ne.s32.totalorder %s54, %s56
      %p63 = scmp.eq.s32.totalorder %s25, 1
      %p64 = por %p62, %p63
      %p65 = scmp.ne.s32.totalorder %s56, %s57
      %p66 = scmp.eq.s32.totalorder %s25, 0
      %p67 = por %p65, %p66
      %p68 = scmp.ne.s32.totalorder %s56, %s57
      %p69 = scmp.eq.s32.totalorder %s26, 1
      %p70 = por %p68, %p69
      %p72 = scmp.ne.s32.totalorder %s57, %s71
      %p73 = scmp.eq.s32.totalorder %s26, 0
      %p74 = por %p72, %p73
      %s76 = sadd.s32 %s75, 1
      %p79 = scmp.eq.s32.totalorder %s20, 1
      %p80 = scmp.ne.s32.totalorder %s75, %s77
      %p81 = scmp.eq.s32.totalorder %s20, 0
      %p82 = por %p80, %p81
      %p83 = scmp.ne.s32.totalorder %s75, %s77
      %p84 = scmp.eq.s32.totalorder %s25, 1
      %p85 = por %p83, %p84
      %p86 = scmp.ne.s32.totalorder %s77, %s78
      %p87 = scmp.eq.s32.totalorder %s25, 0
      %p88 = por %p86, %p87
      %p89 = scmp.ne.s32.totalorder %s77, %s78
      %p90 = scmp.eq.s32.totalorder %s26, 1
      %p91 = por %p89, %p90
      %p93 = scmp.ne.s32.totalorder %s78, %s92
      %p94 = scmp.eq.s32.totalorder %s26, 0
      %p95 = por %p93, %p94
      %s97 = sadd.s32 %s96, 1
      %p100 = scmp.eq.s32.totalorder %s20, 1
      %p101 = scmp.ne.s32.totalorder %s96, %s98
      %p102 = scmp.eq.s32.totalorder %s20, 0
      %p103 = por %p101, %p102
      %p104 = scmp.ne.s32.totalorder %s96, %s98
      %p105 = scmp.eq.s32.totalorder %s25, 1
      %p106 = por %p104, %p105
      %p107 = scmp.ne.s32.totalorder %s98, %s99
      %p108 = scmp.eq.s32.totalorder %s25, 0
      %p109 = por %p107, %p108
      %p110 = scmp.ne.s32.totalorder %s98, %s99
      %p111 = scmp.eq.s32.totalorder %s26, 1
      %p112 = por %p110, %p111
      %p114 = scmp.ne.s32.totalorder %s99, %s113
      %p115 = scmp.eq.s32.totalorder %s26, 0
      %p116 = por %p114, %p115
      %s118 = sadd.s32 %s117, 1
      %p121 = scmp.eq.s32.totalorder %s20, 1
      %p122 = scmp.ne.s32.totalorder %s117, %s119
      %p123 = scmp.eq.s32.totalorder %s20, 0
      %p124 = por %p122, %p123
      %p125 = scmp.ne.s32.totalorder %s117, %s119
      %p126 = scmp.eq.s32.totalorder %s25, 1
      %p127 = por %p125, %p126
      %p128 = scmp.ne.s32.totalorder %s119, %s120
      %p129 = scmp.eq.s32.totalorder %s25, 0
      %p130 = por %p128, %p129
      %p131 = scmp.ne.s32.totalorder %s119, %s120
      %p132 = scmp.eq.s32.totalorder %s26, 1
      %p133 = por %p131, %p132
      %p135 = scmp.ne.s32.totalorder %s120, %s134
      %p136 = scmp.eq.s32.totalorder %s26, 0
      %p137 = por %p135, %p136
      %s139 = sadd.s32 %s138, 1
      %p142 = scmp.eq.s32.totalorder %s20, 1
      %p143 = scmp.ne.s32.totalorder %s138, %s140
      %p144 = scmp.eq.s32.totalorder %s20, 0
      %p145 = por %p143, %p144
      %p146 = scmp.ne.s32.totalorder %s138, %s140
      %p147 = scmp.eq.s32.totalorder %s25, 1
      %p148 = por %p146, %p147
      %p149 = scmp.ne.s32.totalorder %s140, %s141
      %p150 = scmp.eq.s32.totalorder %s25, 0
      %p151 = por %p149, %p150
      %p152 = scmp.ne.s32.totalorder %s140, %s141
      %p153 = scmp.eq.s32.totalorder %s26, 1
      %p154 = por %p152, %p153
      %p156 = scmp.ne.s32.totalorder %s141, %s155
      %p157 = scmp.eq.s32.totalorder %s26, 0
      %p158 = por %p156, %p157
      %s160 = sadd.s32 %s159, 1
      %p163 = scmp.eq.s32.totalorder %s20, 1
      %p164 = scmp.ne.s32.totalorder %s159, %s161
      %p165 = scmp.eq.s32.totalorder %s20, 0
      %p166 = por %p164, %p165
      %p167 = scmp.ne.s32.totalorder %s159, %s161
      %p168 = scmp.eq.s32.totalorder %s25, 1
      %p169 = por %p167, %p168
      %p170 = scmp.ne.s32.totalorder %s161, %s162
      %p171 = scmp.eq.s32.totalorder %s25, 0
      %p172 = por %p170, %p171
      %p173 = scmp.ne.s32.totalorder %s161, %s162
      %p174 = scmp.eq.s32.totalorder %s26, 1
      %p175 = por %p173, %p174
      %p177 = scmp.ne.s32.totalorder %s162, %s176
      %p178 = scmp.eq.s32.totalorder %s26, 0
      %p179 = por %p177, %p178
      %s181 = sadd.s32 %s180, 1
      %p184 = scmp.eq.s32.totalorder %s20, 1
      %p185 = scmp.ne.s32.totalorder %s180, %s182
      %p186 = scmp.eq.s32.totalorder %s20, 0
      %p187 = por %p185, %p186
      %p188 = scmp.ne.s32.totalorder %s180, %s182
      %p189 = scmp.eq.s32.totalorder %s25, 1
      %p190 = por %p188, %p189
      %p191 = scmp.ne.s32.totalorder %s182, %s183
      %p192 = scmp.eq.s32.totalorder %s25, 0
      %p193 = por %p191, %p192
      %p194 = scmp.ne.s32.totalorder %s182, %s183
      %p195 = scmp.eq.s32.totalorder %s26, 1
      %p196 = por %p194, %p195
      %p198 = scmp.ne.s32.totalorder %s183, %s197
      %p199 = scmp.eq.s32.totalorder %s26, 0
      %p200 = por %p198, %p199
      %s202 = sadd.s32 %s201, 1
      %p205 = scmp.eq.s32.totalorder %s20, 1
      %p206 = scmp.ne.s32.totalorder %s201, %s203
      %p207 = scmp.eq.s32.totalorder %s20, 0
      %p208 = por %p206, %p207
      %p209 = scmp.ne.s32.totalorder %s201, %s203
      %p210 = scmp.eq.s32.totalorder %s25, 1
      %p211 = por %p209, %p210
      %p212 = scmp.ne.s32.totalorder %s203, %s204
      %p213 = scmp.eq.s32.totalorder %s25, 0
      %p214 = por %p212, %p213
      %p215 = scmp.ne.s32.totalorder %s203, %s204
      %p216 = scmp.eq.s32.totalorder %s26, 1
      %p217 = por %p215, %p216
      %p219 = scmp.ne.s32.totalorder %s204, %s218
      %p220 = scmp.eq.s32.totalorder %s26, 0
      %p221 = por %p219, %p220
      %s223 = sadd.s32 %s222, 1
      %p226 = scmp.eq.s32.totalorder %s20, 1
      %p227 = scmp.ne.s32.totalorder %s222, %s224
      %p228 = scmp.eq.s32.totalorder %s20, 0
      %p229 = por %p227, %p228
      %p230 = scmp.ne.s32.totalorder %s222, %s224
      %p231 = scmp.eq.s32.totalorder %s25, 1
      %p232 = por %p230, %p231
      %p233 = scmp.ne.s32.totalorder %s224, %s225
      %p234 = scmp.eq.s32.totalorder %s25, 0
      %p235 = por %p233, %p234
      %p236 = scmp.ne.s32.totalorder %s224, %s225
      %p237 = scmp.eq.s32.totalorder %s26, 1
      %p238 = por %p236, %p237
      %p240 = scmp.ne.s32.totalorder %s225, %s239
      %p241 = scmp.eq.s32.totalorder %s26, 0
      %p242 = por %p240, %p241
      %s243 = ssub.s32 %s20, %s27
      %p244 = scmp.eq.s32.totalorder %s243, 0
      %s246 = sadd.s32 %s245, 1
      %s247 = scalar_select %p244, %s245, %s246
      %p250 = pneg %p244
      %p251 = scmp.eq.s32.totalorder %s20, 1
      %p252 = por %p250, %p251
      %p253 = scmp.ne.s32.totalorder %s245, %s248
      %p254 = scmp.eq.s32.totalorder %s20, 0
      %p255 = por %p253, %p254
      %p256 = scmp.ne.s32.totalorder %s245, %s248
      %p257 = scmp.eq.s32.totalorder %s25, 1
      %p258 = por %p256, %p257
      %p259 = scmp.ne.s32.totalorder %s248, %s249
      %p260 = scmp.eq.s32.totalorder %s25, 0
      %p261 = por %p259, %p260
      %p262 = scmp.ne.s32.totalorder %s248, %s249
      %p263 = scmp.eq.s32.totalorder %s26, 1
      %p264 = por %p262, %p263
      %p266 = scmp.ne.s32.totalorder %s249, %s265
      %p267 = scmp.eq.s32.totalorder %s26, 0
      %p268 = por %p266, %p267
      %p269 = scmp.le.s32.totalorder 1, %s20
      %p270 = scmp.lt.s32.totalorder %s20, 3
      %p271 = pnand %p269, %p270
      %p272 = pneg %p271
      // Predicated region
      $region9: #{tpu_custom_call.1} parent=5 // pred_check
        _
      $region10: #{tpu_custom_call.1} parent=5 // pred_check_branch
        %274 = sbr.rel (%p271) target = $region12
      $region11: #{tpu_custom_call.1} parent=5 // pred_region
        %s275 = ssub.s32 %s20, 1
        // Predicated region
        $region13: #{tpu_custom_call.1} parent=11 // pred_check
          %p276 = pneg %p67
        $region14: #{tpu_custom_call.1} parent=11 // pred_check_branch
          %278 = sbr.rel (%p276) target = $region16
        $region15: #{tpu_custom_call.1} parent=11 // pred_region
          _
        $region16: #{tpu_custom_call.1} parent=11 // pred_fallthru
          _
        // Predicated region
        $region17: #{tpu_custom_call.1} parent=11 // pred_check
          %p279 = pneg %p88
        $region18: #{tpu_custom_call.1} parent=11 // pred_check_branch
          %281 = sbr.rel (%p279) target = $region20
        $region19: #{tpu_custom_call.1} parent=11 // pred_region
          _
        $region20: #{tpu_custom_call.1} parent=11 // pred_fallthru
          _
        // Predicated region
        $region21: #{tpu_custom_call.1} parent=11 // pred_check
          %p282 = pneg %p109
        $region22: #{tpu_custom_call.1} parent=11 // pred_check_branch
          %284 = sbr.rel (%p282) target = $region24
        $region23: #{tpu_custom_call.1} parent=11 // pred_region
          _
        $region24: #{tpu_custom_call.1} parent=11 // pred_fallthru
          _
        // Predicated region
        $region25: #{tpu_custom_call.1} parent=11 // pred_check
          %p285 = pneg %p130
        $region26: #{tpu_custom_call.1} parent=11 // pred_check_branch
          %287 = sbr.rel (%p285) target = $region28
        $region27: #{tpu_custom_call.1} parent=11 // pred_region
          _
        $region28: #{tpu_custom_call.1} parent=11 // pred_fallthru
          _
        // Predicated region
        $region29: #{tpu_custom_call.1} parent=11 // pred_check
          %p288 = pneg %p151
        $region30: #{tpu_custom_call.1} parent=11 // pred_check_branch
          %290 = sbr.rel (%p288) target = $region32
        $region31: #{tpu_custom_call.1} parent=11 // pred_region
          _
        $region32: #{tpu_custom_call.1} parent=11 // pred_fallthru
          _
        // Predicated region
        $region33: #{tpu_custom_call.1} parent=11 // pred_check
          %p291 = pneg %p172
        $region34: #{tpu_custom_call.1} parent=11 // pred_check_branch
          %293 = sbr.rel (%p291) target = $region36
        $region35: #{tpu_custom_call.1} parent=11 // pred_region
          _
        $region36: #{tpu_custom_call.1} parent=11 // pred_fallthru
          _
        // Predicated region
        $region37: #{tpu_custom_call.1} parent=11 // pred_check
          %p294 = pneg %p193
        $region38: #{tpu_custom_call.1} parent=11 // pred_check_branch
          %296 = sbr.rel (%p294) target = $region40
        $region39: #{tpu_custom_call.1} parent=11 // pred_region
          _
        $region40: #{tpu_custom_call.1} parent=11 // pred_fallthru
          _
        // Predicated region
        $region41: #{tpu_custom_call.1} parent=11 // pred_check
          %p297 = pneg %p214
        $region42: #{tpu_custom_call.1} parent=11 // pred_check_branch
          %299 = sbr.rel (%p297) target = $region44
        $region43: #{tpu_custom_call.1} parent=11 // pred_region
          _
        $region44: #{tpu_custom_call.1} parent=11 // pred_fallthru
          _
        // Predicated region
        $region45: #{tpu_custom_call.1} parent=11 // pred_check
          %p300 = pneg %p235
        $region46: #{tpu_custom_call.1} parent=11 // pred_check_branch
          %302 = sbr.rel (%p300) target = $region48
        $region47: #{tpu_custom_call.1} parent=11 // pred_region
          _
        $region48: #{tpu_custom_call.1} parent=11 // pred_fallthru
          _
      $region12: #{tpu_custom_call.1} parent=5 // pred_fallthru
        _
      %p303 = scmp.lt.s32.totalorder %s20, 2
      // Predicated region
      $region49: #{tpu_custom_call.1} parent=5 // pred_check
        %p304 = pneg %p303
      $region50: #{tpu_custom_call.1} parent=5 // pred_check_branch
        %306 = sbr.rel (%p304) target = $region52
      $region51: #{tpu_custom_call.1} parent=5 // pred_region
        // Predicated region
        $region53: #{tpu_custom_call.1} parent=51 // pred_check
          %p307 = pneg %p40
        $region54: #{tpu_custom_call.1} parent=51 // pred_check_branch
          %309 = sbr.rel (%p307) target = $region56
        $region55: #{tpu_custom_call.1} parent=51 // pred_region
          %p310 = scmp.lt.s32.totalorder %s20, 1
          %s311 = scalar_select %p310, %s20, 1
          %s312 = smul.addr %s311, 32
          %s313 = smul.addr %s312, 8
          %s314 = scalar_lea.vmem %s0, %s313
        $region56: #{tpu_custom_call.1} parent=51 // pred_fallthru
          _
      $region52: #{tpu_custom_call.1} parent=5 // pred_fallthru
        _
      %p315 = scmp.le.s32.totalorder 1, %s20
      %p316 = scmp.lt.s32.totalorder %s20, 3
      %p317 = pnand %p315, %p316
      %p318 = pneg %p317
      // Predicated region
      $region57: #{tpu_custom_call.1} parent=5 // pred_check
        _
      $region58: #{tpu_custom_call.1} parent=5 // pred_check_branch
        %320 = sbr.rel (%p317) target = $region60
      $region59: #{tpu_custom_call.1} parent=5 // pred_region
        %s321 = ssub.s32 %s20, 1
        %p322 = scmp.lt.s32.totalorder %s25, 1
        %s323 = scalar_select %p322, %s25, 1
        %s324 = smul.addr %s323, 32
        %s325 = smul.addr %s324, 8
        %s326 = scalar_lea.vmem %s0, %s325
        %p327 = pneg %p46
        %p328 = pneg %p43
        %p329 = pneg %p67
        %p330 = pneg %p64
        %p331 = pneg %p88
        %p332 = pneg %p85
        %p333 = pneg %p109
        %p334 = pneg %p106
        %p335 = pneg %p130
        %p336 = pneg %p127
        %p337 = pneg %p151
        %p338 = pneg %p148
        %p339 = pneg %p172
        %p340 = pneg %p169
        %p341 = pneg %p193
        %p342 = pneg %p190
        %p343 = pneg %p214
        %p344 = pneg %p211
        %p345 = pneg %p235
        %p346 = pneg %p232
        %p347 = pneg %p261
        %p348 = pneg %p258
        %s349 = sand.u32 %s248, 1
        %s350 = scalar_lea.sflag [#allocation8], %s349
        %s351 = sand.u32 %s248, 1
        %s352 = smul.addr %s351, 256
        %s353 = scalar_lea.vmem [#allocation7], %s352
        %p354 = scmp.lt.s32.totalorder %s25, 1
        %s355 = scalar_select %p354, %s25, 1
        %s356 = smul.addr %s355, 32
        %s357 = smul.addr %s356, 8
        %s358 = scalar_lea.vmem %s0, %s357
        %s359 = sld [smem:[#allocation6]]
        %vm360 = vcmask 64512
        %361 = vst.msk [vmem:[#allocation2] sm:$0xff] %vm360, 0.0
        %362 = vst.msk [vmem:[#allocation2 + $0x8] sm:$0xff] %vm360, 0.0
        %vm363 = vcmask 58368
        %364 = vst.msk [vmem:[#allocation2 + $0x10] sm:$0x3] %vm363, 0.0
        %365 = vst.msk [vmem:[#allocation2 + $0x18] sm:$0xff] %vm360, 0.0
        %366 = vst.msk [vmem:[#allocation2 + $0x20] sm:$0xff] %vm360, 0.0
        %367 = vst.msk [vmem:[#allocation2 + $0x28] sm:$0x3] %vm363, 0.0
        %368 = vst.msk [vmem:[#allocation2 + $0x30] sm:$0xff] %vm360, 0.0
        %369 = vst.msk [vmem:[#allocation2 + $0x38] sm:$0xff] %vm360, 0.0
        %370 = vst.msk [vmem:[#allocation2 + $0x40] sm:$0x3] %vm363, 0.0
        %371 = vst.msk [vmem:[#allocation2 + $0x48] sm:$0xff] %vm360, 0.0
        %372 = vst.msk [vmem:[#allocation2 + $0x50] sm:$0xff] %vm360, 0.0
        %373 = vst.msk [vmem:[#allocation2 + $0x58] sm:$0x3] %vm363, 0.0
        %374 = vst.msk [vmem:[#allocation2 + $0x60] sm:$0xff] %vm360, 0.0
        %375 = vst.msk [vmem:[#allocation2 + $0x68] sm:$0xff] %vm360, 0.0
        %376 = vst.msk [vmem:[#allocation2 + $0x70] sm:$0x3] %vm363, 0.0
        %377 = vst.msk [vmem:[#allocation2 + $0x78] sm:$0xff] %vm360, 0.0
        %378 = vst.msk [vmem:[#allocation2 + $0x80] sm:$0xff] %vm360, 0.0
        %379 = vst.msk [vmem:[#allocation2 + $0x88] sm:$0x3] %vm363, 0.0
        %380 = vst.msk [vmem:[#allocation2 + $0x90] sm:$0xff] %vm360, 0.0
        %381 = vst.msk [vmem:[#allocation2 + $0x98] sm:$0xff] %vm360, 0.0
        %382 = vst.msk [vmem:[#allocation2 + $0xa0] sm:$0x3] %vm363, 0.0
        %383 = vst.msk [vmem:[#allocation2 + $0xa8] sm:$0xff] %vm360, 0.0
        %384 = vst.msk [vmem:[#allocation2 + $0xb0] sm:$0xff] %vm360, 0.0
        %385 = vst.msk [vmem:[#allocation2 + $0xb8] sm:$0x3] %vm363, 0.0
        %386 = vst.msk [vmem:[#allocation2 + $0xc0] sm:$0xff] %vm360, 0.0
        %387 = vst.msk [vmem:[#allocation2 + $0xc8] sm:$0xff] %vm360, 0.0
        %388 = vst.msk [vmem:[#allocation2 + $0xd0] sm:$0x3] %vm363, 0.0
        %389 = vst.msk [vmem:[#allocation2 + $0xd8] sm:$0xff] %vm360, 0.0
        %390 = vst.msk [vmem:[#allocation2 + $0xe0] sm:$0xff] %vm360, 0.0
        %391 = vst.msk [vmem:[#allocation2 + $0xe8] sm:$0x3] %vm363, 0.0
        %392 = vst.msk [vmem:[#allocation2 + $0xf0] sm:$0xff] %vm360, 0.0
        %393 = vst.msk [vmem:[#allocation2 + $0xf8] sm:$0xff] %vm360, 0.0
        %394 = vst.msk [vmem:[#allocation2 + $0x100] sm:$0x3] %vm363, 0.0
        %395 = vst.msk [vmem:[#allocation2 + $0x108] sm:$0xff] %vm360, 0.0
        %396 = vst.msk [vmem:[#allocation2 + $0x110] sm:$0xff] %vm360, 0.0
        %397 = vst.msk [vmem:[#allocation2 + $0x118] sm:$0x3] %vm363, 0.0
        %398 = vst.msk [vmem:[#allocation2 + $0x120] sm:$0xff] %vm360, 0.0
        %399 = vst.msk [vmem:[#allocation2 + $0x128] sm:$0xff] %vm360, 0.0
        %400 = vst.msk [vmem:[#allocation2 + $0x130] sm:$0x3] %vm363, 0.0
        %401 = vst.msk [vmem:[#allocation2 + $0x138] sm:$0xff] %vm360, 0.0
        %402 = vst.msk [vmem:[#allocation2 + $0x140] sm:$0xff] %vm360, 0.0
        %403 = vst.msk [vmem:[#allocation2 + $0x148] sm:$0x3] %vm363, 0.0
        %404 = vst.msk [vmem:[#allocation2 + $0x150] sm:$0xff] %vm360, 0.0
        %405 = vst.msk [vmem:[#allocation2 + $0x158] sm:$0xff] %vm360, 0.0
        %406 = vst.msk [vmem:[#allocation2 + $0x160] sm:$0x3] %vm363, 0.0
        %407 = vst.msk [vmem:[#allocation2 + $0x168] sm:$0xff] %vm360, 0.0
        %408 = vst.msk [vmem:[#allocation2 + $0x170] sm:$0xff] %vm360, 0.0
        %409 = vst.msk [vmem:[#allocation2 + $0x178] sm:$0x3] %vm363, 0.0
        %410 = vst.msk [vmem:[#allocation2 + $0x180] sm:$0xff] %vm360, 0.0
        %411 = vst.msk [vmem:[#allocation2 + $0x188] sm:$0xff] %vm360, 0.0
        %412 = vst.msk [vmem:[#allocation2 + $0x190] sm:$0x3] %vm363, 0.0
        %413 = vst.msk [vmem:[#allocation2 + $0x198] sm:$0xff] %vm360, 0.0
        %414 = vst.msk [vmem:[#allocation2 + $0x1a0] sm:$0xff] %vm360, 0.0
        %415 = vst.msk [vmem:[#allocation2 + $0x1a8] sm:$0x3] %vm363, 0.0
        %v416 = vld [vmem:[%s358] sm:$0xff]
        %v417 = vld [vmem:[%s358 + $0x8] sm:$0xff]
        %v418 = vld [vmem:[%s358 + $0x10] sm:$0xff]
        %v419 = vld [vmem:[%s358 + $0x18] sm:$0xff]
        %v420 = vld [vmem:[%s358 + $0x20] sm:$0xff]
        %v421 = vld [vmem:[%s358 + $0x28] sm:$0xff]
        %v422 = vld [vmem:[%s358 + $0x30] sm:$0xff]
        %v423 = vld [vmem:[%s358 + $0x38] sm:$0xff]
        %v424 = vld [vmem:[%s358 + $0x40] sm:$0xff]
        %v425 = vld [vmem:[%s358 + $0x48] sm:$0xff]
        %v426 = vld [vmem:[%s358 + $0x50] sm:$0xff]
        %v427 = vld [vmem:[%s358 + $0x58] sm:$0xff]
        %v428 = vld [vmem:[%s358 + $0x60] sm:$0xff]
        %v429 = vld [vmem:[%s358 + $0x68] sm:$0xff]
        %v430 = vld [vmem:[%s358 + $0x70] sm:$0xff]
        %v431 = vld [vmem:[%s358 + $0x78] sm:$0xff]
        %v432 = vld [vmem:[%s358 + $0x80] sm:$0xff]
        %v433 = vld [vmem:[%s358 + $0x88] sm:$0xff]
        %v434 = vld [vmem:[%s358 + $0x90] sm:$0xff]
        %v435 = vld [vmem:[%s358 + $0x98] sm:$0xff]
        %v436 = vld [vmem:[%s358 + $0xa0] sm:$0xff]
        %v437 = vld [vmem:[%s358 + $0xa8] sm:$0xff]
        %v438 = vld [vmem:[%s358 + $0xb0] sm:$0xff]
        %v439 = vld [vmem:[%s358 + $0xb8] sm:$0xff]
        %v440 = vld [vmem:[%s358 + $0xc0] sm:$0xff]
        %v441 = vld [vmem:[%s358 + $0xc8] sm:$0xff]
        %v442 = vld [vmem:[%s358 + $0xd0] sm:$0xff]
        %v443 = vld [vmem:[%s358 + $0xd8] sm:$0xff]
        %v444 = vld [vmem:[%s358 + $0xe0] sm:$0xff]
        %v445 = vld [vmem:[%s358 + $0xe8] sm:$0xff]
        %v446 = vld [vmem:[%s358 + $0xf0] sm:$0xff]
        %v447 = vld [vmem:[%s358 + $0xf8] sm:$0xff]
        %s448 = scalar_lea.vmem [#allocation2], 24
        %449 = vst.msk [vmem:[%s448 + $0x1] sm:$0xff] %vm360, %v416
        %450 = vst.msk [vmem:[%s448 + $0x9] sm:$0xff] %vm360, %v417
        %451 = vst.msk [vmem:[%s448 + $0x19] sm:$0xff] %vm360, %v418
        %452 = vst.msk [vmem:[%s448 + $0x21] sm:$0xff] %vm360, %v419
        %453 = vst.msk [vmem:[%s448 + $0x31] sm:$0xff] %vm360, %v420
        %454 = vst.msk [vmem:[%s448 + $0x39] sm:$0xff] %vm360, %v421
        %455 = vst.msk [vmem:[%s448 + $0x49] sm:$0xff] %vm360, %v422
        %456 = vst.msk [vmem:[%s448 + $0x51] sm:$0xff] %vm360, %v423
        %457 = vst.msk [vmem:[%s448 + $0x61] sm:$0xff] %vm360, %v424
        %458 = vst.msk [vmem:[%s448 + $0x69] sm:$0xff] %vm360, %v425
        %459 = vst.msk [vmem:[%s448 + $0x79] sm:$0xff] %vm360, %v426
        %460 = vst.msk [vmem:[%s448 + $0x81] sm:$0xff] %vm360, %v427
        %461 = vst.msk [vmem:[%s448 + $0x91] sm:$0xff] %vm360, %v428
        %462 = vst.msk [vmem:[%s448 + $0x99] sm:$0xff] %vm360, %v429
        %463 = vst.msk [vmem:[%s448 + $0xa9] sm:$0xff] %vm360, %v430
        %464 = vst.msk [vmem:[%s448 + $0xb1] sm:$0xff] %vm360, %v431
        %465 = vst.msk [vmem:[%s448 + $0xc1] sm:$0xff] %vm360, %v432
        %466 = vst.msk [vmem:[%s448 + $0xc9] sm:$0xff] %vm360, %v433
        %467 = vst.msk [vmem:[%s448 + $0xd9] sm:$0xff] %vm360, %v434
        %468 = vst.msk [vmem:[%s448 + $0xe1] sm:$0xff] %vm360, %v435
        %469 = vst.msk [vmem:[%s448 + $0xf1] sm:$0xff] %vm360, %v436
        %470 = vst.msk [vmem:[%s448 + $0xf9] sm:$0xff] %vm360, %v437
        %471 = vst.msk [vmem:[%s448 + $0x109] sm:$0xff] %vm360, %v438
        %472 = vst.msk [vmem:[%s448 + $0x111] sm:$0xff] %vm360, %v439
        %473 = vst.msk [vmem:[%s448 + $0x121] sm:$0xff] %vm360, %v440
        %474 = vst.msk [vmem:[%s448 + $0x129] sm:$0xff] %vm360, %v441
        %475 = vst.msk [vmem:[%s448 + $0x139] sm:$0xff] %vm360, %v442
        %476 = vst.msk [vmem:[%s448 + $0x141] sm:$0xff] %vm360, %v443
        %477 = vst.msk [vmem:[%s448 + $0x151] sm:$0xff] %vm360, %v444
        %478 = vst.msk [vmem:[%s448 + $0x159] sm:$0xff] %vm360, %v445
        %479 = vst.msk [vmem:[%s448 + $0x169] sm:$0xff] %vm360, %v446
        %480 = vst.msk [vmem:[%s448 + $0x171] sm:$0xff] %vm360, %v447
        %v481 = vld [vmem:[#allocation2] sm:$0xff]
        %v482 = vld [vmem:[#allocation2 + $0x8] sm:$0xff]
        %v483 = vld [vmem:[#allocation2 + $0x10] sm:$0x3]
        %v484 = vld [vmem:[#allocation2 + $0x18] sm:$0xff]
        %v485 = vld [vmem:[#allocation2 + $0x20] sm:$0xff]
        %v486 = vld [vmem:[#allocation2 + $0x28] sm:$0x3]
        %v487 = vld [vmem:[#allocation2 + $0x30] sm:$0xff]
        %v488 = vld [vmem:[#allocation2 + $0x38] sm:$0xff]
        %v489 = vld [vmem:[#allocation2 + $0x40] sm:$0x3]
        %v490 = vld [vmem:[#allocation2 + $0x48] sm:$0xff]
        %v491 = vld [vmem:[#allocation2 + $0x50] sm:$0xff]
        %v492 = vld [vmem:[#allocation2 + $0x58] sm:$0x3]
        %v493 = vld [vmem:[#allocation2 + $0x60] sm:$0xff]
        %v494 = vld [vmem:[#allocation2 + $0x68] sm:$0xff]
        %v495 = vld [vmem:[#allocation2 + $0x70] sm:$0x3]
        %v496 = vld [vmem:[#allocation2 + $0x78] sm:$0xff]
        %v497 = vld [vmem:[#allocation2 + $0x80] sm:$0xff]
        %v498 = vld [vmem:[#allocation2 + $0x88] sm:$0x3]
        %v499 = vld [vmem:[#allocation2 + $0x90] sm:$0xff]
        %v500 = vld [vmem:[#allocation2 + $0x98] sm:$0xff]
        %v501 = vld [vmem:[#allocation2 + $0xa0] sm:$0x3]
        %v502 = vld [vmem:[#allocation2 + $0xa8] sm:$0xff]
        %v503 = vld [vmem:[#allocation2 + $0xb0] sm:$0xff]
        %v504 = vld [vmem:[#allocation2 + $0xb8] sm:$0x3]
        %v505 = vld [vmem:[#allocation2 + $0xc0] sm:$0xff]
        %v506 = vld [vmem:[#allocation2 + $0xc8] sm:$0xff]
        %v507 = vld [vmem:[#allocation2 + $0xd0] sm:$0x3]
        %v508 = vld [vmem:[#allocation2 + $0xd8] sm:$0xff]
        %v509 = vld [vmem:[#allocation2 + $0xe0] sm:$0xff]
        %v510 = vld [vmem:[#allocation2 + $0xe8] sm:$0x3]
        %v511 = vld [vmem:[#allocation2 + $0xf0] sm:$0xff]
        %v512 = vld [vmem:[#allocation2 + $0xf8] sm:$0xff]
        %v513 = vld [vmem:[#allocation2 + $0x100] sm:$0x3]
        %v514 = vld [vmem:[#allocation2 + $0x108] sm:$0xff]
        %v515 = vld [vmem:[#allocation2 + $0x110] sm:$0xff]
        %v516 = vld [vmem:[#allocation2 + $0x118] sm:$0x3]
        %v517 = vld [vmem:[#allocation2 + $0x120] sm:$0xff]
        %v518 = vld [vmem:[#allocation2 + $0x128] sm:$0xff]
        %v519 = vld [vmem:[#allocation2 + $0x130] sm:$0x3]
        %v520 = vld [vmem:[#allocation2 + $0x138] sm:$0xff]
        %v521 = vld [vmem:[#allocation2 + $0x140] sm:$0xff]
        %v522 = vld [vmem:[#allocation2 + $0x148] sm:$0x3]
        %v523 = vld [vmem:[#allocation2 + $0x150] sm:$0xff]
        %v524 = vld [vmem:[#allocation2 + $0x158] sm:$0xff]
        %v525 = vld [vmem:[#allocation2 + $0x160] sm:$0x3]
        %v526 = vld [vmem:[#allocation2 + $0x168] sm:$0xff]
        %v527 = vld [vmem:[#allocation2 + $0x170] sm:$0xff]
        %v528 = vld [vmem:[#allocation2 + $0x178] sm:$0x3]
        %v529 = vld [vmem:[#allocation2 + $0x180] sm:$0xff]
        %v530 = vld [vmem:[#allocation2 + $0x188] sm:$0xff]
        %v531 = vld [vmem:[#allocation2 + $0x190] sm:$0x3]
        %v532 = vld [vmem:[#allocation2 + $0x198] sm:$0xff]
        %v533 = vld [vmem:[#allocation2 + $0x1a0] sm:$0xff]
        %v534 = vld [vmem:[#allocation2 + $0x1a8] sm:$0x3]
        %535 = vst.msk [vmem:[#allocation3] sm:$0xff] %vm360, %v481
        %536 = vst.msk [vmem:[#allocation3 + $0x8] sm:$0xff] %vm360, %v482
        %537 = vst.msk [vmem:[#allocation3 + $0x10] sm:$0xff] %vm360, %v484
        %538 = vst.msk [vmem:[#allocation3 + $0x18] sm:$0xff] %vm360, %v485
        %539 = vst.msk [vmem:[#allocation3 + $0x20] sm:$0xff] %vm360, %v487
        %540 = vst.msk [vmem:[#allocation3 + $0x28] sm:$0xff] %vm360, %v488
        %541 = vst.msk [vmem:[#allocation3 + $0x30] sm:$0xff] %vm360, %v490
        %542 = vst.msk [vmem:[#allocation3 + $0x38] sm:$0xff] %vm360, %v491
        %543 = vst.msk [vmem:[#allocation3 + $0x40] sm:$0xff] %vm360, %v493
        %544 = vst.msk [vmem:[#allocation3 + $0x48] sm:$0xff] %vm360, %v494
        %545 = vst.msk [vmem:[#allocation3 + $0x50] sm:$0xff] %vm360, %v496
        %546 = vst.msk [vmem:[#allocation3 + $0x58] sm:$0xff] %vm360, %v497
        %547 = vst.msk [vmem:[#allocation3 + $0x60] sm:$0xff] %vm360, %v499
        %548 = vst.msk [vmem:[#allocation3 + $0x68] sm:$0xff] %vm360, %v500
        %549 = vst.msk [vmem:[#allocation3 + $0x70] sm:$0xff] %vm360, %v502
        %550 = vst.msk [vmem:[#allocation3 + $0x78] sm:$0xff] %vm360, %v503
        %551 = vst.msk [vmem:[#allocation3 + $0x80] sm:$0xff] %vm360, %v505
        %552 = vst.msk [vmem:[#allocation3 + $0x88] sm:$0xff] %vm360, %v506
        %553 = vst.msk [vmem:[#allocation3 + $0x90] sm:$0xff] %vm360, %v508
        %554 = vst.msk [vmem:[#allocation3 + $0x98] sm:$0xff] %vm360, %v509
        %555 = vst.msk [vmem:[#allocation3 + $0xa0] sm:$0xff] %vm360, %v511
        %556 = vst.msk [vmem:[#allocation3 + $0xa8] sm:$0xff] %vm360, %v512
        %557 = vst.msk [vmem:[#allocation3 + $0xb0] sm:$0xff] %vm360, %v514
        %558 = vst.msk [vmem:[#allocation3 + $0xb8] sm:$0xff] %vm360, %v515
        %559 = vst.msk [vmem:[#allocation3 + $0xc0] sm:$0xff] %vm360, %v517
        %560 = vst.msk [vmem:[#allocation3 + $0xc8] sm:$0xff] %vm360, %v518
        %561 = vst.msk [vmem:[#allocation3 + $0xd0] sm:$0xff] %vm360, %v520
        %562 = vst.msk [vmem:[#allocation3 + $0xd8] sm:$0xff] %vm360, %v521
        %563 = vst.msk [vmem:[#allocation3 + $0xe0] sm:$0xff] %vm360, %v523
        %564 = vst.msk [vmem:[#allocation3 + $0xe8] sm:$0xff] %vm360, %v524
        %565 = vst.msk [vmem:[#allocation3 + $0xf0] sm:$0xff] %vm360, %v526
        %566 = vst.msk [vmem:[#allocation3 + $0xf8] sm:$0xff] %vm360, %v527
        %615 = vrot.lane.b32.xlu0 %v481, 8
        %v616 = vpop.permute.xlu0 %615
        %617 = vrot.lane.b32.xlu0 %v482, 8
        %v618 = vpop.permute.xlu0 %617
        %619 = vrot.lane.b32.xlu0 %v483, 8
        %v620 = vpop.permute.xlu0 %619
        %621 = vrot.lane.b32.xlu0 %v484, 8
        %v622 = vpop.permute.xlu0 %621
        %623 = vrot.lane.b32.xlu0 %v485, 8
        %v624 = vpop.permute.xlu0 %623
        %625 = vrot.lane.b32.xlu0 %v486, 8
        %v626 = vpop.permute.xlu0 %625
        %627 = vrot.lane.b32.xlu0 %v487, 8
        %v628 = vpop.permute.xlu0 %627
        %629 = vrot.lane.b32.xlu0 %v488, 8
        %v630 = vpop.permute.xlu0 %629
        %631 = vrot.lane.b32.xlu0 %v489, 8
        %v632 = vpop.permute.xlu0 %631
        %633 = vrot.lane.b32.xlu0 %v490, 8
        %v634 = vpop.permute.xlu0 %633
        %635 = vrot.lane.b32.xlu0 %v491, 8
        %v636 = vpop.permute.xlu0 %635
        %637 = vrot.lane.b32.xlu0 %v492, 8
        %v638 = vpop.permute.xlu0 %637
        %639 = vrot.lane.b32.xlu0 %v493, 8
        %v640 = vpop.permute.xlu0 %639
        %641 = vrot.lane.b32.xlu0 %v494, 8
        %v642 = vpop.permute.xlu0 %641
        %643 = vrot.lane.b32.xlu0 %v495, 8
        %v644 = vpop.permute.xlu0 %643
        %645 = vrot.lane.b32.xlu0 %v496, 8
        %v646 = vpop.permute.xlu0 %645
        %647 = vrot.lane.b32.xlu0 %v497, 8
        %v648 = vpop.permute.xlu0 %647
        %649 = vrot.lane.b32.xlu0 %v498, 8
        %v650 = vpop.permute.xlu0 %649
        %651 = vrot.lane.b32.xlu0 %v499, 8
        %v652 = vpop.permute.xlu0 %651
        %653 = vrot.lane.b32.xlu0 %v500, 8
        %v654 = vpop.permute.xlu0 %653
        %655 = vrot.lane.b32.xlu0 %v501, 8
        %v656 = vpop.permute.xlu0 %655
        %657 = vrot.lane.b32.xlu0 %v502, 8
        %v658 = vpop.permute.xlu0 %657
        %659 = vrot.lane.b32.xlu0 %v503, 8
        %v660 = vpop.permute.xlu0 %659
        %661 = vrot.lane.b32.xlu0 %v504, 8
        %v662 = vpop.permute.xlu0 %661
        %663 = vrot.lane.b32.xlu0 %v505, 8
        %v664 = vpop.permute.xlu0 %663
        %665 = vrot.lane.b32.xlu0 %v506, 8
        %v666 = vpop.permute.xlu0 %665
        %667 = vrot.lane.b32.xlu0 %v507, 8
        %v668 = vpop.permute.xlu0 %667
        %669 = vrot.lane.b32.xlu0 %v508, 8
        %v670 = vpop.permute.xlu0 %669
        %671 = vrot.lane.b32.xlu0 %v509, 8
        %v672 = vpop.permute.xlu0 %671
        %673 = vrot.lane.b32.xlu0 %v510, 8
        %v674 = vpop.permute.xlu0 %673
        %675 = vrot.lane.b32.xlu0 %v511, 8
        %v676 = vpop.permute.xlu0 %675
        %677 = vrot.lane.b32.xlu0 %v512, 8
        %v678 = vpop.permute.xlu0 %677
        %679 = vrot.lane.b32.xlu0 %v513, 8
        %v680 = vpop.permute.xlu0 %679
        %681 = vrot.lane.b32.xlu0 %v514, 8
        %v682 = vpop.permute.xlu0 %681
        %683 = vrot.lane.b32.xlu0 %v515, 8
        %v684 = vpop.permute.xlu0 %683
        %685 = vrot.lane.b32.xlu0 %v516, 8
        %v686 = vpop.permute.xlu0 %685
        %687 = vrot.lane.b32.xlu0 %v517, 8
        %v688 = vpop.permute.xlu0 %687
        %689 = vrot.lane.b32.xlu0 %v518, 8
        %v690 = vpop.permute.xlu0 %689
        %691 = vrot.lane.b32.xlu0 %v519, 8
        %v692 = vpop.permute.xlu0 %691
        %693 = vrot.lane.b32.xlu0 %v520, 8
        %v694 = vpop.permute.xlu0 %693
        %695 = vrot.lane.b32.xlu0 %v521, 8
        %v696 = vpop.permute.xlu0 %695
        %697 = vrot.lane.b32.xlu0 %v522, 8
        %v698 = vpop.permute.xlu0 %697
        %699 = vrot.lane.b32.xlu0 %v523, 8
        %v700 = vpop.permute.xlu0 %699
        %701 = vrot.lane.b32.xlu0 %v524, 8
        %v702 = vpop.permute.xlu0 %701
        %703 = vrot.lane.b32.xlu0 %v525, 8
        %v704 = vpop.permute.xlu0 %703
        %705 = vrot.lane.b32.xlu0 %v526, 8
        %v706 = vpop.permute.xlu0 %705
        %707 = vrot.lane.b32.xlu0 %v527, 8
        %v708 = vpop.permute.xlu0 %707
        %709 = vrot.lane.b32.xlu0 %v528, 8
        %v710 = vpop.permute.xlu0 %709
        %vm759 = vcmask 130113
        %760 = vst.msk [vmem:[#allocation3 - $0x1] sm:$0xfe] %vm759, %v616
        %vm761 = vcmask 130112
        %762 = vst.msk [vmem:[#allocation3 + $0x7] sm:$0xff] %vm761, %v618
        %vm763 = vcmask 122944
        %764 = vst.msk [vmem:[#allocation3 + $0xf] sm:$0x1] %vm763, %v620
        %765 = vst.msk [vmem:[#allocation3 + $0xf] sm:$0xfe] %vm759, %v622
        %766 = vst.msk [vmem:[#allocation3 + $0x17] sm:$0xff] %vm761, %v624
        %767 = vst.msk [vmem:[#allocation3 + $0x1f] sm:$0x1] %vm763, %v626
        %768 = vst.msk [vmem:[#allocation3 + $0x1f] sm:$0xfe] %vm759, %v628
        %769 = vst.msk [vmem:[#allocation3 + $0x27] sm:$0xff] %vm761, %v630
        %770 = vst.msk [vmem:[#allocation3 + $0x2f] sm:$0x1] %vm763, %v632
        %771 = vst.msk [vmem:[#allocation3 + $0x2f] sm:$0xfe] %vm759, %v634
        %772 = vst.msk [vmem:[#allocation3 + $0x37] sm:$0xff] %vm761, %v636
        %773 = vst.msk [vmem:[#allocation3 + $0x3f] sm:$0x1] %vm763, %v638
        %774 = vst.msk [vmem:[#allocation3 + $0x3f] sm:$0xfe] %vm759, %v640
        %775 = vst.msk [vmem:[#allocation3 + $0x47] sm:$0xff] %vm761, %v642
        %776 = vst.msk [vmem:[#allocation3 + $0x4f] sm:$0x1] %vm763, %v644
        %777 = vst.msk [vmem:[#allocation3 + $0x4f] sm:$0xfe] %vm759, %v646
        %778 = vst.msk [vmem:[#allocation3 + $0x57] sm:$0xff] %vm761, %v648
        %779 = vst.msk [vmem:[#allocation3 + $0x5f] sm:$0x1] %vm763, %v650
        %780 = vst.msk [vmem:[#allocation3 + $0x5f] sm:$0xfe] %vm759, %v652
        %781 = vst.msk [vmem:[#allocation3 + $0x67] sm:$0xff] %vm761, %v654
        %782 = vst.msk [vmem:[#allocation3 + $0x6f] sm:$0x1] %vm763, %v656
        %783 = vst.msk [vmem:[#allocation3 + $0x6f] sm:$0xfe] %vm759, %v658
        %784 = vst.msk [vmem:[#allocation3 + $0x77] sm:$0xff] %vm761, %v660
        %785 = vst.msk [vmem:[#allocation3 + $0x7f] sm:$0x1] %vm763, %v662
        %786 = vst.msk [vmem:[#allocation3 + $0x7f] sm:$0xfe] %vm759, %v664
        %787 = vst.msk [vmem:[#allocation3 + $0x87] sm:$0xff] %vm761, %v666
        %788 = vst.msk [vmem:[#allocation3 + $0x8f] sm:$0x1] %vm763, %v668
        %789 = vst.msk [vmem:[#allocation3 + $0x8f] sm:$0xfe] %vm759, %v670
        %790 = vst.msk [vmem:[#allocation3 + $0x97] sm:$0xff] %vm761, %v672
        %791 = vst.msk [vmem:[#allocation3 + $0x9f] sm:$0x1] %vm763, %v674
        %792 = vst.msk [vmem:[#allocation3 + $0x9f] sm:$0xfe] %vm759, %v676
        %793 = vst.msk [vmem:[#allocation3 + $0xa7] sm:$0xff] %vm761, %v678
        %794 = vst.msk [vmem:[#allocation3 + $0xaf] sm:$0x1] %vm763, %v680
        %795 = vst.msk [vmem:[#allocation3 + $0xaf] sm:$0xfe] %vm759, %v682
        %796 = vst.msk [vmem:[#allocation3 + $0xb7] sm:$0xff] %vm761, %v684
        %797 = vst.msk [vmem:[#allocation3 + $0xbf] sm:$0x1] %vm763, %v686
        %798 = vst.msk [vmem:[#allocation3 + $0xbf] sm:$0xfe] %vm759, %v688
        %799 = vst.msk [vmem:[#allocation3 + $0xc7] sm:$0xff] %vm761, %v690
        %800 = vst.msk [vmem:[#allocation3 + $0xcf] sm:$0x1] %vm763, %v692
        %801 = vst.msk [vmem:[#allocation3 + $0xcf] sm:$0xfe] %vm759, %v694
        %802 = vst.msk [vmem:[#allocation3 + $0xd7] sm:$0xff] %vm761, %v696
        %803 = vst.msk [vmem:[#allocation3 + $0xdf] sm:$0x1] %vm763, %v698
        %804 = vst.msk [vmem:[#allocation3 + $0xdf] sm:$0xfe] %vm759, %v700
        %805 = vst.msk [vmem:[#allocation3 + $0xe7] sm:$0xff] %vm761, %v702
        %806 = vst.msk [vmem:[#allocation3 + $0xef] sm:$0x1] %vm763, %v704
        %807 = vst.msk [vmem:[#allocation3 + $0xef] sm:$0xfe] %vm759, %v706
        %808 = vst.msk [vmem:[#allocation3 + $0xf7] sm:$0xff] %vm761, %v708
        %809 = vst.msk [vmem:[#allocation3 + $0xff] sm:$0x1] %vm763, %v710
        %810 = vrot.lane.b32.xlu0 %v481, 16
        %v811 = vpop.permute.xlu0 %810
        %812 = vrot.lane.b32.xlu0 %v482, 16
        %v813 = vpop.permute.xlu0 %812
        %814 = vrot.lane.b32.xlu0 %v483, 16
        %v815 = vpop.permute.xlu0 %814
        %816 = vrot.lane.b32.xlu0 %v484, 16
        %v817 = vpop.permute.xlu0 %816
        %818 = vrot.lane.b32.xlu0 %v485, 16
        %v819 = vpop.permute.xlu0 %818
        %820 = vrot.lane.b32.xlu0 %v486, 16
        %v821 = vpop.permute.xlu0 %820
        %822 = vrot.lane.b32.xlu0 %v487, 16
        %v823 = vpop.permute.xlu0 %822
        %824 = vrot.lane.b32.xlu0 %v488, 16
        %v825 = vpop.permute.xlu0 %824
        %826 = vrot.lane.b32.xlu0 %v489, 16
        %v827 = vpop.permute.xlu0 %826
        %828 = vrot.lane.b32.xlu0 %v490, 16
        %v829 = vpop.permute.xlu0 %828
        %830 = vrot.lane.b32.xlu0 %v491, 16
        %v831 = vpop.permute.xlu0 %830
        %832 = vrot.lane.b32.xlu0 %v492, 16
        %v833 = vpop.permute.xlu0 %832
        %834 = vrot.lane.b32.xlu0 %v493, 16
        %v835 = vpop.permute.xlu0 %834
        %836 = vrot.lane.b32.xlu0 %v494, 16
        %v837 = vpop.permute.xlu0 %836
        %838 = vrot.lane.b32.xlu0 %v495, 16
        %v839 = vpop.permute.xlu0 %838
        %840 = vrot.lane.b32.xlu0 %v496, 16
        %v841 = vpop.permute.xlu0 %840
        %842 = vrot.lane.b32.xlu0 %v497, 16
        %v843 = vpop.permute.xlu0 %842
        %844 = vrot.lane.b32.xlu0 %v498, 16
        %v845 = vpop.permute.xlu0 %844
        %846 = vrot.lane.b32.xlu0 %v499, 16
        %v847 = vpop.permute.xlu0 %846
        %848 = vrot.lane.b32.xlu0 %v500, 16
        %v849 = vpop.permute.xlu0 %848
        %850 = vrot.lane.b32.xlu0 %v501, 16
        %v851 = vpop.permute.xlu0 %850
        %852 = vrot.lane.b32.xlu0 %v502, 16
        %v853 = vpop.permute.xlu0 %852
        %854 = vrot.lane.b32.xlu0 %v503, 16
        %v855 = vpop.permute.xlu0 %854
        %856 = vrot.lane.b32.xlu0 %v504, 16
        %v857 = vpop.permute.xlu0 %856
        %858 = vrot.lane.b32.xlu0 %v505, 16
        %v859 = vpop.permute.xlu0 %858
        %860 = vrot.lane.b32.xlu0 %v506, 16
        %v861 = vpop.permute.xlu0 %860
        %862 = vrot.lane.b32.xlu0 %v507, 16
        %v863 = vpop.permute.xlu0 %862
        %864 = vrot.lane.b32.xlu0 %v508, 16
        %v865 = vpop.permute.xlu0 %864
        %866 = vrot.lane.b32.xlu0 %v509, 16
        %v867 = vpop.permute.xlu0 %866
        %868 = vrot.lane.b32.xlu0 %v510, 16
        %v869 = vpop.permute.xlu0 %868
        %870 = vrot.lane.b32.xlu0 %v511, 16
        %v871 = vpop.permute.xlu0 %870
        %872 = vrot.lane.b32.xlu0 %v512, 16
        %v873 = vpop.permute.xlu0 %872
        %874 = vrot.lane.b32.xlu0 %v513, 16
        %v875 = vpop.permute.xlu0 %874
        %876 = vrot.lane.b32.xlu0 %v514, 16
        %v877 = vpop.permute.xlu0 %876
        %878 = vrot.lane.b32.xlu0 %v515, 16
        %v879 = vpop.permute.xlu0 %878
        %880 = vrot.lane.b32.xlu0 %v516, 16
        %v881 = vpop.permute.xlu0 %880
        %882 = vrot.lane.b32.xlu0 %v517, 16
        %v883 = vpop.permute.xlu0 %882
        %884 = vrot.lane.b32.xlu0 %v518, 16
        %v885 = vpop.permute.xlu0 %884
        %886 = vrot.lane.b32.xlu0 %v519, 16
        %v887 = vpop.permute.xlu0 %886
        %888 = vrot.lane.b32.xlu0 %v520, 16
        %v889 = vpop.permute.xlu0 %888
        %890 = vrot.lane.b32.xlu0 %v521, 16
        %v891 = vpop.permute.xlu0 %890
        %892 = vrot.lane.b32.xlu0 %v522, 16
        %v893 = vpop.permute.xlu0 %892
        %894 = vrot.lane.b32.xlu0 %v523, 16
        %v895 = vpop.permute.xlu0 %894
        %896 = vrot.lane.b32.xlu0 %v524, 16
        %v897 = vpop.permute.xlu0 %896
        %898 = vrot.lane.b32.xlu0 %v525, 16
        %v899 = vpop.permute.xlu0 %898
        %900 = vrot.lane.b32.xlu0 %v526, 16
        %v901 = vpop.permute.xlu0 %900
        %902 = vrot.lane.b32.xlu0 %v527, 16
        %v903 = vpop.permute.xlu0 %902
        %904 = vrot.lane.b32.xlu0 %v528, 16
        %v905 = vpop.permute.xlu0 %904
        %vm954 = vcmask 195714
        %955 = vst.msk [vmem:[#allocation3 - $0x2] sm:$0xfc] %vm954, %v811
        %vm956 = vcmask 195712
        %957 = vst.msk [vmem:[#allocation3 + $0x6] sm:$0xff] %vm956, %v813
        %vm958 = vcmask 189568
        %959 = vst.msk [vmem:[#allocation3 + $0xe] sm:$0x3] %vm958, %v815
        %960 = vst.msk [vmem:[#allocation3 + $0xe] sm:$0xfc] %vm954, %v817
        %961 = vst.msk [vmem:[#allocation3 + $0x16] sm:$0xff] %vm956, %v819
        %962 = vst.msk [vmem:[#allocation3 + $0x1e] sm:$0x3] %vm958, %v821
        %963 = vst.msk [vmem:[#allocation3 + $0x1e] sm:$0xfc] %vm954, %v823
        %964 = vst.msk [vmem:[#allocation3 + $0x26] sm:$0xff] %vm956, %v825
        %965 = vst.msk [vmem:[#allocation3 + $0x2e] sm:$0x3] %vm958, %v827
        %966 = vst.msk [vmem:[#allocation3 + $0x2e] sm:$0xfc] %vm954, %v829
        %967 = vst.msk [vmem:[#allocation3 + $0x36] sm:$0xff] %vm956, %v831
        %968 = vst.msk [vmem:[#allocation3 + $0x3e] sm:$0x3] %vm958, %v833
        %969 = vst.msk [vmem:[#allocation3 + $0x3e] sm:$0xfc] %vm954, %v835
        %970 = vst.msk [vmem:[#allocation3 + $0x46] sm:$0xff] %vm956, %v837
        %971 = vst.msk [vmem:[#allocation3 + $0x4e] sm:$0x3] %vm958, %v839
        %972 = vst.msk [vmem:[#allocation3 + $0x4e] sm:$0xfc] %vm954, %v841
        %973 = vst.msk [vmem:[#allocation3 + $0x56] sm:$0xff] %vm956, %v843
        %974 = vst.msk [vmem:[#allocation3 + $0x5e] sm:$0x3] %vm958, %v845
        %975 = vst.msk [vmem:[#allocation3 + $0x5e] sm:$0xfc] %vm954, %v847
        %976 = vst.msk [vmem:[#allocation3 + $0x66] sm:$0xff] %vm956, %v849
        %977 = vst.msk [vmem:[#allocation3 + $0x6e] sm:$0x3] %vm958, %v851
        %978 = vst.msk [vmem:[#allocation3 + $0x6e] sm:$0xfc] %vm954, %v853
        %979 = vst.msk [vmem:[#allocation3 + $0x76] sm:$0xff] %vm956, %v855
        %980 = vst.msk [vmem:[#allocation3 + $0x7e] sm:$0x3] %vm958, %v857
        %981 = vst.msk [vmem:[#allocation3 + $0x7e] sm:$0xfc] %vm954, %v859
        %982 = vst.msk [vmem:[#allocation3 + $0x86] sm:$0xff] %vm956, %v861
        %983 = vst.msk [vmem:[#allocation3 + $0x8e] sm:$0x3] %vm958, %v863
        %984 = vst.msk [vmem:[#allocation3 + $0x8e] sm:$0xfc] %vm954, %v865
        %985 = vst.msk [vmem:[#allocation3 + $0x96] sm:$0xff] %vm956, %v867
        %986 = vst.msk [vmem:[#allocation3 + $0x9e] sm:$0x3] %vm958, %v869
        %987 = vst.msk [vmem:[#allocation3 + $0x9e] sm:$0xfc] %vm954, %v871
        %988 = vst.msk [vmem:[#allocation3 + $0xa6] sm:$0xff] %vm956, %v873
        %989 = vst.msk [vmem:[#allocation3 + $0xae] sm:$0x3] %vm958, %v875
        %990 = vst.msk [vmem:[#allocation3 + $0xae] sm:$0xfc] %vm954, %v877
        %991 = vst.msk [vmem:[#allocation3 + $0xb6] sm:$0xff] %vm956, %v879
        %992 = vst.msk [vmem:[#allocation3 + $0xbe] sm:$0x3] %vm958, %v881
        %993 = vst.msk [vmem:[#allocation3 + $0xbe] sm:$0xfc] %vm954, %v883
        %994 = vst.msk [vmem:[#allocation3 + $0xc6] sm:$0xff] %vm956, %v885
        %995 = vst.msk [vmem:[#allocation3 + $0xce] sm:$0x3] %vm958, %v887
        %996 = vst.msk [vmem:[#allocation3 + $0xce] sm:$0xfc] %vm954, %v889
        %997 = vst.msk [vmem:[#allocation3 + $0xd6] sm:$0xff] %vm956, %v891
        %998 = vst.msk [vmem:[#allocation3 + $0xde] sm:$0x3] %vm958, %v893
        %999 = vst.msk [vmem:[#allocation3 + $0xde] sm:$0xfc] %vm954, %v895
        %1000 = vst.msk [vmem:[#allocation3 + $0xe6] sm:$0xff] %vm956, %v897
        %1001 = vst.msk [vmem:[#allocation3 + $0xee] sm:$0x3] %vm958, %v899
        %1002 = vst.msk [vmem:[#allocation3 + $0xee] sm:$0xfc] %vm954, %v901
        %1003 = vst.msk [vmem:[#allocation3 + $0xf6] sm:$0xff] %vm956, %v903
        %1004 = vst.msk [vmem:[#allocation3 + $0xfe] sm:$0x3] %vm958, %v905
        %1007 = vrot.lane.b32.xlu0 %v484, 24
        %v1008 = vpop.permute.xlu0 %1007
        %1009 = vrot.lane.b32.xlu0 %v485, 24
        %v1010 = vpop.permute.xlu0 %1009
        %1011 = vrot.lane.b32.xlu0 %v487, 24
        %v1012 = vpop.permute.xlu0 %1011
        %1013 = vrot.lane.b32.xlu0 %v488, 24
        %v1014 = vpop.permute.xlu0 %1013
        %1015 = vrot.lane.b32.xlu0 %v490, 24
        %v1016 = vpop.permute.xlu0 %1015
        %1017 = vrot.lane.b32.xlu0 %v491, 24
        %v1018 = vpop.permute.xlu0 %1017
        %1019 = vrot.lane.b32.xlu0 %v493, 24
        %v1020 = vpop.permute.xlu0 %1019
        %1021 = vrot.lane.b32.xlu0 %v494, 24
        %v1022 = vpop.permute.xlu0 %1021
        %1023 = vrot.lane.b32.xlu0 %v496, 24
        %v1024 = vpop.permute.xlu0 %1023
        %1025 = vrot.lane.b32.xlu0 %v497, 24
        %v1026 = vpop.permute.xlu0 %1025
        %1027 = vrot.lane.b32.xlu0 %v499, 24
        %v1028 = vpop.permute.xlu0 %1027
        %1029 = vrot.lane.b32.xlu0 %v500, 24
        %v1030 = vpop.permute.xlu0 %1029
        %1031 = vrot.lane.b32.xlu0 %v502, 24
        %v1032 = vpop.permute.xlu0 %1031
        %1033 = vrot.lane.b32.xlu0 %v503, 24
        %v1034 = vpop.permute.xlu0 %1033
        %1035 = vrot.lane.b32.xlu0 %v505, 24
        %v1036 = vpop.permute.xlu0 %1035
        %1037 = vrot.lane.b32.xlu0 %v506, 24
        %v1038 = vpop.permute.xlu0 %1037
        %1039 = vrot.lane.b32.xlu0 %v508, 24
        %v1040 = vpop.permute.xlu0 %1039
        %1041 = vrot.lane.b32.xlu0 %v509, 24
        %v1042 = vpop.permute.xlu0 %1041
        %1043 = vrot.lane.b32.xlu0 %v511, 24
        %v1044 = vpop.permute.xlu0 %1043
        %1045 = vrot.lane.b32.xlu0 %v512, 24
        %v1046 = vpop.permute.xlu0 %1045
        %1047 = vrot.lane.b32.xlu0 %v514, 24
        %v1048 = vpop.permute.xlu0 %1047
        %1049 = vrot.lane.b32.xlu0 %v515, 24
        %v1050 = vpop.permute.xlu0 %1049
        %1051 = vrot.lane.b32.xlu0 %v517, 24
        %v1052 = vpop.permute.xlu0 %1051
        %1053 = vrot.lane.b32.xlu0 %v518, 24
        %v1054 = vpop.permute.xlu0 %1053
        %1055 = vrot.lane.b32.xlu0 %v520, 24
        %v1056 = vpop.permute.xlu0 %1055
        %1057 = vrot.lane.b32.xlu0 %v521, 24
        %v1058 = vpop.permute.xlu0 %1057
        %1059 = vrot.lane.b32.xlu0 %v523, 24
        %v1060 = vpop.permute.xlu0 %1059
        %1061 = vrot.lane.b32.xlu0 %v524, 24
        %v1062 = vpop.permute.xlu0 %1061
        %1063 = vrot.lane.b32.xlu0 %v526, 24
        %v1064 = vpop.permute.xlu0 %1063
        %1065 = vrot.lane.b32.xlu0 %v527, 24
        %v1066 = vpop.permute.xlu0 %1065
        %1067 = vrot.lane.b32.xlu0 %v529, 24
        %v1068 = vpop.permute.xlu0 %1067
        %1069 = vrot.lane.b32.xlu0 %v530, 24
        %v1070 = vpop.permute.xlu0 %1069
        %vm1103 = vcmask 261312
        %1104 = vst.msk [vmem:[#allocation3] sm:$0xff] %vm1103, %v1008
        %1105 = vst.msk [vmem:[#allocation3 + $0x8] sm:$0xff] %vm1103, %v1010
        %1106 = vst.msk [vmem:[#allocation3 + $0x10] sm:$0xff] %vm1103, %v1012
        %1107 = vst.msk [vmem:[#allocation3 + $0x18] sm:$0xff] %vm1103, %v1014
        %1108 = vst.msk [vmem:[#allocation3 + $0x20] sm:$0xff] %vm1103, %v1016
        %1109 = vst.msk [vmem:[#allocation3 + $0x28] sm:$0xff] %vm1103, %v1018
        %1110 = vst.msk [vmem:[#allocation3 + $0x30] sm:$0xff] %vm1103, %v1020
        %1111 = vst.msk [vmem:[#allocation3 + $0x38] sm:$0xff] %vm1103, %v1022
        %1112 = vst.msk [vmem:[#allocation3 + $0x40] sm:$0xff] %vm1103, %v1024
        %1113 = vst.msk [vmem:[#allocation3 + $0x48] sm:$0xff] %vm1103, %v1026
        %1114 = vst.msk [vmem:[#allocation3 + $0x50] sm:$0xff] %vm1103, %v1028
        %1115 = vst.msk [vmem:[#allocation3 + $0x58] sm:$0xff] %vm1103, %v1030
        %1116 = vst.msk [vmem:[#allocation3 + $0x60] sm:$0xff] %vm1103, %v1032
        %1117 = vst.msk [vmem:[#allocation3 + $0x68] sm:$0xff] %vm1103, %v1034
        %1118 = vst.msk [vmem:[#allocation3 + $0x70] sm:$0xff] %vm1103, %v1036
        %1119 = vst.msk [vmem:[#allocation3 + $0x78] sm:$0xff] %vm1103, %v1038
        %1120 = vst.msk [vmem:[#allocation3 + $0x80] sm:$0xff] %vm1103, %v1040
        %1121 = vst.msk [vmem:[#allocation3 + $0x88] sm:$0xff] %vm1103, %v1042
        %1122 = vst.msk [vmem:[#allocation3 + $0x90] sm:$0xff] %vm1103, %v1044
        %1123 = vst.msk [vmem:[#allocation3 + $0x98] sm:$0xff] %vm1103, %v1046
        %1124 = vst.msk [vmem:[#allocation3 + $0xa0] sm:$0xff] %vm1103, %v1048
        %1125 = vst.msk [vmem:[#allocation3 + $0xa8] sm:$0xff] %vm1103, %v1050
        %1126 = vst.msk [vmem:[#allocation3 + $0xb0] sm:$0xff] %vm1103, %v1052
        %1127 = vst.msk [vmem:[#allocation3 + $0xb8] sm:$0xff] %vm1103, %v1054
        %1128 = vst.msk [vmem:[#allocation3 + $0xc0] sm:$0xff] %vm1103, %v1056
        %1129 = vst.msk [vmem:[#allocation3 + $0xc8] sm:$0xff] %vm1103, %v1058
        %1130 = vst.msk [vmem:[#allocation3 + $0xd0] sm:$0xff] %vm1103, %v1060
        %1131 = vst.msk [vmem:[#allocation3 + $0xd8] sm:$0xff] %vm1103, %v1062
        %1132 = vst.msk [vmem:[#allocation3 + $0xe0] sm:$0xff] %vm1103, %v1064
        %1133 = vst.msk [vmem:[#allocation3 + $0xe8] sm:$0xff] %vm1103, %v1066
        %1134 = vst.msk [vmem:[#allocation3 + $0xf0] sm:$0xff] %vm1103, %v1068
        %1135 = vst.msk [vmem:[#allocation3 + $0xf8] sm:$0xff] %vm1103, %v1070
        %1137 = vrot.lane.b32.xlu0 %v484, 32
        %v1138 = vpop.permute.xlu0 %1137
        %1139 = vrot.lane.b32.xlu0 %v485, 32
        %v1140 = vpop.permute.xlu0 %1139
        %1141 = vrot.lane.b32.xlu0 %v486, 32
        %v1142 = vpop.permute.xlu0 %1141
        %1143 = vrot.lane.b32.xlu0 %v487, 32
        %v1144 = vpop.permute.xlu0 %1143
        %1145 = vrot.lane.b32.xlu0 %v488, 32
        %v1146 = vpop.permute.xlu0 %1145
        %1147 = vrot.lane.b32.xlu0 %v489, 32
        %v1148 = vpop.permute.xlu0 %1147
        %1149 = vrot.lane.b32.xlu0 %v490, 32
        %v1150 = vpop.permute.xlu0 %1149
        %1151 = vrot.lane.b32.xlu0 %v491, 32
        %v1152 = vpop.permute.xlu0 %1151
        %1153 = vrot.lane.b32.xlu0 %v492, 32
        %v1154 = vpop.permute.xlu0 %1153
        %1155 = vrot.lane.b32.xlu0 %v493, 32
        %v1156 = vpop.permute.xlu0 %1155
        %1157 = vrot.lane.b32.xlu0 %v494, 32
        %v1158 = vpop.permute.xlu0 %1157
        %1159 = vrot.lane.b32.xlu0 %v495, 32
        %v1160 = vpop.permute.xlu0 %1159
        %1161 = vrot.lane.b32.xlu0 %v496, 32
        %v1162 = vpop.permute.xlu0 %1161
        %1163 = vrot.lane.b32.xlu0 %v497, 32
        %v1164 = vpop.permute.xlu0 %1163
        %1165 = vrot.lane.b32.xlu0 %v498, 32
        %v1166 = vpop.permute.xlu0 %1165
        %1167 = vrot.lane.b32.xlu0 %v499, 32
        %v1168 = vpop.permute.xlu0 %1167
        %1169 = vrot.lane.b32.xlu0 %v500, 32
        %v1170 = vpop.permute.xlu0 %1169
        %1171 = vrot.lane.b32.xlu0 %v501, 32
        %v1172 = vpop.permute.xlu0 %1171
        %1173 = vrot.lane.b32.xlu0 %v502, 32
        %v1174 = vpop.permute.xlu0 %1173
        %1175 = vrot.lane.b32.xlu0 %v503, 32
        %v1176 = vpop.permute.xlu0 %1175
        %1177 = vrot.lane.b32.xlu0 %v504, 32
        %v1178 = vpop.permute.xlu0 %1177
        %1179 = vrot.lane.b32.xlu0 %v505, 32
        %v1180 = vpop.permute.xlu0 %1179
        %1181 = vrot.lane.b32.xlu0 %v506, 32
        %v1182 = vpop.permute.xlu0 %1181
        %1183 = vrot.lane.b32.xlu0 %v507, 32
        %v1184 = vpop.permute.xlu0 %1183
        %1185 = vrot.lane.b32.xlu0 %v508, 32
        %v1186 = vpop.permute.xlu0 %1185
        %1187 = vrot.lane.b32.xlu0 %v509, 32
        %v1188 = vpop.permute.xlu0 %1187
        %1189 = vrot.lane.b32.xlu0 %v510, 32
        %v1190 = vpop.permute.xlu0 %1189
        %1191 = vrot.lane.b32.xlu0 %v511, 32
        %v1192 = vpop.permute.xlu0 %1191
        %1193 = vrot.lane.b32.xlu0 %v512, 32
        %v1194 = vpop.permute.xlu0 %1193
        %1195 = vrot.lane.b32.xlu0 %v513, 32
        %v1196 = vpop.permute.xlu0 %1195
        %1197 = vrot.lane.b32.xlu0 %v514, 32
        %v1198 = vpop.permute.xlu0 %1197
        %1199 = vrot.lane.b32.xlu0 %v515, 32
        %v1200 = vpop.permute.xlu0 %1199
        %1201 = vrot.lane.b32.xlu0 %v516, 32
        %v1202 = vpop.permute.xlu0 %1201
        %1203 = vrot.lane.b32.xlu0 %v517, 32
        %v1204 = vpop.permute.xlu0 %1203
        %1205 = vrot.lane.b32.xlu0 %v518, 32
        %v1206 = vpop.permute.xlu0 %1205
        %1207 = vrot.lane.b32.xlu0 %v519, 32
        %v1208 = vpop.permute.xlu0 %1207
        %1209 = vrot.lane.b32.xlu0 %v520, 32
        %v1210 = vpop.permute.xlu0 %1209
        %1211 = vrot.lane.b32.xlu0 %v521, 32
        %v1212 = vpop.permute.xlu0 %1211
        %1213 = vrot.lane.b32.xlu0 %v522, 32
        %v1214 = vpop.permute.xlu0 %1213
        %1215 = vrot.lane.b32.xlu0 %v523, 32
        %v1216 = vpop.permute.xlu0 %1215
        %1217 = vrot.lane.b32.xlu0 %v524, 32
        %v1218 = vpop.permute.xlu0 %1217
        %1219 = vrot.lane.b32.xlu0 %v525, 32
        %v1220 = vpop.permute.xlu0 %1219
        %1221 = vrot.lane.b32.xlu0 %v526, 32
        %v1222 = vpop.permute.xlu0 %1221
        %1223 = vrot.lane.b32.xlu0 %v527, 32
        %v1224 = vpop.permute.xlu0 %1223
        %1225 = vrot.lane.b32.xlu0 %v528, 32
        %v1226 = vpop.permute.xlu0 %1225
        %1227 = vrot.lane.b32.xlu0 %v529, 32
        %v1228 = vpop.permute.xlu0 %1227
        %1229 = vrot.lane.b32.xlu0 %v530, 32
        %v1230 = vpop.permute.xlu0 %1229
        %1231 = vrot.lane.b32.xlu0 %v531, 32
        %v1232 = vpop.permute.xlu0 %1231
        %vm1281 = vcmask 326913
        %1282 = vst.msk [vmem:[#allocation3 - $0x1] sm:$0xfe] %vm1281, %v1138
        %vm1283 = vcmask 326912
        %1284 = vst.msk [vmem:[#allocation3 + $0x7] sm:$0xff] %vm1283, %v1140
        %vm1285 = vcmask 319744
        %1286 = vst.msk [vmem:[#allocation3 + $0xf] sm:$0x1] %vm1285, %v1142
        %1287 = vst.msk [vmem:[#allocation3 + $0xf] sm:$0xfe] %vm1281, %v1144
        %1288 = vst.msk [vmem:[#allocation3 + $0x17] sm:$0xff] %vm1283, %v1146
        %1289 = vst.msk [vmem:[#allocation3 + $0x1f] sm:$0x1] %vm1285, %v1148
        %1290 = vst.msk [vmem:[#allocation3 + $0x1f] sm:$0xfe] %vm1281, %v1150
        %1291 = vst.msk [vmem:[#allocation3 + $0x27] sm:$0xff] %vm1283, %v1152
        %1292 = vst.msk [vmem:[#allocation3 + $0x2f] sm:$0x1] %vm1285, %v1154
        %1293 = vst.msk [vmem:[#allocation3 + $0x2f] sm:$0xfe] %vm1281, %v1156
        %1294 = vst.msk [vmem:[#allocation3 + $0x37] sm:$0xff] %vm1283, %v1158
        %1295 = vst.msk [vmem:[#allocation3 + $0x3f] sm:$0x1] %vm1285, %v1160
        %1296 = vst.msk [vmem:[#allocation3 + $0x3f] sm:$0xfe] %vm1281, %v1162
        %1297 = vst.msk [vmem:[#allocation3 + $0x47] sm:$0xff] %vm1283, %v1164
        %1298 = vst.msk [vmem:[#allocation3 + $0x4f] sm:$0x1] %vm1285, %v1166
        %1299 = vst.msk [vmem:[#allocation3 + $0x4f] sm:$0xfe] %vm1281, %v1168
        %1300 = vst.msk [vmem:[#allocation3 + $0x57] sm:$0xff] %vm1283, %v1170
        %1301 = vst.msk [vmem:[#allocation3 + $0x5f] sm:$0x1] %vm1285, %v1172
        %1302 = vst.msk [vmem:[#allocation3 + $0x5f] sm:$0xfe] %vm1281, %v1174
        %1303 = vst.msk [vmem:[#allocation3 + $0x67] sm:$0xff] %vm1283, %v1176
        %1304 = vst.msk [vmem:[#allocation3 + $0x6f] sm:$0x1] %vm1285, %v1178
        %1305 = vst.msk [vmem:[#allocation3 + $0x6f] sm:$0xfe] %vm1281, %v1180
        %1306 = vst.msk [vmem:[#allocation3 + $0x77] sm:$0xff] %vm1283, %v1182
        %1307 = vst.msk [vmem:[#allocation3 + $0x7f] sm:$0x1] %vm1285, %v1184
        %1308 = vst.msk [vmem:[#allocation3 + $0x7f] sm:$0xfe] %vm1281, %v1186
        %1309 = vst.msk [vmem:[#allocation3 + $0x87] sm:$0xff] %vm1283, %v1188
        %1310 = vst.msk [vmem:[#allocation3 + $0x8f] sm:$0x1] %vm1285, %v1190
        %1311 = vst.msk [vmem:[#allocation3 + $0x8f] sm:$0xfe] %vm1281, %v1192
        %1312 = vst.msk [vmem:[#allocation3 + $0x97] sm:$0xff] %vm1283, %v1194
        %1313 = vst.msk [vmem:[#allocation3 + $0x9f] sm:$0x1] %vm1285, %v1196
        %1314 = vst.msk [vmem:[#allocation3 + $0x9f] sm:$0xfe] %vm1281, %v1198
        %1315 = vst.msk [vmem:[#allocation3 + $0xa7] sm:$0xff] %vm1283, %v1200
        %1316 = vst.msk [vmem:[#allocation3 + $0xaf] sm:$0x1] %vm1285, %v1202
        %1317 = vst.msk [vmem:[#allocation3 + $0xaf] sm:$0xfe] %vm1281, %v1204
        %1318 = vst.msk [vmem:[#allocation3 + $0xb7] sm:$0xff] %vm1283, %v1206
        %1319 = vst.msk [vmem:[#allocation3 + $0xbf] sm:$0x1] %vm1285, %v1208
        %1320 = vst.msk [vmem:[#allocation3 + $0xbf] sm:$0xfe] %vm1281, %v1210
        %1321 = vst.msk [vmem:[#allocation3 + $0xc7] sm:$0xff] %vm1283, %v1212
        %1322 = vst.msk [vmem:[#allocation3 + $0xcf] sm:$0x1] %vm1285, %v1214
        %1323 = vst.msk [vmem:[#allocation3 + $0xcf] sm:$0xfe] %vm1281, %v1216
        %1324 = vst.msk [vmem:[#allocation3 + $0xd7] sm:$0xff] %vm1283, %v1218
        %1325 = vst.msk [vmem:[#allocation3 + $0xdf] sm:$0x1] %vm1285, %v1220
        %1326 = vst.msk [vmem:[#allocation3 + $0xdf] sm:$0xfe] %vm1281, %v1222
        %1327 = vst.msk [vmem:[#allocation3 + $0xe7] sm:$0xff] %vm1283, %v1224
        %1328 = vst.msk [vmem:[#allocation3 + $0xef] sm:$0x1] %vm1285, %v1226
        %1329 = vst.msk [vmem:[#allocation3 + $0xef] sm:$0xfe] %vm1281, %v1228
        %1330 = vst.msk [vmem:[#allocation3 + $0xf7] sm:$0xff] %vm1283, %v1230
        %1331 = vst.msk [vmem:[#allocation3 + $0xff] sm:$0x1] %vm1285, %v1232
        %1332 = vrot.lane.b32.xlu0 %v484, 40
        %v1333 = vpop.permute.xlu0 %1332
        %1334 = vrot.lane.b32.xlu0 %v485, 40
        %v1335 = vpop.permute.xlu0 %1334
        %1336 = vrot.lane.b32.xlu0 %v486, 40
        %v1337 = vpop.permute.xlu0 %1336
        %1338 = vrot.lane.b32.xlu0 %v487, 40
        %v1339 = vpop.permute.xlu0 %1338
        %1340 = vrot.lane.b32.xlu0 %v488, 40
        %v1341 = vpop.permute.xlu0 %1340
        %1342 = vrot.lane.b32.xlu0 %v489, 40
        %v1343 = vpop.permute.xlu0 %1342
        %1344 = vrot.lane.b32.xlu0 %v490, 40
        %v1345 = vpop.permute.xlu0 %1344
        %1346 = vrot.lane.b32.xlu0 %v491, 40
        %v1347 = vpop.permute.xlu0 %1346
        %1348 = vrot.lane.b32.xlu0 %v492, 40
        %v1349 = vpop.permute.xlu0 %1348
        %1350 = vrot.lane.b32.xlu0 %v493, 40
        %v1351 = vpop.permute.xlu0 %1350
        %1352 = vrot.lane.b32.xlu0 %v494, 40
        %v1353 = vpop.permute.xlu0 %1352
        %1354 = vrot.lane.b32.xlu0 %v495, 40
        %v1355 = vpop.permute.xlu0 %1354
        %1356 = vrot.lane.b32.xlu0 %v496, 40
        %v1357 = vpop.permute.xlu0 %1356
        %1358 = vrot.lane.b32.xlu0 %v497, 40
        %v1359 = vpop.permute.xlu0 %1358
        %1360 = vrot.lane.b32.xlu0 %v498, 40
        %v1361 = vpop.permute.xlu0 %1360
        %1362 = vrot.lane.b32.xlu0 %v499, 40
        %v1363 = vpop.permute.xlu0 %1362
        %1364 = vrot.lane.b32.xlu0 %v500, 40
        %v1365 = vpop.permute.xlu0 %1364
        %1366 = vrot.lane.b32.xlu0 %v501, 40
        %v1367 = vpop.permute.xlu0 %1366
        %1368 = vrot.lane.b32.xlu0 %v502, 40
        %v1369 = vpop.permute.xlu0 %1368
        %1370 = vrot.lane.b32.xlu0 %v503, 40
        %v1371 = vpop.permute.xlu0 %1370
        %1372 = vrot.lane.b32.xlu0 %v504, 40
        %v1373 = vpop.permute.xlu0 %1372
        %1374 = vrot.lane.b32.xlu0 %v505, 40
        %v1375 = vpop.permute.xlu0 %1374
        %1376 = vrot.lane.b32.xlu0 %v506, 40
        %v1377 = vpop.permute.xlu0 %1376
        %1378 = vrot.lane.b32.xlu0 %v507, 40
        %v1379 = vpop.permute.xlu0 %1378
        %1380 = vrot.lane.b32.xlu0 %v508, 40
        %v1381 = vpop.permute.xlu0 %1380
        %1382 = vrot.lane.b32.xlu0 %v509, 40
        %v1383 = vpop.permute.xlu0 %1382
        %1384 = vrot.lane.b32.xlu0 %v510, 40
        %v1385 = vpop.permute.xlu0 %1384
        %1386 = vrot.lane.b32.xlu0 %v511, 40
        %v1387 = vpop.permute.xlu0 %1386
        %1388 = vrot.lane.b32.xlu0 %v512, 40
        %v1389 = vpop.permute.xlu0 %1388
        %1390 = vrot.lane.b32.xlu0 %v513, 40
        %v1391 = vpop.permute.xlu0 %1390
        %1392 = vrot.lane.b32.xlu0 %v514, 40
        %v1393 = vpop.permute.xlu0 %1392
        %1394 = vrot.lane.b32.xlu0 %v515, 40
        %v1395 = vpop.permute.xlu0 %1394
        %1396 = vrot.lane.b32.xlu0 %v516, 40
        %v1397 = vpop.permute.xlu0 %1396
        %1398 = vrot.lane.b32.xlu0 %v517, 40
        %v1399 = vpop.permute.xlu0 %1398
        %1400 = vrot.lane.b32.xlu0 %v518, 40
        %v1401 = vpop.permute.xlu0 %1400
        %1402 = vrot.lane.b32.xlu0 %v519, 40
        %v1403 = vpop.permute.xlu0 %1402
        %1404 = vrot.lane.b32.xlu0 %v520, 40
        %v1405 = vpop.permute.xlu0 %1404
        %1406 = vrot.lane.b32.xlu0 %v521, 40
        %v1407 = vpop.permute.xlu0 %1406
        %1408 = vrot.lane.b32.xlu0 %v522, 40
        %v1409 = vpop.permute.xlu0 %1408
        %1410 = vrot.lane.b32.xlu0 %v523, 40
        %v1411 = vpop.permute.xlu0 %1410
        %1412 = vrot.lane.b32.xlu0 %v524, 40
        %v1413 = vpop.permute.xlu0 %1412
        %1414 = vrot.lane.b32.xlu0 %v525, 40
        %v1415 = vpop.permute.xlu0 %1414
        %1416 = vrot.lane.b32.xlu0 %v526, 40
        %v1417 = vpop.permute.xlu0 %1416
        %1418 = vrot.lane.b32.xlu0 %v527, 40
        %v1419 = vpop.permute.xlu0 %1418
        %1420 = vrot.lane.b32.xlu0 %v528, 40
        %v1421 = vpop.permute.xlu0 %1420
        %1422 = vrot.lane.b32.xlu0 %v529, 40
        %v1423 = vpop.permute.xlu0 %1422
        %1424 = vrot.lane.b32.xlu0 %v530, 40
        %v1425 = vpop.permute.xlu0 %1424
        %1426 = vrot.lane.b32.xlu0 %v531, 40
        %v1427 = vpop.permute.xlu0 %1426
        %vm1476 = vcmask 392514
        %1477 = vst.msk [vmem:[#allocation3 - $0x2] sm:$0xfc] %vm1476, %v1333
        %vm1478 = vcmask 392512
        %1479 = vst.msk [vmem:[#allocation3 + $0x6] sm:$0xff] %vm1478, %v1335
        %vm1480 = vcmask 386368
        %1481 = vst.msk [vmem:[#allocation3 + $0xe] sm:$0x3] %vm1480, %v1337
        %1482 = vst.msk [vmem:[#allocation3 + $0xe] sm:$0xfc] %vm1476, %v1339
        %1483 = vst.msk [vmem:[#allocation3 + $0x16] sm:$0xff] %vm1478, %v1341
        %1484 = vst.msk [vmem:[#allocation3 + $0x1e] sm:$0x3] %vm1480, %v1343
        %1485 = vst.msk [vmem:[#allocation3 + $0x1e] sm:$0xfc] %vm1476, %v1345
        %1486 = vst.msk [vmem:[#allocation3 + $0x26] sm:$0xff] %vm1478, %v1347
        %1487 = vst.msk [vmem:[#allocation3 + $0x2e] sm:$0x3] %vm1480, %v1349
        %1488 = vst.msk [vmem:[#allocation3 + $0x2e] sm:$0xfc] %vm1476, %v1351
        %1489 = vst.msk [vmem:[#allocation3 + $0x36] sm:$0xff] %vm1478, %v1353
        %1490 = vst.msk [vmem:[#allocation3 + $0x3e] sm:$0x3] %vm1480, %v1355
        %1491 = vst.msk [vmem:[#allocation3 + $0x3e] sm:$0xfc] %vm1476, %v1357
        %1492 = vst.msk [vmem:[#allocation3 + $0x46] sm:$0xff] %vm1478, %v1359
        %1493 = vst.msk [vmem:[#allocation3 + $0x4e] sm:$0x3] %vm1480, %v1361
        %1494 = vst.msk [vmem:[#allocation3 + $0x4e] sm:$0xfc] %vm1476, %v1363
        %1495 = vst.msk [vmem:[#allocation3 + $0x56] sm:$0xff] %vm1478, %v1365
        %1496 = vst.msk [vmem:[#allocation3 + $0x5e] sm:$0x3] %vm1480, %v1367
        %1497 = vst.msk [vmem:[#allocation3 + $0x5e] sm:$0xfc] %vm1476, %v1369
        %1498 = vst.msk [vmem:[#allocation3 + $0x66] sm:$0xff] %vm1478, %v1371
        %1499 = vst.msk [vmem:[#allocation3 + $0x6e] sm:$0x3] %vm1480, %v1373
        %1500 = vst.msk [vmem:[#allocation3 + $0x6e] sm:$0xfc] %vm1476, %v1375
        %1501 = vst.msk [vmem:[#allocation3 + $0x76] sm:$0xff] %vm1478, %v1377
        %1502 = vst.msk [vmem:[#allocation3 + $0x7e] sm:$0x3] %vm1480, %v1379
        %1503 = vst.msk [vmem:[#allocation3 + $0x7e] sm:$0xfc] %vm1476, %v1381
        %1504 = vst.msk [vmem:[#allocation3 + $0x86] sm:$0xff] %vm1478, %v1383
        %1505 = vst.msk [vmem:[#allocation3 + $0x8e] sm:$0x3] %vm1480, %v1385
        %1506 = vst.msk [vmem:[#allocation3 + $0x8e] sm:$0xfc] %vm1476, %v1387
        %1507 = vst.msk [vmem:[#allocation3 + $0x96] sm:$0xff] %vm1478, %v1389
        %1508 = vst.msk [vmem:[#allocation3 + $0x9e] sm:$0x3] %vm1480, %v1391
        %1509 = vst.msk [vmem:[#allocation3 + $0x9e] sm:$0xfc] %vm1476, %v1393
        %1510 = vst.msk [vmem:[#allocation3 + $0xa6] sm:$0xff] %vm1478, %v1395
        %1511 = vst.msk [vmem:[#allocation3 + $0xae] sm:$0x3] %vm1480, %v1397
        %1512 = vst.msk [vmem:[#allocation3 + $0xae] sm:$0xfc] %vm1476, %v1399
        %1513 = vst.msk [vmem:[#allocation3 + $0xb6] sm:$0xff] %vm1478, %v1401
        %1514 = vst.msk [vmem:[#allocation3 + $0xbe] sm:$0x3] %vm1480, %v1403
        %1515 = vst.msk [vmem:[#allocation3 + $0xbe] sm:$0xfc] %vm1476, %v1405
        %1516 = vst.msk [vmem:[#allocation3 + $0xc6] sm:$0xff] %vm1478, %v1407
        %1517 = vst.msk [vmem:[#allocation3 + $0xce] sm:$0x3] %vm1480, %v1409
        %1518 = vst.msk [vmem:[#allocation3 + $0xce] sm:$0xfc] %vm1476, %v1411
        %1519 = vst.msk [vmem:[#allocation3 + $0xd6] sm:$0xff] %vm1478, %v1413
        %1520 = vst.msk [vmem:[#allocation3 + $0xde] sm:$0x3] %vm1480, %v1415
        %1521 = vst.msk [vmem:[#allocation3 + $0xde] sm:$0xfc] %vm1476, %v1417
        %1522 = vst.msk [vmem:[#allocation3 + $0xe6] sm:$0xff] %vm1478, %v1419
        %1523 = vst.msk [vmem:[#allocation3 + $0xee] sm:$0x3] %vm1480, %v1421
        %1524 = vst.msk [vmem:[#allocation3 + $0xee] sm:$0xfc] %vm1476, %v1423
        %1525 = vst.msk [vmem:[#allocation3 + $0xf6] sm:$0xff] %vm1478, %v1425
        %1526 = vst.msk [vmem:[#allocation3 + $0xfe] sm:$0x3] %vm1480, %v1427
        %1529 = vrot.lane.b32.xlu0 %v487, 48
        %v1530 = vpop.permute.xlu0 %1529
        %1531 = vrot.lane.b32.xlu0 %v488, 48
        %v1532 = vpop.permute.xlu0 %1531
        %1533 = vrot.lane.b32.xlu0 %v490, 48
        %v1534 = vpop.permute.xlu0 %1533
        %1535 = vrot.lane.b32.xlu0 %v491, 48
        %v1536 = vpop.permute.xlu0 %1535
        %1537 = vrot.lane.b32.xlu0 %v493, 48
        %v1538 = vpop.permute.xlu0 %1537
        %1539 = vrot.lane.b32.xlu0 %v494, 48
        %v1540 = vpop.permute.xlu0 %1539
        %1541 = vrot.lane.b32.xlu0 %v496, 48
        %v1542 = vpop.permute.xlu0 %1541
        %1543 = vrot.lane.b32.xlu0 %v497, 48
        %v1544 = vpop.permute.xlu0 %1543
        %1545 = vrot.lane.b32.xlu0 %v499, 48
        %v1546 = vpop.permute.xlu0 %1545
        %1547 = vrot.lane.b32.xlu0 %v500, 48
        %v1548 = vpop.permute.xlu0 %1547
        %1549 = vrot.lane.b32.xlu0 %v502, 48
        %v1550 = vpop.permute.xlu0 %1549
        %1551 = vrot.lane.b32.xlu0 %v503, 48
        %v1552 = vpop.permute.xlu0 %1551
        %1553 = vrot.lane.b32.xlu0 %v505, 48
        %v1554 = vpop.permute.xlu0 %1553
        %1555 = vrot.lane.b32.xlu0 %v506, 48
        %v1556 = vpop.permute.xlu0 %1555
        %1557 = vrot.lane.b32.xlu0 %v508, 48
        %v1558 = vpop.permute.xlu0 %1557
        %1559 = vrot.lane.b32.xlu0 %v509, 48
        %v1560 = vpop.permute.xlu0 %1559
        %1561 = vrot.lane.b32.xlu0 %v511, 48
        %v1562 = vpop.permute.xlu0 %1561
        %1563 = vrot.lane.b32.xlu0 %v512, 48
        %v1564 = vpop.permute.xlu0 %1563
        %1565 = vrot.lane.b32.xlu0 %v514, 48
        %v1566 = vpop.permute.xlu0 %1565
        %1567 = vrot.lane.b32.xlu0 %v515, 48
        %v1568 = vpop.permute.xlu0 %1567
        %1569 = vrot.lane.b32.xlu0 %v517, 48
        %v1570 = vpop.permute.xlu0 %1569
        %1571 = vrot.lane.b32.xlu0 %v518, 48
        %v1572 = vpop.permute.xlu0 %1571
        %1573 = vrot.lane.b32.xlu0 %v520, 48
        %v1574 = vpop.permute.xlu0 %1573
        %1575 = vrot.lane.b32.xlu0 %v521, 48
        %v1576 = vpop.permute.xlu0 %1575
        %1577 = vrot.lane.b32.xlu0 %v523, 48
        %v1578 = vpop.permute.xlu0 %1577
        %1579 = vrot.lane.b32.xlu0 %v524, 48
        %v1580 = vpop.permute.xlu0 %1579
        %1581 = vrot.lane.b32.xlu0 %v526, 48
        %v1582 = vpop.permute.xlu0 %1581
        %1583 = vrot.lane.b32.xlu0 %v527, 48
        %v1584 = vpop.permute.xlu0 %1583
        %1585 = vrot.lane.b32.xlu0 %v529, 48
        %v1586 = vpop.permute.xlu0 %1585
        %1587 = vrot.lane.b32.xlu0 %v530, 48
        %v1588 = vpop.permute.xlu0 %1587
        %1589 = vrot.lane.b32.xlu0 %v532, 48
        %v1590 = vpop.permute.xlu0 %1589
        %1591 = vrot.lane.b32.xlu0 %v533, 48
        %v1592 = vpop.permute.xlu0 %1591
        %vm1625 = vcmask 458112
        %1626 = vst.msk [vmem:[#allocation3] sm:$0xff] %vm1625, %v1530
        %1627 = vst.msk [vmem:[#allocation3 + $0x8] sm:$0xff] %vm1625, %v1532
        %1628 = vst.msk [vmem:[#allocation3 + $0x10] sm:$0xff] %vm1625, %v1534
        %1629 = vst.msk [vmem:[#allocation3 + $0x18] sm:$0xff] %vm1625, %v1536
        %1630 = vst.msk [vmem:[#allocation3 + $0x20] sm:$0xff] %vm1625, %v1538
        %1631 = vst.msk [vmem:[#allocation3 + $0x28] sm:$0xff] %vm1625, %v1540
        %1632 = vst.msk [vmem:[#allocation3 + $0x30] sm:$0xff] %vm1625, %v1542
        %1633 = vst.msk [vmem:[#allocation3 + $0x38] sm:$0xff] %vm1625, %v1544
        %1634 = vst.msk [vmem:[#allocation3 + $0x40] sm:$0xff] %vm1625, %v1546
        %1635 = vst.msk [vmem:[#allocation3 + $0x48] sm:$0xff] %vm1625, %v1548
        %1636 = vst.msk [vmem:[#allocation3 + $0x50] sm:$0xff] %vm1625, %v1550
        %1637 = vst.msk [vmem:[#allocation3 + $0x58] sm:$0xff] %vm1625, %v1552
        %1638 = vst.msk [vmem:[#allocation3 + $0x60] sm:$0xff] %vm1625, %v1554
        %1639 = vst.msk [vmem:[#allocation3 + $0x68] sm:$0xff] %vm1625, %v1556
        %1640 = vst.msk [vmem:[#allocation3 + $0x70] sm:$0xff] %vm1625, %v1558
        %1641 = vst.msk [vmem:[#allocation3 + $0x78] sm:$0xff] %vm1625, %v1560
        %1642 = vst.msk [vmem:[#allocation3 + $0x80] sm:$0xff] %vm1625, %v1562
        %1643 = vst.msk [vmem:[#allocation3 + $0x88] sm:$0xff] %vm1625, %v1564
        %1644 = vst.msk [vmem:[#allocation3 + $0x90] sm:$0xff] %vm1625, %v1566
        %1645 = vst.msk [vmem:[#allocation3 + $0x98] sm:$0xff] %vm1625, %v1568
        %1646 = vst.msk [vmem:[#allocation3 + $0xa0] sm:$0xff] %vm1625, %v1570
        %1647 = vst.msk [vmem:[#allocation3 + $0xa8] sm:$0xff] %vm1625, %v1572
        %1648 = vst.msk [vmem:[#allocation3 + $0xb0] sm:$0xff] %vm1625, %v1574
        %1649 = vst.msk [vmem:[#allocation3 + $0xb8] sm:$0xff] %vm1625, %v1576
        %1650 = vst.msk [vmem:[#allocation3 + $0xc0] sm:$0xff] %vm1625, %v1578
        %1651 = vst.msk [vmem:[#allocation3 + $0xc8] sm:$0xff] %vm1625, %v1580
        %1652 = vst.msk [vmem:[#allocation3 + $0xd0] sm:$0xff] %vm1625, %v1582
        %1653 = vst.msk [vmem:[#allocation3 + $0xd8] sm:$0xff] %vm1625, %v1584
        %1654 = vst.msk [vmem:[#allocation3 + $0xe0] sm:$0xff] %vm1625, %v1586
        %1655 = vst.msk [vmem:[#allocation3 + $0xe8] sm:$0xff] %vm1625, %v1588
        %1656 = vst.msk [vmem:[#allocation3 + $0xf0] sm:$0xff] %vm1625, %v1590
        %1657 = vst.msk [vmem:[#allocation3 + $0xf8] sm:$0xff] %vm1625, %v1592
        %1659 = vrot.lane.b32.xlu0 %v487, 56
        %v1660 = vpop.permute.xlu0 %1659
        %1661 = vrot.lane.b32.xlu0 %v488, 56
        %v1662 = vpop.permute.xlu0 %1661
        %1663 = vrot.lane.b32.xlu0 %v489, 56
        %v1664 = vpop.permute.xlu0 %1663
        %1665 = vrot.lane.b32.xlu0 %v490, 56
        %v1666 = vpop.permute.xlu0 %1665
        %1667 = vrot.lane.b32.xlu0 %v491, 56
        %v1668 = vpop.permute.xlu0 %1667
        %1669 = vrot.lane.b32.xlu0 %v492, 56
        %v1670 = vpop.permute.xlu0 %1669
        %1671 = vrot.lane.b32.xlu0 %v493, 56
        %v1672 = vpop.permute.xlu0 %1671
        %1673 = vrot.lane.b32.xlu0 %v494, 56
        %v1674 = vpop.permute.xlu0 %1673
        %1675 = vrot.lane.b32.xlu0 %v495, 56
        %v1676 = vpop.permute.xlu0 %1675
        %1677 = vrot.lane.b32.xlu0 %v496, 56
        %v1678 = vpop.permute.xlu0 %1677
        %1679 = vrot.lane.b32.xlu0 %v497, 56
        %v1680 = vpop.permute.xlu0 %1679
        %1681 = vrot.lane.b32.xlu0 %v498, 56
        %v1682 = vpop.permute.xlu0 %1681
        %1683 = vrot.lane.b32.xlu0 %v499, 56
        %v1684 = vpop.permute.xlu0 %1683
        %1685 = vrot.lane.b32.xlu0 %v500, 56
        %v1686 = vpop.permute.xlu0 %1685
        %1687 = vrot.lane.b32.xlu0 %v501, 56
        %v1688 = vpop.permute.xlu0 %1687
        %1689 = vrot.lane.b32.xlu0 %v502, 56
        %v1690 = vpop.permute.xlu0 %1689
        %1691 = vrot.lane.b32.xlu0 %v503, 56
        %v1692 = vpop.permute.xlu0 %1691
        %1693 = vrot.lane.b32.xlu0 %v504, 56
        %v1694 = vpop.permute.xlu0 %1693
        %1695 = vrot.lane.b32.xlu0 %v505, 56
        %v1696 = vpop.permute.xlu0 %1695
        %1697 = vrot.lane.b32.xlu0 %v506, 56
        %v1698 = vpop.permute.xlu0 %1697
        %1699 = vrot.lane.b32.xlu0 %v507, 56
        %v1700 = vpop.permute.xlu0 %1699
        %1701 = vrot.lane.b32.xlu0 %v508, 56
        %v1702 = vpop.permute.xlu0 %1701
        %1703 = vrot.lane.b32.xlu0 %v509, 56
        %v1704 = vpop.permute.xlu0 %1703
        %1705 = vrot.lane.b32.xlu0 %v510, 56
        %v1706 = vpop.permute.xlu0 %1705
        %1707 = vrot.lane.b32.xlu0 %v511, 56
        %v1708 = vpop.permute.xlu0 %1707
        %1709 = vrot.lane.b32.xlu0 %v512, 56
        %v1710 = vpop.permute.xlu0 %1709
        %1711 = vrot.lane.b32.xlu0 %v513, 56
        %v1712 = vpop.permute.xlu0 %1711
        %1713 = vrot.lane.b32.xlu0 %v514, 56
        %v1714 = vpop.permute.xlu0 %1713
        %1715 = vrot.lane.b32.xlu0 %v515, 56
        %v1716 = vpop.permute.xlu0 %1715
        %1717 = vrot.lane.b32.xlu0 %v516, 56
        %v1718 = vpop.permute.xlu0 %1717
        %1719 = vrot.lane.b32.xlu0 %v517, 56
        %v1720 = vpop.permute.xlu0 %1719
        %1721 = vrot.lane.b32.xlu0 %v518, 56
        %v1722 = vpop.permute.xlu0 %1721
        %1723 = vrot.lane.b32.xlu0 %v519, 56
        %v1724 = vpop.permute.xlu0 %1723
        %1725 = vrot.lane.b32.xlu0 %v520, 56
        %v1726 = vpop.permute.xlu0 %1725
        %1727 = vrot.lane.b32.xlu0 %v521, 56
        %v1728 = vpop.permute.xlu0 %1727
        %1729 = vrot.lane.b32.xlu0 %v522, 56
        %v1730 = vpop.permute.xlu0 %1729
        %1731 = vrot.lane.b32.xlu0 %v523, 56
        %v1732 = vpop.permute.xlu0 %1731
        %1733 = vrot.lane.b32.xlu0 %v524, 56
        %v1734 = vpop.permute.xlu0 %1733
        %1735 = vrot.lane.b32.xlu0 %v525, 56
        %v1736 = vpop.permute.xlu0 %1735
        %1737 = vrot.lane.b32.xlu0 %v526, 56
        %v1738 = vpop.permute.xlu0 %1737
        %1739 = vrot.lane.b32.xlu0 %v527, 56
        %v1740 = vpop.permute.xlu0 %1739
        %1741 = vrot.lane.b32.xlu0 %v528, 56
        %v1742 = vpop.permute.xlu0 %1741
        %1743 = vrot.lane.b32.xlu0 %v529, 56
        %v1744 = vpop.permute.xlu0 %1743
        %1745 = vrot.lane.b32.xlu0 %v530, 56
        %v1746 = vpop.permute.xlu0 %1745
        %1747 = vrot.lane.b32.xlu0 %v531, 56
        %v1748 = vpop.permute.xlu0 %1747
        %1749 = vrot.lane.b32.xlu0 %v532, 56
        %v1750 = vpop.permute.xlu0 %1749
        %1751 = vrot.lane.b32.xlu0 %v533, 56
        %v1752 = vpop.permute.xlu0 %1751
        %1753 = vrot.lane.b32.xlu0 %v534, 56
        %v1754 = vpop.permute.xlu0 %1753
        %vm1803 = vcmask 523713
        %1804 = vst.msk [vmem:[#allocation3 - $0x1] sm:$0xfe] %vm1803, %v1660
        %vm1805 = vcmask 523712
        %1806 = vst.msk [vmem:[#allocation3 + $0x7] sm:$0xff] %vm1805, %v1662
        %vm1807 = vcmask 516544
        %1808 = vst.msk [vmem:[#allocation3 + $0xf] sm:$0x1] %vm1807, %v1664
        %1809 = vst.msk [vmem:[#allocation3 + $0xf] sm:$0xfe] %vm1803, %v1666
        %1810 = vst.msk [vmem:[#allocation3 + $0x17] sm:$0xff] %vm1805, %v1668
        %1811 = vst.msk [vmem:[#allocation3 + $0x1f] sm:$0x1] %vm1807, %v1670
        %1812 = vst.msk [vmem:[#allocation3 + $0x1f] sm:$0xfe] %vm1803, %v1672
        %1813 = vst.msk [vmem:[#allocation3 + $0x27] sm:$0xff] %vm1805, %v1674
        %1814 = vst.msk [vmem:[#allocation3 + $0x2f] sm:$0x1] %vm1807, %v1676
        %1815 = vst.msk [vmem:[#allocation3 + $0x2f] sm:$0xfe] %vm1803, %v1678
        %1816 = vst.msk [vmem:[#allocation3 + $0x37] sm:$0xff] %vm1805, %v1680
        %1817 = vst.msk [vmem:[#allocation3 + $0x3f] sm:$0x1] %vm1807, %v1682
        %1818 = vst.msk [vmem:[#allocation3 + $0x3f] sm:$0xfe] %vm1803, %v1684
        %1819 = vst.msk [vmem:[#allocation3 + $0x47] sm:$0xff] %vm1805, %v1686
        %1820 = vst.msk [vmem:[#allocation3 + $0x4f] sm:$0x1] %vm1807, %v1688
        %1821 = vst.msk [vmem:[#allocation3 + $0x4f] sm:$0xfe] %vm1803, %v1690
        %1822 = vst.msk [vmem:[#allocation3 + $0x57] sm:$0xff] %vm1805, %v1692
        %1823 = vst.msk [vmem:[#allocation3 + $0x5f] sm:$0x1] %vm1807, %v1694
        %1824 = vst.msk [vmem:[#allocation3 + $0x5f] sm:$0xfe] %vm1803, %v1696
        %1825 = vst.msk [vmem:[#allocation3 + $0x67] sm:$0xff] %vm1805, %v1698
        %1826 = vst.msk [vmem:[#allocation3 + $0x6f] sm:$0x1] %vm1807, %v1700
        %1827 = vst.msk [vmem:[#allocation3 + $0x6f] sm:$0xfe] %vm1803, %v1702
        %1828 = vst.msk [vmem:[#allocation3 + $0x77] sm:$0xff] %vm1805, %v1704
        %1829 = vst.msk [vmem:[#allocation3 + $0x7f] sm:$0x1] %vm1807, %v1706
        %1830 = vst.msk [vmem:[#allocation3 + $0x7f] sm:$0xfe] %vm1803, %v1708
        %1831 = vst.msk [vmem:[#allocation3 + $0x87] sm:$0xff] %vm1805, %v1710
        %1832 = vst.msk [vmem:[#allocation3 + $0x8f] sm:$0x1] %vm1807, %v1712
        %1833 = vst.msk [vmem:[#allocation3 + $0x8f] sm:$0xfe] %vm1803, %v1714
        %1834 = vst.msk [vmem:[#allocation3 + $0x97] sm:$0xff] %vm1805, %v1716
        %1835 = vst.msk [vmem:[#allocation3 + $0x9f] sm:$0x1] %vm1807, %v1718
        %1836 = vst.msk [vmem:[#allocation3 + $0x9f] sm:$0xfe] %vm1803, %v1720
        %1837 = vst.msk [vmem:[#allocation3 + $0xa7] sm:$0xff] %vm1805, %v1722
        %1838 = vst.msk [vmem:[#allocation3 + $0xaf] sm:$0x1] %vm1807, %v1724
        %1839 = vst.msk [vmem:[#allocation3 + $0xaf] sm:$0xfe] %vm1803, %v1726
        %1840 = vst.msk [vmem:[#allocation3 + $0xb7] sm:$0xff] %vm1805, %v1728
        %1841 = vst.msk [vmem:[#allocation3 + $0xbf] sm:$0x1] %vm1807, %v1730
        %1842 = vst.msk [vmem:[#allocation3 + $0xbf] sm:$0xfe] %vm1803, %v1732
        %1843 = vst.msk [vmem:[#allocation3 + $0xc7] sm:$0xff] %vm1805, %v1734
        %1844 = vst.msk [vmem:[#allocation3 + $0xcf] sm:$0x1] %vm1807, %v1736
        %1845 = vst.msk [vmem:[#allocation3 + $0xcf] sm:$0xfe] %vm1803, %v1738
        %1846 = vst.msk [vmem:[#allocation3 + $0xd7] sm:$0xff] %vm1805, %v1740
        %1847 = vst.msk [vmem:[#allocation3 + $0xdf] sm:$0x1] %vm1807, %v1742
        %1848 = vst.msk [vmem:[#allocation3 + $0xdf] sm:$0xfe] %vm1803, %v1744
        %1849 = vst.msk [vmem:[#allocation3 + $0xe7] sm:$0xff] %vm1805, %v1746
        %1850 = vst.msk [vmem:[#allocation3 + $0xef] sm:$0x1] %vm1807, %v1748
        %1851 = vst.msk [vmem:[#allocation3 + $0xef] sm:$0xfe] %vm1803, %v1750
        %1852 = vst.msk [vmem:[#allocation3 + $0xf7] sm:$0xff] %vm1805, %v1752
        %1853 = vst.msk [vmem:[#allocation3 + $0xff] sm:$0x1] %vm1807, %v1754
        %1854 = vrot.lane.b32.xlu0 %v487, 64
        %v1855 = vpop.permute.xlu0 %1854
        %1856 = vrot.lane.b32.xlu0 %v488, 64
        %v1857 = vpop.permute.xlu0 %1856
        %1858 = vrot.lane.b32.xlu0 %v489, 64
        %v1859 = vpop.permute.xlu0 %1858
        %1860 = vrot.lane.b32.xlu0 %v490, 64
        %v1861 = vpop.permute.xlu0 %1860
        %1862 = vrot.lane.b32.xlu0 %v491, 64
        %v1863 = vpop.permute.xlu0 %1862
        %1864 = vrot.lane.b32.xlu0 %v492, 64
        %v1865 = vpop.permute.xlu0 %1864
        %1866 = vrot.lane.b32.xlu0 %v493, 64
        %v1867 = vpop.permute.xlu0 %1866
        %1868 = vrot.lane.b32.xlu0 %v494, 64
        %v1869 = vpop.permute.xlu0 %1868
        %1870 = vrot.lane.b32.xlu0 %v495, 64
        %v1871 = vpop.permute.xlu0 %1870
        %1872 = vrot.lane.b32.xlu0 %v496, 64
        %v1873 = vpop.permute.xlu0 %1872
        %1874 = vrot.lane.b32.xlu0 %v497, 64
        %v1875 = vpop.permute.xlu0 %1874
        %1876 = vrot.lane.b32.xlu0 %v498, 64
        %v1877 = vpop.permute.xlu0 %1876
        %1878 = vrot.lane.b32.xlu0 %v499, 64
        %v1879 = vpop.permute.xlu0 %1878
        %1880 = vrot.lane.b32.xlu0 %v500, 64
        %v1881 = vpop.permute.xlu0 %1880
        %1882 = vrot.lane.b32.xlu0 %v501, 64
        %v1883 = vpop.permute.xlu0 %1882
        %1884 = vrot.lane.b32.xlu0 %v502, 64
        %v1885 = vpop.permute.xlu0 %1884
        %1886 = vrot.lane.b32.xlu0 %v503, 64
        %v1887 = vpop.permute.xlu0 %1886
        %1888 = vrot.lane.b32.xlu0 %v504, 64
        %v1889 = vpop.permute.xlu0 %1888
        %1890 = vrot.lane.b32.xlu0 %v505, 64
        %v1891 = vpop.permute.xlu0 %1890
        %1892 = vrot.lane.b32.xlu0 %v506, 64
        %v1893 = vpop.permute.xlu0 %1892
        %1894 = vrot.lane.b32.xlu0 %v507, 64
        %v1895 = vpop.permute.xlu0 %1894
        %1896 = vrot.lane.b32.xlu0 %v508, 64
        %v1897 = vpop.permute.xlu0 %1896
        %1898 = vrot.lane.b32.xlu0 %v509, 64
        %v1899 = vpop.permute.xlu0 %1898
        %1900 = vrot.lane.b32.xlu0 %v510, 64
        %v1901 = vpop.permute.xlu0 %1900
        %1902 = vrot.lane.b32.xlu0 %v511, 64
        %v1903 = vpop.permute.xlu0 %1902
        %1904 = vrot.lane.b32.xlu0 %v512, 64
        %v1905 = vpop.permute.xlu0 %1904
        %1906 = vrot.lane.b32.xlu0 %v513, 64
        %v1907 = vpop.permute.xlu0 %1906
        %1908 = vrot.lane.b32.xlu0 %v514, 64
        %v1909 = vpop.permute.xlu0 %1908
        %1910 = vrot.lane.b32.xlu0 %v515, 64
        %v1911 = vpop.permute.xlu0 %1910
        %1912 = vrot.lane.b32.xlu0 %v516, 64
        %v1913 = vpop.permute.xlu0 %1912
        %1914 = vrot.lane.b32.xlu0 %v517, 64
        %v1915 = vpop.permute.xlu0 %1914
        %1916 = vrot.lane.b32.xlu0 %v518, 64
        %v1917 = vpop.permute.xlu0 %1916
        %1918 = vrot.lane.b32.xlu0 %v519, 64
        %v1919 = vpop.permute.xlu0 %1918
        %1920 = vrot.lane.b32.xlu0 %v520, 64
        %v1921 = vpop.permute.xlu0 %1920
        %1922 = vrot.lane.b32.xlu0 %v521, 64
        %v1923 = vpop.permute.xlu0 %1922
        %1924 = vrot.lane.b32.xlu0 %v522, 64
        %v1925 = vpop.permute.xlu0 %1924
        %1926 = vrot.lane.b32.xlu0 %v523, 64
        %v1927 = vpop.permute.xlu0 %1926
        %1928 = vrot.lane.b32.xlu0 %v524, 64
        %v1929 = vpop.permute.xlu0 %1928
        %1930 = vrot.lane.b32.xlu0 %v525, 64
        %v1931 = vpop.permute.xlu0 %1930
        %1932 = vrot.lane.b32.xlu0 %v526, 64
        %v1933 = vpop.permute.xlu0 %1932
        %1934 = vrot.lane.b32.xlu0 %v527, 64
        %v1935 = vpop.permute.xlu0 %1934
        %1936 = vrot.lane.b32.xlu0 %v528, 64
        %v1937 = vpop.permute.xlu0 %1936
        %1938 = vrot.lane.b32.xlu0 %v529, 64
        %v1939 = vpop.permute.xlu0 %1938
        %1940 = vrot.lane.b32.xlu0 %v530, 64
        %v1941 = vpop.permute.xlu0 %1940
        %1942 = vrot.lane.b32.xlu0 %v531, 64
        %v1943 = vpop.permute.xlu0 %1942
        %1944 = vrot.lane.b32.xlu0 %v532, 64
        %v1945 = vpop.permute.xlu0 %1944
        %1946 = vrot.lane.b32.xlu0 %v533, 64
        %v1947 = vpop.permute.xlu0 %1946
        %1948 = vrot.lane.b32.xlu0 %v534, 64
        %v1949 = vpop.permute.xlu0 %1948
        %vm1998 = vcmask 589314
        %1999 = vst.msk [vmem:[#allocation3 - $0x2] sm:$0xfc] %vm1998, %v1855
        %vm2000 = vcmask 589312
        %2001 = vst.msk [vmem:[#allocation3 + $0x6] sm:$0xff] %vm2000, %v1857
        %vm2002 = vcmask 583168
        %2003 = vst.msk [vmem:[#allocation3 + $0xe] sm:$0x3] %vm2002, %v1859
        %2004 = vst.msk [vmem:[#allocation3 + $0xe] sm:$0xfc] %vm1998, %v1861
        %2005 = vst.msk [vmem:[#allocation3 + $0x16] sm:$0xff] %vm2000, %v1863
        %2006 = vst.msk [vmem:[#allocation3 + $0x1e] sm:$0x3] %vm2002, %v1865
        %2007 = vst.msk [vmem:[#allocation3 + $0x1e] sm:$0xfc] %vm1998, %v1867
        %2008 = vst.msk [vmem:[#allocation3 + $0x26] sm:$0xff] %vm2000, %v1869
        %2009 = vst.msk [vmem:[#allocation3 + $0x2e] sm:$0x3] %vm2002, %v1871
        %2010 = vst.msk [vmem:[#allocation3 + $0x2e] sm:$0xfc] %vm1998, %v1873
        %2011 = vst.msk [vmem:[#allocation3 + $0x36] sm:$0xff] %vm2000, %v1875
        %2012 = vst.msk [vmem:[#allocation3 + $0x3e] sm:$0x3] %vm2002, %v1877
        %2013 = vst.msk [vmem:[#allocation3 + $0x3e] sm:$0xfc] %vm1998, %v1879
        %2014 = vst.msk [vmem:[#allocation3 + $0x46] sm:$0xff] %vm2000, %v1881
        %2015 = vst.msk [vmem:[#allocation3 + $0x4e] sm:$0x3] %vm2002, %v1883
        %2016 = vst.msk [vmem:[#allocation3 + $0x4e] sm:$0xfc] %vm1998, %v1885
        %2017 = vst.msk [vmem:[#allocation3 + $0x56] sm:$0xff] %vm2000, %v1887
        %2018 = vst.msk [vmem:[#allocation3 + $0x5e] sm:$0x3] %vm2002, %v1889
        %2019 = vst.msk [vmem:[#allocation3 + $0x5e] sm:$0xfc] %vm1998, %v1891
        %2020 = vst.msk [vmem:[#allocation3 + $0x66] sm:$0xff] %vm2000, %v1893
        %2021 = vst.msk [vmem:[#allocation3 + $0x6e] sm:$0x3] %vm2002, %v1895
        %2022 = vst.msk [vmem:[#allocation3 + $0x6e] sm:$0xfc] %vm1998, %v1897
        %2023 = vst.msk [vmem:[#allocation3 + $0x76] sm:$0xff] %vm2000, %v1899
        %2024 = vst.msk [vmem:[#allocation3 + $0x7e] sm:$0x3] %vm2002, %v1901
        %2025 = vst.msk [vmem:[#allocation3 + $0x7e] sm:$0xfc] %vm1998, %v1903
        %2026 = vst.msk [vmem:[#allocation3 + $0x86] sm:$0xff] %vm2000, %v1905
        %2027 = vst.msk [vmem:[#allocation3 + $0x8e] sm:$0x3] %vm2002, %v1907
        %2028 = vst.msk [vmem:[#allocation3 + $0x8e] sm:$0xfc] %vm1998, %v1909
        %2029 = vst.msk [vmem:[#allocation3 + $0x96] sm:$0xff] %vm2000, %v1911
        %2030 = vst.msk [vmem:[#allocation3 + $0x9e] sm:$0x3] %vm2002, %v1913
        %2031 = vst.msk [vmem:[#allocation3 + $0x9e] sm:$0xfc] %vm1998, %v1915
        %2032 = vst.msk [vmem:[#allocation3 + $0xa6] sm:$0xff] %vm2000, %v1917
        %2033 = vst.msk [vmem:[#allocation3 + $0xae] sm:$0x3] %vm2002, %v1919
        %2034 = vst.msk [vmem:[#allocation3 + $0xae] sm:$0xfc] %vm1998, %v1921
        %2035 = vst.msk [vmem:[#allocation3 + $0xb6] sm:$0xff] %vm2000, %v1923
        %2036 = vst.msk [vmem:[#allocation3 + $0xbe] sm:$0x3] %vm2002, %v1925
        %2037 = vst.msk [vmem:[#allocation3 + $0xbe] sm:$0xfc] %vm1998, %v1927
        %2038 = vst.msk [vmem:[#allocation3 + $0xc6] sm:$0xff] %vm2000, %v1929
        %2039 = vst.msk [vmem:[#allocation3 + $0xce] sm:$0x3] %vm2002, %v1931
        %2040 = vst.msk [vmem:[#allocation3 + $0xce] sm:$0xfc] %vm1998, %v1933
        %2041 = vst.msk [vmem:[#allocation3 + $0xd6] sm:$0xff] %vm2000, %v1935
        %2042 = vst.msk [vmem:[#allocation3 + $0xde] sm:$0x3] %vm2002, %v1937
        %2043 = vst.msk [vmem:[#allocation3 + $0xde] sm:$0xfc] %vm1998, %v1939
        %2044 = vst.msk [vmem:[#allocation3 + $0xe6] sm:$0xff] %vm2000, %v1941
        %2045 = vst.msk [vmem:[#allocation3 + $0xee] sm:$0x3] %vm2002, %v1943
        %2046 = vst.msk [vmem:[#allocation3 + $0xee] sm:$0xfc] %vm1998, %v1945
        %2047 = vst.msk [vmem:[#allocation3 + $0xf6] sm:$0xff] %vm2000, %v1947
        %2048 = vst.msk [vmem:[#allocation3 + $0xfe] sm:$0x3] %vm2002, %v1949
        %v2049 = vld [vmem:[#allocation3] sm:$0xff]
        %v2050 = vld [vmem:[#allocation3 + $0x8] sm:$0xff]
        %v2051 = vld [vmem:[#allocation3 + $0x10] sm:$0xff]
        %v2052 = vld [vmem:[#allocation3 + $0x18] sm:$0xff]
        %v2053 = vld [vmem:[#allocation3 + $0x20] sm:$0xff]
        %v2054 = vld [vmem:[#allocation3 + $0x28] sm:$0xff]
        %v2055 = vld [vmem:[#allocation3 + $0x30] sm:$0xff]
        %v2056 = vld [vmem:[#allocation3 + $0x38] sm:$0xff]
        %v2057 = vld [vmem:[#allocation3 + $0x40] sm:$0xff]
        %v2058 = vld [vmem:[#allocation3 + $0x48] sm:$0xff]
        %v2059 = vld [vmem:[#allocation3 + $0x50] sm:$0xff]
        %v2060 = vld [vmem:[#allocation3 + $0x58] sm:$0xff]
        %v2061 = vld [vmem:[#allocation3 + $0x60] sm:$0xff]
        %v2062 = vld [vmem:[#allocation3 + $0x68] sm:$0xff]
        %v2063 = vld [vmem:[#allocation3 + $0x70] sm:$0xff]
        %v2064 = vld [vmem:[#allocation3 + $0x78] sm:$0xff]
        %v2065 = vld [vmem:[#allocation3 + $0x80] sm:$0xff]
        %v2066 = vld [vmem:[#allocation3 + $0x88] sm:$0xff]
        %v2067 = vld [vmem:[#allocation3 + $0x90] sm:$0xff]
        %v2068 = vld [vmem:[#allocation3 + $0x98] sm:$0xff]
        %v2069 = vld [vmem:[#allocation3 + $0xa0] sm:$0xff]
        %v2070 = vld [vmem:[#allocation3 + $0xa8] sm:$0xff]
        %v2071 = vld [vmem:[#allocation3 + $0xb0] sm:$0xff]
        %v2072 = vld [vmem:[#allocation3 + $0xb8] sm:$0xff]
        %v2073 = vld [vmem:[#allocation3 + $0xc0] sm:$0xff]
        %v2074 = vld [vmem:[#allocation3 + $0xc8] sm:$0xff]
        %v2075 = vld [vmem:[#allocation3 + $0xd0] sm:$0xff]
        %v2076 = vld [vmem:[#allocation3 + $0xd8] sm:$0xff]
        %v2077 = vld [vmem:[#allocation3 + $0xe0] sm:$0xff]
        %v2078 = vld [vmem:[#allocation3 + $0xe8] sm:$0xff]
        %v2079 = vld [vmem:[#allocation3 + $0xf0] sm:$0xff]
        %v2080 = vld [vmem:[#allocation3 + $0xf8] sm:$0xff]
        %v2081 = vld [vmem:[%s1] sm:$0xff]
        %v2082 = vld [vmem:[%s1 + $0x8] sm:$0xff]
        %v2083 = vld [vmem:[%s1 + $0x10] sm:$0xff]
        %v2084 = vld [vmem:[%s1 + $0x18] sm:$0xff]
        %v2085 = vld [vmem:[%s1 + $0x20] sm:$0xff]
        %v2086 = vld [vmem:[%s1 + $0x28] sm:$0xff]
        %v2087 = vld [vmem:[%s1 + $0x30] sm:$0xff]
        %v2088 = vld [vmem:[%s1 + $0x38] sm:$0xff]
        %v2089 = vld [vmem:[%s1 + $0x40] sm:$0xff]
        %v2090 = vld [vmem:[%s2] sm:$0x1]
        %v2092 = vlaneseq
        %v2093 = vshrl.u32 %v2092, 7
        %v2094 = vsub.s32 0, %v2093
        %v2095 = vrot.slane %v2090, %v2094
        %vm2097 = vcmask 588800
        %v2099 = vsel %vm2097, %v2049, 0
        %v2102 = vsel %vm2097, %v2050, 0
        %v2105 = vsel %vm2097, %v2051, 0
        %v2108 = vsel %vm2097, %v2052, 0
        %v2111 = vsel %vm2097, %v2053, 0
        %v2114 = vsel %vm2097, %v2054, 0
        %v2117 = vsel %vm2097, %v2055, 0
        %v2120 = vsel %vm2097, %v2056, 0
        %v2123 = vsel %vm2097, %v2057, 0
        %v2126 = vsel %vm2097, %v2058, 0
        %v2129 = vsel %vm2097, %v2059, 0
        %v2132 = vsel %vm2097, %v2060, 0
        %v2135 = vsel %vm2097, %v2061, 0
        %v2138 = vsel %vm2097, %v2062, 0
        %v2141 = vsel %vm2097, %v2063, 0
        %v2144 = vsel %vm2097, %v2064, 0
        %v2147 = vsel %vm2097, %v2065, 0
        %v2150 = vsel %vm2097, %v2066, 0
        %v2153 = vsel %vm2097, %v2067, 0
        %v2156 = vsel %vm2097, %v2068, 0
        %v2159 = vsel %vm2097, %v2069, 0
        %v2162 = vsel %vm2097, %v2070, 0
        %v2165 = vsel %vm2097, %v2071, 0
        %v2168 = vsel %vm2097, %v2072, 0
        %v2171 = vsel %vm2097, %v2073, 0
        %v2174 = vsel %vm2097, %v2074, 0
        %v2177 = vsel %vm2097, %v2075, 0
        %v2180 = vsel %vm2097, %v2076, 0
        %v2183 = vsel %vm2097, %v2077, 0
        %v2186 = vsel %vm2097, %v2078, 0
        %v2189 = vsel %vm2097, %v2079, 0
        %v2192 = vsel %vm2097, %v2080, 0
        %2194 = vmatprep.subr.mxu0 0.0
        %2195 = vmatpush1.msra.mxu0 0.0
        %2196 = vmatprep.subr.mxu0 0.0
        %2197 = vmatpush1.msra.mxu0 0.0
        %2198 = vmatprep.subr.mxu0 0.0
        %2199 = vmatpush1.msra.mxu0 0.0
        %2200 = vmatprep.subr.mxu0 0.0
        %2201 = vmatpush1.msra.mxu0 0.0
        %2202 = vmatprep.subr.mxu0 0.0
        %2203 = vmatpush1.msra.mxu0 0.0
        %2204 = vmatprep.subr.mxu0 0.0
        %2205 = vmatpush1.msra.mxu0 0.0
        %2206 = vmatprep.subr.mxu0 0.0
        %2207 = vmatpush1.msra.mxu0 0.0
        %2208 = vmatprep.subr.mxu0 0.0
        %2209 = vmatpush1.msra.mxu0 %v2089
        %2210 = vmatprep.subr.mxu0 0.0
        %2211 = vmatpush1.msra.mxu0 %v2088
        %2212 = vmatprep.subr.mxu0 0.0
        %2213 = vmatpush1.msra.mxu0 %v2087
        %2214 = vmatprep.subr.mxu0 0.0
        %2215 = vmatpush1.msra.mxu0 %v2086
        %2216 = vmatprep.subr.mxu0 0.0
        %2217 = vmatpush1.msra.mxu0 %v2085
        %2218 = vmatprep.subr.mxu0 0.0
        %2219 = vmatpush1.msra.mxu0 %v2084
        %2220 = vmatprep.subr.mxu0 0.0
        %2221 = vmatpush1.msra.mxu0 %v2083
        %2222 = vmatprep.subr.mxu0 0.0
        %2223 = vmatpush1.msra.mxu0 %v2082
        %2224 = vmatprep.subr.mxu0 0.0
        %2225 = vmatpush1.msra.mxu0 %v2081
        %2226 = vmatprep.subr.mxu0 0.0
        %2227 = vmatpush2.msra.mxu0 0.0
        %2228 = vmatprep.subr.mxu0 0.0
        %2229 = vmatpush2.msra.mxu0 0.0
        %2230 = vmatprep.subr.mxu0 0.0
        %2231 = vmatpush2.msra.mxu0 0.0
        %2232 = vmatprep.subr.mxu0 0.0
        %2233 = vmatpush2.msra.mxu0 0.0
        %2234 = vmatprep.subr.mxu0 0.0
        %2235 = vmatpush2.msra.mxu0 0.0
        %2236 = vmatprep.subr.mxu0 0.0
        %2237 = vmatpush2.msra.mxu0 0.0
        %2238 = vmatprep.subr.mxu0 0.0
        %2239 = vmatpush2.msra.mxu0 0.0
        %2240 = vmatprep.subr.mxu0 0.0
        %2241 = vmatpush2.msra.mxu0 0.0
        %2242 = vmatprep.subr.mxu0 0.0
        %2243 = vmatpush2.msra.mxu0 0.0
        %2244 = vmatprep.subr.mxu0 0.0
        %2245 = vmatpush2.msra.mxu0 0.0
        %2246 = vmatprep.subr.mxu0 0.0
        %2247 = vmatpush2.msra.mxu0 0.0
        %2248 = vmatprep.subr.mxu0 0.0
        %2249 = vmatpush2.msra.mxu0 0.0
        %2250 = vmatprep.subr.mxu0 0.0
        %2251 = vmatpush2.msra.mxu0 0.0
        %2252 = vmatprep.subr.mxu0 0.0
        %2253 = vmatpush2.msra.mxu0 0.0
        %2254 = vmatprep.subr.mxu0 0.0
        %2255 = vmatpush2.msra.mxu0 0.0
        %2256 = vmatprep.subr.mxu0 0.0
        %2257 = vmatpush2.msra.mxu0 0.0
        %2258 = vmatprep.mubr.f32.mxu0 0.0
        %2259 = vmatmul.mubr.f32.gmra.mxu0 %v2099
        %v2260 = vpop.f32.mrf.mxu0
        %v2261 = vadd.f32 %v2095, %v2260
        %v2262 = vpop.f32.mrf.mxu0
        %2263 = vmatprep.mubr.f32.mxu0 0.0
        %2264 = vmatmul.mubr.f32.gmra.mxu0 %v2102
        %v2265 = vpop.f32.mrf.mxu0
        %v2266 = vadd.f32 %v2095, %v2265
        %v2267 = vpop.f32.mrf.mxu0
        %2268 = vmatprep.mubr.f32.mxu0 0.0
        %2269 = vmatmul.mubr.f32.gmra.mxu0 %v2105
        %v2270 = vpop.f32.mrf.mxu0
        %v2271 = vadd.f32 %v2095, %v2270
        %v2272 = vpop.f32.mrf.mxu0
        %2273 = vmatprep.mubr.f32.mxu0 0.0
        %2274 = vmatmul.mubr.f32.gmra.mxu0 %v2108
        %v2275 = vpop.f32.mrf.mxu0
        %v2276 = vadd.f32 %v2095, %v2275
        %v2277 = vpop.f32.mrf.mxu0
        %2278 = vmatprep.mubr.f32.mxu0 0.0
        %2279 = vmatmul.mubr.f32.gmra.mxu0 %v2111
        %v2280 = vpop.f32.mrf.mxu0
        %v2281 = vadd.f32 %v2095, %v2280
        %v2282 = vpop.f32.mrf.mxu0
        %2283 = vmatprep.mubr.f32.mxu0 0.0
        %2284 = vmatmul.mubr.f32.gmra.mxu0 %v2114
        %v2285 = vpop.f32.mrf.mxu0
        %v2286 = vadd.f32 %v2095, %v2285
        %v2287 = vpop.f32.mrf.mxu0
        %2288 = vmatprep.mubr.f32.mxu0 0.0
        %2289 = vmatmul.mubr.f32.gmra.mxu0 %v2117
        %v2290 = vpop.f32.mrf.mxu0
        %v2291 = vadd.f32 %v2095, %v2290
        %v2292 = vpop.f32.mrf.mxu0
        %2293 = vmatprep.mubr.f32.mxu0 0.0
        %2294 = vmatmul.mubr.f32.gmra.mxu0 %v2120
        %v2295 = vpop.f32.mrf.mxu0
        %v2296 = vadd.f32 %v2095, %v2295
        %v2297 = vpop.f32.mrf.mxu0
        %2298 = vmatprep.mubr.f32.mxu0 0.0
        %2299 = vmatmul.mubr.f32.gmra.mxu0 %v2123
        %v2300 = vpop.f32.mrf.mxu0
        %v2301 = vadd.f32 %v2095, %v2300
        %v2302 = vpop.f32.mrf.mxu0
        %2303 = vmatprep.mubr.f32.mxu0 0.0
        %2304 = vmatmul.mubr.f32.gmra.mxu0 %v2126
        %v2305 = vpop.f32.mrf.mxu0
        %v2306 = vadd.f32 %v2095, %v2305
        %v2307 = vpop.f32.mrf.mxu0
        %2308 = vmatprep.mubr.f32.mxu0 0.0
        %2309 = vmatmul.mubr.f32.gmra.mxu0 %v2129
        %v2310 = vpop.f32.mrf.mxu0
        %v2311 = vadd.f32 %v2095, %v2310
        %v2312 = vpop.f32.mrf.mxu0
        %2313 = vmatprep.mubr.f32.mxu0 0.0
        %2314 = vmatmul.mubr.f32.gmra.mxu0 %v2132
        %v2315 = vpop.f32.mrf.mxu0
        %v2316 = vadd.f32 %v2095, %v2315
        %v2317 = vpop.f32.mrf.mxu0
        %2318 = vmatprep.mubr.f32.mxu0 0.0
        %2319 = vmatmul.mubr.f32.gmra.mxu0 %v2135
        %v2320 = vpop.f32.mrf.mxu0
        %v2321 = vadd.f32 %v2095, %v2320
        %v2322 = vpop.f32.mrf.mxu0
        %2323 = vmatprep.mubr.f32.mxu0 0.0
        %2324 = vmatmul.mubr.f32.gmra.mxu0 %v2138
        %v2325 = vpop.f32.mrf.mxu0
        %v2326 = vadd.f32 %v2095, %v2325
        %v2327 = vpop.f32.mrf.mxu0
        %2328 = vmatprep.mubr.f32.mxu0 0.0
        %2329 = vmatmul.mubr.f32.gmra.mxu0 %v2141
        %v2330 = vpop.f32.mrf.mxu0
        %v2331 = vadd.f32 %v2095, %v2330
        %v2332 = vpop.f32.mrf.mxu0
        %2333 = vmatprep.mubr.f32.mxu0 0.0
        %2334 = vmatmul.mubr.f32.gmra.mxu0 %v2144
        %v2335 = vpop.f32.mrf.mxu0
        %v2336 = vadd.f32 %v2095, %v2335
        %v2337 = vpop.f32.mrf.mxu0
        %2338 = vmatprep.mubr.f32.mxu0 0.0
        %2339 = vmatmul.mubr.f32.gmra.mxu0 %v2147
        %v2340 = vpop.f32.mrf.mxu0
        %v2341 = vadd.f32 %v2095, %v2340
        %v2342 = vpop.f32.mrf.mxu0
        %2343 = vmatprep.mubr.f32.mxu0 0.0
        %2344 = vmatmul.mubr.f32.gmra.mxu0 %v2150
        %v2345 = vpop.f32.mrf.mxu0
        %v2346 = vadd.f32 %v2095, %v2345
        %v2347 = vpop.f32.mrf.mxu0
        %2348 = vmatprep.mubr.f32.mxu0 0.0
        %2349 = vmatmul.mubr.f32.gmra.mxu0 %v2153
        %v2350 = vpop.f32.mrf.mxu0
        %v2351 = vadd.f32 %v2095, %v2350
        %v2352 = vpop.f32.mrf.mxu0
        %2353 = vmatprep.mubr.f32.mxu0 0.0
        %2354 = vmatmul.mubr.f32.gmra.mxu0 %v2156
        %v2355 = vpop.f32.mrf.mxu0
        %v2356 = vadd.f32 %v2095, %v2355
        %v2357 = vpop.f32.mrf.mxu0
        %2358 = vmatprep.mubr.f32.mxu0 0.0
        %2359 = vmatmul.mubr.f32.gmra.mxu0 %v2159
        %v2360 = vpop.f32.mrf.mxu0
        %v2361 = vadd.f32 %v2095, %v2360
        %v2362 = vpop.f32.mrf.mxu0
        %2363 = vmatprep.mubr.f32.mxu0 0.0
        %2364 = vmatmul.mubr.f32.gmra.mxu0 %v2162
        %v2365 = vpop.f32.mrf.mxu0
        %v2366 = vadd.f32 %v2095, %v2365
        %v2367 = vpop.f32.mrf.mxu0
        %2368 = vmatprep.mubr.f32.mxu0 0.0
        %2369 = vmatmul.mubr.f32.gmra.mxu0 %v2165
        %v2370 = vpop.f32.mrf.mxu0
        %v2371 = vadd.f32 %v2095, %v2370
        %v2372 = vpop.f32.mrf.mxu0
        %2373 = vmatprep.mubr.f32.mxu0 0.0
        %2374 = vmatmul.mubr.f32.gmra.mxu0 %v2168
        %v2375 = vpop.f32.mrf.mxu0
        %v2376 = vadd.f32 %v2095, %v2375
        %v2377 = vpop.f32.mrf.mxu0
        %2378 = vmatprep.mubr.f32.mxu0 0.0
        %2379 = vmatmul.mubr.f32.gmra.mxu0 %v2171
        %v2380 = vpop.f32.mrf.mxu0
        %v2381 = vadd.f32 %v2095, %v2380
        %v2382 = vpop.f32.mrf.mxu0
        %2383 = vmatprep.mubr.f32.mxu0 0.0
        %2384 = vmatmul.mubr.f32.gmra.mxu0 %v2174
        %v2385 = vpop.f32.mrf.mxu0
        %v2386 = vadd.f32 %v2095, %v2385
        %v2387 = vpop.f32.mrf.mxu0
        %2388 = vmatprep.mubr.f32.mxu0 0.0
        %2389 = vmatmul.mubr.f32.gmra.mxu0 %v2177
        %v2390 = vpop.f32.mrf.mxu0
        %v2391 = vadd.f32 %v2095, %v2390
        %v2392 = vpop.f32.mrf.mxu0
        %2393 = vmatprep.mubr.f32.mxu0 0.0
        %2394 = vmatmul.mubr.f32.gmra.mxu0 %v2180
        %v2395 = vpop.f32.mrf.mxu0
        %v2396 = vadd.f32 %v2095, %v2395
        %v2397 = vpop.f32.mrf.mxu0
        %2398 = vmatprep.mubr.f32.mxu0 0.0
        %2399 = vmatmul.mubr.f32.gmra.mxu0 %v2183
        %v2400 = vpop.f32.mrf.mxu0
        %v2401 = vadd.f32 %v2095, %v2400
        %v2402 = vpop.f32.mrf.mxu0
        %2403 = vmatprep.mubr.f32.mxu0 0.0
        %2404 = vmatmul.mubr.f32.gmra.mxu0 %v2186
        %v2405 = vpop.f32.mrf.mxu0
        %v2406 = vadd.f32 %v2095, %v2405
        %v2407 = vpop.f32.mrf.mxu0
        %2408 = vmatprep.mubr.f32.mxu0 0.0
        %2409 = vmatmul.mubr.f32.gmra.mxu0 %v2189
        %v2410 = vpop.f32.mrf.mxu0
        %v2411 = vadd.f32 %v2095, %v2410
        %v2412 = vpop.f32.mrf.mxu0
        %2413 = vmatprep.mubr.f32.mxu0 0.0
        %2414 = vmatmul.mubr.f32.gmra.mxu0 %v2192
        %v2415 = vpop.f32.mrf.mxu0
        %v2416 = vadd.f32 %v2095, %v2415
        %v2417 = vpop.f32.mrf.mxu0
        %2418 = vdwg.mxu0
        %vm2419 = vcmp.ge.f32.partialorder %v2261, 0.0
        %vm2420 = vcmp.ge.f32.partialorder %v2266, 0.0
        %vm2421 = vcmp.ge.f32.partialorder %v2271, 0.0
        %vm2422 = vcmp.ge.f32.partialorder %v2276, 0.0
        %vm2423 = vcmp.ge.f32.partialorder %v2281, 0.0
        %vm2424 = vcmp.ge.f32.partialorder %v2286, 0.0
        %vm2425 = vcmp.ge.f32.partialorder %v2291, 0.0
        %vm2426 = vcmp.ge.f32.partialorder %v2296, 0.0
        %vm2427 = vcmp.ge.f32.partialorder %v2301, 0.0
        %vm2428 = vcmp.ge.f32.partialorder %v2306, 0.0
        %vm2429 = vcmp.ge.f32.partialorder %v2311, 0.0
        %vm2430 = vcmp.ge.f32.partialorder %v2316, 0.0
        %vm2431 = vcmp.ge.f32.partialorder %v2321, 0.0
        %vm2432 = vcmp.ge.f32.partialorder %v2326, 0.0
        %vm2433 = vcmp.ge.f32.partialorder %v2331, 0.0
        %vm2434 = vcmp.ge.f32.partialorder %v2336, 0.0
        %vm2435 = vcmp.ge.f32.partialorder %v2341, 0.0
        %vm2436 = vcmp.ge.f32.partialorder %v2346, 0.0
        %vm2437 = vcmp.ge.f32.partialorder %v2351, 0.0
        %vm2438 = vcmp.ge.f32.partialorder %v2356, 0.0
        %vm2439 = vcmp.ge.f32.partialorder %v2361, 0.0
        %vm2440 = vcmp.ge.f32.partialorder %v2366, 0.0
        %vm2441 = vcmp.ge.f32.partialorder %v2371, 0.0
        %vm2442 = vcmp.ge.f32.partialorder %v2376, 0.0
        %vm2443 = vcmp.ge.f32.partialorder %v2381, 0.0
        %vm2444 = vcmp.ge.f32.partialorder %v2386, 0.0
        %vm2445 = vcmp.ge.f32.partialorder %v2391, 0.0
        %vm2446 = vcmp.ge.f32.partialorder %v2396, 0.0
        %vm2447 = vcmp.ge.f32.partialorder %v2401, 0.0
        %vm2448 = vcmp.ge.f32.partialorder %v2406, 0.0
        %vm2449 = vcmp.ge.f32.partialorder %v2411, 0.0
        %vm2450 = vcmp.ge.f32.partialorder %v2416, 0.0
        %v2451 = vstv %s359
        %v2452 = vmul.f32 %v2451, %v2261
        %v2453 = vmul.f32 %v2451, %v2266
        %v2454 = vmul.f32 %v2451, %v2271
        %v2455 = vmul.f32 %v2451, %v2276
        %v2456 = vmul.f32 %v2451, %v2281
        %v2457 = vmul.f32 %v2451, %v2286
        %v2458 = vmul.f32 %v2451, %v2291
        %v2459 = vmul.f32 %v2451, %v2296
        %v2460 = vmul.f32 %v2451, %v2301
        %v2461 = vmul.f32 %v2451, %v2306
        %v2462 = vmul.f32 %v2451, %v2311
        %v2463 = vmul.f32 %v2451, %v2316
        %v2464 = vmul.f32 %v2451, %v2321
        %v2465 = vmul.f32 %v2451, %v2326
        %v2466 = vmul.f32 %v2451, %v2331
        %v2467 = vmul.f32 %v2451, %v2336
        %v2468 = vmul.f32 %v2451, %v2341
        %v2469 = vmul.f32 %v2451, %v2346
        %v2470 = vmul.f32 %v2451, %v2351
        %v2471 = vmul.f32 %v2451, %v2356
        %v2472 = vmul.f32 %v2451, %v2361
        %v2473 = vmul.f32 %v2451, %v2366
        %v2474 = vmul.f32 %v2451, %v2371
        %v2475 = vmul.f32 %v2451, %v2376
        %v2476 = vmul.f32 %v2451, %v2381
        %v2477 = vmul.f32 %v2451, %v2386
        %v2478 = vmul.f32 %v2451, %v2391
        %v2479 = vmul.f32 %v2451, %v2396
        %v2480 = vmul.f32 %v2451, %v2401
        %v2481 = vmul.f32 %v2451, %v2406
        %v2482 = vmul.f32 %v2451, %v2411
        %v2483 = vmul.f32 %v2451, %v2416
        %v2484 = vsel %vm2419, %v2261, %v2452
        %v2485 = vsel %vm2420, %v2266, %v2453
        %v2486 = vsel %vm2421, %v2271, %v2454
        %v2487 = vsel %vm2422, %v2276, %v2455
        %v2488 = vsel %vm2423, %v2281, %v2456
        %v2489 = vsel %vm2424, %v2286, %v2457
        %v2490 = vsel %vm2425, %v2291, %v2458
        %v2491 = vsel %vm2426, %v2296, %v2459
        %v2492 = vsel %vm2427, %v2301, %v2460
        %v2493 = vsel %vm2428, %v2306, %v2461
        %v2494 = vsel %vm2429, %v2311, %v2462
        %v2495 = vsel %vm2430, %v2316, %v2463
        %v2496 = vsel %vm2431, %v2321, %v2464
        %v2497 = vsel %vm2432, %v2326, %v2465
        %v2498 = vsel %vm2433, %v2331, %v2466
        %v2499 = vsel %vm2434, %v2336, %v2467
        %v2500 = vsel %vm2435, %v2341, %v2468
        %v2501 = vsel %vm2436, %v2346, %v2469
        %v2502 = vsel %vm2437, %v2351, %v2470
        %v2503 = vsel %vm2438, %v2356, %v2471
        %v2504 = vsel %vm2439, %v2361, %v2472
        %v2505 = vsel %vm2440, %v2366, %v2473
        %v2506 = vsel %vm2441, %v2371, %v2474
        %v2507 = vsel %vm2442, %v2376, %v2475
        %v2508 = vsel %vm2443, %v2381, %v2476
        %v2509 = vsel %vm2444, %v2386, %v2477
        %v2510 = vsel %vm2445, %v2391, %v2478
        %v2511 = vsel %vm2446, %v2396, %v2479
        %v2512 = vsel %vm2447, %v2401, %v2480
        %v2513 = vsel %vm2448, %v2406, %v2481
        %v2514 = vsel %vm2449, %v2411, %v2482
        %v2515 = vsel %vm2450, %v2416, %v2483
        %vm2516 = vcmask 523264
        %2517 = vst.msk [vmem:[#allocation4] sm:$0xff] %vm2516, 0.0
        %2518 = vst.msk [vmem:[#allocation4 + $0x8] sm:$0xff] %vm2516, 0.0
        %vm2519 = vcmask 517120
        %2520 = vst.msk [vmem:[#allocation4 + $0x10] sm:$0x3] %vm2519, 0.0
        %2521 = vst.msk [vmem:[#allocation4 + $0x18] sm:$0xff] %vm2516, 0.0
        %2522 = vst.msk [vmem:[#allocation4 + $0x20] sm:$0xff] %vm2516, 0.0
        %2523 = vst.msk [vmem:[#allocation4 + $0x28] sm:$0x3] %vm2519, 0.0
        %2524 = vst.msk [vmem:[#allocation4 + $0x30] sm:$0xff] %vm2516, 0.0
        %2525 = vst.msk [vmem:[#allocation4 + $0x38] sm:$0xff] %vm2516, 0.0
        %2526 = vst.msk [vmem:[#allocation4 + $0x40] sm:$0x3] %vm2519, 0.0
        %2527 = vst.msk [vmem:[#allocation4 + $0x48] sm:$0xff] %vm2516, 0.0
        %2528 = vst.msk [vmem:[#allocation4 + $0x50] sm:$0xff] %vm2516, 0.0
        %2529 = vst.msk [vmem:[#allocation4 + $0x58] sm:$0x3] %vm2519, 0.0
        %2530 = vst.msk [vmem:[#allocation4 + $0x60] sm:$0xff] %vm2516, 0.0
        %2531 = vst.msk [vmem:[#allocation4 + $0x68] sm:$0xff] %vm2516, 0.0
        %2532 = vst.msk [vmem:[#allocation4 + $0x70] sm:$0x3] %vm2519, 0.0
        %2533 = vst.msk [vmem:[#allocation4 + $0x78] sm:$0xff] %vm2516, 0.0
        %2534 = vst.msk [vmem:[#allocation4 + $0x80] sm:$0xff] %vm2516, 0.0
        %2535 = vst.msk [vmem:[#allocation4 + $0x88] sm:$0x3] %vm2519, 0.0
        %2536 = vst.msk [vmem:[#allocation4 + $0x90] sm:$0xff] %vm2516, 0.0
        %2537 = vst.msk [vmem:[#allocation4 + $0x98] sm:$0xff] %vm2516, 0.0
        %2538 = vst.msk [vmem:[#allocation4 + $0xa0] sm:$0x3] %vm2519, 0.0
        %2539 = vst.msk [vmem:[#allocation4 + $0xa8] sm:$0xff] %vm2516, 0.0
        %2540 = vst.msk [vmem:[#allocation4 + $0xb0] sm:$0xff] %vm2516, 0.0
        %2541 = vst.msk [vmem:[#allocation4 + $0xb8] sm:$0x3] %vm2519, 0.0
        %2542 = vst.msk [vmem:[#allocation4 + $0xc0] sm:$0xff] %vm2516, 0.0
        %2543 = vst.msk [vmem:[#allocation4 + $0xc8] sm:$0xff] %vm2516, 0.0
        %2544 = vst.msk [vmem:[#allocation4 + $0xd0] sm:$0x3] %vm2519, 0.0
        %2545 = vst.msk [vmem:[#allocation4 + $0xd8] sm:$0xff] %vm2516, 0.0
        %2546 = vst.msk [vmem:[#allocation4 + $0xe0] sm:$0xff] %vm2516, 0.0
        %2547 = vst.msk [vmem:[#allocation4 + $0xe8] sm:$0x3] %vm2519, 0.0
        %2548 = vst.msk [vmem:[#allocation4 + $0xf0] sm:$0xff] %vm2516, 0.0
        %2549 = vst.msk [vmem:[#allocation4 + $0xf8] sm:$0xff] %vm2516, 0.0
        %2550 = vst.msk [vmem:[#allocation4 + $0x100] sm:$0x3] %vm2519, 0.0
        %2551 = vst.msk [vmem:[#allocation4 + $0x108] sm:$0xff] %vm2516, 0.0
        %2552 = vst.msk [vmem:[#allocation4 + $0x110] sm:$0xff] %vm2516, 0.0
        %2553 = vst.msk [vmem:[#allocation4 + $0x118] sm:$0x3] %vm2519, 0.0
        %2554 = vst.msk [vmem:[#allocation4 + $0x120] sm:$0xff] %vm2516, 0.0
        %2555 = vst.msk [vmem:[#allocation4 + $0x128] sm:$0xff] %vm2516, 0.0
        %2556 = vst.msk [vmem:[#allocation4 + $0x130] sm:$0x3] %vm2519, 0.0
        %2557 = vst.msk [vmem:[#allocation4 + $0x138] sm:$0xff] %vm2516, 0.0
        %2558 = vst.msk [vmem:[#allocation4 + $0x140] sm:$0xff] %vm2516, 0.0
        %2559 = vst.msk [vmem:[#allocation4 + $0x148] sm:$0x3] %vm2519, 0.0
        %2560 = vst.msk [vmem:[#allocation4 + $0x150] sm:$0xff] %vm2516, 0.0
        %2561 = vst.msk [vmem:[#allocation4 + $0x158] sm:$0xff] %vm2516, 0.0
        %2562 = vst.msk [vmem:[#allocation4 + $0x160] sm:$0x3] %vm2519, 0.0
        %2563 = vst.msk [vmem:[#allocation4 + $0x168] sm:$0xff] %vm2516, 0.0
        %2564 = vst.msk [vmem:[#allocation4 + $0x170] sm:$0xff] %vm2516, 0.0
        %2565 = vst.msk [vmem:[#allocation4 + $0x178] sm:$0x3] %vm2519, 0.0
        %2566 = vst.msk [vmem:[#allocation4 + $0x180] sm:$0xff] %vm2516, 0.0
        %2567 = vst.msk [vmem:[#allocation4 + $0x188] sm:$0xff] %vm2516, 0.0
        %2568 = vst.msk [vmem:[#allocation4 + $0x190] sm:$0x3] %vm2519, 0.0
        %2569 = vst.msk [vmem:[#allocation4 + $0x198] sm:$0xff] %vm2516, 0.0
        %2570 = vst.msk [vmem:[#allocation4 + $0x1a0] sm:$0xff] %vm2516, 0.0
        %2571 = vst.msk [vmem:[#allocation4 + $0x1a8] sm:$0x3] %vm2519, 0.0
        %s2572 = scalar_lea.vmem [#allocation4], 24
        %2573 = vst.msk [vmem:[%s2572 + $0x1] sm:$0xff] %vm2516, %v2484
        %2574 = vst.msk [vmem:[%s2572 + $0x9] sm:$0xff] %vm2516, %v2485
        %2575 = vst.msk [vmem:[%s2572 + $0x19] sm:$0xff] %vm2516, %v2486
        %2576 = vst.msk [vmem:[%s2572 + $0x21] sm:$0xff] %vm2516, %v2487
        %2577 = vst.msk [vmem:[%s2572 + $0x31] sm:$0xff] %vm2516, %v2488
        %2578 = vst.msk [vmem:[%s2572 + $0x39] sm:$0xff] %vm2516, %v2489
        %2579 = vst.msk [vmem:[%s2572 + $0x49] sm:$0xff] %vm2516, %v2490
        %2580 = vst.msk [vmem:[%s2572 + $0x51] sm:$0xff] %vm2516, %v2491
        %2581 = vst.msk [vmem:[%s2572 + $0x61] sm:$0xff] %vm2516, %v2492
        %2582 = vst.msk [vmem:[%s2572 + $0x69] sm:$0xff] %vm2516, %v2493
        %2583 = vst.msk [vmem:[%s2572 + $0x79] sm:$0xff] %vm2516, %v2494
        %2584 = vst.msk [vmem:[%s2572 + $0x81] sm:$0xff] %vm2516, %v2495
        %2585 = vst.msk [vmem:[%s2572 + $0x91] sm:$0xff] %vm2516, %v2496
        %2586 = vst.msk [vmem:[%s2572 + $0x99] sm:$0xff] %vm2516, %v2497
        %2587 = vst.msk [vmem:[%s2572 + $0xa9] sm:$0xff] %vm2516, %v2498
        %2588 = vst.msk [vmem:[%s2572 + $0xb1] sm:$0xff] %vm2516, %v2499
        %2589 = vst.msk [vmem:[%s2572 + $0xc1] sm:$0xff] %vm2516, %v2500
        %2590 = vst.msk [vmem:[%s2572 + $0xc9] sm:$0xff] %vm2516, %v2501
        %2591 = vst.msk [vmem:[%s2572 + $0xd9] sm:$0xff] %vm2516, %v2502
        %2592 = vst.msk [vmem:[%s2572 + $0xe1] sm:$0xff] %vm2516, %v2503
        %2593 = vst.msk [vmem:[%s2572 + $0xf1] sm:$0xff] %vm2516, %v2504
        %2594 = vst.msk [vmem:[%s2572 + $0xf9] sm:$0xff] %vm2516, %v2505
        %2595 = vst.msk [vmem:[%s2572 + $0x109] sm:$0xff] %vm2516, %v2506
        %2596 = vst.msk [vmem:[%s2572 + $0x111] sm:$0xff] %vm2516, %v2507
        %2597 = vst.msk [vmem:[%s2572 + $0x121] sm:$0xff] %vm2516, %v2508
        %2598 = vst.msk [vmem:[%s2572 + $0x129] sm:$0xff] %vm2516, %v2509
        %2599 = vst.msk [vmem:[%s2572 + $0x139] sm:$0xff] %vm2516, %v2510
        %2600 = vst.msk [vmem:[%s2572 + $0x141] sm:$0xff] %vm2516, %v2511
        %2601 = vst.msk [vmem:[%s2572 + $0x151] sm:$0xff] %vm2516, %v2512
        %2602 = vst.msk [vmem:[%s2572 + $0x159] sm:$0xff] %vm2516, %v2513
        %2603 = vst.msk [vmem:[%s2572 + $0x169] sm:$0xff] %vm2516, %v2514
        %2604 = vst.msk [vmem:[%s2572 + $0x171] sm:$0xff] %vm2516, %v2515
        %v2605 = vld [vmem:[#allocation4] sm:$0xff]
        %v2606 = vld [vmem:[#allocation4 + $0x8] sm:$0xff]
        %v2607 = vld [vmem:[#allocation4 + $0x10] sm:$0x3]
        %v2608 = vld [vmem:[#allocation4 + $0x18] sm:$0xff]
        %v2609 = vld [vmem:[#allocation4 + $0x20] sm:$0xff]
        %v2610 = vld [vmem:[#allocation4 + $0x28] sm:$0x3]
        %v2611 = vld [vmem:[#allocation4 + $0x30] sm:$0xff]
        %v2612 = vld [vmem:[#allocation4 + $0x38] sm:$0xff]
        %v2613 = vld [vmem:[#allocation4 + $0x40] sm:$0x3]
        %v2614 = vld [vmem:[#allocation4 + $0x48] sm:$0xff]
        %v2615 = vld [vmem:[#allocation4 + $0x50] sm:$0xff]
        %v2616 = vld [vmem:[#allocation4 + $0x58] sm:$0x3]
        %v2617 = vld [vmem:[#allocation4 + $0x60] sm:$0xff]
        %v2618 = vld [vmem:[#allocation4 + $0x68] sm:$0xff]
        %v2619 = vld [vmem:[#allocation4 + $0x70] sm:$0x3]
        %v2620 = vld [vmem:[#allocation4 + $0x78] sm:$0xff]
        %v2621 = vld [vmem:[#allocation4 + $0x80] sm:$0xff]
        %v2622 = vld [vmem:[#allocation4 + $0x88] sm:$0x3]
        %v2623 = vld [vmem:[#allocation4 + $0x90] sm:$0xff]
        %v2624 = vld [vmem:[#allocation4 + $0x98] sm:$0xff]
        %v2625 = vld [vmem:[#allocation4 + $0xa0] sm:$0x3]
        %v2626 = vld [vmem:[#allocation4 + $0xa8] sm:$0xff]
        %v2627 = vld [vmem:[#allocation4 + $0xb0] sm:$0xff]
        %v2628 = vld [vmem:[#allocation4 + $0xb8] sm:$0x3]
        %v2629 = vld [vmem:[#allocation4 + $0xc0] sm:$0xff]
        %v2630 = vld [vmem:[#allocation4 + $0xc8] sm:$0xff]
        %v2631 = vld [vmem:[#allocation4 + $0xd0] sm:$0x3]
        %v2632 = vld [vmem:[#allocation4 + $0xd8] sm:$0xff]
        %v2633 = vld [vmem:[#allocation4 + $0xe0] sm:$0xff]
        %v2634 = vld [vmem:[#allocation4 + $0xe8] sm:$0x3]
        %v2635 = vld [vmem:[#allocation4 + $0xf0] sm:$0xff]
        %v2636 = vld [vmem:[#allocation4 + $0xf8] sm:$0xff]
        %v2637 = vld [vmem:[#allocation4 + $0x100] sm:$0x3]
        %v2638 = vld [vmem:[#allocation4 + $0x108] sm:$0xff]
        %v2639 = vld [vmem:[#allocation4 + $0x110] sm:$0xff]
        %v2640 = vld [vmem:[#allocation4 + $0x118] sm:$0x3]
        %v2641 = vld [vmem:[#allocation4 + $0x120] sm:$0xff]
        %v2642 = vld [vmem:[#allocation4 + $0x128] sm:$0xff]
        %v2643 = vld [vmem:[#allocation4 + $0x130] sm:$0x3]
        %v2644 = vld [vmem:[#allocation4 + $0x138] sm:$0xff]
        %v2645 = vld [vmem:[#allocation4 + $0x140] sm:$0xff]
        %v2646 = vld [vmem:[#allocation4 + $0x148] sm:$0x3]
        %v2647 = vld [vmem:[#allocation4 + $0x150] sm:$0xff]
        %v2648 = vld [vmem:[#allocation4 + $0x158] sm:$0xff]
        %v2649 = vld [vmem:[#allocation4 + $0x160] sm:$0x3]
        %v2650 = vld [vmem:[#allocation4 + $0x168] sm:$0xff]
        %v2651 = vld [vmem:[#allocation4 + $0x170] sm:$0xff]
        %v2652 = vld [vmem:[#allocation4 + $0x178] sm:$0x3]
        %v2653 = vld [vmem:[#allocation4 + $0x180] sm:$0xff]
        %v2654 = vld [vmem:[#allocation4 + $0x188] sm:$0xff]
        %v2655 = vld [vmem:[#allocation4 + $0x190] sm:$0x3]
        %v2656 = vld [vmem:[#allocation4 + $0x198] sm:$0xff]
        %v2657 = vld [vmem:[#allocation4 + $0x1a0] sm:$0xff]
        %v2658 = vld [vmem:[#allocation4 + $0x1a8] sm:$0x3]
        %2659 = vst.msk [vmem:[#allocation5] sm:$0xff] %vm2516, %v2605
        %2660 = vst.msk [vmem:[#allocation5 + $0x28] sm:$0xff] %vm2516, %v2606
        %2661 = vst.msk [vmem:[#allocation5 + $0x50] sm:$0xff] %vm2516, %v2608
        %2662 = vst.msk [vmem:[#allocation5 + $0x78] sm:$0xff] %vm2516, %v2609
        %2663 = vst.msk [vmem:[#allocation5 + $0xa0] sm:$0xff] %vm2516, %v2611
        %2664 = vst.msk [vmem:[#allocation5 + $0xc8] sm:$0xff] %vm2516, %v2612
        %2665 = vst.msk [vmem:[#allocation5 + $0xf0] sm:$0xff] %vm2516, %v2614
        %2666 = vst.msk [vmem:[#allocation5 + $0x118] sm:$0xff] %vm2516, %v2615
        %2667 = vst.msk [vmem:[#allocation5 + $0x140] sm:$0xff] %vm2516, %v2617
        %2668 = vst.msk [vmem:[#allocation5 + $0x168] sm:$0xff] %vm2516, %v2618
        %2669 = vst.msk [vmem:[#allocation5 + $0x190] sm:$0xff] %vm2516, %v2620
        %2670 = vst.msk [vmem:[#allocation5 + $0x1b8] sm:$0xff] %vm2516, %v2621
        %2671 = vst.msk [vmem:[#allocation5 + $0x1e0] sm:$0xff] %vm2516, %v2623
        %2672 = vst.msk [vmem:[#allocation5 + $0x208] sm:$0xff] %vm2516, %v2624
        %2673 = vst.msk [vmem:[#allocation5 + $0x230] sm:$0xff] %vm2516, %v2626
        %2674 = vst.msk [vmem:[#allocation5 + $0x258] sm:$0xff] %vm2516, %v2627
        %2675 = vst.msk [vmem:[#allocation5 + $0x280] sm:$0xff] %vm2516, %v2629
        %2676 = vst.msk [vmem:[#allocation5 + $0x2a8] sm:$0xff] %vm2516, %v2630
        %2677 = vst.msk [vmem:[#allocation5 + $0x2d0] sm:$0xff] %vm2516, %v2632
        %2678 = vst.msk [vmem:[#allocation5 + $0x2f8] sm:$0xff] %vm2516, %v2633
        %2679 = vst.msk [vmem:[#allocation5 + $0x320] sm:$0xff] %vm2516, %v2635
        %2680 = vst.msk [vmem:[#allocation5 + $0x348] sm:$0xff] %vm2516, %v2636
        %2681 = vst.msk [vmem:[#allocation5 + $0x370] sm:$0xff] %vm2516, %v2638
        %2682 = vst.msk [vmem:[#allocation5 + $0x398] sm:$0xff] %vm2516, %v2639
        %2683 = vst.msk [vmem:[#allocation5 + $0x3c0] sm:$0xff] %vm2516, %v2641
        %2684 = vst.msk [vmem:[#allocation5 + $0x3e8] sm:$0xff] %vm2516, %v2642
        %2685 = vst.msk [vmem:[#allocation5 + $0x410] sm:$0xff] %vm2516, %v2644
        %2686 = vst.msk [vmem:[#allocation5 + $0x438] sm:$0xff] %vm2516, %v2645
        %2687 = vst.msk [vmem:[#allocation5 + $0x460] sm:$0xff] %vm2516, %v2647
        %2688 = vst.msk [vmem:[#allocation5 + $0x488] sm:$0xff] %vm2516, %v2648
        %2689 = vst.msk [vmem:[#allocation5 + $0x4b0] sm:$0xff] %vm2516, %v2650
        %2690 = vst.msk [vmem:[#allocation5 + $0x4d8] sm:$0xff] %vm2516, %v2651
        %vm2739 = vcmask 1046528
        %v2740 = vrot.slane %v2605, 1
        %v2741 = vrot.slane %v2606, 1
        %v2742 = vsel %vm2739, %v2740, %v2741
        %v2743 = vrot.slane %v2607, 1
        %v2744 = vsel %vm2739, %v2741, %v2743
        %v2745 = vrot.slane %v2608, 1
        %v2746 = vrot.slane %v2609, 1
        %v2747 = vsel %vm2739, %v2745, %v2746
        %v2748 = vrot.slane %v2610, 1
        %v2749 = vsel %vm2739, %v2746, %v2748
        %v2750 = vrot.slane %v2611, 1
        %v2751 = vrot.slane %v2612, 1
        %v2752 = vsel %vm2739, %v2750, %v2751
        %v2753 = vrot.slane %v2613, 1
        %v2754 = vsel %vm2739, %v2751, %v2753
        %v2755 = vrot.slane %v2614, 1
        %v2756 = vrot.slane %v2615, 1
        %v2757 = vsel %vm2739, %v2755, %v2756
        %v2758 = vrot.slane %v2616, 1
        %v2759 = vsel %vm2739, %v2756, %v2758
        %v2760 = vrot.slane %v2617, 1
        %v2761 = vrot.slane %v2618, 1
        %v2762 = vsel %vm2739, %v2760, %v2761
        %v2763 = vrot.slane %v2619, 1
        %v2764 = vsel %vm2739, %v2761, %v2763
        %v2765 = vrot.slane %v2620, 1
        %v2766 = vrot.slane %v2621, 1
        %v2767 = vsel %vm2739, %v2765, %v2766
        %v2768 = vrot.slane %v2622, 1
        %v2769 = vsel %vm2739, %v2766, %v2768
        %v2770 = vrot.slane %v2623, 1
        %v2771 = vrot.slane %v2624, 1
        %v2772 = vsel %vm2739, %v2770, %v2771
        %v2773 = vrot.slane %v2625, 1
        %v2774 = vsel %vm2739, %v2771, %v2773
        %v2775 = vrot.slane %v2626, 1
        %v2776 = vrot.slane %v2627, 1
        %v2777 = vsel %vm2739, %v2775, %v2776
        %v2778 = vrot.slane %v2628, 1
        %v2779 = vsel %vm2739, %v2776, %v2778
        %v2780 = vrot.slane %v2629, 1
        %v2781 = vrot.slane %v2630, 1
        %v2782 = vsel %vm2739, %v2780, %v2781
        %v2783 = vrot.slane %v2631, 1
        %v2784 = vsel %vm2739, %v2781, %v2783
        %v2785 = vrot.slane %v2632, 1
        %v2786 = vrot.slane %v2633, 1
        %v2787 = vsel %vm2739, %v2785, %v2786
        %v2788 = vrot.slane %v2634, 1
        %v2789 = vsel %vm2739, %v2786, %v2788
        %v2790 = vrot.slane %v2635, 1
        %v2791 = vrot.slane %v2636, 1
        %v2792 = vsel %vm2739, %v2790, %v2791
        %v2793 = vrot.slane %v2637, 1
        %v2794 = vsel %vm2739, %v2791, %v2793
        %v2795 = vrot.slane %v2638, 1
        %v2796 = vrot.slane %v2639, 1
        %v2797 = vsel %vm2739, %v2795, %v2796
        %v2798 = vrot.slane %v2640, 1
        %v2799 = vsel %vm2739, %v2796, %v2798
        %v2800 = vrot.slane %v2641, 1
        %v2801 = vrot.slane %v2642, 1
        %v2802 = vsel %vm2739, %v2800, %v2801
        %v2803 = vrot.slane %v2643, 1
        %v2804 = vsel %vm2739, %v2801, %v2803
        %v2805 = vrot.slane %v2644, 1
        %v2806 = vrot.slane %v2645, 1
        %v2807 = vsel %vm2739, %v2805, %v2806
        %v2808 = vrot.slane %v2646, 1
        %v2809 = vsel %vm2739, %v2806, %v2808
        %v2810 = vrot.slane %v2647, 1
        %v2811 = vrot.slane %v2648, 1
        %v2812 = vsel %vm2739, %v2810, %v2811
        %v2813 = vrot.slane %v2649, 1
        %v2814 = vsel %vm2739, %v2811, %v2813
        %v2815 = vrot.slane %v2650, 1
        %v2816 = vrot.slane %v2651, 1
        %v2817 = vsel %vm2739, %v2815, %v2816
        %v2818 = vrot.slane %v2652, 1
        %v2819 = vsel %vm2739, %v2816, %v2818
        %2820 = vrot.lane.b32.xlu0 %v2742, 64
        %v2821 = vpop.permute.xlu0 %2820
        %2822 = vrot.lane.b32.xlu0 %v2744, 64
        %v2823 = vpop.permute.xlu0 %2822
        %2824 = vrot.lane.b32.xlu0 %v2747, 64
        %v2825 = vpop.permute.xlu0 %2824
        %2826 = vrot.lane.b32.xlu0 %v2749, 64
        %v2827 = vpop.permute.xlu0 %2826
        %2828 = vrot.lane.b32.xlu0 %v2752, 64
        %v2829 = vpop.permute.xlu0 %2828
        %2830 = vrot.lane.b32.xlu0 %v2754, 64
        %v2831 = vpop.permute.xlu0 %2830
        %2832 = vrot.lane.b32.xlu0 %v2757, 64
        %v2833 = vpop.permute.xlu0 %2832
        %2834 = vrot.lane.b32.xlu0 %v2759, 64
        %v2835 = vpop.permute.xlu0 %2834
        %2836 = vrot.lane.b32.xlu0 %v2762, 64
        %v2837 = vpop.permute.xlu0 %2836
        %2838 = vrot.lane.b32.xlu0 %v2764, 64
        %v2839 = vpop.permute.xlu0 %2838
        %2840 = vrot.lane.b32.xlu0 %v2767, 64
        %v2841 = vpop.permute.xlu0 %2840
        %2842 = vrot.lane.b32.xlu0 %v2769, 64
        %v2843 = vpop.permute.xlu0 %2842
        %2844 = vrot.lane.b32.xlu0 %v2772, 64
        %v2845 = vpop.permute.xlu0 %2844
        %2846 = vrot.lane.b32.xlu0 %v2774, 64
        %v2847 = vpop.permute.xlu0 %2846
        %2848 = vrot.lane.b32.xlu0 %v2777, 64
        %v2849 = vpop.permute.xlu0 %2848
        %2850 = vrot.lane.b32.xlu0 %v2779, 64
        %v2851 = vpop.permute.xlu0 %2850
        %2852 = vrot.lane.b32.xlu0 %v2782, 64
        %v2853 = vpop.permute.xlu0 %2852
        %2854 = vrot.lane.b32.xlu0 %v2784, 64
        %v2855 = vpop.permute.xlu0 %2854
        %2856 = vrot.lane.b32.xlu0 %v2787, 64
        %v2857 = vpop.permute.xlu0 %2856
        %2858 = vrot.lane.b32.xlu0 %v2789, 64
        %v2859 = vpop.permute.xlu0 %2858
        %2860 = vrot.lane.b32.xlu0 %v2792, 64
        %v2861 = vpop.permute.xlu0 %2860
        %2862 = vrot.lane.b32.xlu0 %v2794, 64
        %v2863 = vpop.permute.xlu0 %2862
        %2864 = vrot.lane.b32.xlu0 %v2797, 64
        %v2865 = vpop.permute.xlu0 %2864
        %2866 = vrot.lane.b32.xlu0 %v2799, 64
        %v2867 = vpop.permute.xlu0 %2866
        %2868 = vrot.lane.b32.xlu0 %v2802, 64
        %v2869 = vpop.permute.xlu0 %2868
        %2870 = vrot.lane.b32.xlu0 %v2804, 64
        %v2871 = vpop.permute.xlu0 %2870
        %2872 = vrot.lane.b32.xlu0 %v2807, 64
        %v2873 = vpop.permute.xlu0 %2872
        %2874 = vrot.lane.b32.xlu0 %v2809, 64
        %v2875 = vpop.permute.xlu0 %2874
        %2876 = vrot.lane.b32.xlu0 %v2812, 64
        %v2877 = vpop.permute.xlu0 %2876
        %2878 = vrot.lane.b32.xlu0 %v2814, 64
        %v2879 = vpop.permute.xlu0 %2878
        %2880 = vrot.lane.b32.xlu0 %v2817, 64
        %v2881 = vpop.permute.xlu0 %2880
        %2882 = vrot.lane.b32.xlu0 %v2819, 64
        %v2883 = vpop.permute.xlu0 %2882
        %vm2916 = vcmask 1048064
        %2917 = vst.msk [vmem:[#allocation5] sm:$0xff] %vm2916, %v2821
        %2918 = vst.msk [vmem:[#allocation5 + $0x28] sm:$0xff] %vm2916, %v2823
        %2919 = vst.msk [vmem:[#allocation5 + $0x50] sm:$0xff] %vm2916, %v2825
        %2920 = vst.msk [vmem:[#allocation5 + $0x78] sm:$0xff] %vm2916, %v2827
        %2921 = vst.msk [vmem:[#allocation5 + $0xa0] sm:$0xff] %vm2916, %v2829
        %2922 = vst.msk [vmem:[#allocation5 + $0xc8] sm:$0xff] %vm2916, %v2831
        %2923 = vst.msk [vmem:[#allocation5 + $0xf0] sm:$0xff] %vm2916, %v2833
        %2924 = vst.msk [vmem:[#allocation5 + $0x118] sm:$0xff] %vm2916, %v2835
        %2925 = vst.msk [vmem:[#allocation5 + $0x140] sm:$0xff] %vm2916, %v2837
        %2926 = vst.msk [vmem:[#allocation5 + $0x168] sm:$0xff] %vm2916, %v2839
        %2927 = vst.msk [vmem:[#allocation5 + $0x190] sm:$0xff] %vm2916, %v2841
        %2928 = vst.msk [vmem:[#allocation5 + $0x1b8] sm:$0xff] %vm2916, %v2843
        %2929 = vst.msk [vmem:[#allocation5 + $0x1e0] sm:$0xff] %vm2916, %v2845
        %2930 = vst.msk [vmem:[#allocation5 + $0x208] sm:$0xff] %vm2916, %v2847
        %2931 = vst.msk [vmem:[#allocation5 + $0x230] sm:$0xff] %vm2916, %v2849
        %2932 = vst.msk [vmem:[#allocation5 + $0x258] sm:$0xff] %vm2916, %v2851
        %2933 = vst.msk [vmem:[#allocation5 + $0x280] sm:$0xff] %vm2916, %v2853
        %2934 = vst.msk [vmem:[#allocation5 + $0x2a8] sm:$0xff] %vm2916, %v2855
        %2935 = vst.msk [vmem:[#allocation5 + $0x2d0] sm:$0xff] %vm2916, %v2857
        %2936 = vst.msk [vmem:[#allocation5 + $0x2f8] sm:$0xff] %vm2916, %v2859
        %2937 = vst.msk [vmem:[#allocation5 + $0x320] sm:$0xff] %vm2916, %v2861
        %2938 = vst.msk [vmem:[#allocation5 + $0x348] sm:$0xff] %vm2916, %v2863
        %2939 = vst.msk [vmem:[#allocation5 + $0x370] sm:$0xff] %vm2916, %v2865
        %2940 = vst.msk [vmem:[#allocation5 + $0x398] sm:$0xff] %vm2916, %v2867
        %2941 = vst.msk [vmem:[#allocation5 + $0x3c0] sm:$0xff] %vm2916, %v2869
        %2942 = vst.msk [vmem:[#allocation5 + $0x3e8] sm:$0xff] %vm2916, %v2871
        %2943 = vst.msk [vmem:[#allocation5 + $0x410] sm:$0xff] %vm2916, %v2873
        %2944 = vst.msk [vmem:[#allocation5 + $0x438] sm:$0xff] %vm2916, %v2875
        %2945 = vst.msk [vmem:[#allocation5 + $0x460] sm:$0xff] %vm2916, %v2877
        %2946 = vst.msk [vmem:[#allocation5 + $0x488] sm:$0xff] %vm2916, %v2879
        %2947 = vst.msk [vmem:[#allocation5 + $0x4b0] sm:$0xff] %vm2916, %v2881
        %2948 = vst.msk [vmem:[#allocation5 + $0x4d8] sm:$0xff] %vm2916, %v2883
        %vm2949 = vcmask 1045504
        %v2950 = vrot.slane %v2605, 2
        %v2951 = vrot.slane %v2606, 2
        %v2952 = vsel %vm2949, %v2950, %v2951
        %v2953 = vrot.slane %v2607, 2
        %v2954 = vsel %vm2949, %v2951, %v2953
        %v2955 = vrot.slane %v2608, 2
        %v2956 = vrot.slane %v2609, 2
        %v2957 = vsel %vm2949, %v2955, %v2956
        %v2958 = vrot.slane %v2610, 2
        %v2959 = vsel %vm2949, %v2956, %v2958
        %v2960 = vrot.slane %v2611, 2
        %v2961 = vrot.slane %v2612, 2
        %v2962 = vsel %vm2949, %v2960, %v2961
        %v2963 = vrot.slane %v2613, 2
        %v2964 = vsel %vm2949, %v2961, %v2963
        %v2965 = vrot.slane %v2614, 2
        %v2966 = vrot.slane %v2615, 2
        %v2967 = vsel %vm2949, %v2965, %v2966
        %v2968 = vrot.slane %v2616, 2
        %v2969 = vsel %vm2949, %v2966, %v2968
        %v2970 = vrot.slane %v2617, 2
        %v2971 = vrot.slane %v2618, 2
        %v2972 = vsel %vm2949, %v2970, %v2971
        %v2973 = vrot.slane %v2619, 2
        %v2974 = vsel %vm2949, %v2971, %v2973
        %v2975 = vrot.slane %v2620, 2
        %v2976 = vrot.slane %v2621, 2
        %v2977 = vsel %vm2949, %v2975, %v2976
        %v2978 = vrot.slane %v2622, 2
        %v2979 = vsel %vm2949, %v2976, %v2978
        %v2980 = vrot.slane %v2623, 2
        %v2981 = vrot.slane %v2624, 2
        %v2982 = vsel %vm2949, %v2980, %v2981
        %v2983 = vrot.slane %v2625, 2
        %v2984 = vsel %vm2949, %v2981, %v2983
        %v2985 = vrot.slane %v2626, 2
        %v2986 = vrot.slane %v2627, 2
        %v2987 = vsel %vm2949, %v2985, %v2986
        %v2988 = vrot.slane %v2628, 2
        %v2989 = vsel %vm2949, %v2986, %v2988
        %v2990 = vrot.slane %v2629, 2
        %v2991 = vrot.slane %v2630, 2
        %v2992 = vsel %vm2949, %v2990, %v2991
        %v2993 = vrot.slane %v2631, 2
        %v2994 = vsel %vm2949, %v2991, %v2993
        %v2995 = vrot.slane %v2632, 2
        %v2996 = vrot.slane %v2633, 2
        %v2997 = vsel %vm2949, %v2995, %v2996
        %v2998 = vrot.slane %v2634, 2
        %v2999 = vsel %vm2949, %v2996, %v2998
        %v3000 = vrot.slane %v2635, 2
        %v3001 = vrot.slane %v2636, 2
        %v3002 = vsel %vm2949, %v3000, %v3001
        %v3003 = vrot.slane %v2637, 2
        %v3004 = vsel %vm2949, %v3001, %v3003
        %v3005 = vrot.slane %v2638, 2
        %v3006 = vrot.slane %v2639, 2
        %v3007 = vsel %vm2949, %v3005, %v3006
        %v3008 = vrot.slane %v2640, 2
        %v3009 = vsel %vm2949, %v3006, %v3008
        %v3010 = vrot.slane %v2641, 2
        %v3011 = vrot.slane %v2642, 2
        %v3012 = vsel %vm2949, %v3010, %v3011
        %v3013 = vrot.slane %v2643, 2
        %v3014 = vsel %vm2949, %v3011, %v3013
        %v3015 = vrot.slane %v2644, 2
        %v3016 = vrot.slane %v2645, 2
        %v3017 = vsel %vm2949, %v3015, %v3016
        %v3018 = vrot.slane %v2646, 2
        %v3019 = vsel %vm2949, %v3016, %v3018
        %v3020 = vrot.slane %v2647, 2
        %v3021 = vrot.slane %v2648, 2
        %v3022 = vsel %vm2949, %v3020, %v3021
        %v3023 = vrot.slane %v2649, 2
        %v3024 = vsel %vm2949, %v3021, %v3023
        %v3025 = vrot.slane %v2650, 2
        %v3026 = vrot.slane %v2651, 2
        %v3027 = vsel %vm2949, %v3025, %v3026
        %v3028 = vrot.slane %v2652, 2
        %v3029 = vsel %vm2949, %v3026, %v3028
        %3062 = vst.msk [vmem:[#allocation5 + $0x8] sm:$0xff] %vm2516, %v2952
        %3063 = vst.msk [vmem:[#allocation5 + $0x30] sm:$0xff] %vm2516, %v2954
        %3064 = vst.msk [vmem:[#allocation5 + $0x58] sm:$0xff] %vm2516, %v2957
        %3065 = vst.msk [vmem:[#allocation5 + $0x80] sm:$0xff] %vm2516, %v2959
        %3066 = vst.msk [vmem:[#allocation5 + $0xa8] sm:$0xff] %vm2516, %v2962
        %3067 = vst.msk [vmem:[#allocation5 + $0xd0] sm:$0xff] %vm2516, %v2964
        %3068 = vst.msk [vmem:[#allocation5 + $0xf8] sm:$0xff] %vm2516, %v2967
        %3069 = vst.msk [vmem:[#allocation5 + $0x120] sm:$0xff] %vm2516, %v2969
        %3070 = vst.msk [vmem:[#allocation5 + $0x148] sm:$0xff] %vm2516, %v2972
        %3071 = vst.msk [vmem:[#allocation5 + $0x170] sm:$0xff] %vm2516, %v2974
        %3072 = vst.msk [vmem:[#allocation5 + $0x198] sm:$0xff] %vm2516, %v2977
        %3073 = vst.msk [vmem:[#allocation5 + $0x1c0] sm:$0xff] %vm2516, %v2979
        %3074 = vst.msk [vmem:[#allocation5 + $0x1e8] sm:$0xff] %vm2516, %v2982
        %3075 = vst.msk [vmem:[#allocation5 + $0x210] sm:$0xff] %vm2516, %v2984
        %3076 = vst.msk [vmem:[#allocation5 + $0x238] sm:$0xff] %vm2516, %v2987
        %3077 = vst.msk [vmem:[#allocation5 + $0x260] sm:$0xff] %vm2516, %v2989
        %3078 = vst.msk [vmem:[#allocation5 + $0x288] sm:$0xff] %vm2516, %v2992
        %3079 = vst.msk [vmem:[#allocation5 + $0x2b0] sm:$0xff] %vm2516, %v2994
        %3080 = vst.msk [vmem:[#allocation5 + $0x2d8] sm:$0xff] %vm2516, %v2997
        %3081 = vst.msk [vmem:[#allocation5 + $0x300] sm:$0xff] %vm2516, %v2999
        %3082 = vst.msk [vmem:[#allocation5 + $0x328] sm:$0xff] %vm2516, %v3002
        %3083 = vst.msk [vmem:[#allocation5 + $0x350] sm:$0xff] %vm2516, %v3004
        %3084 = vst.msk [vmem:[#allocation5 + $0x378] sm:$0xff] %vm2516, %v3007
        %3085 = vst.msk [vmem:[#allocation5 + $0x3a0] sm:$0xff] %vm2516, %v3009
        %3086 = vst.msk [vmem:[#allocation5 + $0x3c8] sm:$0xff] %vm2516, %v3012
        %3087 = vst.msk [vmem:[#allocation5 + $0x3f0] sm:$0xff] %vm2516, %v3014
        %3088 = vst.msk [vmem:[#allocation5 + $0x418] sm:$0xff] %vm2516, %v3017
        %3089 = vst.msk [vmem:[#allocation5 + $0x440] sm:$0xff] %vm2516, %v3019
        %3090 = vst.msk [vmem:[#allocation5 + $0x468] sm:$0xff] %vm2516, %v3022
        %3091 = vst.msk [vmem:[#allocation5 + $0x490] sm:$0xff] %vm2516, %v3024
        %3092 = vst.msk [vmem:[#allocation5 + $0x4b8] sm:$0xff] %vm2516, %v3027
        %3093 = vst.msk [vmem:[#allocation5 + $0x4e0] sm:$0xff] %vm2516, %v3029
        %3096 = vrot.lane.b32.xlu0 %v2608, 64
        %v3097 = vpop.permute.xlu0 %3096
        %3098 = vrot.lane.b32.xlu0 %v2609, 64
        %v3099 = vpop.permute.xlu0 %3098
        %3100 = vrot.lane.b32.xlu0 %v2611, 64
        %v3101 = vpop.permute.xlu0 %3100
        %3102 = vrot.lane.b32.xlu0 %v2612, 64
        %v3103 = vpop.permute.xlu0 %3102
        %3104 = vrot.lane.b32.xlu0 %v2614, 64
        %v3105 = vpop.permute.xlu0 %3104
        %3106 = vrot.lane.b32.xlu0 %v2615, 64
        %v3107 = vpop.permute.xlu0 %3106
        %3108 = vrot.lane.b32.xlu0 %v2617, 64
        %v3109 = vpop.permute.xlu0 %3108
        %3110 = vrot.lane.b32.xlu0 %v2618, 64
        %v3111 = vpop.permute.xlu0 %3110
        %3112 = vrot.lane.b32.xlu0 %v2620, 64
        %v3113 = vpop.permute.xlu0 %3112
        %3114 = vrot.lane.b32.xlu0 %v2621, 64
        %v3115 = vpop.permute.xlu0 %3114
        %3116 = vrot.lane.b32.xlu0 %v2623, 64
        %v3117 = vpop.permute.xlu0 %3116
        %3118 = vrot.lane.b32.xlu0 %v2624, 64
        %v3119 = vpop.permute.xlu0 %3118
        %3120 = vrot.lane.b32.xlu0 %v2626, 64
        %v3121 = vpop.permute.xlu0 %3120
        %3122 = vrot.lane.b32.xlu0 %v2627, 64
        %v3123 = vpop.permute.xlu0 %3122
        %3124 = vrot.lane.b32.xlu0 %v2629, 64
        %v3125 = vpop.permute.xlu0 %3124
        %3126 = vrot.lane.b32.xlu0 %v2630, 64
        %v3127 = vpop.permute.xlu0 %3126
        %3128 = vrot.lane.b32.xlu0 %v2632, 64
        %v3129 = vpop.permute.xlu0 %3128
        %3130 = vrot.lane.b32.xlu0 %v2633, 64
        %v3131 = vpop.permute.xlu0 %3130
        %3132 = vrot.lane.b32.xlu0 %v2635, 64
        %v3133 = vpop.permute.xlu0 %3132
        %3134 = vrot.lane.b32.xlu0 %v2636, 64
        %v3135 = vpop.permute.xlu0 %3134
        %3136 = vrot.lane.b32.xlu0 %v2638, 64
        %v3137 = vpop.permute.xlu0 %3136
        %3138 = vrot.lane.b32.xlu0 %v2639, 64
        %v3139 = vpop.permute.xlu0 %3138
        %3140 = vrot.lane.b32.xlu0 %v2641, 64
        %v3141 = vpop.permute.xlu0 %3140
        %3142 = vrot.lane.b32.xlu0 %v2642, 64
        %v3143 = vpop.permute.xlu0 %3142
        %3144 = vrot.lane.b32.xlu0 %v2644, 64
        %v3145 = vpop.permute.xlu0 %3144
        %3146 = vrot.lane.b32.xlu0 %v2645, 64
        %v3147 = vpop.permute.xlu0 %3146
        %3148 = vrot.lane.b32.xlu0 %v2647, 64
        %v3149 = vpop.permute.xlu0 %3148
        %3150 = vrot.lane.b32.xlu0 %v2648, 64
        %v3151 = vpop.permute.xlu0 %3150
        %3152 = vrot.lane.b32.xlu0 %v2650, 64
        %v3153 = vpop.permute.xlu0 %3152
        %3154 = vrot.lane.b32.xlu0 %v2651, 64
        %v3155 = vpop.permute.xlu0 %3154
        %3156 = vrot.lane.b32.xlu0 %v2653, 64
        %v3157 = vpop.permute.xlu0 %3156
        %3158 = vrot.lane.b32.xlu0 %v2654, 64
        %v3159 = vpop.permute.xlu0 %3158
        %3192 = vst.msk [vmem:[#allocation5 + $0x8] sm:$0xff] %vm2916, %v3097
        %3193 = vst.msk [vmem:[#allocation5 + $0x30] sm:$0xff] %vm2916, %v3099
        %3194 = vst.msk [vmem:[#allocation5 + $0x58] sm:$0xff] %vm2916, %v3101
        %3195 = vst.msk [vmem:[#allocation5 + $0x80] sm:$0xff] %vm2916, %v3103
        %3196 = vst.msk [vmem:[#allocation5 + $0xa8] sm:$0xff] %vm2916, %v3105
        %3197 = vst.msk [vmem:[#allocation5 + $0xd0] sm:$0xff] %vm2916, %v3107
        %3198 = vst.msk [vmem:[#allocation5 + $0xf8] sm:$0xff] %vm2916, %v3109
        %3199 = vst.msk [vmem:[#allocation5 + $0x120] sm:$0xff] %vm2916, %v3111
        %3200 = vst.msk [vmem:[#allocation5 + $0x148] sm:$0xff] %vm2916, %v3113
        %3201 = vst.msk [vmem:[#allocation5 + $0x170] sm:$0xff] %vm2916, %v3115
        %3202 = vst.msk [vmem:[#allocation5 + $0x198] sm:$0xff] %vm2916, %v3117
        %3203 = vst.msk [vmem:[#allocation5 + $0x1c0] sm:$0xff] %vm2916, %v3119
        %3204 = vst.msk [vmem:[#allocation5 + $0x1e8] sm:$0xff] %vm2916, %v3121
        %3205 = vst.msk [vmem:[#allocation5 + $0x210] sm:$0xff] %vm2916, %v3123
        %3206 = vst.msk [vmem:[#allocation5 + $0x238] sm:$0xff] %vm2916, %v3125
        %3207 = vst.msk [vmem:[#allocation5 + $0x260] sm:$0xff] %vm2916, %v3127
        %3208 = vst.msk [vmem:[#allocation5 + $0x288] sm:$0xff] %vm2916, %v3129
        %3209 = vst.msk [vmem:[#allocation5 + $0x2b0] sm:$0xff] %vm2916, %v3131
        %3210 = vst.msk [vmem:[#allocation5 + $0x2d8] sm:$0xff] %vm2916, %v3133
        %3211 = vst.msk [vmem:[#allocation5 + $0x300] sm:$0xff] %vm2916, %v3135
        %3212 = vst.msk [vmem:[#allocation5 + $0x328] sm:$0xff] %vm2916, %v3137
        %3213 = vst.msk [vmem:[#allocation5 + $0x350] sm:$0xff] %vm2916, %v3139
        %3214 = vst.msk [vmem:[#allocation5 + $0x378] sm:$0xff] %vm2916, %v3141
        %3215 = vst.msk [vmem:[#allocation5 + $0x3a0] sm:$0xff] %vm2916, %v3143
        %3216 = vst.msk [vmem:[#allocation5 + $0x3c8] sm:$0xff] %vm2916, %v3145
        %3217 = vst.msk [vmem:[#allocation5 + $0x3f0] sm:$0xff] %vm2916, %v3147
        %3218 = vst.msk [vmem:[#allocation5 + $0x418] sm:$0xff] %vm2916, %v3149
        %3219 = vst.msk [vmem:[#allocation5 + $0x440] sm:$0xff] %vm2916, %v3151
        %3220 = vst.msk [vmem:[#allocation5 + $0x468] sm:$0xff] %vm2916, %v3153
        %3221 = vst.msk [vmem:[#allocation5 + $0x490] sm:$0xff] %vm2916, %v3155
        %3222 = vst.msk [vmem:[#allocation5 + $0x4b8] sm:$0xff] %vm2916, %v3157
        %3223 = vst.msk [vmem:[#allocation5 + $0x4e0] sm:$0xff] %vm2916, %v3159
        %v3225 = vrot.slane %v2653, 1
        %v3226 = vrot.slane %v2654, 1
        %v3227 = vsel %vm2739, %v3225, %v3226
        %v3228 = vrot.slane %v2655, 1
        %v3229 = vsel %vm2739, %v3226, %v3228
        %3262 = vst.msk [vmem:[#allocation5 + $0x10] sm:$0xff] %vm2516, %v2747
        %3263 = vst.msk [vmem:[#allocation5 + $0x38] sm:$0xff] %vm2516, %v2749
        %3264 = vst.msk [vmem:[#allocation5 + $0x60] sm:$0xff] %vm2516, %v2752
        %3265 = vst.msk [vmem:[#allocation5 + $0x88] sm:$0xff] %vm2516, %v2754
        %3266 = vst.msk [vmem:[#allocation5 + $0xb0] sm:$0xff] %vm2516, %v2757
        %3267 = vst.msk [vmem:[#allocation5 + $0xd8] sm:$0xff] %vm2516, %v2759
        %3268 = vst.msk [vmem:[#allocation5 + $0x100] sm:$0xff] %vm2516, %v2762
        %3269 = vst.msk [vmem:[#allocation5 + $0x128] sm:$0xff] %vm2516, %v2764
        %3270 = vst.msk [vmem:[#allocation5 + $0x150] sm:$0xff] %vm2516, %v2767
        %3271 = vst.msk [vmem:[#allocation5 + $0x178] sm:$0xff] %vm2516, %v2769
        %3272 = vst.msk [vmem:[#allocation5 + $0x1a0] sm:$0xff] %vm2516, %v2772
        %3273 = vst.msk [vmem:[#allocation5 + $0x1c8] sm:$0xff] %vm2516, %v2774
        %3274 = vst.msk [vmem:[#allocation5 + $0x1f0] sm:$0xff] %vm2516, %v2777
        %3275 = vst.msk [vmem:[#allocation5 + $0x218] sm:$0xff] %vm2516, %v2779
        %3276 = vst.msk [vmem:[#allocation5 + $0x240] sm:$0xff] %vm2516, %v2782
        %3277 = vst.msk [vmem:[#allocation5 + $0x268] sm:$0xff] %vm2516, %v2784
        %3278 = vst.msk [vmem:[#allocation5 + $0x290] sm:$0xff] %vm2516, %v2787
        %3279 = vst.msk [vmem:[#allocation5 + $0x2b8] sm:$0xff] %vm2516, %v2789
        %3280 = vst.msk [vmem:[#allocation5 + $0x2e0] sm:$0xff] %vm2516, %v2792
        %3281 = vst.msk [vmem:[#allocation5 + $0x308] sm:$0xff] %vm2516, %v2794
        %3282 = vst.msk [vmem:[#allocation5 + $0x330] sm:$0xff] %vm2516, %v2797
        %3283 = vst.msk [vmem:[#allocation5 + $0x358] sm:$0xff] %vm2516, %v2799
        %3284 = vst.msk [vmem:[#allocation5 + $0x380] sm:$0xff] %vm2516, %v2802
        %3285 = vst.msk [vmem:[#allocation5 + $0x3a8] sm:$0xff] %vm2516, %v2804
        %3286 = vst.msk [vmem:[#allocation5 + $0x3d0] sm:$0xff] %vm2516, %v2807
        %3287 = vst.msk [vmem:[#allocation5 + $0x3f8] sm:$0xff] %vm2516, %v2809
        %3288 = vst.msk [vmem:[#allocation5 + $0x420] sm:$0xff] %vm2516, %v2812
        %3289 = vst.msk [vmem:[#allocation5 + $0x448] sm:$0xff] %vm2516, %v2814
        %3290 = vst.msk [vmem:[#allocation5 + $0x470] sm:$0xff] %vm2516, %v2817
        %3291 = vst.msk [vmem:[#allocation5 + $0x498] sm:$0xff] %vm2516, %v2819
        %3292 = vst.msk [vmem:[#allocation5 + $0x4c0] sm:$0xff] %vm2516, %v3227
        %3293 = vst.msk [vmem:[#allocation5 + $0x4e8] sm:$0xff] %vm2516, %v3229
        %v3294 = vrot.slane %v2653, 2
        %v3295 = vrot.slane %v2654, 2
        %v3296 = vsel %vm2949, %v3294, %v3295
        %v3297 = vrot.slane %v2655, 2
        %v3298 = vsel %vm2949, %v3295, %v3297
        %3299 = vrot.lane.b32.xlu0 %v2957, 64
        %v3300 = vpop.permute.xlu0 %3299
        %3301 = vrot.lane.b32.xlu0 %v2959, 64
        %v3302 = vpop.permute.xlu0 %3301
        %3303 = vrot.lane.b32.xlu0 %v2962, 64
        %v3304 = vpop.permute.xlu0 %3303
        %3305 = vrot.lane.b32.xlu0 %v2964, 64
        %v3306 = vpop.permute.xlu0 %3305
        %3307 = vrot.lane.b32.xlu0 %v2967, 64
        %v3308 = vpop.permute.xlu0 %3307
        %3309 = vrot.lane.b32.xlu0 %v2969, 64
        %v3310 = vpop.permute.xlu0 %3309
        %3311 = vrot.lane.b32.xlu0 %v2972, 64
        %v3312 = vpop.permute.xlu0 %3311
        %3313 = vrot.lane.b32.xlu0 %v2974, 64
        %v3314 = vpop.permute.xlu0 %3313
        %3315 = vrot.lane.b32.xlu0 %v2977, 64
        %v3316 = vpop.permute.xlu0 %3315
        %3317 = vrot.lane.b32.xlu0 %v2979, 64
        %v3318 = vpop.permute.xlu0 %3317
        %3319 = vrot.lane.b32.xlu0 %v2982, 64
        %v3320 = vpop.permute.xlu0 %3319
        %3321 = vrot.lane.b32.xlu0 %v2984, 64
        %v3322 = vpop.permute.xlu0 %3321
        %3323 = vrot.lane.b32.xlu0 %v2987, 64
        %v3324 = vpop.permute.xlu0 %3323
        %3325 = vrot.lane.b32.xlu0 %v2989, 64
        %v3326 = vpop.permute.xlu0 %3325
        %3327 = vrot.lane.b32.xlu0 %v2992, 64
        %v3328 = vpop.permute.xlu0 %3327
        %3329 = vrot.lane.b32.xlu0 %v2994, 64
        %v3330 = vpop.permute.xlu0 %3329
        %3331 = vrot.lane.b32.xlu0 %v2997, 64
        %v3332 = vpop.permute.xlu0 %3331
        %3333 = vrot.lane.b32.xlu0 %v2999, 64
        %v3334 = vpop.permute.xlu0 %3333
        %3335 = vrot.lane.b32.xlu0 %v3002, 64
        %v3336 = vpop.permute.xlu0 %3335
        %3337 = vrot.lane.b32.xlu0 %v3004, 64
        %v3338 = vpop.permute.xlu0 %3337
        %3339 = vrot.lane.b32.xlu0 %v3007, 64
        %v3340 = vpop.permute.xlu0 %3339
        %3341 = vrot.lane.b32.xlu0 %v3009, 64
        %v3342 = vpop.permute.xlu0 %3341
        %3343 = vrot.lane.b32.xlu0 %v3012, 64
        %v3344 = vpop.permute.xlu0 %3343
        %3345 = vrot.lane.b32.xlu0 %v3014, 64
        %v3346 = vpop.permute.xlu0 %3345
        %3347 = vrot.lane.b32.xlu0 %v3017, 64
        %v3348 = vpop.permute.xlu0 %3347
        %3349 = vrot.lane.b32.xlu0 %v3019, 64
        %v3350 = vpop.permute.xlu0 %3349
        %3351 = vrot.lane.b32.xlu0 %v3022, 64
        %v3352 = vpop.permute.xlu0 %3351
        %3353 = vrot.lane.b32.xlu0 %v3024, 64
        %v3354 = vpop.permute.xlu0 %3353
        %3355 = vrot.lane.b32.xlu0 %v3027, 64
        %v3356 = vpop.permute.xlu0 %3355
        %3357 = vrot.lane.b32.xlu0 %v3029, 64
        %v3358 = vpop.permute.xlu0 %3357
        %3359 = vrot.lane.b32.xlu0 %v3296, 64
        %v3360 = vpop.permute.xlu0 %3359
        %3361 = vrot.lane.b32.xlu0 %v3298, 64
        %v3362 = vpop.permute.xlu0 %3361
        %3395 = vst.msk [vmem:[#allocation5 + $0x10] sm:$0xff] %vm2916, %v3300
        %3396 = vst.msk [vmem:[#allocation5 + $0x38] sm:$0xff] %vm2916, %v3302
        %3397 = vst.msk [vmem:[#allocation5 + $0x60] sm:$0xff] %vm2916, %v3304
        %3398 = vst.msk [vmem:[#allocation5 + $0x88] sm:$0xff] %vm2916, %v3306
        %3399 = vst.msk [vmem:[#allocation5 + $0xb0] sm:$0xff] %vm2916, %v3308
        %3400 = vst.msk [vmem:[#allocation5 + $0xd8] sm:$0xff] %vm2916, %v3310
        %3401 = vst.msk [vmem:[#allocation5 + $0x100] sm:$0xff] %vm2916, %v3312
        %3402 = vst.msk [vmem:[#allocation5 + $0x128] sm:$0xff] %vm2916, %v3314
        %3403 = vst.msk [vmem:[#allocation5 + $0x150] sm:$0xff] %vm2916, %v3316
        %3404 = vst.msk [vmem:[#allocation5 + $0x178] sm:$0xff] %vm2916, %v3318
        %3405 = vst.msk [vmem:[#allocation5 + $0x1a0] sm:$0xff] %vm2916, %v3320
        %3406 = vst.msk [vmem:[#allocation5 + $0x1c8] sm:$0xff] %vm2916, %v3322
        %3407 = vst.msk [vmem:[#allocation5 + $0x1f0] sm:$0xff] %vm2916, %v3324
        %3408 = vst.msk [vmem:[#allocation5 + $0x218] sm:$0xff] %vm2916, %v3326
        %3409 = vst.msk [vmem:[#allocation5 + $0x240] sm:$0xff] %vm2916, %v3328
        %3410 = vst.msk [vmem:[#allocation5 + $0x268] sm:$0xff] %vm2916, %v3330
        %3411 = vst.msk [vmem:[#allocation5 + $0x290] sm:$0xff] %vm2916, %v3332
        %3412 = vst.msk [vmem:[#allocation5 + $0x2b8] sm:$0xff] %vm2916, %v3334
        %3413 = vst.msk [vmem:[#allocation5 + $0x2e0] sm:$0xff] %vm2916, %v3336
        %3414 = vst.msk [vmem:[#allocation5 + $0x308] sm:$0xff] %vm2916, %v3338
        %3415 = vst.msk [vmem:[#allocation5 + $0x330] sm:$0xff] %vm2916, %v3340
        %3416 = vst.msk [vmem:[#allocation5 + $0x358] sm:$0xff] %vm2916, %v3342
        %3417 = vst.msk [vmem:[#allocation5 + $0x380] sm:$0xff] %vm2916, %v3344
        %3418 = vst.msk [vmem:[#allocation5 + $0x3a8] sm:$0xff] %vm2916, %v3346
        %3419 = vst.msk [vmem:[#allocation5 + $0x3d0] sm:$0xff] %vm2916, %v3348
        %3420 = vst.msk [vmem:[#allocation5 + $0x3f8] sm:$0xff] %vm2916, %v3350
        %3421 = vst.msk [vmem:[#allocation5 + $0x420] sm:$0xff] %vm2916, %v3352
        %3422 = vst.msk [vmem:[#allocation5 + $0x448] sm:$0xff] %vm2916, %v3354
        %3423 = vst.msk [vmem:[#allocation5 + $0x470] sm:$0xff] %vm2916, %v3356
        %3424 = vst.msk [vmem:[#allocation5 + $0x498] sm:$0xff] %vm2916, %v3358
        %3425 = vst.msk [vmem:[#allocation5 + $0x4c0] sm:$0xff] %vm2916, %v3360
        %3426 = vst.msk [vmem:[#allocation5 + $0x4e8] sm:$0xff] %vm2916, %v3362
        %3427 = vst.msk [vmem:[#allocation5 + $0x18] sm:$0xff] %vm2516, %v2611
        %3428 = vst.msk [vmem:[#allocation5 + $0x40] sm:$0xff] %vm2516, %v2612
        %3429 = vst.msk [vmem:[#allocation5 + $0x68] sm:$0xff] %vm2516, %v2614
        %3430 = vst.msk [vmem:[#allocation5 + $0x90] sm:$0xff] %vm2516, %v2615
        %3431 = vst.msk [vmem:[#allocation5 + $0xb8] sm:$0xff] %vm2516, %v2617
        %3432 = vst.msk [vmem:[#allocation5 + $0xe0] sm:$0xff] %vm2516, %v2618
        %3433 = vst.msk [vmem:[#allocation5 + $0x108] sm:$0xff] %vm2516, %v2620
        %3434 = vst.msk [vmem:[#allocation5 + $0x130] sm:$0xff] %vm2516, %v2621
        %3435 = vst.msk [vmem:[#allocation5 + $0x158] sm:$0xff] %vm2516, %v2623
        %3436 = vst.msk [vmem:[#allocation5 + $0x180] sm:$0xff] %vm2516, %v2624
        %3437 = vst.msk [vmem:[#allocation5 + $0x1a8] sm:$0xff] %vm2516, %v2626
        %3438 = vst.msk [vmem:[#allocation5 + $0x1d0] sm:$0xff] %vm2516, %v2627
        %3439 = vst.msk [vmem:[#allocation5 + $0x1f8] sm:$0xff] %vm2516, %v2629
        %3440 = vst.msk [vmem:[#allocation5 + $0x220] sm:$0xff] %vm2516, %v2630
        %3441 = vst.msk [vmem:[#allocation5 + $0x248] sm:$0xff] %vm2516, %v2632
        %3442 = vst.msk [vmem:[#allocation5 + $0x270] sm:$0xff] %vm2516, %v2633
        %3443 = vst.msk [vmem:[#allocation5 + $0x298] sm:$0xff] %vm2516, %v2635
        %3444 = vst.msk [vmem:[#allocation5 + $0x2c0] sm:$0xff] %vm2516, %v2636
        %3445 = vst.msk [vmem:[#allocation5 + $0x2e8] sm:$0xff] %vm2516, %v2638
        %3446 = vst.msk [vmem:[#allocation5 + $0x310] sm:$0xff] %vm2516, %v2639
        %3447 = vst.msk [vmem:[#allocation5 + $0x338] sm:$0xff] %vm2516, %v2641
        %3448 = vst.msk [vmem:[#allocation5 + $0x360] sm:$0xff] %vm2516, %v2642
        %3449 = vst.msk [vmem:[#allocation5 + $0x388] sm:$0xff] %vm2516, %v2644
        %3450 = vst.msk [vmem:[#allocation5 + $0x3b0] sm:$0xff] %vm2516, %v2645
        %3451 = vst.msk [vmem:[#allocation5 + $0x3d8] sm:$0xff] %vm2516, %v2647
        %3452 = vst.msk [vmem:[#allocation5 + $0x400] sm:$0xff] %vm2516, %v2648
        %3453 = vst.msk [vmem:[#allocation5 + $0x428] sm:$0xff] %vm2516, %v2650
        %3454 = vst.msk [vmem:[#allocation5 + $0x450] sm:$0xff] %vm2516, %v2651
        %3455 = vst.msk [vmem:[#allocation5 + $0x478] sm:$0xff] %vm2516, %v2653
        %3456 = vst.msk [vmem:[#allocation5 + $0x4a0] sm:$0xff] %vm2516, %v2654
        %3457 = vst.msk [vmem:[#allocation5 + $0x4c8] sm:$0xff] %vm2516, %v2656
        %3458 = vst.msk [vmem:[#allocation5 + $0x4f0] sm:$0xff] %vm2516, %v2657
        %v3462 = vrot.slane %v2656, 1
        %v3463 = vrot.slane %v2657, 1
        %v3464 = vsel %vm2739, %v3462, %v3463
        %v3465 = vrot.slane %v2658, 1
        %v3466 = vsel %vm2739, %v3463, %v3465
        %3467 = vrot.lane.b32.xlu0 %v3227, 64
        %v3468 = vpop.permute.xlu0 %3467
        %3469 = vrot.lane.b32.xlu0 %v3229, 64
        %v3470 = vpop.permute.xlu0 %3469
        %3471 = vrot.lane.b32.xlu0 %v3464, 64
        %v3472 = vpop.permute.xlu0 %3471
        %3473 = vrot.lane.b32.xlu0 %v3466, 64
        %v3474 = vpop.permute.xlu0 %3473
        %3479 = vst.msk [vmem:[#allocation5 + $0x18] sm:$0xff] %vm2916, %v2829
        %3480 = vst.msk [vmem:[#allocation5 + $0x40] sm:$0xff] %vm2916, %v2831
        %3481 = vst.msk [vmem:[#allocation5 + $0x68] sm:$0xff] %vm2916, %v2833
        %3482 = vst.msk [vmem:[#allocation5 + $0x90] sm:$0xff] %vm2916, %v2835
        %3483 = vst.msk [vmem:[#allocation5 + $0xb8] sm:$0xff] %vm2916, %v2837
        %3484 = vst.msk [vmem:[#allocation5 + $0xe0] sm:$0xff] %vm2916, %v2839
        %3485 = vst.msk [vmem:[#allocation5 + $0x108] sm:$0xff] %vm2916, %v2841
        %3486 = vst.msk [vmem:[#allocation5 + $0x130] sm:$0xff] %vm2916, %v2843
        %3487 = vst.msk [vmem:[#allocation5 + $0x158] sm:$0xff] %vm2916, %v2845
        %3488 = vst.msk [vmem:[#allocation5 + $0x180] sm:$0xff] %vm2916, %v2847
        %3489 = vst.msk [vmem:[#allocation5 + $0x1a8] sm:$0xff] %vm2916, %v2849
        %3490 = vst.msk [vmem:[#allocation5 + $0x1d0] sm:$0xff] %vm2916, %v2851
        %3491 = vst.msk [vmem:[#allocation5 + $0x1f8] sm:$0xff] %vm2916, %v2853
        %3492 = vst.msk [vmem:[#allocation5 + $0x220] sm:$0xff] %vm2916, %v2855
        %3493 = vst.msk [vmem:[#allocation5 + $0x248] sm:$0xff] %vm2916, %v2857
        %3494 = vst.msk [vmem:[#allocation5 + $0x270] sm:$0xff] %vm2916, %v2859
        %3495 = vst.msk [vmem:[#allocation5 + $0x298] sm:$0xff] %vm2916, %v2861
        %3496 = vst.msk [vmem:[#allocation5 + $0x2c0] sm:$0xff] %vm2916, %v2863
        %3497 = vst.msk [vmem:[#allocation5 + $0x2e8] sm:$0xff] %vm2916, %v2865
        %3498 = vst.msk [vmem:[#allocation5 + $0x310] sm:$0xff] %vm2916, %v2867
        %3499 = vst.msk [vmem:[#allocation5 + $0x338] sm:$0xff] %vm2916, %v2869
        %3500 = vst.msk [vmem:[#allocation5 + $0x360] sm:$0xff] %vm2916, %v2871
        %3501 = vst.msk [vmem:[#allocation5 + $0x388] sm:$0xff] %vm2916, %v2873
        %3502 = vst.msk [vmem:[#allocation5 + $0x3b0] sm:$0xff] %vm2916, %v2875
        %3503 = vst.msk [vmem:[#allocation5 + $0x3d8] sm:$0xff] %vm2916, %v2877
        %3504 = vst.msk [vmem:[#allocation5 + $0x400] sm:$0xff] %vm2916, %v2879
        %3505 = vst.msk [vmem:[#allocation5 + $0x428] sm:$0xff] %vm2916, %v2881
        %3506 = vst.msk [vmem:[#allocation5 + $0x450] sm:$0xff] %vm2916, %v2883
        %3507 = vst.msk [vmem:[#allocation5 + $0x478] sm:$0xff] %vm2916, %v3468
        %3508 = vst.msk [vmem:[#allocation5 + $0x4a0] sm:$0xff] %vm2916, %v3470
        %3509 = vst.msk [vmem:[#allocation5 + $0x4c8] sm:$0xff] %vm2916, %v3472
        %3510 = vst.msk [vmem:[#allocation5 + $0x4f0] sm:$0xff] %vm2916, %v3474
        %v3511 = vrot.slane %v2656, 2
        %v3512 = vrot.slane %v2657, 2
        %v3513 = vsel %vm2949, %v3511, %v3512
        %v3514 = vrot.slane %v2658, 2
        %v3515 = vsel %vm2949, %v3512, %v3514
        %3520 = vst.msk [vmem:[#allocation5 + $0x20] sm:$0xff] %vm2516, %v2962
        %3521 = vst.msk [vmem:[#allocation5 + $0x48] sm:$0xff] %vm2516, %v2964
        %3522 = vst.msk [vmem:[#allocation5 + $0x70] sm:$0xff] %vm2516, %v2967
        %3523 = vst.msk [vmem:[#allocation5 + $0x98] sm:$0xff] %vm2516, %v2969
        %3524 = vst.msk [vmem:[#allocation5 + $0xc0] sm:$0xff] %vm2516, %v2972
        %3525 = vst.msk [vmem:[#allocation5 + $0xe8] sm:$0xff] %vm2516, %v2974
        %3526 = vst.msk [vmem:[#allocation5 + $0x110] sm:$0xff] %vm2516, %v2977
        %3527 = vst.msk [vmem:[#allocation5 + $0x138] sm:$0xff] %vm2516, %v2979
        %3528 = vst.msk [vmem:[#allocation5 + $0x160] sm:$0xff] %vm2516, %v2982
        %3529 = vst.msk [vmem:[#allocation5 + $0x188] sm:$0xff] %vm2516, %v2984
        %3530 = vst.msk [vmem:[#allocation5 + $0x1b0] sm:$0xff] %vm2516, %v2987
        %3531 = vst.msk [vmem:[#allocation5 + $0x1d8] sm:$0xff] %vm2516, %v2989
        %3532 = vst.msk [vmem:[#allocation5 + $0x200] sm:$0xff] %vm2516, %v2992
        %3533 = vst.msk [vmem:[#allocation5 + $0x228] sm:$0xff] %vm2516, %v2994
        %3534 = vst.msk [vmem:[#allocation5 + $0x250] sm:$0xff] %vm2516, %v2997
        %3535 = vst.msk [vmem:[#allocation5 + $0x278] sm:$0xff] %vm2516, %v2999
        %3536 = vst.msk [vmem:[#allocation5 + $0x2a0] sm:$0xff] %vm2516, %v3002
        %3537 = vst.msk [vmem:[#allocation5 + $0x2c8] sm:$0xff] %vm2516, %v3004
        %3538 = vst.msk [vmem:[#allocation5 + $0x2f0] sm:$0xff] %vm2516, %v3007
        %3539 = vst.msk [vmem:[#allocation5 + $0x318] sm:$0xff] %vm2516, %v3009
        %3540 = vst.msk [vmem:[#allocation5 + $0x340] sm:$0xff] %vm2516, %v3012
        %3541 = vst.msk [vmem:[#allocation5 + $0x368] sm:$0xff] %vm2516, %v3014
        %3542 = vst.msk [vmem:[#allocation5 + $0x390] sm:$0xff] %vm2516, %v3017
        %3543 = vst.msk [vmem:[#allocation5 + $0x3b8] sm:$0xff] %vm2516, %v3019
        %3544 = vst.msk [vmem:[#allocation5 + $0x3e0] sm:$0xff] %vm2516, %v3022
        %3545 = vst.msk [vmem:[#allocation5 + $0x408] sm:$0xff] %vm2516, %v3024
        %3546 = vst.msk [vmem:[#allocation5 + $0x430] sm:$0xff] %vm2516, %v3027
        %3547 = vst.msk [vmem:[#allocation5 + $0x458] sm:$0xff] %vm2516, %v3029
        %3548 = vst.msk [vmem:[#allocation5 + $0x480] sm:$0xff] %vm2516, %v3296
        %3549 = vst.msk [vmem:[#allocation5 + $0x4a8] sm:$0xff] %vm2516, %v3298
        %3550 = vst.msk [vmem:[#allocation5 + $0x4d0] sm:$0xff] %vm2516, %v3513
        %3551 = vst.msk [vmem:[#allocation5 + $0x4f8] sm:$0xff] %vm2516, %v3515
        %v3552 = vld [vmem:[#allocation5] sm:$0xff]
        %v3553 = vld [vmem:[#allocation5 + $0x8] sm:$0xff]
        %v3554 = vld [vmem:[#allocation5 + $0x10] sm:$0xff]
        %v3555 = vld [vmem:[#allocation5 + $0x18] sm:$0xff]
        %v3556 = vld [vmem:[#allocation5 + $0x20] sm:$0xff]
        %v3557 = vld [vmem:[#allocation5 + $0x28] sm:$0xff]
        %v3558 = vld [vmem:[#allocation5 + $0x30] sm:$0xff]
        %v3559 = vld [vmem:[#allocation5 + $0x38] sm:$0xff]
        %v3560 = vld [vmem:[#allocation5 + $0x40] sm:$0xff]
        %v3561 = vld [vmem:[#allocation5 + $0x48] sm:$0xff]
        %v3562 = vld [vmem:[#allocation5 + $0x50] sm:$0xff]
        %v3563 = vld [vmem:[#allocation5 + $0x58] sm:$0xff]
        %v3564 = vld [vmem:[#allocation5 + $0x60] sm:$0xff]
        %v3565 = vld [vmem:[#allocation5 + $0x68] sm:$0xff]
        %v3566 = vld [vmem:[#allocation5 + $0x70] sm:$0xff]
        %v3567 = vld [vmem:[#allocation5 + $0x78] sm:$0xff]
        %v3568 = vld [vmem:[#allocation5 + $0x80] sm:$0xff]
        %v3569 = vld [vmem:[#allocation5 + $0x88] sm:$0xff]
        %v3570 = vld [vmem:[#allocation5 + $0x90] sm:$0xff]
        %v3571 = vld [vmem:[#allocation5 + $0x98] sm:$0xff]
        %v3572 = vld [vmem:[#allocation5 + $0xa0] sm:$0xff]
        %v3573 = vld [vmem:[#allocation5 + $0xa8] sm:$0xff]
        %v3574 = vld [vmem:[#allocation5 + $0xb0] sm:$0xff]
        %v3575 = vld [vmem:[#allocation5 + $0xb8] sm:$0xff]
        %v3576 = vld [vmem:[#allocation5 + $0xc0] sm:$0xff]
        %v3577 = vld [vmem:[#allocation5 + $0xc8] sm:$0xff]
        %v3578 = vld [vmem:[#allocation5 + $0xd0] sm:$0xff]
        %v3579 = vld [vmem:[#allocation5 + $0xd8] sm:$0xff]
        %v3580 = vld [vmem:[#allocation5 + $0xe0] sm:$0xff]
        %v3581 = vld [vmem:[#allocation5 + $0xe8] sm:$0xff]
        %v3582 = vld [vmem:[#allocation5 + $0xf0] sm:$0xff]
        %v3583 = vld [vmem:[#allocation5 + $0xf8] sm:$0xff]
        %v3584 = vld [vmem:[#allocation5 + $0x100] sm:$0xff]
        %v3585 = vld [vmem:[#allocation5 + $0x108] sm:$0xff]
        %v3586 = vld [vmem:[#allocation5 + $0x110] sm:$0xff]
        %v3587 = vld [vmem:[#allocation5 + $0x118] sm:$0xff]
        %v3588 = vld [vmem:[#allocation5 + $0x120] sm:$0xff]
        %v3589 = vld [vmem:[#allocation5 + $0x128] sm:$0xff]
        %v3590 = vld [vmem:[#allocation5 + $0x130] sm:$0xff]
        %v3591 = vld [vmem:[#allocation5 + $0x138] sm:$0xff]
        %v3592 = vld [vmem:[#allocation5 + $0x140] sm:$0xff]
        %v3593 = vld [vmem:[#allocation5 + $0x148] sm:$0xff]
        %v3594 = vld [vmem:[#allocation5 + $0x150] sm:$0xff]
        %v3595 = vld [vmem:[#allocation5 + $0x158] sm:$0xff]
        %v3596 = vld [vmem:[#allocation5 + $0x160] sm:$0xff]
        %v3597 = vld [vmem:[#allocation5 + $0x168] sm:$0xff]
        %v3598 = vld [vmem:[#allocation5 + $0x170] sm:$0xff]
        %v3599 = vld [vmem:[#allocation5 + $0x178] sm:$0xff]
        %v3600 = vld [vmem:[#allocation5 + $0x180] sm:$0xff]
        %v3601 = vld [vmem:[#allocation5 + $0x188] sm:$0xff]
        %v3602 = vld [vmem:[#allocation5 + $0x190] sm:$0xff]
        %v3603 = vld [vmem:[#allocation5 + $0x198] sm:$0xff]
        %v3604 = vld [vmem:[#allocation5 + $0x1a0] sm:$0xff]
        %v3605 = vld [vmem:[#allocation5 + $0x1a8] sm:$0xff]
        %v3606 = vld [vmem:[#allocation5 + $0x1b0] sm:$0xff]
        %v3607 = vld [vmem:[#allocation5 + $0x1b8] sm:$0xff]
        %v3608 = vld [vmem:[#allocation5 + $0x1c0] sm:$0xff]
        %v3609 = vld [vmem:[#allocation5 + $0x1c8] sm:$0xff]
        %v3610 = vld [vmem:[#allocation5 + $0x1d0] sm:$0xff]
        %v3611 = vld [vmem:[#allocation5 + $0x1d8] sm:$0xff]
        %v3612 = vld [vmem:[#allocation5 + $0x1e0] sm:$0xff]
        %v3613 = vld [vmem:[#allocation5 + $0x1e8] sm:$0xff]
        %v3614 = vld [vmem:[#allocation5 + $0x1f0] sm:$0xff]
        %v3615 = vld [vmem:[#allocation5 + $0x1f8] sm:$0xff]
        %v3616 = vld [vmem:[#allocation5 + $0x200] sm:$0xff]
        %v3617 = vld [vmem:[#allocation5 + $0x208] sm:$0xff]
        %v3618 = vld [vmem:[#allocation5 + $0x210] sm:$0xff]
        %v3619 = vld [vmem:[#allocation5 + $0x218] sm:$0xff]
        %v3620 = vld [vmem:[#allocation5 + $0x220] sm:$0xff]
        %v3621 = vld [vmem:[#allocation5 + $0x228] sm:$0xff]
        %v3622 = vld [vmem:[#allocation5 + $0x230] sm:$0xff]
        %v3623 = vld [vmem:[#allocation5 + $0x238] sm:$0xff]
        %v3624 = vld [vmem:[#allocation5 + $0x240] sm:$0xff]
        %v3625 = vld [vmem:[#allocation5 + $0x248] sm:$0xff]
        %v3626 = vld [vmem:[#allocation5 + $0x250] sm:$0xff]
        %v3627 = vld [vmem:[#allocation5 + $0x258] sm:$0xff]
        %v3628 = vld [vmem:[#allocation5 + $0x260] sm:$0xff]
        %v3629 = vld [vmem:[#allocation5 + $0x268] sm:$0xff]
        %v3630 = vld [vmem:[#allocation5 + $0x270] sm:$0xff]
        %v3631 = vld [vmem:[#allocation5 + $0x278] sm:$0xff]
        %v3632 = vld [vmem:[#allocation5 + $0x280] sm:$0xff]
        %v3633 = vld [vmem:[#allocation5 + $0x288] sm:$0xff]
        %v3634 = vld [vmem:[#allocation5 + $0x290] sm:$0xff]
        %v3635 = vld [vmem:[#allocation5 + $0x298] sm:$0xff]
        %v3636 = vld [vmem:[#allocation5 + $0x2a0] sm:$0xff]
        %v3637 = vld [vmem:[#allocation5 + $0x2a8] sm:$0xff]
        %v3638 = vld [vmem:[#allocation5 + $0x2b0] sm:$0xff]
        %v3639 = vld [vmem:[#allocation5 + $0x2b8] sm:$0xff]
        %v3640 = vld [vmem:[#allocation5 + $0x2c0] sm:$0xff]
        %v3641 = vld [vmem:[#allocation5 + $0x2c8] sm:$0xff]
        %v3642 = vld [vmem:[#allocation5 + $0x2d0] sm:$0xff]
        %v3643 = vld [vmem:[#allocation5 + $0x2d8] sm:$0xff]
        %v3644 = vld [vmem:[#allocation5 + $0x2e0] sm:$0xff]
        %v3645 = vld [vmem:[#allocation5 + $0x2e8] sm:$0xff]
        %v3646 = vld [vmem:[#allocation5 + $0x2f0] sm:$0xff]
        %v3647 = vld [vmem:[#allocation5 + $0x2f8] sm:$0xff]
        %v3648 = vld [vmem:[#allocation5 + $0x300] sm:$0xff]
        %v3649 = vld [vmem:[#allocation5 + $0x308] sm:$0xff]
        %v3650 = vld [vmem:[#allocation5 + $0x310] sm:$0xff]
        %v3651 = vld [vmem:[#allocation5 + $0x318] sm:$0xff]
        %v3652 = vld [vmem:[#allocation5 + $0x320] sm:$0xff]
        %v3653 = vld [vmem:[#allocation5 + $0x328] sm:$0xff]
        %v3654 = vld [vmem:[#allocation5 + $0x330] sm:$0xff]
        %v3655 = vld [vmem:[#allocation5 + $0x338] sm:$0xff]
        %v3656 = vld [vmem:[#allocation5 + $0x340] sm:$0xff]
        %v3657 = vld [vmem:[#allocation5 + $0x348] sm:$0xff]
        %v3658 = vld [vmem:[#allocation5 + $0x350] sm:$0xff]
        %v3659 = vld [vmem:[#allocation5 + $0x358] sm:$0xff]
        %v3660 = vld [vmem:[#allocation5 + $0x360] sm:$0xff]
        %v3661 = vld [vmem:[#allocation5 + $0x368] sm:$0xff]
        %v3662 = vld [vmem:[#allocation5 + $0x370] sm:$0xff]
        %v3663 = vld [vmem:[#allocation5 + $0x378] sm:$0xff]
        %v3664 = vld [vmem:[#allocation5 + $0x380] sm:$0xff]
        %v3665 = vld [vmem:[#allocation5 + $0x388] sm:$0xff]
        %v3666 = vld [vmem:[#allocation5 + $0x390] sm:$0xff]
        %v3667 = vld [vmem:[#allocation5 + $0x398] sm:$0xff]
        %v3668 = vld [vmem:[#allocation5 + $0x3a0] sm:$0xff]
        %v3669 = vld [vmem:[#allocation5 + $0x3a8] sm:$0xff]
        %v3670 = vld [vmem:[#allocation5 + $0x3b0] sm:$0xff]
        %v3671 = vld [vmem:[#allocation5 + $0x3b8] sm:$0xff]
        %v3672 = vld [vmem:[#allocation5 + $0x3c0] sm:$0xff]
        %v3673 = vld [vmem:[#allocation5 + $0x3c8] sm:$0xff]
        %v3674 = vld [vmem:[#allocation5 + $0x3d0] sm:$0xff]
        %v3675 = vld [vmem:[#allocation5 + $0x3d8] sm:$0xff]
        %v3676 = vld [vmem:[#allocation5 + $0x3e0] sm:$0xff]
        %v3677 = vld [vmem:[#allocation5 + $0x3e8] sm:$0xff]
        %v3678 = vld [vmem:[#allocation5 + $0x3f0] sm:$0xff]
        %v3679 = vld [vmem:[#allocation5 + $0x3f8] sm:$0xff]
        %v3680 = vld [vmem:[#allocation5 + $0x400] sm:$0xff]
        %v3681 = vld [vmem:[#allocation5 + $0x408] sm:$0xff]
        %v3682 = vld [vmem:[#allocation5 + $0x410] sm:$0xff]
        %v3683 = vld [vmem:[#allocation5 + $0x418] sm:$0xff]
        %v3684 = vld [vmem:[#allocation5 + $0x420] sm:$0xff]
        %v3685 = vld [vmem:[#allocation5 + $0x428] sm:$0xff]
        %v3686 = vld [vmem:[#allocation5 + $0x430] sm:$0xff]
        %v3687 = vld [vmem:[#allocation5 + $0x438] sm:$0xff]
        %v3688 = vld [vmem:[#allocation5 + $0x440] sm:$0xff]
        %v3689 = vld [vmem:[#allocation5 + $0x448] sm:$0xff]
        %v3690 = vld [vmem:[#allocation5 + $0x450] sm:$0xff]
        %v3691 = vld [vmem:[#allocation5 + $0x458] sm:$0xff]
        %v3692 = vld [vmem:[#allocation5 + $0x460] sm:$0xff]
        %v3693 = vld [vmem:[#allocation5 + $0x468] sm:$0xff]
        %v3694 = vld [vmem:[#allocation5 + $0x470] sm:$0xff]
        %v3695 = vld [vmem:[#allocation5 + $0x478] sm:$0xff]
        %v3696 = vld [vmem:[#allocation5 + $0x480] sm:$0xff]
        %v3697 = vld [vmem:[#allocation5 + $0x488] sm:$0xff]
        %v3698 = vld [vmem:[#allocation5 + $0x490] sm:$0xff]
        %v3699 = vld [vmem:[#allocation5 + $0x498] sm:$0xff]
        %v3700 = vld [vmem:[#allocation5 + $0x4a0] sm:$0xff]
        %v3701 = vld [vmem:[#allocation5 + $0x4a8] sm:$0xff]
        %v3702 = vld [vmem:[#allocation5 + $0x4b0] sm:$0xff]
        %v3703 = vld [vmem:[#allocation5 + $0x4b8] sm:$0xff]
        %v3704 = vld [vmem:[#allocation5 + $0x4c0] sm:$0xff]
        %v3705 = vld [vmem:[#allocation5 + $0x4c8] sm:$0xff]
        %v3706 = vld [vmem:[#allocation5 + $0x4d0] sm:$0xff]
        %v3707 = vld [vmem:[#allocation5 + $0x4d8] sm:$0xff]
        %v3708 = vld [vmem:[#allocation5 + $0x4e0] sm:$0xff]
        %v3709 = vld [vmem:[#allocation5 + $0x4e8] sm:$0xff]
        %v3710 = vld [vmem:[#allocation5 + $0x4f0] sm:$0xff]
        %v3711 = vld [vmem:[#allocation5 + $0x4f8] sm:$0xff]
        %v3712 = vld [vmem:[%s3] sm:$0xff]
        %v3713 = vld [vmem:[%s3 + $0x8] sm:$0xff]
        %v3714 = vld [vmem:[%s3 + $0x10] sm:$0xff]
        %v3715 = vld [vmem:[%s3 + $0x18] sm:$0xff]
        %v3716 = vld [vmem:[%s3 + $0x20] sm:$0xff]
        %v3717 = vld [vmem:[%s3 + $0x28] sm:$0xff]
        %v3718 = vld [vmem:[%s3 + $0x30] sm:$0xff]
        %v3719 = vld [vmem:[%s3 + $0x38] sm:$0xff]
        %v3720 = vld [vmem:[%s3 + $0x40] sm:$0xff]
        %v3721 = vld [vmem:[%s3 + $0x48] sm:$0xff]
        %v3722 = vld [vmem:[%s3 + $0x50] sm:$0xff]
        %v3723 = vld [vmem:[%s3 + $0x58] sm:$0xff]
        %v3724 = vld [vmem:[%s3 + $0x60] sm:$0xff]
        %v3725 = vld [vmem:[%s3 + $0x68] sm:$0xff]
        %v3726 = vld [vmem:[%s3 + $0x70] sm:$0xff]
        %v3727 = vld [vmem:[%s3 + $0x78] sm:$0xff]
        %v3728 = vld [vmem:[%s3 + $0x80] sm:$0xff]
        %v3729 = vld [vmem:[%s3 + $0x88] sm:$0xff]
        %v3730 = vld [vmem:[%s3 + $0x90] sm:$0xff]
        %v3731 = vld [vmem:[%s3 + $0x98] sm:$0xff]
        %v3732 = vld [vmem:[%s3 + $0xa0] sm:$0xff]
        %v3733 = vld [vmem:[%s3 + $0xa8] sm:$0xff]
        %v3734 = vld [vmem:[%s3 + $0xb0] sm:$0xff]
        %v3735 = vld [vmem:[%s3 + $0xb8] sm:$0xff]
        %v3736 = vld [vmem:[%s3 + $0xc0] sm:$0xff]
        %v3737 = vld [vmem:[%s3 + $0xc8] sm:$0xff]
        %v3738 = vld [vmem:[%s3 + $0xd0] sm:$0xff]
        %v3739 = vld [vmem:[%s3 + $0xd8] sm:$0xff]
        %v3740 = vld [vmem:[%s3 + $0xe0] sm:$0xff]
        %v3741 = vld [vmem:[%s3 + $0xe8] sm:$0xff]
        %v3742 = vld [vmem:[%s3 + $0xf0] sm:$0xff]
        %v3743 = vld [vmem:[%s3 + $0xf8] sm:$0xff]
        %v3744 = vld [vmem:[%s3 + $0x100] sm:$0xff]
        %v3745 = vld [vmem:[%s3 + $0x108] sm:$0xff]
        %v3746 = vld [vmem:[%s3 + $0x110] sm:$0xff]
        %v3747 = vld [vmem:[%s3 + $0x118] sm:$0xff]
        %v3748 = vld [vmem:[%s3 + $0x120] sm:$0xff]
        %v3749 = vld [vmem:[%s3 + $0x128] sm:$0xff]
        %v3750 = vld [vmem:[%s3 + $0x130] sm:$0xff]
        %v3751 = vld [vmem:[%s3 + $0x138] sm:$0xff]
        %v3752 = vld [vmem:[%s3 + $0x140] sm:$0xff]
        %v3753 = vld [vmem:[%s3 + $0x148] sm:$0xff]
        %v3754 = vld [vmem:[%s3 + $0x150] sm:$0xff]
        %v3755 = vld [vmem:[%s3 + $0x158] sm:$0xff]
        %v3756 = vld [vmem:[%s3 + $0x160] sm:$0xff]
        %v3757 = vld [vmem:[%s3 + $0x168] sm:$0xff]
        %v3758 = vld [vmem:[%s3 + $0x170] sm:$0xff]
        %v3759 = vld [vmem:[%s3 + $0x178] sm:$0xff]
        %v3760 = vld [vmem:[%s3 + $0x180] sm:$0xff]
        %v3761 = vld [vmem:[%s3 + $0x188] sm:$0xff]
        %v3762 = vld [vmem:[%s3 + $0x190] sm:$0xff]
        %v3763 = vld [vmem:[%s3 + $0x198] sm:$0xff]
        %v3764 = vld [vmem:[%s3 + $0x1a0] sm:$0xff]
        %v3765 = vld [vmem:[%s3 + $0x1a8] sm:$0xff]
        %v3766 = vld [vmem:[%s3 + $0x1b0] sm:$0xff]
        %v3767 = vld [vmem:[%s3 + $0x1b8] sm:$0xff]
        %v3768 = vld [vmem:[%s3 + $0x1c0] sm:$0xff]
        %v3769 = vld [vmem:[%s3 + $0x1c8] sm:$0xff]
        %v3770 = vld [vmem:[%s3 + $0x1d0] sm:$0xff]
        %v3771 = vld [vmem:[%s3 + $0x1d8] sm:$0xff]
        %v3772 = vld [vmem:[%s3 + $0x1e0] sm:$0xff]
        %v3773 = vld [vmem:[%s3 + $0x1e8] sm:$0xff]
        %v3774 = vld [vmem:[%s3 + $0x1f0] sm:$0xff]
        %v3775 = vld [vmem:[%s3 + $0x1f8] sm:$0xff]
        %v3776 = vld [vmem:[%s3 + $0x200] sm:$0xff]
        %v3777 = vld [vmem:[%s3 + $0x208] sm:$0xff]
        %v3778 = vld [vmem:[%s3 + $0x210] sm:$0xff]
        %v3779 = vld [vmem:[%s3 + $0x218] sm:$0xff]
        %v3780 = vld [vmem:[%s3 + $0x220] sm:$0xff]
        %v3781 = vld [vmem:[%s3 + $0x228] sm:$0xff]
        %v3782 = vld [vmem:[%s3 + $0x230] sm:$0xff]
        %v3783 = vld [vmem:[%s3 + $0x238] sm:$0xff]
        %v3784 = vld [vmem:[%s4] sm:$0x1]
        %v3786 = vlaneseq
        %v3787 = vshrl.u32 %v3786, 7
        %v3788 = vsub.s32 0, %v3787
        %v3789 = vrot.slane %v3784, %v3788
        %v3792 = vsel %vm2516, %v3556, 0
        %v3795 = vsel %vm2516, %v3561, 0
        %v3798 = vsel %vm2516, %v3566, 0
        %v3801 = vsel %vm2516, %v3571, 0
        %v3804 = vsel %vm2516, %v3576, 0
        %v3807 = vsel %vm2516, %v3581, 0
        %v3810 = vsel %vm2516, %v3586, 0
        %v3813 = vsel %vm2516, %v3591, 0
        %v3816 = vsel %vm2516, %v3596, 0
        %v3819 = vsel %vm2516, %v3601, 0
        %v3822 = vsel %vm2516, %v3606, 0
        %v3825 = vsel %vm2516, %v3611, 0
        %v3828 = vsel %vm2516, %v3616, 0
        %v3831 = vsel %vm2516, %v3621, 0
        %v3834 = vsel %vm2516, %v3626, 0
        %v3837 = vsel %vm2516, %v3631, 0
        %v3840 = vsel %vm2516, %v3636, 0
        %v3843 = vsel %vm2516, %v3641, 0
        %v3846 = vsel %vm2516, %v3646, 0
        %v3849 = vsel %vm2516, %v3651, 0
        %v3852 = vsel %vm2516, %v3656, 0
        %v3855 = vsel %vm2516, %v3661, 0
        %v3858 = vsel %vm2516, %v3666, 0
        %v3861 = vsel %vm2516, %v3671, 0
        %v3864 = vsel %vm2516, %v3676, 0
        %v3867 = vsel %vm2516, %v3681, 0
        %v3870 = vsel %vm2516, %v3686, 0
        %v3873 = vsel %vm2516, %v3691, 0
        %v3876 = vsel %vm2516, %v3696, 0
        %v3879 = vsel %vm2516, %v3701, 0
        %v3882 = vsel %vm2516, %v3706, 0
        %v3885 = vsel %vm2516, %v3711, 0
        %3887 = vmatprep.subr.mxu0 0.0
        %3888 = vmatpush1.msra.mxu0 %v3727
        %3889 = vmatprep.subr.mxu0 0.0
        %3890 = vmatpush1.msra.mxu0 %v3726
        %3891 = vmatprep.subr.mxu0 0.0
        %3892 = vmatpush1.msra.mxu0 %v3725
        %3893 = vmatprep.subr.mxu0 0.0
        %3894 = vmatpush1.msra.mxu0 %v3724
        %3895 = vmatprep.subr.mxu0 0.0
        %3896 = vmatpush1.msra.mxu0 %v3723
        %3897 = vmatprep.subr.mxu0 0.0
        %3898 = vmatpush1.msra.mxu0 %v3722
        %3899 = vmatprep.subr.mxu0 0.0
        %3900 = vmatpush1.msra.mxu0 %v3721
        %3901 = vmatprep.subr.mxu0 0.0
        %3902 = vmatpush1.msra.mxu0 %v3720
        %3903 = vmatprep.subr.mxu0 0.0
        %3904 = vmatpush1.msra.mxu0 %v3719
        %3905 = vmatprep.subr.mxu0 0.0
        %3906 = vmatpush1.msra.mxu0 %v3718
        %3907 = vmatprep.subr.mxu0 0.0
        %3908 = vmatpush1.msra.mxu0 %v3717
        %3909 = vmatprep.subr.mxu0 0.0
        %3910 = vmatpush1.msra.mxu0 %v3716
        %3911 = vmatprep.subr.mxu0 0.0
        %3912 = vmatpush1.msra.mxu0 %v3715
        %3913 = vmatprep.subr.mxu0 0.0
        %3914 = vmatpush1.msra.mxu0 %v3714
        %3915 = vmatprep.subr.mxu0 0.0
        %3916 = vmatpush1.msra.mxu0 %v3713
        %3917 = vmatprep.subr.mxu0 0.0
        %3918 = vmatpush1.msra.mxu0 %v3712
        %3919 = vmatprep.subr.mxu0 0.0
        %3920 = vmatpush2.msra.mxu0 %v3743
        %3921 = vmatprep.subr.mxu0 0.0
        %3922 = vmatpush2.msra.mxu0 %v3742
        %3923 = vmatprep.subr.mxu0 0.0
        %3924 = vmatpush2.msra.mxu0 %v3741
        %3925 = vmatprep.subr.mxu0 0.0
        %3926 = vmatpush2.msra.mxu0 %v3740
        %3927 = vmatprep.subr.mxu0 0.0
        %3928 = vmatpush2.msra.mxu0 %v3739
        %3929 = vmatprep.subr.mxu0 0.0
        %3930 = vmatpush2.msra.mxu0 %v3738
        %3931 = vmatprep.subr.mxu0 0.0
        %3932 = vmatpush2.msra.mxu0 %v3737
        %3933 = vmatprep.subr.mxu0 0.0
        %3934 = vmatpush2.msra.mxu0 %v3736
        %3935 = vmatprep.subr.mxu0 0.0
        %3936 = vmatpush2.msra.mxu0 %v3735
        %3937 = vmatprep.subr.mxu0 0.0
        %3938 = vmatpush2.msra.mxu0 %v3734
        %3939 = vmatprep.subr.mxu0 0.0
        %3940 = vmatpush2.msra.mxu0 %v3733
        %3941 = vmatprep.subr.mxu0 0.0
        %3942 = vmatpush2.msra.mxu0 %v3732
        %3943 = vmatprep.subr.mxu0 0.0
        %3944 = vmatpush2.msra.mxu0 %v3731
        %3945 = vmatprep.subr.mxu0 0.0
        %3946 = vmatpush2.msra.mxu0 %v3730
        %3947 = vmatprep.subr.mxu0 0.0
        %3948 = vmatpush2.msra.mxu0 %v3729
        %3949 = vmatprep.subr.mxu0 0.0
        %3950 = vmatpush2.msra.mxu0 %v3728
        %3951 = vmatprep.mubr.f32.mxu0 %v3553
        %3952 = vmatmul.mubr.f32.gmra.mxu0 %v3552
        %v3953 = vpop.f32.mrf.mxu0
        %v3954 = vadd.f32 %v3789, %v3953
        %v3955 = vpop.f32.mrf.mxu0
        %3956 = vmatprep.mubr.f32.mxu0 %v3558
        %3957 = vmatmul.mubr.f32.gmra.mxu0 %v3557
        %v3958 = vpop.f32.mrf.mxu0
        %v3959 = vadd.f32 %v3789, %v3958
        %v3960 = vpop.f32.mrf.mxu0
        %3961 = vmatprep.mubr.f32.mxu0 %v3563
        %3962 = vmatmul.mubr.f32.gmra.mxu0 %v3562
        %v3963 = vpop.f32.mrf.mxu0
        %v3964 = vadd.f32 %v3789, %v3963
        %v3965 = vpop.f32.mrf.mxu0
        %3966 = vmatprep.mubr.f32.mxu0 %v3568
        %3967 = vmatmul.mubr.f32.gmra.mxu0 %v3567
        %v3968 = vpop.f32.mrf.mxu0
        %v3969 = vadd.f32 %v3789, %v3968
        %v3970 = vpop.f32.mrf.mxu0
        %3971 = vmatprep.mubr.f32.mxu0 %v3573
        %3972 = vmatmul.mubr.f32.gmra.mxu0 %v3572
        %v3973 = vpop.f32.mrf.mxu0
        %v3974 = vadd.f32 %v3789, %v3973
        %v3975 = vpop.f32.mrf.mxu0
        %3976 = vmatprep.mubr.f32.mxu0 %v3578
        %3977 = vmatmul.mubr.f32.gmra.mxu0 %v3577
        %v3978 = vpop.f32.mrf.mxu0
        %v3979 = vadd.f32 %v3789, %v3978
        %v3980 = vpop.f32.mrf.mxu0
        %3981 = vmatprep.mubr.f32.mxu0 %v3583
        %3982 = vmatmul.mubr.f32.gmra.mxu0 %v3582
        %v3983 = vpop.f32.mrf.mxu0
        %v3984 = vadd.f32 %v3789, %v3983
        %v3985 = vpop.f32.mrf.mxu0
        %3986 = vmatprep.mubr.f32.mxu0 %v3588
        %3987 = vmatmul.mubr.f32.gmra.mxu0 %v3587
        %v3988 = vpop.f32.mrf.mxu0
        %v3989 = vadd.f32 %v3789, %v3988
        %v3990 = vpop.f32.mrf.mxu0
        %3991 = vmatprep.mubr.f32.mxu0 %v3593
        %3992 = vmatmul.mubr.f32.gmra.mxu0 %v3592
        %v3993 = vpop.f32.mrf.mxu0
        %v3994 = vadd.f32 %v3789, %v3993
        %v3995 = vpop.f32.mrf.mxu0
        %3996 = vmatprep.mubr.f32.mxu0 %v3598
        %3997 = vmatmul.mubr.f32.gmra.mxu0 %v3597
        %v3998 = vpop.f32.mrf.mxu0
        %v3999 = vadd.f32 %v3789, %v3998
        %v4000 = vpop.f32.mrf.mxu0
        %4001 = vmatprep.mubr.f32.mxu0 %v3603
        %4002 = vmatmul.mubr.f32.gmra.mxu0 %v3602
        %v4003 = vpop.f32.mrf.mxu0
        %v4004 = vadd.f32 %v3789, %v4003
        %v4005 = vpop.f32.mrf.mxu0
        %4006 = vmatprep.mubr.f32.mxu0 %v3608
        %4007 = vmatmul.mubr.f32.gmra.mxu0 %v3607
        %v4008 = vpop.f32.mrf.mxu0
        %v4009 = vadd.f32 %v3789, %v4008
        %v4010 = vpop.f32.mrf.mxu0
        %4011 = vmatprep.mubr.f32.mxu0 %v3613
        %4012 = vmatmul.mubr.f32.gmra.mxu0 %v3612
        %v4013 = vpop.f32.mrf.mxu0
        %v4014 = vadd.f32 %v3789, %v4013
        %v4015 = vpop.f32.mrf.mxu0
        %4016 = vmatprep.mubr.f32.mxu0 %v3618
        %4017 = vmatmul.mubr.f32.gmra.mxu0 %v3617
        %v4018 = vpop.f32.mrf.mxu0
        %v4019 = vadd.f32 %v3789, %v4018
        %v4020 = vpop.f32.mrf.mxu0
        %4021 = vmatprep.mubr.f32.mxu0 %v3623
        %4022 = vmatmul.mubr.f32.gmra.mxu0 %v3622
        %v4023 = vpop.f32.mrf.mxu0
        %v4024 = vadd.f32 %v3789, %v4023
        %v4025 = vpop.f32.mrf.mxu0
        %4026 = vmatprep.mubr.f32.mxu0 %v3628
        %4027 = vmatmul.mubr.f32.gmra.mxu0 %v3627
        %v4028 = vpop.f32.mrf.mxu0
        %v4029 = vadd.f32 %v3789, %v4028
        %v4030 = vpop.f32.mrf.mxu0
        %4031 = vmatprep.mubr.f32.mxu0 %v3633
        %4032 = vmatmul.mubr.f32.gmra.mxu0 %v3632
        %v4033 = vpop.f32.mrf.mxu0
        %v4034 = vadd.f32 %v3789, %v4033
        %v4035 = vpop.f32.mrf.mxu0
        %4036 = vmatprep.mubr.f32.mxu0 %v3638
        %4037 = vmatmul.mubr.f32.gmra.mxu0 %v3637
        %v4038 = vpop.f32.mrf.mxu0
        %v4039 = vadd.f32 %v3789, %v4038
        %v4040 = vpop.f32.mrf.mxu0
        %4041 = vmatprep.mubr.f32.mxu0 %v3643
        %4042 = vmatmul.mubr.f32.gmra.mxu0 %v3642
        %v4043 = vpop.f32.mrf.mxu0
        %v4044 = vadd.f32 %v3789, %v4043
        %v4045 = vpop.f32.mrf.mxu0
        %4046 = vmatprep.mubr.f32.mxu0 %v3648
        %4047 = vmatmul.mubr.f32.gmra.mxu0 %v3647
        %v4048 = vpop.f32.mrf.mxu0
        %v4049 = vadd.f32 %v3789, %v4048
        %v4050 = vpop.f32.mrf.mxu0
        %4051 = vmatprep.mubr.f32.mxu0 %v3653
        %4052 = vmatmul.mubr.f32.gmra.mxu0 %v3652
        %v4053 = vpop.f32.mrf.mxu0
        %v4054 = vadd.f32 %v3789, %v4053
        %v4055 = vpop.f32.mrf.mxu0
        %4056 = vmatprep.mubr.f32.mxu0 %v3658
        %4057 = vmatmul.mubr.f32.gmra.mxu0 %v3657
        %v4058 = vpop.f32.mrf.mxu0
        %v4059 = vadd.f32 %v3789, %v4058
        %v4060 = vpop.f32.mrf.mxu0
        %4061 = vmatprep.mubr.f32.mxu0 %v3663
        %4062 = vmatmul.mubr.f32.gmra.mxu0 %v3662
        %v4063 = vpop.f32.mrf.mxu0
        %v4064 = vadd.f32 %v3789, %v4063
        %v4065 = vpop.f32.mrf.mxu0
        %4066 = vmatprep.mubr.f32.mxu0 %v3668
        %4067 = vmatmul.mubr.f32.gmra.mxu0 %v3667
        %v4068 = vpop.f32.mrf.mxu0
        %v4069 = vadd.f32 %v3789, %v4068
        %v4070 = vpop.f32.mrf.mxu0
        %4071 = vmatprep.mubr.f32.mxu0 %v3673
        %4072 = vmatmul.mubr.f32.gmra.mxu0 %v3672
        %v4073 = vpop.f32.mrf.mxu0
        %v4074 = vadd.f32 %v3789, %v4073
        %v4075 = vpop.f32.mrf.mxu0
        %4076 = vmatprep.mubr.f32.mxu0 %v3678
        %4077 = vmatmul.mubr.f32.gmra.mxu0 %v3677
        %v4078 = vpop.f32.mrf.mxu0
        %v4079 = vadd.f32 %v3789, %v4078
        %v4080 = vpop.f32.mrf.mxu0
        %4081 = vmatprep.mubr.f32.mxu0 %v3683
        %4082 = vmatmul.mubr.f32.gmra.mxu0 %v3682
        %v4083 = vpop.f32.mrf.mxu0
        %v4084 = vadd.f32 %v3789, %v4083
        %v4085 = vpop.f32.mrf.mxu0
        %4086 = vmatprep.mubr.f32.mxu0 %v3688
        %4087 = vmatmul.mubr.f32.gmra.mxu0 %v3687
        %v4088 = vpop.f32.mrf.mxu0
        %v4089 = vadd.f32 %v3789, %v4088
        %v4090 = vpop.f32.mrf.mxu0
        %4091 = vmatprep.mubr.f32.mxu0 %v3693
        %4092 = vmatmul.mubr.f32.gmra.mxu0 %v3692
        %v4093 = vpop.f32.mrf.mxu0
        %v4094 = vadd.f32 %v3789, %v4093
        %v4095 = vpop.f32.mrf.mxu0
        %4096 = vmatprep.mubr.f32.mxu0 %v3698
        %4097 = vmatmul.mubr.f32.gmra.mxu0 %v3697
        %v4098 = vpop.f32.mrf.mxu0
        %v4099 = vadd.f32 %v3789, %v4098
        %v4100 = vpop.f32.mrf.mxu0
        %4101 = vmatprep.mubr.f32.mxu0 %v3703
        %4102 = vmatmul.mubr.f32.gmra.mxu0 %v3702
        %v4103 = vpop.f32.mrf.mxu0
        %v4104 = vadd.f32 %v3789, %v4103
        %v4105 = vpop.f32.mrf.mxu0
        %4106 = vmatprep.mubr.f32.mxu0 %v3708
        %4107 = vmatmul.mubr.f32.gmra.mxu0 %v3707
        %v4108 = vpop.f32.mrf.mxu0
        %v4109 = vadd.f32 %v3789, %v4108
        %v4110 = vpop.f32.mrf.mxu0
        %4111 = vdwg.mxu0
        %4112 = vmatprep.subr.mxu0 0.0
        %4113 = vmatpush1.msra.mxu0 %v3759
        %4114 = vmatprep.subr.mxu0 0.0
        %4115 = vmatpush1.msra.mxu0 %v3758
        %4116 = vmatprep.subr.mxu0 0.0
        %4117 = vmatpush1.msra.mxu0 %v3757
        %4118 = vmatprep.subr.mxu0 0.0
        %4119 = vmatpush1.msra.mxu0 %v3756
        %4120 = vmatprep.subr.mxu0 0.0
        %4121 = vmatpush1.msra.mxu0 %v3755
        %4122 = vmatprep.subr.mxu0 0.0
        %4123 = vmatpush1.msra.mxu0 %v3754
        %4124 = vmatprep.subr.mxu0 0.0
        %4125 = vmatpush1.msra.mxu0 %v3753
        %4126 = vmatprep.subr.mxu0 0.0
        %4127 = vmatpush1.msra.mxu0 %v3752
        %4128 = vmatprep.subr.mxu0 0.0
        %4129 = vmatpush1.msra.mxu0 %v3751
        %4130 = vmatprep.subr.mxu0 0.0
        %4131 = vmatpush1.msra.mxu0 %v3750
        %4132 = vmatprep.subr.mxu0 0.0
        %4133 = vmatpush1.msra.mxu0 %v3749
        %4134 = vmatprep.subr.mxu0 0.0
        %4135 = vmatpush1.msra.mxu0 %v3748
        %4136 = vmatprep.subr.mxu0 0.0
        %4137 = vmatpush1.msra.mxu0 %v3747
        %4138 = vmatprep.subr.mxu0 0.0
        %4139 = vmatpush1.msra.mxu0 %v3746
        %4140 = vmatprep.subr.mxu0 0.0
        %4141 = vmatpush1.msra.mxu0 %v3745
        %4142 = vmatprep.subr.mxu0 0.0
        %4143 = vmatpush1.msra.mxu0 %v3744
        %4144 = vmatprep.subr.mxu0 0.0
        %4145 = vmatpush2.msra.mxu0 %v3775
        %4146 = vmatprep.subr.mxu0 0.0
        %4147 = vmatpush2.msra.mxu0 %v3774
        %4148 = vmatprep.subr.mxu0 0.0
        %4149 = vmatpush2.msra.mxu0 %v3773
        %4150 = vmatprep.subr.mxu0 0.0
        %4151 = vmatpush2.msra.mxu0 %v3772
        %4152 = vmatprep.subr.mxu0 0.0
        %4153 = vmatpush2.msra.mxu0 %v3771
        %4154 = vmatprep.subr.mxu0 0.0
        %4155 = vmatpush2.msra.mxu0 %v3770
        %4156 = vmatprep.subr.mxu0 0.0
        %4157 = vmatpush2.msra.mxu0 %v3769
        %4158 = vmatprep.subr.mxu0 0.0
        %4159 = vmatpush2.msra.mxu0 %v3768
        %4160 = vmatprep.subr.mxu0 0.0
        %4161 = vmatpush2.msra.mxu0 %v3767
        %4162 = vmatprep.subr.mxu0 0.0
        %4163 = vmatpush2.msra.mxu0 %v3766
        %4164 = vmatprep.subr.mxu0 0.0
        %4165 = vmatpush2.msra.mxu0 %v3765
        %4166 = vmatprep.subr.mxu0 0.0
        %4167 = vmatpush2.msra.mxu0 %v3764
        %4168 = vmatprep.subr.mxu0 0.0
        %4169 = vmatpush2.msra.mxu0 %v3763
        %4170 = vmatprep.subr.mxu0 0.0
        %4171 = vmatpush2.msra.mxu0 %v3762
        %4172 = vmatprep.subr.mxu0 0.0
        %4173 = vmatpush2.msra.mxu0 %v3761
        %4174 = vmatprep.subr.mxu0 0.0
        %4175 = vmatpush2.msra.mxu0 %v3760
        %4176 = vmatprep.mubr.f32.mxu0 %v3555
        %4177 = vmatmul.mubr.f32.gmra.mxu0 %v3554
        %v4178 = vpop.f32.mrf.mxu0
        %v4179 = vadd.f32 %v3954, %v4178
        %v4180 = vpop.f32.mrf.mxu0
        %4181 = vmatprep.mubr.f32.mxu0 %v3560
        %4182 = vmatmul.mubr.f32.gmra.mxu0 %v3559
        %v4183 = vpop.f32.mrf.mxu0
        %v4184 = vadd.f32 %v3959, %v4183
        %v4185 = vpop.f32.mrf.mxu0
        %4186 = vmatprep.mubr.f32.mxu0 %v3565
        %4187 = vmatmul.mubr.f32.gmra.mxu0 %v3564
        %v4188 = vpop.f32.mrf.mxu0
        %v4189 = vadd.f32 %v3964, %v4188
        %v4190 = vpop.f32.mrf.mxu0
        %4191 = vmatprep.mubr.f32.mxu0 %v3570
        %4192 = vmatmul.mubr.f32.gmra.mxu0 %v3569
        %v4193 = vpop.f32.mrf.mxu0
        %v4194 = vadd.f32 %v3969, %v4193
        %v4195 = vpop.f32.mrf.mxu0
        %4196 = vmatprep.mubr.f32.mxu0 %v3575
        %4197 = vmatmul.mubr.f32.gmra.mxu0 %v3574
        %v4198 = vpop.f32.mrf.mxu0
        %v4199 = vadd.f32 %v3974, %v4198
        %v4200 = vpop.f32.mrf.mxu0
        %4201 = vmatprep.mubr.f32.mxu0 %v3580
        %4202 = vmatmul.mubr.f32.gmra.mxu0 %v3579
        %v4203 = vpop.f32.mrf.mxu0
        %v4204 = vadd.f32 %v3979, %v4203
        %v4205 = vpop.f32.mrf.mxu0
        %4206 = vmatprep.mubr.f32.mxu0 %v3585
        %4207 = vmatmul.mubr.f32.gmra.mxu0 %v3584
        %v4208 = vpop.f32.mrf.mxu0
        %v4209 = vadd.f32 %v3984, %v4208
        %v4210 = vpop.f32.mrf.mxu0
        %4211 = vmatprep.mubr.f32.mxu0 %v3590
        %4212 = vmatmul.mubr.f32.gmra.mxu0 %v3589
        %v4213 = vpop.f32.mrf.mxu0
        %v4214 = vadd.f32 %v3989, %v4213
        %v4215 = vpop.f32.mrf.mxu0
        %4216 = vmatprep.mubr.f32.mxu0 %v3595
        %4217 = vmatmul.mubr.f32.gmra.mxu0 %v3594
        %v4218 = vpop.f32.mrf.mxu0
        %v4219 = vadd.f32 %v3994, %v4218
        %v4220 = vpop.f32.mrf.mxu0
        %4221 = vmatprep.mubr.f32.mxu0 %v3600
        %4222 = vmatmul.mubr.f32.gmra.mxu0 %v3599
        %v4223 = vpop.f32.mrf.mxu0
        %v4224 = vadd.f32 %v3999, %v4223
        %v4225 = vpop.f32.mrf.mxu0
        %4226 = vmatprep.mubr.f32.mxu0 %v3605
        %4227 = vmatmul.mubr.f32.gmra.mxu0 %v3604
        %v4228 = vpop.f32.mrf.mxu0
        %v4229 = vadd.f32 %v4004, %v4228
        %v4230 = vpop.f32.mrf.mxu0
        %4231 = vmatprep.mubr.f32.mxu0 %v3610
        %4232 = vmatmul.mubr.f32.gmra.mxu0 %v3609
        %v4233 = vpop.f32.mrf.mxu0
        %v4234 = vadd.f32 %v4009, %v4233
        %v4235 = vpop.f32.mrf.mxu0
        %4236 = vmatprep.mubr.f32.mxu0 %v3615
        %4237 = vmatmul.mubr.f32.gmra.mxu0 %v3614
        %v4238 = vpop.f32.mrf.mxu0
        %v4239 = vadd.f32 %v4014, %v4238
        %v4240 = vpop.f32.mrf.mxu0
        %4241 = vmatprep.mubr.f32.mxu0 %v3620
        %4242 = vmatmul.mubr.f32.gmra.mxu0 %v3619
        %v4243 = vpop.f32.mrf.mxu0
        %v4244 = vadd.f32 %v4019, %v4243
        %v4245 = vpop.f32.mrf.mxu0
        %4246 = vmatprep.mubr.f32.mxu0 %v3625
        %4247 = vmatmul.mubr.f32.gmra.mxu0 %v3624
        %v4248 = vpop.f32.mrf.mxu0
        %v4249 = vadd.f32 %v4024, %v4248
        %v4250 = vpop.f32.mrf.mxu0
        %4251 = vmatprep.mubr.f32.mxu0 %v3630
        %4252 = vmatmul.mubr.f32.gmra.mxu0 %v3629
        %v4253 = vpop.f32.mrf.mxu0
        %v4254 = vadd.f32 %v4029, %v4253
        %v4255 = vpop.f32.mrf.mxu0
        %4256 = vmatprep.mubr.f32.mxu0 %v3635
        %4257 = vmatmul.mubr.f32.gmra.mxu0 %v3634
        %v4258 = vpop.f32.mrf.mxu0
        %v4259 = vadd.f32 %v4034, %v4258
        %v4260 = vpop.f32.mrf.mxu0
        %4261 = vmatprep.mubr.f32.mxu0 %v3640
        %4262 = vmatmul.mubr.f32.gmra.mxu0 %v3639
        %v4263 = vpop.f32.mrf.mxu0
        %v4264 = vadd.f32 %v4039, %v4263
        %v4265 = vpop.f32.mrf.mxu0
        %4266 = vmatprep.mubr.f32.mxu0 %v3645
        %4267 = vmatmul.mubr.f32.gmra.mxu0 %v3644
        %v4268 = vpop.f32.mrf.mxu0
        %v4269 = vadd.f32 %v4044, %v4268
        %v4270 = vpop.f32.mrf.mxu0
        %4271 = vmatprep.mubr.f32.mxu0 %v3650
        %4272 = vmatmul.mubr.f32.gmra.mxu0 %v3649
        %v4273 = vpop.f32.mrf.mxu0
        %v4274 = vadd.f32 %v4049, %v4273
        %v4275 = vpop.f32.mrf.mxu0
        %4276 = vmatprep.mubr.f32.mxu0 %v3655
        %4277 = vmatmul.mubr.f32.gmra.mxu0 %v3654
        %v4278 = vpop.f32.mrf.mxu0
        %v4279 = vadd.f32 %v4054, %v4278
        %v4280 = vpop.f32.mrf.mxu0
        %4281 = vmatprep.mubr.f32.mxu0 %v3660
        %4282 = vmatmul.mubr.f32.gmra.mxu0 %v3659
        %v4283 = vpop.f32.mrf.mxu0
        %v4284 = vadd.f32 %v4059, %v4283
        %v4285 = vpop.f32.mrf.mxu0
        %4286 = vmatprep.mubr.f32.mxu0 %v3665
        %4287 = vmatmul.mubr.f32.gmra.mxu0 %v3664
        %v4288 = vpop.f32.mrf.mxu0
        %v4289 = vadd.f32 %v4064, %v4288
        %v4290 = vpop.f32.mrf.mxu0
        %4291 = vmatprep.mubr.f32.mxu0 %v3670
        %4292 = vmatmul.mubr.f32.gmra.mxu0 %v3669
        %v4293 = vpop.f32.mrf.mxu0
        %v4294 = vadd.f32 %v4069, %v4293
        %v4295 = vpop.f32.mrf.mxu0
        %4296 = vmatprep.mubr.f32.mxu0 %v3675
        %4297 = vmatmul.mubr.f32.gmra.mxu0 %v3674
        %v4298 = vpop.f32.mrf.mxu0
        %v4299 = vadd.f32 %v4074, %v4298
        %v4300 = vpop.f32.mrf.mxu0
        %4301 = vmatprep.mubr.f32.mxu0 %v3680
        %4302 = vmatmul.mubr.f32.gmra.mxu0 %v3679
        %v4303 = vpop.f32.mrf.mxu0
        %v4304 = vadd.f32 %v4079, %v4303
        %v4305 = vpop.f32.mrf.mxu0
        %4306 = vmatprep.mubr.f32.mxu0 %v3685
        %4307 = vmatmul.mubr.f32.gmra.mxu0 %v3684
        %v4308 = vpop.f32.mrf.mxu0
        %v4309 = vadd.f32 %v4084, %v4308
        %v4310 = vpop.f32.mrf.mxu0
        %4311 = vmatprep.mubr.f32.mxu0 %v3690
        %4312 = vmatmul.mubr.f32.gmra.mxu0 %v3689
        %v4313 = vpop.f32.mrf.mxu0
        %v4314 = vadd.f32 %v4089, %v4313
        %v4315 = vpop.f32.mrf.mxu0
        %4316 = vmatprep.mubr.f32.mxu0 %v3695
        %4317 = vmatmul.mubr.f32.gmra.mxu0 %v3694
        %v4318 = vpop.f32.mrf.mxu0
        %v4319 = vadd.f32 %v4094, %v4318
        %v4320 = vpop.f32.mrf.mxu0
        %4321 = vmatprep.mubr.f32.mxu0 %v3700
        %4322 = vmatmul.mubr.f32.gmra.mxu0 %v3699
        %v4323 = vpop.f32.mrf.mxu0
        %v4324 = vadd.f32 %v4099, %v4323
        %v4325 = vpop.f32.mrf.mxu0
        %4326 = vmatprep.mubr.f32.mxu0 %v3705
        %4327 = vmatmul.mubr.f32.gmra.mxu0 %v3704
        %v4328 = vpop.f32.mrf.mxu0
        %v4329 = vadd.f32 %v4104, %v4328
        %v4330 = vpop.f32.mrf.mxu0
        %4331 = vmatprep.mubr.f32.mxu0 %v3710
        %4332 = vmatmul.mubr.f32.gmra.mxu0 %v3709
        %v4333 = vpop.f32.mrf.mxu0
        %v4334 = vadd.f32 %v4109, %v4333
        %v4335 = vpop.f32.mrf.mxu0
        %4336 = vdwg.mxu0
        %4337 = vmatprep.subr.mxu0 0.0
        %4338 = vmatpush1.msra.mxu0 0.0
        %4339 = vmatprep.subr.mxu0 0.0
        %4340 = vmatpush1.msra.mxu0 0.0
        %4341 = vmatprep.subr.mxu0 0.0
        %4342 = vmatpush1.msra.mxu0 0.0
        %4343 = vmatprep.subr.mxu0 0.0
        %4344 = vmatpush1.msra.mxu0 0.0
        %4345 = vmatprep.subr.mxu0 0.0
        %4346 = vmatpush1.msra.mxu0 0.0
        %4347 = vmatprep.subr.mxu0 0.0
        %4348 = vmatpush1.msra.mxu0 0.0
        %4349 = vmatprep.subr.mxu0 0.0
        %4350 = vmatpush1.msra.mxu0 0.0
        %4351 = vmatprep.subr.mxu0 0.0
        %4352 = vmatpush1.msra.mxu0 0.0
        %4353 = vmatprep.subr.mxu0 0.0
        %4354 = vmatpush1.msra.mxu0 %v3783
        %4355 = vmatprep.subr.mxu0 0.0
        %4356 = vmatpush1.msra.mxu0 %v3782
        %4357 = vmatprep.subr.mxu0 0.0
        %4358 = vmatpush1.msra.mxu0 %v3781
        %4359 = vmatprep.subr.mxu0 0.0
        %4360 = vmatpush1.msra.mxu0 %v3780
        %4361 = vmatprep.subr.mxu0 0.0
        %4362 = vmatpush1.msra.mxu0 %v3779
        %4363 = vmatprep.subr.mxu0 0.0
        %4364 = vmatpush1.msra.mxu0 %v3778
        %4365 = vmatprep.subr.mxu0 0.0
        %4366 = vmatpush1.msra.mxu0 %v3777
        %4367 = vmatprep.subr.mxu0 0.0
        %4368 = vmatpush1.msra.mxu0 %v3776
        %4369 = vmatprep.subr.mxu0 0.0
        %4370 = vmatpush2.msra.mxu0 0.0
        %4371 = vmatprep.subr.mxu0 0.0
        %4372 = vmatpush2.msra.mxu0 0.0
        %4373 = vmatprep.subr.mxu0 0.0
        %4374 = vmatpush2.msra.mxu0 0.0
        %4375 = vmatprep.subr.mxu0 0.0
        %4376 = vmatpush2.msra.mxu0 0.0
        %4377 = vmatprep.subr.mxu0 0.0
        %4378 = vmatpush2.msra.mxu0 0.0
        %4379 = vmatprep.subr.mxu0 0.0
        %4380 = vmatpush2.msra.mxu0 0.0
        %4381 = vmatprep.subr.mxu0 0.0
        %4382 = vmatpush2.msra.mxu0 0.0
        %4383 = vmatprep.subr.mxu0 0.0
        %4384 = vmatpush2.msra.mxu0 0.0
        %4385 = vmatprep.subr.mxu0 0.0
        %4386 = vmatpush2.msra.mxu0 0.0
        %4387 = vmatprep.subr.mxu0 0.0
        %4388 = vmatpush2.msra.mxu0 0.0
        %4389 = vmatprep.subr.mxu0 0.0
        %4390 = vmatpush2.msra.mxu0 0.0
        %4391 = vmatprep.subr.mxu0 0.0
        %4392 = vmatpush2.msra.mxu0 0.0
        %4393 = vmatprep.subr.mxu0 0.0
        %4394 = vmatpush2.msra.mxu0 0.0
        %4395 = vmatprep.subr.mxu0 0.0
        %4396 = vmatpush2.msra.mxu0 0.0
        %4397 = vmatprep.subr.mxu0 0.0
        %4398 = vmatpush2.msra.mxu0 0.0
        %4399 = vmatprep.subr.mxu0 0.0
        %4400 = vmatpush2.msra.mxu0 0.0
        %4401 = vmatprep.mubr.f32.mxu0 0.0
        %4402 = vmatmul.mubr.f32.gmra.mxu0 %v3792
        %v4403 = vpop.f32.mrf.mxu0
        %v4404 = vadd.f32 %v4179, %v4403
        %v4405 = vpop.f32.mrf.mxu0
        %4406 = vmatprep.mubr.f32.mxu0 0.0
        %4407 = vmatmul.mubr.f32.gmra.mxu0 %v3795
        %v4408 = vpop.f32.mrf.mxu0
        %v4409 = vadd.f32 %v4184, %v4408
        %v4410 = vpop.f32.mrf.mxu0
        %4411 = vmatprep.mubr.f32.mxu0 0.0
        %4412 = vmatmul.mubr.f32.gmra.mxu0 %v3798
        %v4413 = vpop.f32.mrf.mxu0
        %v4414 = vadd.f32 %v4189, %v4413
        %v4415 = vpop.f32.mrf.mxu0
        %4416 = vmatprep.mubr.f32.mxu0 0.0
        %4417 = vmatmul.mubr.f32.gmra.mxu0 %v3801
        %v4418 = vpop.f32.mrf.mxu0
        %v4419 = vadd.f32 %v4194, %v4418
        %v4420 = vpop.f32.mrf.mxu0
        %4421 = vmatprep.mubr.f32.mxu0 0.0
        %4422 = vmatmul.mubr.f32.gmra.mxu0 %v3804
        %v4423 = vpop.f32.mrf.mxu0
        %v4424 = vadd.f32 %v4199, %v4423
        %v4425 = vpop.f32.mrf.mxu0
        %4426 = vmatprep.mubr.f32.mxu0 0.0
        %4427 = vmatmul.mubr.f32.gmra.mxu0 %v3807
        %v4428 = vpop.f32.mrf.mxu0
        %v4429 = vadd.f32 %v4204, %v4428
        %v4430 = vpop.f32.mrf.mxu0
        %4431 = vmatprep.mubr.f32.mxu0 0.0
        %4432 = vmatmul.mubr.f32.gmra.mxu0 %v3810
        %v4433 = vpop.f32.mrf.mxu0
        %v4434 = vadd.f32 %v4209, %v4433
        %v4435 = vpop.f32.mrf.mxu0
        %4436 = vmatprep.mubr.f32.mxu0 0.0
        %4437 = vmatmul.mubr.f32.gmra.mxu0 %v3813
        %v4438 = vpop.f32.mrf.mxu0
        %v4439 = vadd.f32 %v4214, %v4438
        %v4440 = vpop.f32.mrf.mxu0
        %4441 = vmatprep.mubr.f32.mxu0 0.0
        %4442 = vmatmul.mubr.f32.gmra.mxu0 %v3816
        %v4443 = vpop.f32.mrf.mxu0
        %v4444 = vadd.f32 %v4219, %v4443
        %v4445 = vpop.f32.mrf.mxu0
        %4446 = vmatprep.mubr.f32.mxu0 0.0
        %4447 = vmatmul.mubr.f32.gmra.mxu0 %v3819
        %v4448 = vpop.f32.mrf.mxu0
        %v4449 = vadd.f32 %v4224, %v4448
        %v4450 = vpop.f32.mrf.mxu0
        %4451 = vmatprep.mubr.f32.mxu0 0.0
        %4452 = vmatmul.mubr.f32.gmra.mxu0 %v3822
        %v4453 = vpop.f32.mrf.mxu0
        %v4454 = vadd.f32 %v4229, %v4453
        %v4455 = vpop.f32.mrf.mxu0
        %4456 = vmatprep.mubr.f32.mxu0 0.0
        %4457 = vmatmul.mubr.f32.gmra.mxu0 %v3825
        %v4458 = vpop.f32.mrf.mxu0
        %v4459 = vadd.f32 %v4234, %v4458
        %v4460 = vpop.f32.mrf.mxu0
        %4461 = vmatprep.mubr.f32.mxu0 0.0
        %4462 = vmatmul.mubr.f32.gmra.mxu0 %v3828
        %v4463 = vpop.f32.mrf.mxu0
        %v4464 = vadd.f32 %v4239, %v4463
        %v4465 = vpop.f32.mrf.mxu0
        %4466 = vmatprep.mubr.f32.mxu0 0.0
        %4467 = vmatmul.mubr.f32.gmra.mxu0 %v3831
        %v4468 = vpop.f32.mrf.mxu0
        %v4469 = vadd.f32 %v4244, %v4468
        %v4470 = vpop.f32.mrf.mxu0
        %4471 = vmatprep.mubr.f32.mxu0 0.0
        %4472 = vmatmul.mubr.f32.gmra.mxu0 %v3834
        %v4473 = vpop.f32.mrf.mxu0
        %v4474 = vadd.f32 %v4249, %v4473
        %v4475 = vpop.f32.mrf.mxu0
        %4476 = vmatprep.mubr.f32.mxu0 0.0
        %4477 = vmatmul.mubr.f32.gmra.mxu0 %v3837
        %v4478 = vpop.f32.mrf.mxu0
        %v4479 = vadd.f32 %v4254, %v4478
        %v4480 = vpop.f32.mrf.mxu0
        %4481 = vmatprep.mubr.f32.mxu0 0.0
        %4482 = vmatmul.mubr.f32.gmra.mxu0 %v3840
        %v4483 = vpop.f32.mrf.mxu0
        %v4484 = vadd.f32 %v4259, %v4483
        %v4485 = vpop.f32.mrf.mxu0
        %4486 = vmatprep.mubr.f32.mxu0 0.0
        %4487 = vmatmul.mubr.f32.gmra.mxu0 %v3843
        %v4488 = vpop.f32.mrf.mxu0
        %v4489 = vadd.f32 %v4264, %v4488
        %v4490 = vpop.f32.mrf.mxu0
        %4491 = vmatprep.mubr.f32.mxu0 0.0
        %4492 = vmatmul.mubr.f32.gmra.mxu0 %v3846
        %v4493 = vpop.f32.mrf.mxu0
        %v4494 = vadd.f32 %v4269, %v4493
        %v4495 = vpop.f32.mrf.mxu0
        %4496 = vmatprep.mubr.f32.mxu0 0.0
        %4497 = vmatmul.mubr.f32.gmra.mxu0 %v3849
        %v4498 = vpop.f32.mrf.mxu0
        %v4499 = vadd.f32 %v4274, %v4498
        %v4500 = vpop.f32.mrf.mxu0
        %4501 = vmatprep.mubr.f32.mxu0 0.0
        %4502 = vmatmul.mubr.f32.gmra.mxu0 %v3852
        %v4503 = vpop.f32.mrf.mxu0
        %v4504 = vadd.f32 %v4279, %v4503
        %v4505 = vpop.f32.mrf.mxu0
        %4506 = vmatprep.mubr.f32.mxu0 0.0
        %4507 = vmatmul.mubr.f32.gmra.mxu0 %v3855
        %v4508 = vpop.f32.mrf.mxu0
        %v4509 = vadd.f32 %v4284, %v4508
        %v4510 = vpop.f32.mrf.mxu0
        %4511 = vmatprep.mubr.f32.mxu0 0.0
        %4512 = vmatmul.mubr.f32.gmra.mxu0 %v3858
        %v4513 = vpop.f32.mrf.mxu0
        %v4514 = vadd.f32 %v4289, %v4513
        %v4515 = vpop.f32.mrf.mxu0
        %4516 = vmatprep.mubr.f32.mxu0 0.0
        %4517 = vmatmul.mubr.f32.gmra.mxu0 %v3861
        %v4518 = vpop.f32.mrf.mxu0
        %v4519 = vadd.f32 %v4294, %v4518
        %v4520 = vpop.f32.mrf.mxu0
        %4521 = vmatprep.mubr.f32.mxu0 0.0
        %4522 = vmatmul.mubr.f32.gmra.mxu0 %v3864
        %v4523 = vpop.f32.mrf.mxu0
        %v4524 = vadd.f32 %v4299, %v4523
        %v4525 = vpop.f32.mrf.mxu0
        %4526 = vmatprep.mubr.f32.mxu0 0.0
        %4527 = vmatmul.mubr.f32.gmra.mxu0 %v3867
        %v4528 = vpop.f32.mrf.mxu0
        %v4529 = vadd.f32 %v4304, %v4528
        %v4530 = vpop.f32.mrf.mxu0
        %4531 = vmatprep.mubr.f32.mxu0 0.0
        %4532 = vmatmul.mubr.f32.gmra.mxu0 %v3870
        %v4533 = vpop.f32.mrf.mxu0
        %v4534 = vadd.f32 %v4309, %v4533
        %v4535 = vpop.f32.mrf.mxu0
        %4536 = vmatprep.mubr.f32.mxu0 0.0
        %4537 = vmatmul.mubr.f32.gmra.mxu0 %v3873
        %v4538 = vpop.f32.mrf.mxu0
        %v4539 = vadd.f32 %v4314, %v4538
        %v4540 = vpop.f32.mrf.mxu0
        %4541 = vmatprep.mubr.f32.mxu0 0.0
        %4542 = vmatmul.mubr.f32.gmra.mxu0 %v3876
        %v4543 = vpop.f32.mrf.mxu0
        %v4544 = vadd.f32 %v4319, %v4543
        %v4545 = vpop.f32.mrf.mxu0
        %4546 = vmatprep.mubr.f32.mxu0 0.0
        %4547 = vmatmul.mubr.f32.gmra.mxu0 %v3879
        %v4548 = vpop.f32.mrf.mxu0
        %v4549 = vadd.f32 %v4324, %v4548
        %v4550 = vpop.f32.mrf.mxu0
        %4551 = vmatprep.mubr.f32.mxu0 0.0
        %4552 = vmatmul.mubr.f32.gmra.mxu0 %v3882
        %v4553 = vpop.f32.mrf.mxu0
        %v4554 = vadd.f32 %v4329, %v4553
        %v4555 = vpop.f32.mrf.mxu0
        %4556 = vmatprep.mubr.f32.mxu0 0.0
        %4557 = vmatmul.mubr.f32.gmra.mxu0 %v3885
        %v4558 = vpop.f32.mrf.mxu0
        %v4559 = vadd.f32 %v4334, %v4558
        %v4560 = vpop.f32.mrf.mxu0
        %4561 = vdwg.mxu0
        %vm4562 = vcmp.ge.f32.partialorder %v4404, 0.0
        %vm4563 = vcmp.ge.f32.partialorder %v4409, 0.0
        %vm4564 = vcmp.ge.f32.partialorder %v4414, 0.0
        %vm4565 = vcmp.ge.f32.partialorder %v4419, 0.0
        %vm4566 = vcmp.ge.f32.partialorder %v4424, 0.0
        %vm4567 = vcmp.ge.f32.partialorder %v4429, 0.0
        %vm4568 = vcmp.ge.f32.partialorder %v4434, 0.0
        %vm4569 = vcmp.ge.f32.partialorder %v4439, 0.0
        %vm4570 = vcmp.ge.f32.partialorder %v4444, 0.0
        %vm4571 = vcmp.ge.f32.partialorder %v4449, 0.0
        %vm4572 = vcmp.ge.f32.partialorder %v4454, 0.0
        %vm4573 = vcmp.ge.f32.partialorder %v4459, 0.0
        %vm4574 = vcmp.ge.f32.partialorder %v4464, 0.0
        %vm4575 = vcmp.ge.f32.partialorder %v4469, 0.0
        %vm4576 = vcmp.ge.f32.partialorder %v4474, 0.0
        %vm4577 = vcmp.ge.f32.partialorder %v4479, 0.0
        %vm4578 = vcmp.ge.f32.partialorder %v4484, 0.0
        %vm4579 = vcmp.ge.f32.partialorder %v4489, 0.0
        %vm4580 = vcmp.ge.f32.partialorder %v4494, 0.0
        %vm4581 = vcmp.ge.f32.partialorder %v4499, 0.0
        %vm4582 = vcmp.ge.f32.partialorder %v4504, 0.0
        %vm4583 = vcmp.ge.f32.partialorder %v4509, 0.0
        %vm4584 = vcmp.ge.f32.partialorder %v4514, 0.0
        %vm4585 = vcmp.ge.f32.partialorder %v4519, 0.0
        %vm4586 = vcmp.ge.f32.partialorder %v4524, 0.0
        %vm4587 = vcmp.ge.f32.partialorder %v4529, 0.0
        %vm4588 = vcmp.ge.f32.partialorder %v4534, 0.0
        %vm4589 = vcmp.ge.f32.partialorder %v4539, 0.0
        %vm4590 = vcmp.ge.f32.partialorder %v4544, 0.0
        %vm4591 = vcmp.ge.f32.partialorder %v4549, 0.0
        %vm4592 = vcmp.ge.f32.partialorder %v4554, 0.0
        %vm4593 = vcmp.ge.f32.partialorder %v4559, 0.0
        %v4594 = vmul.f32 %v2451, %v4404
        %v4595 = vmul.f32 %v2451, %v4409
        %v4596 = vmul.f32 %v2451, %v4414
        %v4597 = vmul.f32 %v2451, %v4419
        %v4598 = vmul.f32 %v2451, %v4424
        %v4599 = vmul.f32 %v2451, %v4429
        %v4600 = vmul.f32 %v2451, %v4434
        %v4601 = vmul.f32 %v2451, %v4439
        %v4602 = vmul.f32 %v2451, %v4444
        %v4603 = vmul.f32 %v2451, %v4449
        %v4604 = vmul.f32 %v2451, %v4454
        %v4605 = vmul.f32 %v2451, %v4459
        %v4606 = vmul.f32 %v2451, %v4464
        %v4607 = vmul.f32 %v2451, %v4469
        %v4608 = vmul.f32 %v2451, %v4474
        %v4609 = vmul.f32 %v2451, %v4479
        %v4610 = vmul.f32 %v2451, %v4484
        %v4611 = vmul.f32 %v2451, %v4489
        %v4612 = vmul.f32 %v2451, %v4494
        %v4613 = vmul.f32 %v2451, %v4499
        %v4614 = vmul.f32 %v2451, %v4504
        %v4615 = vmul.f32 %v2451, %v4509
        %v4616 = vmul.f32 %v2451, %v4514
        %v4617 = vmul.f32 %v2451, %v4519
        %v4618 = vmul.f32 %v2451, %v4524
        %v4619 = vmul.f32 %v2451, %v4529
        %v4620 = vmul.f32 %v2451, %v4534
        %v4621 = vmul.f32 %v2451, %v4539
        %v4622 = vmul.f32 %v2451, %v4544
        %v4623 = vmul.f32 %v2451, %v4549
        %v4624 = vmul.f32 %v2451, %v4554
        %v4625 = vmul.f32 %v2451, %v4559
        %v4626 = vsel %vm4562, %v4404, %v4594
        %v4627 = vsel %vm4563, %v4409, %v4595
        %v4628 = vsel %vm4564, %v4414, %v4596
        %v4629 = vsel %vm4565, %v4419, %v4597
        %v4630 = vsel %vm4566, %v4424, %v4598
        %v4631 = vsel %vm4567, %v4429, %v4599
        %v4632 = vsel %vm4568, %v4434, %v4600
        %v4633 = vsel %vm4569, %v4439, %v4601
        %v4634 = vsel %vm4570, %v4444, %v4602
        %v4635 = vsel %vm4571, %v4449, %v4603
        %v4636 = vsel %vm4572, %v4454, %v4604
        %v4637 = vsel %vm4573, %v4459, %v4605
        %v4638 = vsel %vm4574, %v4464, %v4606
        %v4639 = vsel %vm4575, %v4469, %v4607
        %v4640 = vsel %vm4576, %v4474, %v4608
        %v4641 = vsel %vm4577, %v4479, %v4609
        %v4642 = vsel %vm4578, %v4484, %v4610
        %v4643 = vsel %vm4579, %v4489, %v4611
        %v4644 = vsel %vm4580, %v4494, %v4612
        %v4645 = vsel %vm4581, %v4499, %v4613
        %v4646 = vsel %vm4582, %v4504, %v4614
        %v4647 = vsel %vm4583, %v4509, %v4615
        %v4648 = vsel %vm4584, %v4514, %v4616
        %v4649 = vsel %vm4585, %v4519, %v4617
        %v4650 = vsel %vm4586, %v4524, %v4618
        %v4651 = vsel %vm4587, %v4529, %v4619
        %v4652 = vsel %vm4588, %v4534, %v4620
        %v4653 = vsel %vm4589, %v4539, %v4621
        %v4654 = vsel %vm4590, %v4544, %v4622
        %v4655 = vsel %vm4591, %v4549, %v4623
        %v4656 = vsel %vm4592, %v4554, %v4624
        %v4657 = vsel %vm4593, %v4559, %v4625
        %4658 = vst.msk [vmem:[%s2572 + $0x1] sm:$0xff] %vm2516, %v4626
        %4659 = vst.msk [vmem:[%s2572 + $0x9] sm:$0xff] %vm2516, %v4627
        %4660 = vst.msk [vmem:[%s2572 + $0x19] sm:$0xff] %vm2516, %v4628
        %4661 = vst.msk [vmem:[%s2572 + $0x21] sm:$0xff] %vm2516, %v4629
        %4662 = vst.msk [vmem:[%s2572 + $0x31] sm:$0xff] %vm2516, %v4630
        %4663 = vst.msk [vmem:[%s2572 + $0x39] sm:$0xff] %vm2516, %v4631
        %4664 = vst.msk [vmem:[%s2572 + $0x49] sm:$0xff] %vm2516, %v4632
        %4665 = vst.msk [vmem:[%s2572 + $0x51] sm:$0xff] %vm2516, %v4633
        %4666 = vst.msk [vmem:[%s2572 + $0x61] sm:$0xff] %vm2516, %v4634
        %4667 = vst.msk [vmem:[%s2572 + $0x69] sm:$0xff] %vm2516, %v4635
        %4668 = vst.msk [vmem:[%s2572 + $0x79] sm:$0xff] %vm2516, %v4636
        %4669 = vst.msk [vmem:[%s2572 + $0x81] sm:$0xff] %vm2516, %v4637
        %4670 = vst.msk [vmem:[%s2572 + $0x91] sm:$0xff] %vm2516, %v4638
        %4671 = vst.msk [vmem:[%s2572 + $0x99] sm:$0xff] %vm2516, %v4639
        %4672 = vst.msk [vmem:[%s2572 + $0xa9] sm:$0xff] %vm2516, %v4640
        %4673 = vst.msk [vmem:[%s2572 + $0xb1] sm:$0xff] %vm2516, %v4641
        %4674 = vst.msk [vmem:[%s2572 + $0xc1] sm:$0xff] %vm2516, %v4642
        %4675 = vst.msk [vmem:[%s2572 + $0xc9] sm:$0xff] %vm2516, %v4643
        %4676 = vst.msk [vmem:[%s2572 + $0xd9] sm:$0xff] %vm2516, %v4644
        %4677 = vst.msk [vmem:[%s2572 + $0xe1] sm:$0xff] %vm2516, %v4645
        %4678 = vst.msk [vmem:[%s2572 + $0xf1] sm:$0xff] %vm2516, %v4646
        %4679 = vst.msk [vmem:[%s2572 + $0xf9] sm:$0xff] %vm2516, %v4647
        %4680 = vst.msk [vmem:[%s2572 + $0x109] sm:$0xff] %vm2516, %v4648
        %4681 = vst.msk [vmem:[%s2572 + $0x111] sm:$0xff] %vm2516, %v4649
        %4682 = vst.msk [vmem:[%s2572 + $0x121] sm:$0xff] %vm2516, %v4650
        %4683 = vst.msk [vmem:[%s2572 + $0x129] sm:$0xff] %vm2516, %v4651
        %4684 = vst.msk [vmem:[%s2572 + $0x139] sm:$0xff] %vm2516, %v4652
        %4685 = vst.msk [vmem:[%s2572 + $0x141] sm:$0xff] %vm2516, %v4653
        %4686 = vst.msk [vmem:[%s2572 + $0x151] sm:$0xff] %vm2516, %v4654
        %4687 = vst.msk [vmem:[%s2572 + $0x159] sm:$0xff] %vm2516, %v4655
        %4688 = vst.msk [vmem:[%s2572 + $0x169] sm:$0xff] %vm2516, %v4656
        %4689 = vst.msk [vmem:[%s2572 + $0x171] sm:$0xff] %vm2516, %v4657
        %v4690 = vld [vmem:[#allocation4] sm:$0xff]
        %v4691 = vld [vmem:[#allocation4 + $0x8] sm:$0xff]
        %v4692 = vld [vmem:[#allocation4 + $0x10] sm:$0x3]
        %v4693 = vld [vmem:[#allocation4 + $0x18] sm:$0xff]
        %v4694 = vld [vmem:[#allocation4 + $0x20] sm:$0xff]
        %v4695 = vld [vmem:[#allocation4 + $0x28] sm:$0x3]
        %v4696 = vld [vmem:[#allocation4 + $0x30] sm:$0xff]
        %v4697 = vld [vmem:[#allocation4 + $0x38] sm:$0xff]
        %v4698 = vld [vmem:[#allocation4 + $0x40] sm:$0x3]
        %v4699 = vld [vmem:[#allocation4 + $0x48] sm:$0xff]
        %v4700 = vld [vmem:[#allocation4 + $0x50] sm:$0xff]
        %v4701 = vld [vmem:[#allocation4 + $0x58] sm:$0x3]
        %v4702 = vld [vmem:[#allocation4 + $0x60] sm:$0xff]
        %v4703 = vld [vmem:[#allocation4 + $0x68] sm:$0xff]
        %v4704 = vld [vmem:[#allocation4 + $0x70] sm:$0x3]
        %v4705 = vld [vmem:[#allocation4 + $0x78] sm:$0xff]
        %v4706 = vld [vmem:[#allocation4 + $0x80] sm:$0xff]
        %v4707 = vld [vmem:[#allocation4 + $0x88] sm:$0x3]
        %v4708 = vld [vmem:[#allocation4 + $0x90] sm:$0xff]
        %v4709 = vld [vmem:[#allocation4 + $0x98] sm:$0xff]
        %v4710 = vld [vmem:[#allocation4 + $0xa0] sm:$0x3]
        %v4711 = vld [vmem:[#allocation4 + $0xa8] sm:$0xff]
        %v4712 = vld [vmem:[#allocation4 + $0xb0] sm:$0xff]
        %v4713 = vld [vmem:[#allocation4 + $0xb8] sm:$0x3]
        %v4714 = vld [vmem:[#allocation4 + $0xc0] sm:$0xff]
        %v4715 = vld [vmem:[#allocation4 + $0xc8] sm:$0xff]
        %v4716 = vld [vmem:[#allocation4 + $0xd0] sm:$0x3]
        %v4717 = vld [vmem:[#allocation4 + $0xd8] sm:$0xff]
        %v4718 = vld [vmem:[#allocation4 + $0xe0] sm:$0xff]
        %v4719 = vld [vmem:[#allocation4 + $0xe8] sm:$0x3]
        %v4720 = vld [vmem:[#allocation4 + $0xf0] sm:$0xff]
        %v4721 = vld [vmem:[#allocation4 + $0xf8] sm:$0xff]
        %v4722 = vld [vmem:[#allocation4 + $0x100] sm:$0x3]
        %v4723 = vld [vmem:[#allocation4 + $0x108] sm:$0xff]
        %v4724 = vld [vmem:[#allocation4 + $0x110] sm:$0xff]
        %v4725 = vld [vmem:[#allocation4 + $0x118] sm:$0x3]
        %v4726 = vld [vmem:[#allocation4 + $0x120] sm:$0xff]
        %v4727 = vld [vmem:[#allocation4 + $0x128] sm:$0xff]
        %v4728 = vld [vmem:[#allocation4 + $0x130] sm:$0x3]
        %v4729 = vld [vmem:[#allocation4 + $0x138] sm:$0xff]
        %v4730 = vld [vmem:[#allocation4 + $0x140] sm:$0xff]
        %v4731 = vld [vmem:[#allocation4 + $0x148] sm:$0x3]
        %v4732 = vld [vmem:[#allocation4 + $0x150] sm:$0xff]
        %v4733 = vld [vmem:[#allocation4 + $0x158] sm:$0xff]
        %v4734 = vld [vmem:[#allocation4 + $0x160] sm:$0x3]
        %v4735 = vld [vmem:[#allocation4 + $0x168] sm:$0xff]
        %v4736 = vld [vmem:[#allocation4 + $0x170] sm:$0xff]
        %v4737 = vld [vmem:[#allocation4 + $0x178] sm:$0x3]
        %v4738 = vld [vmem:[#allocation4 + $0x180] sm:$0xff]
        %v4739 = vld [vmem:[#allocation4 + $0x188] sm:$0xff]
        %v4740 = vld [vmem:[#allocation4 + $0x190] sm:$0x3]
        %v4741 = vld [vmem:[#allocation4 + $0x198] sm:$0xff]
        %v4742 = vld [vmem:[#allocation4 + $0x1a0] sm:$0xff]
        %v4743 = vld [vmem:[#allocation4 + $0x1a8] sm:$0x3]
        %4744 = vst.msk [vmem:[#allocation5] sm:$0xff] %vm2516, %v4690
        %4745 = vst.msk [vmem:[#allocation5 + $0x28] sm:$0xff] %vm2516, %v4691
        %4746 = vst.msk [vmem:[#allocation5 + $0x50] sm:$0xff] %vm2516, %v4693
        %4747 = vst.msk [vmem:[#allocation5 + $0x78] sm:$0xff] %vm2516, %v4694
        %4748 = vst.msk [vmem:[#allocation5 + $0xa0] sm:$0xff] %vm2516, %v4696
        %4749 = vst.msk [vmem:[#allocation5 + $0xc8] sm:$0xff] %vm2516, %v4697
        %4750 = vst.msk [vmem:[#allocation5 + $0xf0] sm:$0xff] %vm2516, %v4699
        %4751 = vst.msk [vmem:[#allocation5 + $0x118] sm:$0xff] %vm2516, %v4700
        %4752 = vst.msk [vmem:[#allocation5 + $0x140] sm:$0xff] %vm2516, %v4702
        %4753 = vst.msk [vmem:[#allocation5 + $0x168] sm:$0xff] %vm2516, %v4703
        %4754 = vst.msk [vmem:[#allocation5 + $0x190] sm:$0xff] %vm2516, %v4705
        %4755 = vst.msk [vmem:[#allocation5 + $0x1b8] sm:$0xff] %vm2516, %v4706
        %4756 = vst.msk [vmem:[#allocation5 + $0x1e0] sm:$0xff] %vm2516, %v4708
        %4757 = vst.msk [vmem:[#allocation5 + $0x208] sm:$0xff] %vm2516, %v4709
        %4758 = vst.msk [vmem:[#allocation5 + $0x230] sm:$0xff] %vm2516, %v4711
        %4759 = vst.msk [vmem:[#allocation5 + $0x258] sm:$0xff] %vm2516, %v4712
        %4760 = vst.msk [vmem:[#allocation5 + $0x280] sm:$0xff] %vm2516, %v4714
        %4761 = vst.msk [vmem:[#allocation5 + $0x2a8] sm:$0xff] %vm2516, %v4715
        %4762 = vst.msk [vmem:[#allocation5 + $0x2d0] sm:$0xff] %vm2516, %v4717
        %4763 = vst.msk [vmem:[#allocation5 + $0x2f8] sm:$0xff] %vm2516, %v4718
        %4764 = vst.msk [vmem:[#allocation5 + $0x320] sm:$0xff] %vm2516, %v4720
        %4765 = vst.msk [vmem:[#allocation5 + $0x348] sm:$0xff] %vm2516, %v4721
        %4766 = vst.msk [vmem:[#allocation5 + $0x370] sm:$0xff] %vm2516, %v4723
        %4767 = vst.msk [vmem:[#allocation5 + $0x398] sm:$0xff] %vm2516, %v4724
        %4768 = vst.msk [vmem:[#allocation5 + $0x3c0] sm:$0xff] %vm2516, %v4726
        %4769 = vst.msk [vmem:[#allocation5 + $0x3e8] sm:$0xff] %vm2516, %v4727
        %4770 = vst.msk [vmem:[#allocation5 + $0x410] sm:$0xff] %vm2516, %v4729
        %4771 = vst.msk [vmem:[#allocation5 + $0x438] sm:$0xff] %vm2516, %v4730
        %4772 = vst.msk [vmem:[#allocation5 + $0x460] sm:$0xff] %vm2516, %v4732
        %4773 = vst.msk [vmem:[#allocation5 + $0x488] sm:$0xff] %vm2516, %v4733
        %4774 = vst.msk [vmem:[#allocation5 + $0x4b0] sm:$0xff] %vm2516, %v4735
        %4775 = vst.msk [vmem:[#allocation5 + $0x4d8] sm:$0xff] %vm2516, %v4736
        %v4824 = vrot.slane %v4690, 1
        %v4825 = vrot.slane %v4691, 1
        %v4826 = vsel %vm2739, %v4824, %v4825
        %v4827 = vrot.slane %v4692, 1
        %v4828 = vsel %vm2739, %v4825, %v4827
        %v4829 = vrot.slane %v4693, 1
        %v4830 = vrot.slane %v4694, 1
        %v4831 = vsel %vm2739, %v4829, %v4830
        %v4832 = vrot.slane %v4695, 1
        %v4833 = vsel %vm2739, %v4830, %v4832
        %v4834 = vrot.slane %v4696, 1
        %v4835 = vrot.slane %v4697, 1
        %v4836 = vsel %vm2739, %v4834, %v4835
        %v4837 = vrot.slane %v4698, 1
        %v4838 = vsel %vm2739, %v4835, %v4837
        %v4839 = vrot.slane %v4699, 1
        %v4840 = vrot.slane %v4700, 1
        %v4841 = vsel %vm2739, %v4839, %v4840
        %v4842 = vrot.slane %v4701, 1
        %v4843 = vsel %vm2739, %v4840, %v4842
        %v4844 = vrot.slane %v4702, 1
        %v4845 = vrot.slane %v4703, 1
        %v4846 = vsel %vm2739, %v4844, %v4845
        %v4847 = vrot.slane %v4704, 1
        %v4848 = vsel %vm2739, %v4845, %v4847
        %v4849 = vrot.slane %v4705, 1
        %v4850 = vrot.slane %v4706, 1
        %v4851 = vsel %vm2739, %v4849, %v4850
        %v4852 = vrot.slane %v4707, 1
        %v4853 = vsel %vm2739, %v4850, %v4852
        %v4854 = vrot.slane %v4708, 1
        %v4855 = vrot.slane %v4709, 1
        %v4856 = vsel %vm2739, %v4854, %v4855
        %v4857 = vrot.slane %v4710, 1
        %v4858 = vsel %vm2739, %v4855, %v4857
        %v4859 = vrot.slane %v4711, 1
        %v4860 = vrot.slane %v4712, 1
        %v4861 = vsel %vm2739, %v4859, %v4860
        %v4862 = vrot.slane %v4713, 1
        %v4863 = vsel %vm2739, %v4860, %v4862
        %v4864 = vrot.slane %v4714, 1
        %v4865 = vrot.slane %v4715, 1
        %v4866 = vsel %vm2739, %v4864, %v4865
        %v4867 = vrot.slane %v4716, 1
        %v4868 = vsel %vm2739, %v4865, %v4867
        %v4869 = vrot.slane %v4717, 1
        %v4870 = vrot.slane %v4718, 1
        %v4871 = vsel %vm2739, %v4869, %v4870
        %v4872 = vrot.slane %v4719, 1
        %v4873 = vsel %vm2739, %v4870, %v4872
        %v4874 = vrot.slane %v4720, 1
        %v4875 = vrot.slane %v4721, 1
        %v4876 = vsel %vm2739, %v4874, %v4875
        %v4877 = vrot.slane %v4722, 1
        %v4878 = vsel %vm2739, %v4875, %v4877
        %v4879 = vrot.slane %v4723, 1
        %v4880 = vrot.slane %v4724, 1
        %v4881 = vsel %vm2739, %v4879, %v4880
        %v4882 = vrot.slane %v4725, 1
        %v4883 = vsel %vm2739, %v4880, %v4882
        %v4884 = vrot.slane %v4726, 1
        %v4885 = vrot.slane %v4727, 1
        %v4886 = vsel %vm2739, %v4884, %v4885
        %v4887 = vrot.slane %v4728, 1
        %v4888 = vsel %vm2739, %v4885, %v4887
        %v4889 = vrot.slane %v4729, 1
        %v4890 = vrot.slane %v4730, 1
        %v4891 = vsel %vm2739, %v4889, %v4890
        %v4892 = vrot.slane %v4731, 1
        %v4893 = vsel %vm2739, %v4890, %v4892
        %v4894 = vrot.slane %v4732, 1
        %v4895 = vrot.slane %v4733, 1
        %v4896 = vsel %vm2739, %v4894, %v4895
        %v4897 = vrot.slane %v4734, 1
        %v4898 = vsel %vm2739, %v4895, %v4897
        %v4899 = vrot.slane %v4735, 1
        %v4900 = vrot.slane %v4736, 1
        %v4901 = vsel %vm2739, %v4899, %v4900
        %v4902 = vrot.slane %v4737, 1
        %v4903 = vsel %vm2739, %v4900, %v4902
        %4904 = vrot.lane.b32.xlu0 %v4826, 64
        %v4905 = vpop.permute.xlu0 %4904
        %4906 = vrot.lane.b32.xlu0 %v4828, 64
        %v4907 = vpop.permute.xlu0 %4906
        %4908 = vrot.lane.b32.xlu0 %v4831, 64
        %v4909 = vpop.permute.xlu0 %4908
        %4910 = vrot.lane.b32.xlu0 %v4833, 64
        %v4911 = vpop.permute.xlu0 %4910
        %4912 = vrot.lane.b32.xlu0 %v4836, 64
        %v4913 = vpop.permute.xlu0 %4912
        %4914 = vrot.lane.b32.xlu0 %v4838, 64
        %v4915 = vpop.permute.xlu0 %4914
        %4916 = vrot.lane.b32.xlu0 %v4841, 64
        %v4917 = vpop.permute.xlu0 %4916
        %4918 = vrot.lane.b32.xlu0 %v4843, 64
        %v4919 = vpop.permute.xlu0 %4918
        %4920 = vrot.lane.b32.xlu0 %v4846, 64
        %v4921 = vpop.permute.xlu0 %4920
        %4922 = vrot.lane.b32.xlu0 %v4848, 64
        %v4923 = vpop.permute.xlu0 %4922
        %4924 = vrot.lane.b32.xlu0 %v4851, 64
        %v4925 = vpop.permute.xlu0 %4924
        %4926 = vrot.lane.b32.xlu0 %v4853, 64
        %v4927 = vpop.permute.xlu0 %4926
        %4928 = vrot.lane.b32.xlu0 %v4856, 64
        %v4929 = vpop.permute.xlu0 %4928
        %4930 = vrot.lane.b32.xlu0 %v4858, 64
        %v4931 = vpop.permute.xlu0 %4930
        %4932 = vrot.lane.b32.xlu0 %v4861, 64
        %v4933 = vpop.permute.xlu0 %4932
        %4934 = vrot.lane.b32.xlu0 %v4863, 64
        %v4935 = vpop.permute.xlu0 %4934
        %4936 = vrot.lane.b32.xlu0 %v4866, 64
        %v4937 = vpop.permute.xlu0 %4936
        %4938 = vrot.lane.b32.xlu0 %v4868, 64
        %v4939 = vpop.permute.xlu0 %4938
        %4940 = vrot.lane.b32.xlu0 %v4871, 64
        %v4941 = vpop.permute.xlu0 %4940
        %4942 = vrot.lane.b32.xlu0 %v4873, 64
        %v4943 = vpop.permute.xlu0 %4942
        %4944 = vrot.lane.b32.xlu0 %v4876, 64
        %v4945 = vpop.permute.xlu0 %4944
        %4946 = vrot.lane.b32.xlu0 %v4878, 64
        %v4947 = vpop.permute.xlu0 %4946
        %4948 = vrot.lane.b32.xlu0 %v4881, 64
        %v4949 = vpop.permute.xlu0 %4948
        %4950 = vrot.lane.b32.xlu0 %v4883, 64
        %v4951 = vpop.permute.xlu0 %4950
        %4952 = vrot.lane.b32.xlu0 %v4886, 64
        %v4953 = vpop.permute.xlu0 %4952
        %4954 = vrot.lane.b32.xlu0 %v4888, 64
        %v4955 = vpop.permute.xlu0 %4954
        %4956 = vrot.lane.b32.xlu0 %v4891, 64
        %v4957 = vpop.permute.xlu0 %4956
        %4958 = vrot.lane.b32.xlu0 %v4893, 64
        %v4959 = vpop.permute.xlu0 %4958
        %4960 = vrot.lane.b32.xlu0 %v4896, 64
        %v4961 = vpop.permute.xlu0 %4960
        %4962 = vrot.lane.b32.xlu0 %v4898, 64
        %v4963 = vpop.permute.xlu0 %4962
        %4964 = vrot.lane.b32.xlu0 %v4901, 64
        %v4965 = vpop.permute.xlu0 %4964
        %4966 = vrot.lane.b32.xlu0 %v4903, 64
        %v4967 = vpop.permute.xlu0 %4966
        %5000 = vst.msk [vmem:[#allocation5] sm:$0xff] %vm2916, %v4905
        %5001 = vst.msk [vmem:[#allocation5 + $0x28] sm:$0xff] %vm2916, %v4907
        %5002 = vst.msk [vmem:[#allocation5 + $0x50] sm:$0xff] %vm2916, %v4909
        %5003 = vst.msk [vmem:[#allocation5 + $0x78] sm:$0xff] %vm2916, %v4911
        %5004 = vst.msk [vmem:[#allocation5 + $0xa0] sm:$0xff] %vm2916, %v4913
        %5005 = vst.msk [vmem:[#allocation5 + $0xc8] sm:$0xff] %vm2916, %v4915
        %5006 = vst.msk [vmem:[#allocation5 + $0xf0] sm:$0xff] %vm2916, %v4917
        %5007 = vst.msk [vmem:[#allocation5 + $0x118] sm:$0xff] %vm2916, %v4919
        %5008 = vst.msk [vmem:[#allocation5 + $0x140] sm:$0xff] %vm2916, %v4921
        %5009 = vst.msk [vmem:[#allocation5 + $0x168] sm:$0xff] %vm2916, %v4923
        %5010 = vst.msk [vmem:[#allocation5 + $0x190] sm:$0xff] %vm2916, %v4925
        %5011 = vst.msk [vmem:[#allocation5 + $0x1b8] sm:$0xff] %vm2916, %v4927
        %5012 = vst.msk [vmem:[#allocation5 + $0x1e0] sm:$0xff] %vm2916, %v4929
        %5013 = vst.msk [vmem:[#allocation5 + $0x208] sm:$0xff] %vm2916, %v4931
        %5014 = vst.msk [vmem:[#allocation5 + $0x230] sm:$0xff] %vm2916, %v4933
        %5015 = vst.msk [vmem:[#allocation5 + $0x258] sm:$0xff] %vm2916, %v4935
        %5016 = vst.msk [vmem:[#allocation5 + $0x280] sm:$0xff] %vm2916, %v4937
        %5017 = vst.msk [vmem:[#allocation5 + $0x2a8] sm:$0xff] %vm2916, %v4939
        %5018 = vst.msk [vmem:[#allocation5 + $0x2d0] sm:$0xff] %vm2916, %v4941
        %5019 = vst.msk [vmem:[#allocation5 + $0x2f8] sm:$0xff] %vm2916, %v4943
        %5020 = vst.msk [vmem:[#allocation5 + $0x320] sm:$0xff] %vm2916, %v4945
        %5021 = vst.msk [vmem:[#allocation5 + $0x348] sm:$0xff] %vm2916, %v4947
        %5022 = vst.msk [vmem:[#allocation5 + $0x370] sm:$0xff] %vm2916, %v4949
        %5023 = vst.msk [vmem:[#allocation5 + $0x398] sm:$0xff] %vm2916, %v4951
        %5024 = vst.msk [vmem:[#allocation5 + $0x3c0] sm:$0xff] %vm2916, %v4953
        %5025 = vst.msk [vmem:[#allocation5 + $0x3e8] sm:$0xff] %vm2916, %v4955
        %5026 = vst.msk [vmem:[#allocation5 + $0x410] sm:$0xff] %vm2916, %v4957
        %5027 = vst.msk [vmem:[#allocation5 + $0x438] sm:$0xff] %vm2916, %v4959
        %5028 = vst.msk [vmem:[#allocation5 + $0x460] sm:$0xff] %vm2916, %v4961
        %5029 = vst.msk [vmem:[#allocation5 + $0x488] sm:$0xff] %vm2916, %v4963
        %5030 = vst.msk [vmem:[#allocation5 + $0x4b0] sm:$0xff] %vm2916, %v4965
        %5031 = vst.msk [vmem:[#allocation5 + $0x4d8] sm:$0xff] %vm2916, %v4967
        %v5032 = vrot.slane %v4690, 2
        %v5033 = vrot.slane %v4691, 2
        %v5034 = vsel %vm2949, %v5032, %v5033
        %v5035 = vrot.slane %v4692, 2
        %v5036 = vsel %vm2949, %v5033, %v5035
        %v5037 = vrot.slane %v4693, 2
        %v5038 = vrot.slane %v4694, 2
        %v5039 = vsel %vm2949, %v5037, %v5038
        %v5040 = vrot.slane %v4695, 2
        %v5041 = vsel %vm2949, %v5038, %v5040
        %v5042 = vrot.slane %v4696, 2
        %v5043 = vrot.slane %v4697, 2
        %v5044 = vsel %vm2949, %v5042, %v5043
        %v5045 = vrot.slane %v4698, 2
        %v5046 = vsel %vm2949, %v5043, %v5045
        %v5047 = vrot.slane %v4699, 2
        %v5048 = vrot.slane %v4700, 2
        %v5049 = vsel %vm2949, %v5047, %v5048
        %v5050 = vrot.slane %v4701, 2
        %v5051 = vsel %vm2949, %v5048, %v5050
        %v5052 = vrot.slane %v4702, 2
        %v5053 = vrot.slane %v4703, 2
        %v5054 = vsel %vm2949, %v5052, %v5053
        %v5055 = vrot.slane %v4704, 2
        %v5056 = vsel %vm2949, %v5053, %v5055
        %v5057 = vrot.slane %v4705, 2
        %v5058 = vrot.slane %v4706, 2
        %v5059 = vsel %vm2949, %v5057, %v5058
        %v5060 = vrot.slane %v4707, 2
        %v5061 = vsel %vm2949, %v5058, %v5060
        %v5062 = vrot.slane %v4708, 2
        %v5063 = vrot.slane %v4709, 2
        %v5064 = vsel %vm2949, %v5062, %v5063
        %v5065 = vrot.slane %v4710, 2
        %v5066 = vsel %vm2949, %v5063, %v5065
        %v5067 = vrot.slane %v4711, 2
        %v5068 = vrot.slane %v4712, 2
        %v5069 = vsel %vm2949, %v5067, %v5068
        %v5070 = vrot.slane %v4713, 2
        %v5071 = vsel %vm2949, %v5068, %v5070
        %v5072 = vrot.slane %v4714, 2
        %v5073 = vrot.slane %v4715, 2
        %v5074 = vsel %vm2949, %v5072, %v5073
        %v5075 = vrot.slane %v4716, 2
        %v5076 = vsel %vm2949, %v5073, %v5075
        %v5077 = vrot.slane %v4717, 2
        %v5078 = vrot.slane %v4718, 2
        %v5079 = vsel %vm2949, %v5077, %v5078
        %v5080 = vrot.slane %v4719, 2
        %v5081 = vsel %vm2949, %v5078, %v5080
        %v5082 = vrot.slane %v4720, 2
        %v5083 = vrot.slane %v4721, 2
        %v5084 = vsel %vm2949, %v5082, %v5083
        %v5085 = vrot.slane %v4722, 2
        %v5086 = vsel %vm2949, %v5083, %v5085
        %v5087 = vrot.slane %v4723, 2
        %v5088 = vrot.slane %v4724, 2
        %v5089 = vsel %vm2949, %v5087, %v5088
        %v5090 = vrot.slane %v4725, 2
        %v5091 = vsel %vm2949, %v5088, %v5090
        %v5092 = vrot.slane %v4726, 2
        %v5093 = vrot.slane %v4727, 2
        %v5094 = vsel %vm2949, %v5092, %v5093
        %v5095 = vrot.slane %v4728, 2
        %v5096 = vsel %vm2949, %v5093, %v5095
        %v5097 = vrot.slane %v4729, 2
        %v5098 = vrot.slane %v4730, 2
        %v5099 = vsel %vm2949, %v5097, %v5098
        %v5100 = vrot.slane %v4731, 2
        %v5101 = vsel %vm2949, %v5098, %v5100
        %v5102 = vrot.slane %v4732, 2
        %v5103 = vrot.slane %v4733, 2
        %v5104 = vsel %vm2949, %v5102, %v5103
        %v5105 = vrot.slane %v4734, 2
        %v5106 = vsel %vm2949, %v5103, %v5105
        %v5107 = vrot.slane %v4735, 2
        %v5108 = vrot.slane %v4736, 2
        %v5109 = vsel %vm2949, %v5107, %v5108
        %v5110 = vrot.slane %v4737, 2
        %v5111 = vsel %vm2949, %v5108, %v5110
        %5144 = vst.msk [vmem:[#allocation5 + $0x8] sm:$0xff] %vm2516, %v5034
        %5145 = vst.msk [vmem:[#allocation5 + $0x30] sm:$0xff] %vm2516, %v5036
        %5146 = vst.msk [vmem:[#allocation5 + $0x58] sm:$0xff] %vm2516, %v5039
        %5147 = vst.msk [vmem:[#allocation5 + $0x80] sm:$0xff] %vm2516, %v5041
        %5148 = vst.msk [vmem:[#allocation5 + $0xa8] sm:$0xff] %vm2516, %v5044
        %5149 = vst.msk [vmem:[#allocation5 + $0xd0] sm:$0xff] %vm2516, %v5046
        %5150 = vst.msk [vmem:[#allocation5 + $0xf8] sm:$0xff] %vm2516, %v5049
        %5151 = vst.msk [vmem:[#allocation5 + $0x120] sm:$0xff] %vm2516, %v5051
        %5152 = vst.msk [vmem:[#allocation5 + $0x148] sm:$0xff] %vm2516, %v5054
        %5153 = vst.msk [vmem:[#allocation5 + $0x170] sm:$0xff] %vm2516, %v5056
        %5154 = vst.msk [vmem:[#allocation5 + $0x198] sm:$0xff] %vm2516, %v5059
        %5155 = vst.msk [vmem:[#allocation5 + $0x1c0] sm:$0xff] %vm2516, %v5061
        %5156 = vst.msk [vmem:[#allocation5 + $0x1e8] sm:$0xff] %vm2516, %v5064
        %5157 = vst.msk [vmem:[#allocation5 + $0x210] sm:$0xff] %vm2516, %v5066
        %5158 = vst.msk [vmem:[#allocation5 + $0x238] sm:$0xff] %vm2516, %v5069
        %5159 = vst.msk [vmem:[#allocation5 + $0x260] sm:$0xff] %vm2516, %v5071
        %5160 = vst.msk [vmem:[#allocation5 + $0x288] sm:$0xff] %vm2516, %v5074
        %5161 = vst.msk [vmem:[#allocation5 + $0x2b0] sm:$0xff] %vm2516, %v5076
        %5162 = vst.msk [vmem:[#allocation5 + $0x2d8] sm:$0xff] %vm2516, %v5079
        %5163 = vst.msk [vmem:[#allocation5 + $0x300] sm:$0xff] %vm2516, %v5081
        %5164 = vst.msk [vmem:[#allocation5 + $0x328] sm:$0xff] %vm2516, %v5084
        %5165 = vst.msk [vmem:[#allocation5 + $0x350] sm:$0xff] %vm2516, %v5086
        %5166 = vst.msk [vmem:[#allocation5 + $0x378] sm:$0xff] %vm2516, %v5089
        %5167 = vst.msk [vmem:[#allocation5 + $0x3a0] sm:$0xff] %vm2516, %v5091
        %5168 = vst.msk [vmem:[#allocation5 + $0x3c8] sm:$0xff] %vm2516, %v5094
        %5169 = vst.msk [vmem:[#allocation5 + $0x3f0] sm:$0xff] %vm2516, %v5096
        %5170 = vst.msk [vmem:[#allocation5 + $0x418] sm:$0xff] %vm2516, %v5099
        %5171 = vst.msk [vmem:[#allocation5 + $0x440] sm:$0xff] %vm2516, %v5101
        %5172 = vst.msk [vmem:[#allocation5 + $0x468] sm:$0xff] %vm2516, %v5104
        %5173 = vst.msk [vmem:[#allocation5 + $0x490] sm:$0xff] %vm2516, %v5106
        %5174 = vst.msk [vmem:[#allocation5 + $0x4b8] sm:$0xff] %vm2516, %v5109
        %5175 = vst.msk [vmem:[#allocation5 + $0x4e0] sm:$0xff] %vm2516, %v5111
        %5178 = vrot.lane.b32.xlu0 %v4693, 64
        %v5179 = vpop.permute.xlu0 %5178
        %5180 = vrot.lane.b32.xlu0 %v4694, 64
        %v5181 = vpop.permute.xlu0 %5180
        %5182 = vrot.lane.b32.xlu0 %v4696, 64
        %v5183 = vpop.permute.xlu0 %5182
        %5184 = vrot.lane.b32.xlu0 %v4697, 64
        %v5185 = vpop.permute.xlu0 %5184
        %5186 = vrot.lane.b32.xlu0 %v4699, 64
        %v5187 = vpop.permute.xlu0 %5186
        %5188 = vrot.lane.b32.xlu0 %v4700, 64
        %v5189 = vpop.permute.xlu0 %5188
        %5190 = vrot.lane.b32.xlu0 %v4702, 64
        %v5191 = vpop.permute.xlu0 %5190
        %5192 = vrot.lane.b32.xlu0 %v4703, 64
        %v5193 = vpop.permute.xlu0 %5192
        %5194 = vrot.lane.b32.xlu0 %v4705, 64
        %v5195 = vpop.permute.xlu0 %5194
        %5196 = vrot.lane.b32.xlu0 %v4706, 64
        %v5197 = vpop.permute.xlu0 %5196
        %5198 = vrot.lane.b32.xlu0 %v4708, 64
        %v5199 = vpop.permute.xlu0 %5198
        %5200 = vrot.lane.b32.xlu0 %v4709, 64
        %v5201 = vpop.permute.xlu0 %5200
        %5202 = vrot.lane.b32.xlu0 %v4711, 64
        %v5203 = vpop.permute.xlu0 %5202
        %5204 = vrot.lane.b32.xlu0 %v4712, 64
        %v5205 = vpop.permute.xlu0 %5204
        %5206 = vrot.lane.b32.xlu0 %v4714, 64
        %v5207 = vpop.permute.xlu0 %5206
        %5208 = vrot.lane.b32.xlu0 %v4715, 64
        %v5209 = vpop.permute.xlu0 %5208
        %5210 = vrot.lane.b32.xlu0 %v4717, 64
        %v5211 = vpop.permute.xlu0 %5210
        %5212 = vrot.lane.b32.xlu0 %v4718, 64
        %v5213 = vpop.permute.xlu0 %5212
        %5214 = vrot.lane.b32.xlu0 %v4720, 64
        %v5215 = vpop.permute.xlu0 %5214
        %5216 = vrot.lane.b32.xlu0 %v4721, 64
        %v5217 = vpop.permute.xlu0 %5216
        %5218 = vrot.lane.b32.xlu0 %v4723, 64
        %v5219 = vpop.permute.xlu0 %5218
        %5220 = vrot.lane.b32.xlu0 %v4724, 64
        %v5221 = vpop.permute.xlu0 %5220
        %5222 = vrot.lane.b32.xlu0 %v4726, 64
        %v5223 = vpop.permute.xlu0 %5222
        %5224 = vrot.lane.b32.xlu0 %v4727, 64
        %v5225 = vpop.permute.xlu0 %5224
        %5226 = vrot.lane.b32.xlu0 %v4729, 64
        %v5227 = vpop.permute.xlu0 %5226
        %5228 = vrot.lane.b32.xlu0 %v4730, 64
        %v5229 = vpop.permute.xlu0 %5228
        %5230 = vrot.lane.b32.xlu0 %v4732, 64
        %v5231 = vpop.permute.xlu0 %5230
        %5232 = vrot.lane.b32.xlu0 %v4733, 64
        %v5233 = vpop.permute.xlu0 %5232
        %5234 = vrot.lane.b32.xlu0 %v4735, 64
        %v5235 = vpop.permute.xlu0 %5234
        %5236 = vrot.lane.b32.xlu0 %v4736, 64
        %v5237 = vpop.permute.xlu0 %5236
        %5238 = vrot.lane.b32.xlu0 %v4738, 64
        %v5239 = vpop.permute.xlu0 %5238
        %5240 = vrot.lane.b32.xlu0 %v4739, 64
        %v5241 = vpop.permute.xlu0 %5240
        %5274 = vst.msk [vmem:[#allocation5 + $0x8] sm:$0xff] %vm2916, %v5179
        %5275 = vst.msk [vmem:[#allocation5 + $0x30] sm:$0xff] %vm2916, %v5181
        %5276 = vst.msk [vmem:[#allocation5 + $0x58] sm:$0xff] %vm2916, %v5183
        %5277 = vst.msk [vmem:[#allocation5 + $0x80] sm:$0xff] %vm2916, %v5185
        %5278 = vst.msk [vmem:[#allocation5 + $0xa8] sm:$0xff] %vm2916, %v5187
        %5279 = vst.msk [vmem:[#allocation5 + $0xd0] sm:$0xff] %vm2916, %v5189
        %5280 = vst.msk [vmem:[#allocation5 + $0xf8] sm:$0xff] %vm2916, %v5191
        %5281 = vst.msk [vmem:[#allocation5 + $0x120] sm:$0xff] %vm2916, %v5193
        %5282 = vst.msk [vmem:[#allocation5 + $0x148] sm:$0xff] %vm2916, %v5195
        %5283 = vst.msk [vmem:[#allocation5 + $0x170] sm:$0xff] %vm2916, %v5197
        %5284 = vst.msk [vmem:[#allocation5 + $0x198] sm:$0xff] %vm2916, %v5199
        %5285 = vst.msk [vmem:[#allocation5 + $0x1c0] sm:$0xff] %vm2916, %v5201
        %5286 = vst.msk [vmem:[#allocation5 + $0x1e8] sm:$0xff] %vm2916, %v5203
        %5287 = vst.msk [vmem:[#allocation5 + $0x210] sm:$0xff] %vm2916, %v5205
        %5288 = vst.msk [vmem:[#allocation5 + $0x238] sm:$0xff] %vm2916, %v5207
        %5289 = vst.msk [vmem:[#allocation5 + $0x260] sm:$0xff] %vm2916, %v5209
        %5290 = vst.msk [vmem:[#allocation5 + $0x288] sm:$0xff] %vm2916, %v5211
        %5291 = vst.msk [vmem:[#allocation5 + $0x2b0] sm:$0xff] %vm2916, %v5213
        %5292 = vst.msk [vmem:[#allocation5 + $0x2d8] sm:$0xff] %vm2916, %v5215
        %5293 = vst.msk [vmem:[#allocation5 + $0x300] sm:$0xff] %vm2916, %v5217
        %5294 = vst.msk [vmem:[#allocation5 + $0x328] sm:$0xff] %vm2916, %v5219
        %5295 = vst.msk [vmem:[#allocation5 + $0x350] sm:$0xff] %vm2916, %v5221
        %5296 = vst.msk [vmem:[#allocation5 + $0x378] sm:$0xff] %vm2916, %v5223
        %5297 = vst.msk [vmem:[#allocation5 + $0x3a0] sm:$0xff] %vm2916, %v5225
        %5298 = vst.msk [vmem:[#allocation5 + $0x3c8] sm:$0xff] %vm2916, %v5227
        %5299 = vst.msk [vmem:[#allocation5 + $0x3f0] sm:$0xff] %vm2916, %v5229
        %5300 = vst.msk [vmem:[#allocation5 + $0x418] sm:$0xff] %vm2916, %v5231
        %5301 = vst.msk [vmem:[#allocation5 + $0x440] sm:$0xff] %vm2916, %v5233
        %5302 = vst.msk [vmem:[#allocation5 + $0x468] sm:$0xff] %vm2916, %v5235
        %5303 = vst.msk [vmem:[#allocation5 + $0x490] sm:$0xff] %vm2916, %v5237
        %5304 = vst.msk [vmem:[#allocation5 + $0x4b8] sm:$0xff] %vm2916, %v5239
        %5305 = vst.msk [vmem:[#allocation5 + $0x4e0] sm:$0xff] %vm2916, %v5241
        %v5307 = vrot.slane %v4738, 1
        %v5308 = vrot.slane %v4739, 1
        %v5309 = vsel %vm2739, %v5307, %v5308
        %v5310 = vrot.slane %v4740, 1
        %v5311 = vsel %vm2739, %v5308, %v5310
        %5344 = vst.msk [vmem:[#allocation5 + $0x10] sm:$0xff] %vm2516, %v4831
        %5345 = vst.msk [vmem:[#allocation5 + $0x38] sm:$0xff] %vm2516, %v4833
        %5346 = vst.msk [vmem:[#allocation5 + $0x60] sm:$0xff] %vm2516, %v4836
        %5347 = vst.msk [vmem:[#allocation5 + $0x88] sm:$0xff] %vm2516, %v4838
        %5348 = vst.msk [vmem:[#allocation5 + $0xb0] sm:$0xff] %vm2516, %v4841
        %5349 = vst.msk [vmem:[#allocation5 + $0xd8] sm:$0xff] %vm2516, %v4843
        %5350 = vst.msk [vmem:[#allocation5 + $0x100] sm:$0xff] %vm2516, %v4846
        %5351 = vst.msk [vmem:[#allocation5 + $0x128] sm:$0xff] %vm2516, %v4848
        %5352 = vst.msk [vmem:[#allocation5 + $0x150] sm:$0xff] %vm2516, %v4851
        %5353 = vst.msk [vmem:[#allocation5 + $0x178] sm:$0xff] %vm2516, %v4853
        %5354 = vst.msk [vmem:[#allocation5 + $0x1a0] sm:$0xff] %vm2516, %v4856
        %5355 = vst.msk [vmem:[#allocation5 + $0x1c8] sm:$0xff] %vm2516, %v4858
        %5356 = vst.msk [vmem:[#allocation5 + $0x1f0] sm:$0xff] %vm2516, %v4861
        %5357 = vst.msk [vmem:[#allocation5 + $0x218] sm:$0xff] %vm2516, %v4863
        %5358 = vst.msk [vmem:[#allocation5 + $0x240] sm:$0xff] %vm2516, %v4866
        %5359 = vst.msk [vmem:[#allocation5 + $0x268] sm:$0xff] %vm2516, %v4868
        %5360 = vst.msk [vmem:[#allocation5 + $0x290] sm:$0xff] %vm2516, %v4871
        %5361 = vst.msk [vmem:[#allocation5 + $0x2b8] sm:$0xff] %vm2516, %v4873
        %5362 = vst.msk [vmem:[#allocation5 + $0x2e0] sm:$0xff] %vm2516, %v4876
        %5363 = vst.msk [vmem:[#allocation5 + $0x308] sm:$0xff] %vm2516, %v4878
        %5364 = vst.msk [vmem:[#allocation5 + $0x330] sm:$0xff] %vm2516, %v4881
        %5365 = vst.msk [vmem:[#allocation5 + $0x358] sm:$0xff] %vm2516, %v4883
        %5366 = vst.msk [vmem:[#allocation5 + $0x380] sm:$0xff] %vm2516, %v4886
        %5367 = vst.msk [vmem:[#allocation5 + $0x3a8] sm:$0xff] %vm2516, %v4888
        %5368 = vst.msk [vmem:[#allocation5 + $0x3d0] sm:$0xff] %vm2516, %v4891
        %5369 = vst.msk [vmem:[#allocation5 + $0x3f8] sm:$0xff] %vm2516, %v4893
        %5370 = vst.msk [vmem:[#allocation5 + $0x420] sm:$0xff] %vm2516, %v4896
        %5371 = vst.msk [vmem:[#allocation5 + $0x448] sm:$0xff] %vm2516, %v4898
        %5372 = vst.msk [vmem:[#allocation5 + $0x470] sm:$0xff] %vm2516, %v4901
        %5373 = vst.msk [vmem:[#allocation5 + $0x498] sm:$0xff] %vm2516, %v4903
        %5374 = vst.msk [vmem:[#allocation5 + $0x4c0] sm:$0xff] %vm2516, %v5309
        %5375 = vst.msk [vmem:[#allocation5 + $0x4e8] sm:$0xff] %vm2516, %v5311
        %v5376 = vrot.slane %v4738, 2
        %v5377 = vrot.slane %v4739, 2
        %v5378 = vsel %vm2949, %v5376, %v5377
        %v5379 = vrot.slane %v4740, 2
        %v5380 = vsel %vm2949, %v5377, %v5379
        %5381 = vrot.lane.b32.xlu0 %v5039, 64
        %v5382 = vpop.permute.xlu0 %5381
        %5383 = vrot.lane.b32.xlu0 %v5041, 64
        %v5384 = vpop.permute.xlu0 %5383
        %5385 = vrot.lane.b32.xlu0 %v5044, 64
        %v5386 = vpop.permute.xlu0 %5385
        %5387 = vrot.lane.b32.xlu0 %v5046, 64
        %v5388 = vpop.permute.xlu0 %5387
        %5389 = vrot.lane.b32.xlu0 %v5049, 64
        %v5390 = vpop.permute.xlu0 %5389
        %5391 = vrot.lane.b32.xlu0 %v5051, 64
        %v5392 = vpop.permute.xlu0 %5391
        %5393 = vrot.lane.b32.xlu0 %v5054, 64
        %v5394 = vpop.permute.xlu0 %5393
        %5395 = vrot.lane.b32.xlu0 %v5056, 64
        %v5396 = vpop.permute.xlu0 %5395
        %5397 = vrot.lane.b32.xlu0 %v5059, 64
        %v5398 = vpop.permute.xlu0 %5397
        %5399 = vrot.lane.b32.xlu0 %v5061, 64
        %v5400 = vpop.permute.xlu0 %5399
        %5401 = vrot.lane.b32.xlu0 %v5064, 64
        %v5402 = vpop.permute.xlu0 %5401
        %5403 = vrot.lane.b32.xlu0 %v5066, 64
        %v5404 = vpop.permute.xlu0 %5403
        %5405 = vrot.lane.b32.xlu0 %v5069, 64
        %v5406 = vpop.permute.xlu0 %5405
        %5407 = vrot.lane.b32.xlu0 %v5071, 64
        %v5408 = vpop.permute.xlu0 %5407
        %5409 = vrot.lane.b32.xlu0 %v5074, 64
        %v5410 = vpop.permute.xlu0 %5409
        %5411 = vrot.lane.b32.xlu0 %v5076, 64
        %v5412 = vpop.permute.xlu0 %5411
        %5413 = vrot.lane.b32.xlu0 %v5079, 64
        %v5414 = vpop.permute.xlu0 %5413
        %5415 = vrot.lane.b32.xlu0 %v5081, 64
        %v5416 = vpop.permute.xlu0 %5415
        %5417 = vrot.lane.b32.xlu0 %v5084, 64
        %v5418 = vpop.permute.xlu0 %5417
        %5419 = vrot.lane.b32.xlu0 %v5086, 64
        %v5420 = vpop.permute.xlu0 %5419
        %5421 = vrot.lane.b32.xlu0 %v5089, 64
        %v5422 = vpop.permute.xlu0 %5421
        %5423 = vrot.lane.b32.xlu0 %v5091, 64
        %v5424 = vpop.permute.xlu0 %5423
        %5425 = vrot.lane.b32.xlu0 %v5094, 64
        %v5426 = vpop.permute.xlu0 %5425
        %5427 = vrot.lane.b32.xlu0 %v5096, 64
        %v5428 = vpop.permute.xlu0 %5427
        %5429 = vrot.lane.b32.xlu0 %v5099, 64
        %v5430 = vpop.permute.xlu0 %5429
        %5431 = vrot.lane.b32.xlu0 %v5101, 64
        %v5432 = vpop.permute.xlu0 %5431
        %5433 = vrot.lane.b32.xlu0 %v5104, 64
        %v5434 = vpop.permute.xlu0 %5433
        %5435 = vrot.lane.b32.xlu0 %v5106, 64
        %v5436 = vpop.permute.xlu0 %5435
        %5437 = vrot.lane.b32.xlu0 %v5109, 64
        %v5438 = vpop.permute.xlu0 %5437
        %5439 = vrot.lane.b32.xlu0 %v5111, 64
        %v5440 = vpop.permute.xlu0 %5439
        %5441 = vrot.lane.b32.xlu0 %v5378, 64
        %v5442 = vpop.permute.xlu0 %5441
        %5443 = vrot.lane.b32.xlu0 %v5380, 64
        %v5444 = vpop.permute.xlu0 %5443
        %5477 = vst.msk [vmem:[#allocation5 + $0x10] sm:$0xff] %vm2916, %v5382
        %5478 = vst.msk [vmem:[#allocation5 + $0x38] sm:$0xff] %vm2916, %v5384
        %5479 = vst.msk [vmem:[#allocation5 + $0x60] sm:$0xff] %vm2916, %v5386
        %5480 = vst.msk [vmem:[#allocation5 + $0x88] sm:$0xff] %vm2916, %v5388
        %5481 = vst.msk [vmem:[#allocation5 + $0xb0] sm:$0xff] %vm2916, %v5390
        %5482 = vst.msk [vmem:[#allocation5 + $0xd8] sm:$0xff] %vm2916, %v5392
        %5483 = vst.msk [vmem:[#allocation5 + $0x100] sm:$0xff] %vm2916, %v5394
        %5484 = vst.msk [vmem:[#allocation5 + $0x128] sm:$0xff] %vm2916, %v5396
        %5485 = vst.msk [vmem:[#allocation5 + $0x150] sm:$0xff] %vm2916, %v5398
        %5486 = vst.msk [vmem:[#allocation5 + $0x178] sm:$0xff] %vm2916, %v5400
        %5487 = vst.msk [vmem:[#allocation5 + $0x1a0] sm:$0xff] %vm2916, %v5402
        %5488 = vst.msk [vmem:[#allocation5 + $0x1c8] sm:$0xff] %vm2916, %v5404
        %5489 = vst.msk [vmem:[#allocation5 + $0x1f0] sm:$0xff] %vm2916, %v5406
        %5490 = vst.msk [vmem:[#allocation5 + $0x218] sm:$0xff] %vm2916, %v5408
        %5491 = vst.msk [vmem:[#allocation5 + $0x240] sm:$0xff] %vm2916, %v5410
        %5492 = vst.msk [vmem:[#allocation5 + $0x268] sm:$0xff] %vm2916, %v5412
        %5493 = vst.msk [vmem:[#allocation5 + $0x290] sm:$0xff] %vm2916, %v5414
        %5494 = vst.msk [vmem:[#allocation5 + $0x2b8] sm:$0xff] %vm2916, %v5416
        %5495 = vst.msk [vmem:[#allocation5 + $0x2e0] sm:$0xff] %vm2916, %v5418
        %5496 = vst.msk [vmem:[#allocation5 + $0x308] sm:$0xff] %vm2916, %v5420
        %5497 = vst.msk [vmem:[#allocation5 + $0x330] sm:$0xff] %vm2916, %v5422
        %5498 = vst.msk [vmem:[#allocation5 + $0x358] sm:$0xff] %vm2916, %v5424
        %5499 = vst.msk [vmem:[#allocation5 + $0x380] sm:$0xff] %vm2916, %v5426
        %5500 = vst.msk [vmem:[#allocation5 + $0x3a8] sm:$0xff] %vm2916, %v5428
        %5501 = vst.msk [vmem:[#allocation5 + $0x3d0] sm:$0xff] %vm2916, %v5430
        %5502 = vst.msk [vmem:[#allocation5 + $0x3f8] sm:$0xff] %vm2916, %v5432
        %5503 = vst.msk [vmem:[#allocation5 + $0x420] sm:$0xff] %vm2916, %v5434
        %5504 = vst.msk [vmem:[#allocation5 + $0x448] sm:$0xff] %vm2916, %v5436
        %5505 = vst.msk [vmem:[#allocation5 + $0x470] sm:$0xff] %vm2916, %v5438
        %5506 = vst.msk [vmem:[#allocation5 + $0x498] sm:$0xff] %vm2916, %v5440
        %5507 = vst.msk [vmem:[#allocation5 + $0x4c0] sm:$0xff] %vm2916, %v5442
        %5508 = vst.msk [vmem:[#allocation5 + $0x4e8] sm:$0xff] %vm2916, %v5444
        %5509 = vst.msk [vmem:[#allocation5 + $0x18] sm:$0xff] %vm2516, %v4696
        %5510 = vst.msk [vmem:[#allocation5 + $0x40] sm:$0xff] %vm2516, %v4697
        %5511 = vst.msk [vmem:[#allocation5 + $0x68] sm:$0xff] %vm2516, %v4699
        %5512 = vst.msk [vmem:[#allocation5 + $0x90] sm:$0xff] %vm2516, %v4700
        %5513 = vst.msk [vmem:[#allocation5 + $0xb8] sm:$0xff] %vm2516, %v4702
        %5514 = vst.msk [vmem:[#allocation5 + $0xe0] sm:$0xff] %vm2516, %v4703
        %5515 = vst.msk [vmem:[#allocation5 + $0x108] sm:$0xff] %vm2516, %v4705
        %5516 = vst.msk [vmem:[#allocation5 + $0x130] sm:$0xff] %vm2516, %v4706
        %5517 = vst.msk [vmem:[#allocation5 + $0x158] sm:$0xff] %vm2516, %v4708
        %5518 = vst.msk [vmem:[#allocation5 + $0x180] sm:$0xff] %vm2516, %v4709
        %5519 = vst.msk [vmem:[#allocation5 + $0x1a8] sm:$0xff] %vm2516, %v4711
        %5520 = vst.msk [vmem:[#allocation5 + $0x1d0] sm:$0xff] %vm2516, %v4712
        %5521 = vst.msk [vmem:[#allocation5 + $0x1f8] sm:$0xff] %vm2516, %v4714
        %5522 = vst.msk [vmem:[#allocation5 + $0x220] sm:$0xff] %vm2516, %v4715
        %5523 = vst.msk [vmem:[#allocation5 + $0x248] sm:$0xff] %vm2516, %v4717
        %5524 = vst.msk [vmem:[#allocation5 + $0x270] sm:$0xff] %vm2516, %v4718
        %5525 = vst.msk [vmem:[#allocation5 + $0x298] sm:$0xff] %vm2516, %v4720
        %5526 = vst.msk [vmem:[#allocation5 + $0x2c0] sm:$0xff] %vm2516, %v4721
        %5527 = vst.msk [vmem:[#allocation5 + $0x2e8] sm:$0xff] %vm2516, %v4723
        %5528 = vst.msk [vmem:[#allocation5 + $0x310] sm:$0xff] %vm2516, %v4724
        %5529 = vst.msk [vmem:[#allocation5 + $0x338] sm:$0xff] %vm2516, %v4726
        %5530 = vst.msk [vmem:[#allocation5 + $0x360] sm:$0xff] %vm2516, %v4727
        %5531 = vst.msk [vmem:[#allocation5 + $0x388] sm:$0xff] %vm2516, %v4729
        %5532 = vst.msk [vmem:[#allocation5 + $0x3b0] sm:$0xff] %vm2516, %v4730
        %5533 = vst.msk [vmem:[#allocation5 + $0x3d8] sm:$0xff] %vm2516, %v4732
        %5534 = vst.msk [vmem:[#allocation5 + $0x400] sm:$0xff] %vm2516, %v4733
        %5535 = vst.msk [vmem:[#allocation5 + $0x428] sm:$0xff] %vm2516, %v4735
        %5536 = vst.msk [vmem:[#allocation5 + $0x450] sm:$0xff] %vm2516, %v4736
        %5537 = vst.msk [vmem:[#allocation5 + $0x478] sm:$0xff] %vm2516, %v4738
        %5538 = vst.msk [vmem:[#allocation5 + $0x4a0] sm:$0xff] %vm2516, %v4739
        %5539 = vst.msk [vmem:[#allocation5 + $0x4c8] sm:$0xff] %vm2516, %v4741
        %5540 = vst.msk [vmem:[#allocation5 + $0x4f0] sm:$0xff] %vm2516, %v4742
        %v5544 = vrot.slane %v4741, 1
        %v5545 = vrot.slane %v4742, 1
        %v5546 = vsel %vm2739, %v5544, %v5545
        %v5547 = vrot.slane %v4743, 1
        %v5548 = vsel %vm2739, %v5545, %v5547
        %5549 = vrot.lane.b32.xlu0 %v5309, 64
        %v5550 = vpop.permute.xlu0 %5549
        %5551 = vrot.lane.b32.xlu0 %v5311, 64
        %v5552 = vpop.permute.xlu0 %5551
        %5553 = vrot.lane.b32.xlu0 %v5546, 64
        %v5554 = vpop.permute.xlu0 %5553
        %5555 = vrot.lane.b32.xlu0 %v5548, 64
        %v5556 = vpop.permute.xlu0 %5555
        %5561 = vst.msk [vmem:[#allocation5 + $0x18] sm:$0xff] %vm2916, %v4913
        %5562 = vst.msk [vmem:[#allocation5 + $0x40] sm:$0xff] %vm2916, %v4915
        %5563 = vst.msk [vmem:[#allocation5 + $0x68] sm:$0xff] %vm2916, %v4917
        %5564 = vst.msk [vmem:[#allocation5 + $0x90] sm:$0xff] %vm2916, %v4919
        %5565 = vst.msk [vmem:[#allocation5 + $0xb8] sm:$0xff] %vm2916, %v4921
        %5566 = vst.msk [vmem:[#allocation5 + $0xe0] sm:$0xff] %vm2916, %v4923
        %5567 = vst.msk [vmem:[#allocation5 + $0x108] sm:$0xff] %vm2916, %v4925
        %5568 = vst.msk [vmem:[#allocation5 + $0x130] sm:$0xff] %vm2916, %v4927
        %5569 = vst.msk [vmem:[#allocation5 + $0x158] sm:$0xff] %vm2916, %v4929
        %5570 = vst.msk [vmem:[#allocation5 + $0x180] sm:$0xff] %vm2916, %v4931
        %5571 = vst.msk [vmem:[#allocation5 + $0x1a8] sm:$0xff] %vm2916, %v4933
        %5572 = vst.msk [vmem:[#allocation5 + $0x1d0] sm:$0xff] %vm2916, %v4935
        %5573 = vst.msk [vmem:[#allocation5 + $0x1f8] sm:$0xff] %vm2916, %v4937
        %5574 = vst.msk [vmem:[#allocation5 + $0x220] sm:$0xff] %vm2916, %v4939
        %5575 = vst.msk [vmem:[#allocation5 + $0x248] sm:$0xff] %vm2916, %v4941
        %5576 = vst.msk [vmem:[#allocation5 + $0x270] sm:$0xff] %vm2916, %v4943
        %5577 = vst.msk [vmem:[#allocation5 + $0x298] sm:$0xff] %vm2916, %v4945
        %5578 = vst.msk [vmem:[#allocation5 + $0x2c0] sm:$0xff] %vm2916, %v4947
        %5579 = vst.msk [vmem:[#allocation5 + $0x2e8] sm:$0xff] %vm2916, %v4949
        %5580 = vst.msk [vmem:[#allocation5 + $0x310] sm:$0xff] %vm2916, %v4951
        %5581 = vst.msk [vmem:[#allocation5 + $0x338] sm:$0xff] %vm2916, %v4953
        %5582 = vst.msk [vmem:[#allocation5 + $0x360] sm:$0xff] %vm2916, %v4955
        %5583 = vst.msk [vmem:[#allocation5 + $0x388] sm:$0xff] %vm2916, %v4957
        %5584 = vst.msk [vmem:[#allocation5 + $0x3b0] sm:$0xff] %vm2916, %v4959
        %5585 = vst.msk [vmem:[#allocation5 + $0x3d8] sm:$0xff] %vm2916, %v4961
        %5586 = vst.msk [vmem:[#allocation5 + $0x400] sm:$0xff] %vm2916, %v4963
        %5587 = vst.msk [vmem:[#allocation5 + $0x428] sm:$0xff] %vm2916, %v4965
        %5588 = vst.msk [vmem:[#allocation5 + $0x450] sm:$0xff] %vm2916, %v4967
        %5589 = vst.msk [vmem:[#allocation5 + $0x478] sm:$0xff] %vm2916, %v5550
        %5590 = vst.msk [vmem:[#allocation5 + $0x4a0] sm:$0xff] %vm2916, %v5552
        %5591 = vst.msk [vmem:[#allocation5 + $0x4c8] sm:$0xff] %vm2916, %v5554
        %5592 = vst.msk [vmem:[#allocation5 + $0x4f0] sm:$0xff] %vm2916, %v5556
        %v5593 = vrot.slane %v4741, 2
        %v5594 = vrot.slane %v4742, 2
        %v5595 = vsel %vm2949, %v5593, %v5594
        %v5596 = vrot.slane %v4743, 2
        %v5597 = vsel %vm2949, %v5594, %v5596
        %5602 = vst.msk [vmem:[#allocation5 + $0x20] sm:$0xff] %vm2516, %v5044
        %5603 = vst.msk [vmem:[#allocation5 + $0x48] sm:$0xff] %vm2516, %v5046
        %5604 = vst.msk [vmem:[#allocation5 + $0x70] sm:$0xff] %vm2516, %v5049
        %5605 = vst.msk [vmem:[#allocation5 + $0x98] sm:$0xff] %vm2516, %v5051
        %5606 = vst.msk [vmem:[#allocation5 + $0xc0] sm:$0xff] %vm2516, %v5054
        %5607 = vst.msk [vmem:[#allocation5 + $0xe8] sm:$0xff] %vm2516, %v5056
        %5608 = vst.msk [vmem:[#allocation5 + $0x110] sm:$0xff] %vm2516, %v5059
        %5609 = vst.msk [vmem:[#allocation5 + $0x138] sm:$0xff] %vm2516, %v5061
        %5610 = vst.msk [vmem:[#allocation5 + $0x160] sm:$0xff] %vm2516, %v5064
        %5611 = vst.msk [vmem:[#allocation5 + $0x188] sm:$0xff] %vm2516, %v5066
        %5612 = vst.msk [vmem:[#allocation5 + $0x1b0] sm:$0xff] %vm2516, %v5069
        %5613 = vst.msk [vmem:[#allocation5 + $0x1d8] sm:$0xff] %vm2516, %v5071
        %5614 = vst.msk [vmem:[#allocation5 + $0x200] sm:$0xff] %vm2516, %v5074
        %5615 = vst.msk [vmem:[#allocation5 + $0x228] sm:$0xff] %vm2516, %v5076
        %5616 = vst.msk [vmem:[#allocation5 + $0x250] sm:$0xff] %vm2516, %v5079
        %5617 = vst.msk [vmem:[#allocation5 + $0x278] sm:$0xff] %vm2516, %v5081
        %5618 = vst.msk [vmem:[#allocation5 + $0x2a0] sm:$0xff] %vm2516, %v5084
        %5619 = vst.msk [vmem:[#allocation5 + $0x2c8] sm:$0xff] %vm2516, %v5086
        %5620 = vst.msk [vmem:[#allocation5 + $0x2f0] sm:$0xff] %vm2516, %v5089
        %5621 = vst.msk [vmem:[#allocation5 + $0x318] sm:$0xff] %vm2516, %v5091
        %5622 = vst.msk [vmem:[#allocation5 + $0x340] sm:$0xff] %vm2516, %v5094
        %5623 = vst.msk [vmem:[#allocation5 + $0x368] sm:$0xff] %vm2516, %v5096
        %5624 = vst.msk [vmem:[#allocation5 + $0x390] sm:$0xff] %vm2516, %v5099
        %5625 = vst.msk [vmem:[#allocation5 + $0x3b8] sm:$0xff] %vm2516, %v5101
        %5626 = vst.msk [vmem:[#allocation5 + $0x3e0] sm:$0xff] %vm2516, %v5104
        %5627 = vst.msk [vmem:[#allocation5 + $0x408] sm:$0xff] %vm2516, %v5106
        %5628 = vst.msk [vmem:[#allocation5 + $0x430] sm:$0xff] %vm2516, %v5109
        %5629 = vst.msk [vmem:[#allocation5 + $0x458] sm:$0xff] %vm2516, %v5111
        %5630 = vst.msk [vmem:[#allocation5 + $0x480] sm:$0xff] %vm2516, %v5378
        %5631 = vst.msk [vmem:[#allocation5 + $0x4a8] sm:$0xff] %vm2516, %v5380
        %5632 = vst.msk [vmem:[#allocation5 + $0x4d0] sm:$0xff] %vm2516, %v5595
        %5633 = vst.msk [vmem:[#allocation5 + $0x4f8] sm:$0xff] %vm2516, %v5597
        %v5634 = vld [vmem:[#allocation5] sm:$0xff]
        %v5635 = vld [vmem:[#allocation5 + $0x8] sm:$0xff]
        %v5636 = vld [vmem:[#allocation5 + $0x10] sm:$0xff]
        %v5637 = vld [vmem:[#allocation5 + $0x18] sm:$0xff]
        %v5638 = vld [vmem:[#allocation5 + $0x20] sm:$0xff]
        %v5639 = vld [vmem:[#allocation5 + $0x28] sm:$0xff]
        %v5640 = vld [vmem:[#allocation5 + $0x30] sm:$0xff]
        %v5641 = vld [vmem:[#allocation5 + $0x38] sm:$0xff]
        %v5642 = vld [vmem:[#allocation5 + $0x40] sm:$0xff]
        %v5643 = vld [vmem:[#allocation5 + $0x48] sm:$0xff]
        %v5644 = vld [vmem:[#allocation5 + $0x50] sm:$0xff]
        %v5645 = vld [vmem:[#allocation5 + $0x58] sm:$0xff]
        %v5646 = vld [vmem:[#allocation5 + $0x60] sm:$0xff]
        %v5647 = vld [vmem:[#allocation5 + $0x68] sm:$0xff]
        %v5648 = vld [vmem:[#allocation5 + $0x70] sm:$0xff]
        %v5649 = vld [vmem:[#allocation5 + $0x78] sm:$0xff]
        %v5650 = vld [vmem:[#allocation5 + $0x80] sm:$0xff]
        %v5651 = vld [vmem:[#allocation5 + $0x88] sm:$0xff]
        %v5652 = vld [vmem:[#allocation5 + $0x90] sm:$0xff]
        %v5653 = vld [vmem:[#allocation5 + $0x98] sm:$0xff]
        %v5654 = vld [vmem:[#allocation5 + $0xa0] sm:$0xff]
        %v5655 = vld [vmem:[#allocation5 + $0xa8] sm:$0xff]
        %v5656 = vld [vmem:[#allocation5 + $0xb0] sm:$0xff]
        %v5657 = vld [vmem:[#allocation5 + $0xb8] sm:$0xff]
        %v5658 = vld [vmem:[#allocation5 + $0xc0] sm:$0xff]
        %v5659 = vld [vmem:[#allocation5 + $0xc8] sm:$0xff]
        %v5660 = vld [vmem:[#allocation5 + $0xd0] sm:$0xff]
        %v5661 = vld [vmem:[#allocation5 + $0xd8] sm:$0xff]
        %v5662 = vld [vmem:[#allocation5 + $0xe0] sm:$0xff]
        %v5663 = vld [vmem:[#allocation5 + $0xe8] sm:$0xff]
        %v5664 = vld [vmem:[#allocation5 + $0xf0] sm:$0xff]
        %v5665 = vld [vmem:[#allocation5 + $0xf8] sm:$0xff]
        %v5666 = vld [vmem:[#allocation5 + $0x100] sm:$0xff]
        %v5667 = vld [vmem:[#allocation5 + $0x108] sm:$0xff]
        %v5668 = vld [vmem:[#allocation5 + $0x110] sm:$0xff]
        %v5669 = vld [vmem:[#allocation5 + $0x118] sm:$0xff]
        %v5670 = vld [vmem:[#allocation5 + $0x120] sm:$0xff]
        %v5671 = vld [vmem:[#allocation5 + $0x128] sm:$0xff]
        %v5672 = vld [vmem:[#allocation5 + $0x130] sm:$0xff]
        %v5673 = vld [vmem:[#allocation5 + $0x138] sm:$0xff]
        %v5674 = vld [vmem:[#allocation5 + $0x140] sm:$0xff]
        %v5675 = vld [vmem:[#allocation5 + $0x148] sm:$0xff]
        %v5676 = vld [vmem:[#allocation5 + $0x150] sm:$0xff]
        %v5677 = vld [vmem:[#allocation5 + $0x158] sm:$0xff]
        %v5678 = vld [vmem:[#allocation5 + $0x160] sm:$0xff]
        %v5679 = vld [vmem:[#allocation5 + $0x168] sm:$0xff]
        %v5680 = vld [vmem:[#allocation5 + $0x170] sm:$0xff]
        %v5681 = vld [vmem:[#allocation5 + $0x178] sm:$0xff]
        %v5682 = vld [vmem:[#allocation5 + $0x180] sm:$0xff]
        %v5683 = vld [vmem:[#allocation5 + $0x188] sm:$0xff]
        %v5684 = vld [vmem:[#allocation5 + $0x190] sm:$0xff]
        %v5685 = vld [vmem:[#allocation5 + $0x198] sm:$0xff]
        %v5686 = vld [vmem:[#allocation5 + $0x1a0] sm:$0xff]
        %v5687 = vld [vmem:[#allocation5 + $0x1a8] sm:$0xff]
        %v5688 = vld [vmem:[#allocation5 + $0x1b0] sm:$0xff]
        %v5689 = vld [vmem:[#allocation5 + $0x1b8] sm:$0xff]
        %v5690 = vld [vmem:[#allocation5 + $0x1c0] sm:$0xff]
        %v5691 = vld [vmem:[#allocation5 + $0x1c8] sm:$0xff]
        %v5692 = vld [vmem:[#allocation5 + $0x1d0] sm:$0xff]
        %v5693 = vld [vmem:[#allocation5 + $0x1d8] sm:$0xff]
        %v5694 = vld [vmem:[#allocation5 + $0x1e0] sm:$0xff]
        %v5695 = vld [vmem:[#allocation5 + $0x1e8] sm:$0xff]
        %v5696 = vld [vmem:[#allocation5 + $0x1f0] sm:$0xff]
        %v5697 = vld [vmem:[#allocation5 + $0x1f8] sm:$0xff]
        %v5698 = vld [vmem:[#allocation5 + $0x200] sm:$0xff]
        %v5699 = vld [vmem:[#allocation5 + $0x208] sm:$0xff]
        %v5700 = vld [vmem:[#allocation5 + $0x210] sm:$0xff]
        %v5701 = vld [vmem:[#allocation5 + $0x218] sm:$0xff]
        %v5702 = vld [vmem:[#allocation5 + $0x220] sm:$0xff]
        %v5703 = vld [vmem:[#allocation5 + $0x228] sm:$0xff]
        %v5704 = vld [vmem:[#allocation5 + $0x230] sm:$0xff]
        %v5705 = vld [vmem:[#allocation5 + $0x238] sm:$0xff]
        %v5706 = vld [vmem:[#allocation5 + $0x240] sm:$0xff]
        %v5707 = vld [vmem:[#allocation5 + $0x248] sm:$0xff]
        %v5708 = vld [vmem:[#allocation5 + $0x250] sm:$0xff]
        %v5709 = vld [vmem:[#allocation5 + $0x258] sm:$0xff]
        %v5710 = vld [vmem:[#allocation5 + $0x260] sm:$0xff]
        %v5711 = vld [vmem:[#allocation5 + $0x268] sm:$0xff]
        %v5712 = vld [vmem:[#allocation5 + $0x270] sm:$0xff]
        %v5713 = vld [vmem:[#allocation5 + $0x278] sm:$0xff]
        %v5714 = vld [vmem:[#allocation5 + $0x280] sm:$0xff]
        %v5715 = vld [vmem:[#allocation5 + $0x288] sm:$0xff]
        %v5716 = vld [vmem:[#allocation5 + $0x290] sm:$0xff]
        %v5717 = vld [vmem:[#allocation5 + $0x298] sm:$0xff]
        %v5718 = vld [vmem:[#allocation5 + $0x2a0] sm:$0xff]
        %v5719 = vld [vmem:[#allocation5 + $0x2a8] sm:$0xff]
        %v5720 = vld [vmem:[#allocation5 + $0x2b0] sm:$0xff]
        %v5721 = vld [vmem:[#allocation5 + $0x2b8] sm:$0xff]
        %v5722 = vld [vmem:[#allocation5 + $0x2c0] sm:$0xff]
        %v5723 = vld [vmem:[#allocation5 + $0x2c8] sm:$0xff]
        %v5724 = vld [vmem:[#allocation5 + $0x2d0] sm:$0xff]
        %v5725 = vld [vmem:[#allocation5 + $0x2d8] sm:$0xff]
        %v5726 = vld [vmem:[#allocation5 + $0x2e0] sm:$0xff]
        %v5727 = vld [vmem:[#allocation5 + $0x2e8] sm:$0xff]
        %v5728 = vld [vmem:[#allocation5 + $0x2f0] sm:$0xff]
        %v5729 = vld [vmem:[#allocation5 + $0x2f8] sm:$0xff]
        %v5730 = vld [vmem:[#allocation5 + $0x300] sm:$0xff]
        %v5731 = vld [vmem:[#allocation5 + $0x308] sm:$0xff]
        %v5732 = vld [vmem:[#allocation5 + $0x310] sm:$0xff]
        %v5733 = vld [vmem:[#allocation5 + $0x318] sm:$0xff]
        %v5734 = vld [vmem:[#allocation5 + $0x320] sm:$0xff]
        %v5735 = vld [vmem:[#allocation5 + $0x328] sm:$0xff]
        %v5736 = vld [vmem:[#allocation5 + $0x330] sm:$0xff]
        %v5737 = vld [vmem:[#allocation5 + $0x338] sm:$0xff]
        %v5738 = vld [vmem:[#allocation5 + $0x340] sm:$0xff]
        %v5739 = vld [vmem:[#allocation5 + $0x348] sm:$0xff]
        %v5740 = vld [vmem:[#allocation5 + $0x350] sm:$0xff]
        %v5741 = vld [vmem:[#allocation5 + $0x358] sm:$0xff]
        %v5742 = vld [vmem:[#allocation5 + $0x360] sm:$0xff]
        %v5743 = vld [vmem:[#allocation5 + $0x368] sm:$0xff]
        %v5744 = vld [vmem:[#allocation5 + $0x370] sm:$0xff]
        %v5745 = vld [vmem:[#allocation5 + $0x378] sm:$0xff]
        %v5746 = vld [vmem:[#allocation5 + $0x380] sm:$0xff]
        %v5747 = vld [vmem:[#allocation5 + $0x388] sm:$0xff]
        %v5748 = vld [vmem:[#allocation5 + $0x390] sm:$0xff]
        %v5749 = vld [vmem:[#allocation5 + $0x398] sm:$0xff]
        %v5750 = vld [vmem:[#allocation5 + $0x3a0] sm:$0xff]
        %v5751 = vld [vmem:[#allocation5 + $0x3a8] sm:$0xff]
        %v5752 = vld [vmem:[#allocation5 + $0x3b0] sm:$0xff]
        %v5753 = vld [vmem:[#allocation5 + $0x3b8] sm:$0xff]
        %v5754 = vld [vmem:[#allocation5 + $0x3c0] sm:$0xff]
        %v5755 = vld [vmem:[#allocation5 + $0x3c8] sm:$0xff]
        %v5756 = vld [vmem:[#allocation5 + $0x3d0] sm:$0xff]
        %v5757 = vld [vmem:[#allocation5 + $0x3d8] sm:$0xff]
        %v5758 = vld [vmem:[#allocation5 + $0x3e0] sm:$0xff]
        %v5759 = vld [vmem:[#allocation5 + $0x3e8] sm:$0xff]
        %v5760 = vld [vmem:[#allocation5 + $0x3f0] sm:$0xff]
        %v5761 = vld [vmem:[#allocation5 + $0x3f8] sm:$0xff]
        %v5762 = vld [vmem:[#allocation5 + $0x400] sm:$0xff]
        %v5763 = vld [vmem:[#allocation5 + $0x408] sm:$0xff]
        %v5764 = vld [vmem:[#allocation5 + $0x410] sm:$0xff]
        %v5765 = vld [vmem:[#allocation5 + $0x418] sm:$0xff]
        %v5766 = vld [vmem:[#allocation5 + $0x420] sm:$0xff]
        %v5767 = vld [vmem:[#allocation5 + $0x428] sm:$0xff]
        %v5768 = vld [vmem:[#allocation5 + $0x430] sm:$0xff]
        %v5769 = vld [vmem:[#allocation5 + $0x438] sm:$0xff]
        %v5770 = vld [vmem:[#allocation5 + $0x440] sm:$0xff]
        %v5771 = vld [vmem:[#allocation5 + $0x448] sm:$0xff]
        %v5772 = vld [vmem:[#allocation5 + $0x450] sm:$0xff]
        %v5773 = vld [vmem:[#allocation5 + $0x458] sm:$0xff]
        %v5774 = vld [vmem:[#allocation5 + $0x460] sm:$0xff]
        %v5775 = vld [vmem:[#allocation5 + $0x468] sm:$0xff]
        %v5776 = vld [vmem:[#allocation5 + $0x470] sm:$0xff]
        %v5777 = vld [vmem:[#allocation5 + $0x478] sm:$0xff]
        %v5778 = vld [vmem:[#allocation5 + $0x480] sm:$0xff]
        %v5779 = vld [vmem:[#allocation5 + $0x488] sm:$0xff]
        %v5780 = vld [vmem:[#allocation5 + $0x490] sm:$0xff]
        %v5781 = vld [vmem:[#allocation5 + $0x498] sm:$0xff]
        %v5782 = vld [vmem:[#allocation5 + $0x4a0] sm:$0xff]
        %v5783 = vld [vmem:[#allocation5 + $0x4a8] sm:$0xff]
        %v5784 = vld [vmem:[#allocation5 + $0x4b0] sm:$0xff]
        %v5785 = vld [vmem:[#allocation5 + $0x4b8] sm:$0xff]
        %v5786 = vld [vmem:[#allocation5 + $0x4c0] sm:$0xff]
        %v5787 = vld [vmem:[#allocation5 + $0x4c8] sm:$0xff]
        %v5788 = vld [vmem:[#allocation5 + $0x4d0] sm:$0xff]
        %v5789 = vld [vmem:[#allocation5 + $0x4d8] sm:$0xff]
        %v5790 = vld [vmem:[#allocation5 + $0x4e0] sm:$0xff]
        %v5791 = vld [vmem:[#allocation5 + $0x4e8] sm:$0xff]
        %v5792 = vld [vmem:[#allocation5 + $0x4f0] sm:$0xff]
        %v5793 = vld [vmem:[#allocation5 + $0x4f8] sm:$0xff]
        %v5794 = vld [vmem:[%s5] sm:$0xff]
        %v5795 = vld [vmem:[%s5 + $0x8] sm:$0xff]
        %v5796 = vld [vmem:[%s5 + $0x10] sm:$0xff]
        %v5797 = vld [vmem:[%s5 + $0x18] sm:$0xff]
        %v5798 = vld [vmem:[%s5 + $0x20] sm:$0xff]
        %v5799 = vld [vmem:[%s5 + $0x28] sm:$0xff]
        %v5800 = vld [vmem:[%s5 + $0x30] sm:$0xff]
        %v5801 = vld [vmem:[%s5 + $0x38] sm:$0xff]
        %v5802 = vld [vmem:[%s5 + $0x40] sm:$0xff]
        %v5803 = vld [vmem:[%s5 + $0x48] sm:$0xff]
        %v5804 = vld [vmem:[%s5 + $0x50] sm:$0xff]
        %v5805 = vld [vmem:[%s5 + $0x58] sm:$0xff]
        %v5806 = vld [vmem:[%s5 + $0x60] sm:$0xff]
        %v5807 = vld [vmem:[%s5 + $0x68] sm:$0xff]
        %v5808 = vld [vmem:[%s5 + $0x70] sm:$0xff]
        %v5809 = vld [vmem:[%s5 + $0x78] sm:$0xff]
        %v5810 = vld [vmem:[%s5 + $0x80] sm:$0xff]
        %v5811 = vld [vmem:[%s5 + $0x88] sm:$0xff]
        %v5812 = vld [vmem:[%s5 + $0x90] sm:$0xff]
        %v5813 = vld [vmem:[%s5 + $0x98] sm:$0xff]
        %v5814 = vld [vmem:[%s5 + $0xa0] sm:$0xff]
        %v5815 = vld [vmem:[%s5 + $0xa8] sm:$0xff]
        %v5816 = vld [vmem:[%s5 + $0xb0] sm:$0xff]
        %v5817 = vld [vmem:[%s5 + $0xb8] sm:$0xff]
        %v5818 = vld [vmem:[%s5 + $0xc0] sm:$0xff]
        %v5819 = vld [vmem:[%s5 + $0xc8] sm:$0xff]
        %v5820 = vld [vmem:[%s5 + $0xd0] sm:$0xff]
        %v5821 = vld [vmem:[%s5 + $0xd8] sm:$0xff]
        %v5822 = vld [vmem:[%s5 + $0xe0] sm:$0xff]
        %v5823 = vld [vmem:[%s5 + $0xe8] sm:$0xff]
        %v5824 = vld [vmem:[%s5 + $0xf0] sm:$0xff]
        %v5825 = vld [vmem:[%s5 + $0xf8] sm:$0xff]
        %v5826 = vld [vmem:[%s5 + $0x100] sm:$0xff]
        %v5827 = vld [vmem:[%s5 + $0x108] sm:$0xff]
        %v5828 = vld [vmem:[%s5 + $0x110] sm:$0xff]
        %v5829 = vld [vmem:[%s5 + $0x118] sm:$0xff]
        %v5830 = vld [vmem:[%s5 + $0x120] sm:$0xff]
        %v5831 = vld [vmem:[%s5 + $0x128] sm:$0xff]
        %v5832 = vld [vmem:[%s5 + $0x130] sm:$0xff]
        %v5833 = vld [vmem:[%s5 + $0x138] sm:$0xff]
        %v5834 = vld [vmem:[%s5 + $0x140] sm:$0xff]
        %v5835 = vld [vmem:[%s5 + $0x148] sm:$0xff]
        %v5836 = vld [vmem:[%s5 + $0x150] sm:$0xff]
        %v5837 = vld [vmem:[%s5 + $0x158] sm:$0xff]
        %v5838 = vld [vmem:[%s5 + $0x160] sm:$0xff]
        %v5839 = vld [vmem:[%s5 + $0x168] sm:$0xff]
        %v5840 = vld [vmem:[%s5 + $0x170] sm:$0xff]
        %v5841 = vld [vmem:[%s5 + $0x178] sm:$0xff]
        %v5842 = vld [vmem:[%s5 + $0x180] sm:$0xff]
        %v5843 = vld [vmem:[%s5 + $0x188] sm:$0xff]
        %v5844 = vld [vmem:[%s5 + $0x190] sm:$0xff]
        %v5845 = vld [vmem:[%s5 + $0x198] sm:$0xff]
        %v5846 = vld [vmem:[%s5 + $0x1a0] sm:$0xff]
        %v5847 = vld [vmem:[%s5 + $0x1a8] sm:$0xff]
        %v5848 = vld [vmem:[%s5 + $0x1b0] sm:$0xff]
        %v5849 = vld [vmem:[%s5 + $0x1b8] sm:$0xff]
        %v5850 = vld [vmem:[%s5 + $0x1c0] sm:$0xff]
        %v5851 = vld [vmem:[%s5 + $0x1c8] sm:$0xff]
        %v5852 = vld [vmem:[%s5 + $0x1d0] sm:$0xff]
        %v5853 = vld [vmem:[%s5 + $0x1d8] sm:$0xff]
        %v5854 = vld [vmem:[%s5 + $0x1e0] sm:$0xff]
        %v5855 = vld [vmem:[%s5 + $0x1e8] sm:$0xff]
        %v5856 = vld [vmem:[%s5 + $0x1f0] sm:$0xff]
        %v5857 = vld [vmem:[%s5 + $0x1f8] sm:$0xff]
        %v5858 = vld [vmem:[%s5 + $0x200] sm:$0xff]
        %v5859 = vld [vmem:[%s5 + $0x208] sm:$0xff]
        %v5860 = vld [vmem:[%s5 + $0x210] sm:$0xff]
        %v5861 = vld [vmem:[%s5 + $0x218] sm:$0xff]
        %v5862 = vld [vmem:[%s5 + $0x220] sm:$0xff]
        %v5863 = vld [vmem:[%s5 + $0x228] sm:$0xff]
        %v5864 = vld [vmem:[%s5 + $0x230] sm:$0xff]
        %v5865 = vld [vmem:[%s5 + $0x238] sm:$0xff]
        %v5866 = vld [vmem:[%s6] sm:$0x1]
        %v5868 = vlaneseq
        %v5869 = vshrl.u32 %v5868, 7
        %v5870 = vsub.s32 0, %v5869
        %v5871 = vrot.slane %v5866, %v5870
        %v5874 = vsel %vm2516, %v5638, 0
        %v5877 = vsel %vm2516, %v5643, 0
        %v5880 = vsel %vm2516, %v5648, 0
        %v5883 = vsel %vm2516, %v5653, 0
        %v5886 = vsel %vm2516, %v5658, 0
        %v5889 = vsel %vm2516, %v5663, 0
        %v5892 = vsel %vm2516, %v5668, 0
        %v5895 = vsel %vm2516, %v5673, 0
        %v5898 = vsel %vm2516, %v5678, 0
        %v5901 = vsel %vm2516, %v5683, 0
        %v5904 = vsel %vm2516, %v5688, 0
        %v5907 = vsel %vm2516, %v5693, 0
        %v5910 = vsel %vm2516, %v5698, 0
        %v5913 = vsel %vm2516, %v5703, 0
        %v5916 = vsel %vm2516, %v5708, 0
        %v5919 = vsel %vm2516, %v5713, 0
        %v5922 = vsel %vm2516, %v5718, 0
        %v5925 = vsel %vm2516, %v5723, 0
        %v5928 = vsel %vm2516, %v5728, 0
        %v5931 = vsel %vm2516, %v5733, 0
        %v5934 = vsel %vm2516, %v5738, 0
        %v5937 = vsel %vm2516, %v5743, 0
        %v5940 = vsel %vm2516, %v5748, 0
        %v5943 = vsel %vm2516, %v5753, 0
        %v5946 = vsel %vm2516, %v5758, 0
        %v5949 = vsel %vm2516, %v5763, 0
        %v5952 = vsel %vm2516, %v5768, 0
        %v5955 = vsel %vm2516, %v5773, 0
        %v5958 = vsel %vm2516, %v5778, 0
        %v5961 = vsel %vm2516, %v5783, 0
        %v5964 = vsel %vm2516, %v5788, 0
        %v5967 = vsel %vm2516, %v5793, 0
        %5969 = vmatprep.subr.mxu0 0.0
        %5970 = vmatpush1.msra.mxu0 %v5809
        %5971 = vmatprep.subr.mxu0 0.0
        %5972 = vmatpush1.msra.mxu0 %v5808
        %5973 = vmatprep.subr.mxu0 0.0
        %5974 = vmatpush1.msra.mxu0 %v5807
        %5975 = vmatprep.subr.mxu0 0.0
        %5976 = vmatpush1.msra.mxu0 %v5806
        %5977 = vmatprep.subr.mxu0 0.0
        %5978 = vmatpush1.msra.mxu0 %v5805
        %5979 = vmatprep.subr.mxu0 0.0
        %5980 = vmatpush1.msra.mxu0 %v5804
        %5981 = vmatprep.subr.mxu0 0.0
        %5982 = vmatpush1.msra.mxu0 %v5803
        %5983 = vmatprep.subr.mxu0 0.0
        %5984 = vmatpush1.msra.mxu0 %v5802
        %5985 = vmatprep.subr.mxu0 0.0
        %5986 = vmatpush1.msra.mxu0 %v5801
        %5987 = vmatprep.subr.mxu0 0.0
        %5988 = vmatpush1.msra.mxu0 %v5800
        %5989 = vmatprep.subr.mxu0 0.0
        %5990 = vmatpush1.msra.mxu0 %v5799
        %5991 = vmatprep.subr.mxu0 0.0
        %5992 = vmatpush1.msra.mxu0 %v5798
        %5993 = vmatprep.subr.mxu0 0.0
        %5994 = vmatpush1.msra.mxu0 %v5797
        %5995 = vmatprep.subr.mxu0 0.0
        %5996 = vmatpush1.msra.mxu0 %v5796
        %5997 = vmatprep.subr.mxu0 0.0
        %5998 = vmatpush1.msra.mxu0 %v5795
        %5999 = vmatprep.subr.mxu0 0.0
        %6000 = vmatpush1.msra.mxu0 %v5794
        %6001 = vmatprep.subr.mxu0 0.0
        %6002 = vmatpush2.msra.mxu0 %v5825
        %6003 = vmatprep.subr.mxu0 0.0
        %6004 = vmatpush2.msra.mxu0 %v5824
        %6005 = vmatprep.subr.mxu0 0.0
        %6006 = vmatpush2.msra.mxu0 %v5823
        %6007 = vmatprep.subr.mxu0 0.0
        %6008 = vmatpush2.msra.mxu0 %v5822
        %6009 = vmatprep.subr.mxu0 0.0
        %6010 = vmatpush2.msra.mxu0 %v5821
        %6011 = vmatprep.subr.mxu0 0.0
        %6012 = vmatpush2.msra.mxu0 %v5820
        %6013 = vmatprep.subr.mxu0 0.0
        %6014 = vmatpush2.msra.mxu0 %v5819
        %6015 = vmatprep.subr.mxu0 0.0
        %6016 = vmatpush2.msra.mxu0 %v5818
        %6017 = vmatprep.subr.mxu0 0.0
        %6018 = vmatpush2.msra.mxu0 %v5817
        %6019 = vmatprep.subr.mxu0 0.0
        %6020 = vmatpush2.msra.mxu0 %v5816
        %6021 = vmatprep.subr.mxu0 0.0
        %6022 = vmatpush2.msra.mxu0 %v5815
        %6023 = vmatprep.subr.mxu0 0.0
        %6024 = vmatpush2.msra.mxu0 %v5814
        %6025 = vmatprep.subr.mxu0 0.0
        %6026 = vmatpush2.msra.mxu0 %v5813
        %6027 = vmatprep.subr.mxu0 0.0
        %6028 = vmatpush2.msra.mxu0 %v5812
        %6029 = vmatprep.subr.mxu0 0.0
        %6030 = vmatpush2.msra.mxu0 %v5811
        %6031 = vmatprep.subr.mxu0 0.0
        %6032 = vmatpush2.msra.mxu0 %v5810
        %6033 = vmatprep.mubr.f32.mxu0 %v5635
        %6034 = vmatmul.mubr.f32.gmra.mxu0 %v5634
        %v6035 = vpop.f32.mrf.mxu0
        %v6036 = vadd.f32 %v5871, %v6035
        %v6037 = vpop.f32.mrf.mxu0
        %6038 = vmatprep.mubr.f32.mxu0 %v5640
        %6039 = vmatmul.mubr.f32.gmra.mxu0 %v5639
        %v6040 = vpop.f32.mrf.mxu0
        %v6041 = vadd.f32 %v5871, %v6040
        %v6042 = vpop.f32.mrf.mxu0
        %6043 = vmatprep.mubr.f32.mxu0 %v5645
        %6044 = vmatmul.mubr.f32.gmra.mxu0 %v5644
        %v6045 = vpop.f32.mrf.mxu0
        %v6046 = vadd.f32 %v5871, %v6045
        %v6047 = vpop.f32.mrf.mxu0
        %6048 = vmatprep.mubr.f32.mxu0 %v5650
        %6049 = vmatmul.mubr.f32.gmra.mxu0 %v5649
        %v6050 = vpop.f32.mrf.mxu0
        %v6051 = vadd.f32 %v5871, %v6050
        %v6052 = vpop.f32.mrf.mxu0
        %6053 = vmatprep.mubr.f32.mxu0 %v5655
        %6054 = vmatmul.mubr.f32.gmra.mxu0 %v5654
        %v6055 = vpop.f32.mrf.mxu0
        %v6056 = vadd.f32 %v5871, %v6055
        %v6057 = vpop.f32.mrf.mxu0
        %6058 = vmatprep.mubr.f32.mxu0 %v5660
        %6059 = vmatmul.mubr.f32.gmra.mxu0 %v5659
        %v6060 = vpop.f32.mrf.mxu0
        %v6061 = vadd.f32 %v5871, %v6060
        %v6062 = vpop.f32.mrf.mxu0
        %6063 = vmatprep.mubr.f32.mxu0 %v5665
        %6064 = vmatmul.mubr.f32.gmra.mxu0 %v5664
        %v6065 = vpop.f32.mrf.mxu0
        %v6066 = vadd.f32 %v5871, %v6065
        %v6067 = vpop.f32.mrf.mxu0
        %6068 = vmatprep.mubr.f32.mxu0 %v5670
        %6069 = vmatmul.mubr.f32.gmra.mxu0 %v5669
        %v6070 = vpop.f32.mrf.mxu0
        %v6071 = vadd.f32 %v5871, %v6070
        %v6072 = vpop.f32.mrf.mxu0
        %6073 = vmatprep.mubr.f32.mxu0 %v5675
        %6074 = vmatmul.mubr.f32.gmra.mxu0 %v5674
        %v6075 = vpop.f32.mrf.mxu0
        %v6076 = vadd.f32 %v5871, %v6075
        %v6077 = vpop.f32.mrf.mxu0
        %6078 = vmatprep.mubr.f32.mxu0 %v5680
        %6079 = vmatmul.mubr.f32.gmra.mxu0 %v5679
        %v6080 = vpop.f32.mrf.mxu0
        %v6081 = vadd.f32 %v5871, %v6080
        %v6082 = vpop.f32.mrf.mxu0
        %6083 = vmatprep.mubr.f32.mxu0 %v5685
        %6084 = vmatmul.mubr.f32.gmra.mxu0 %v5684
        %v6085 = vpop.f32.mrf.mxu0
        %v6086 = vadd.f32 %v5871, %v6085
        %v6087 = vpop.f32.mrf.mxu0
        %6088 = vmatprep.mubr.f32.mxu0 %v5690
        %6089 = vmatmul.mubr.f32.gmra.mxu0 %v5689
        %v6090 = vpop.f32.mrf.mxu0
        %v6091 = vadd.f32 %v5871, %v6090
        %v6092 = vpop.f32.mrf.mxu0
        %6093 = vmatprep.mubr.f32.mxu0 %v5695
        %6094 = vmatmul.mubr.f32.gmra.mxu0 %v5694
        %v6095 = vpop.f32.mrf.mxu0
        %v6096 = vadd.f32 %v5871, %v6095
        %v6097 = vpop.f32.mrf.mxu0
        %6098 = vmatprep.mubr.f32.mxu0 %v5700
        %6099 = vmatmul.mubr.f32.gmra.mxu0 %v5699
        %v6100 = vpop.f32.mrf.mxu0
        %v6101 = vadd.f32 %v5871, %v6100
        %v6102 = vpop.f32.mrf.mxu0
        %6103 = vmatprep.mubr.f32.mxu0 %v5705
        %6104 = vmatmul.mubr.f32.gmra.mxu0 %v5704
        %v6105 = vpop.f32.mrf.mxu0
        %v6106 = vadd.f32 %v5871, %v6105
        %v6107 = vpop.f32.mrf.mxu0
        %6108 = vmatprep.mubr.f32.mxu0 %v5710
        %6109 = vmatmul.mubr.f32.gmra.mxu0 %v5709
        %v6110 = vpop.f32.mrf.mxu0
        %v6111 = vadd.f32 %v5871, %v6110
        %v6112 = vpop.f32.mrf.mxu0
        %6113 = vmatprep.mubr.f32.mxu0 %v5715
        %6114 = vmatmul.mubr.f32.gmra.mxu0 %v5714
        %v6115 = vpop.f32.mrf.mxu0
        %v6116 = vadd.f32 %v5871, %v6115
        %v6117 = vpop.f32.mrf.mxu0
        %6118 = vmatprep.mubr.f32.mxu0 %v5720
        %6119 = vmatmul.mubr.f32.gmra.mxu0 %v5719
        %v6120 = vpop.f32.mrf.mxu0
        %v6121 = vadd.f32 %v5871, %v6120
        %v6122 = vpop.f32.mrf.mxu0
        %6123 = vmatprep.mubr.f32.mxu0 %v5725
        %6124 = vmatmul.mubr.f32.gmra.mxu0 %v5724
        %v6125 = vpop.f32.mrf.mxu0
        %v6126 = vadd.f32 %v5871, %v6125
        %v6127 = vpop.f32.mrf.mxu0
        %6128 = vmatprep.mubr.f32.mxu0 %v5730
        %6129 = vmatmul.mubr.f32.gmra.mxu0 %v5729
        %v6130 = vpop.f32.mrf.mxu0
        %v6131 = vadd.f32 %v5871, %v6130
        %v6132 = vpop.f32.mrf.mxu0
        %6133 = vmatprep.mubr.f32.mxu0 %v5735
        %6134 = vmatmul.mubr.f32.gmra.mxu0 %v5734
        %v6135 = vpop.f32.mrf.mxu0
        %v6136 = vadd.f32 %v5871, %v6135
        %v6137 = vpop.f32.mrf.mxu0
        %6138 = vmatprep.mubr.f32.mxu0 %v5740
        %6139 = vmatmul.mubr.f32.gmra.mxu0 %v5739
        %v6140 = vpop.f32.mrf.mxu0
        %v6141 = vadd.f32 %v5871, %v6140
        %v6142 = vpop.f32.mrf.mxu0
        %6143 = vmatprep.mubr.f32.mxu0 %v5745
        %6144 = vmatmul.mubr.f32.gmra.mxu0 %v5744
        %v6145 = vpop.f32.mrf.mxu0
        %v6146 = vadd.f32 %v5871, %v6145
        %v6147 = vpop.f32.mrf.mxu0
        %6148 = vmatprep.mubr.f32.mxu0 %v5750
        %6149 = vmatmul.mubr.f32.gmra.mxu0 %v5749
        %v6150 = vpop.f32.mrf.mxu0
        %v6151 = vadd.f32 %v5871, %v6150
        %v6152 = vpop.f32.mrf.mxu0
        %6153 = vmatprep.mubr.f32.mxu0 %v5755
        %6154 = vmatmul.mubr.f32.gmra.mxu0 %v5754
        %v6155 = vpop.f32.mrf.mxu0
        %v6156 = vadd.f32 %v5871, %v6155
        %v6157 = vpop.f32.mrf.mxu0
        %6158 = vmatprep.mubr.f32.mxu0 %v5760
        %6159 = vmatmul.mubr.f32.gmra.mxu0 %v5759
        %v6160 = vpop.f32.mrf.mxu0
        %v6161 = vadd.f32 %v5871, %v6160
        %v6162 = vpop.f32.mrf.mxu0
        %6163 = vmatprep.mubr.f32.mxu0 %v5765
        %6164 = vmatmul.mubr.f32.gmra.mxu0 %v5764
        %v6165 = vpop.f32.mrf.mxu0
        %v6166 = vadd.f32 %v5871, %v6165
        %v6167 = vpop.f32.mrf.mxu0
        %6168 = vmatprep.mubr.f32.mxu0 %v5770
        %6169 = vmatmul.mubr.f32.gmra.mxu0 %v5769
        %v6170 = vpop.f32.mrf.mxu0
        %v6171 = vadd.f32 %v5871, %v6170
        %v6172 = vpop.f32.mrf.mxu0
        %6173 = vmatprep.mubr.f32.mxu0 %v5775
        %6174 = vmatmul.mubr.f32.gmra.mxu0 %v5774
        %v6175 = vpop.f32.mrf.mxu0
        %v6176 = vadd.f32 %v5871, %v6175
        %v6177 = vpop.f32.mrf.mxu0
        %6178 = vmatprep.mubr.f32.mxu0 %v5780
        %6179 = vmatmul.mubr.f32.gmra.mxu0 %v5779
        %v6180 = vpop.f32.mrf.mxu0
        %v6181 = vadd.f32 %v5871, %v6180
        %v6182 = vpop.f32.mrf.mxu0
        %6183 = vmatprep.mubr.f32.mxu0 %v5785
        %6184 = vmatmul.mubr.f32.gmra.mxu0 %v5784
        %v6185 = vpop.f32.mrf.mxu0
        %v6186 = vadd.f32 %v5871, %v6185
        %v6187 = vpop.f32.mrf.mxu0
        %6188 = vmatprep.mubr.f32.mxu0 %v5790
        %6189 = vmatmul.mubr.f32.gmra.mxu0 %v5789
        %v6190 = vpop.f32.mrf.mxu0
        %v6191 = vadd.f32 %v5871, %v6190
        %v6192 = vpop.f32.mrf.mxu0
        %6193 = vdwg.mxu0
        %6194 = vmatprep.subr.mxu0 0.0
        %6195 = vmatpush1.msra.mxu0 %v5841
        %6196 = vmatprep.subr.mxu0 0.0
        %6197 = vmatpush1.msra.mxu0 %v5840
        %6198 = vmatprep.subr.mxu0 0.0
        %6199 = vmatpush1.msra.mxu0 %v5839
        %6200 = vmatprep.subr.mxu0 0.0
        %6201 = vmatpush1.msra.mxu0 %v5838
        %6202 = vmatprep.subr.mxu0 0.0
        %6203 = vmatpush1.msra.mxu0 %v5837
        %6204 = vmatprep.subr.mxu0 0.0
        %6205 = vmatpush1.msra.mxu0 %v5836
        %6206 = vmatprep.subr.mxu0 0.0
        %6207 = vmatpush1.msra.mxu0 %v5835
        %6208 = vmatprep.subr.mxu0 0.0
        %6209 = vmatpush1.msra.mxu0 %v5834
        %6210 = vmatprep.subr.mxu0 0.0
        %6211 = vmatpush1.msra.mxu0 %v5833
        %6212 = vmatprep.subr.mxu0 0.0
        %6213 = vmatpush1.msra.mxu0 %v5832
        %6214 = vmatprep.subr.mxu0 0.0
        %6215 = vmatpush1.msra.mxu0 %v5831
        %6216 = vmatprep.subr.mxu0 0.0
        %6217 = vmatpush1.msra.mxu0 %v5830
        %6218 = vmatprep.subr.mxu0 0.0
        %6219 = vmatpush1.msra.mxu0 %v5829
        %6220 = vmatprep.subr.mxu0 0.0
        %6221 = vmatpush1.msra.mxu0 %v5828
        %6222 = vmatprep.subr.mxu0 0.0
        %6223 = vmatpush1.msra.mxu0 %v5827
        %6224 = vmatprep.subr.mxu0 0.0
        %6225 = vmatpush1.msra.mxu0 %v5826
        %6226 = vmatprep.subr.mxu0 0.0
        %6227 = vmatpush2.msra.mxu0 %v5857
        %6228 = vmatprep.subr.mxu0 0.0
        %6229 = vmatpush2.msra.mxu0 %v5856
        %6230 = vmatprep.subr.mxu0 0.0
        %6231 = vmatpush2.msra.mxu0 %v5855
        %6232 = vmatprep.subr.mxu0 0.0
        %6233 = vmatpush2.msra.mxu0 %v5854
        %6234 = vmatprep.subr.mxu0 0.0
        %6235 = vmatpush2.msra.mxu0 %v5853
        %6236 = vmatprep.subr.mxu0 0.0
        %6237 = vmatpush2.msra.mxu0 %v5852
        %6238 = vmatprep.subr.mxu0 0.0
        %6239 = vmatpush2.msra.mxu0 %v5851
        %6240 = vmatprep.subr.mxu0 0.0
        %6241 = vmatpush2.msra.mxu0 %v5850
        %6242 = vmatprep.subr.mxu0 0.0
        %6243 = vmatpush2.msra.mxu0 %v5849
        %6244 = vmatprep.subr.mxu0 0.0
        %6245 = vmatpush2.msra.mxu0 %v5848
        %6246 = vmatprep.subr.mxu0 0.0
        %6247 = vmatpush2.msra.mxu0 %v5847
        %6248 = vmatprep.subr.mxu0 0.0
        %6249 = vmatpush2.msra.mxu0 %v5846
        %6250 = vmatprep.subr.mxu0 0.0
        %6251 = vmatpush2.msra.mxu0 %v5845
        %6252 = vmatprep.subr.mxu0 0.0
        %6253 = vmatpush2.msra.mxu0 %v5844
        %6254 = vmatprep.subr.mxu0 0.0
        %6255 = vmatpush2.msra.mxu0 %v5843
        %6256 = vmatprep.subr.mxu0 0.0
        %6257 = vmatpush2.msra.mxu0 %v5842
        %6258 = vmatprep.mubr.f32.mxu0 %v5637
        %6259 = vmatmul.mubr.f32.gmra.mxu0 %v5636
        %v6260 = vpop.f32.mrf.mxu0
        %v6261 = vadd.f32 %v6036, %v6260
        %v6262 = vpop.f32.mrf.mxu0
        %6263 = vmatprep.mubr.f32.mxu0 %v5642
        %6264 = vmatmul.mubr.f32.gmra.mxu0 %v5641
        %v6265 = vpop.f32.mrf.mxu0
        %v6266 = vadd.f32 %v6041, %v6265
        %v6267 = vpop.f32.mrf.mxu0
        %6268 = vmatprep.mubr.f32.mxu0 %v5647
        %6269 = vmatmul.mubr.f32.gmra.mxu0 %v5646
        %v6270 = vpop.f32.mrf.mxu0
        %v6271 = vadd.f32 %v6046, %v6270
        %v6272 = vpop.f32.mrf.mxu0
        %6273 = vmatprep.mubr.f32.mxu0 %v5652
        %6274 = vmatmul.mubr.f32.gmra.mxu0 %v5651
        %v6275 = vpop.f32.mrf.mxu0
        %v6276 = vadd.f32 %v6051, %v6275
        %v6277 = vpop.f32.mrf.mxu0
        %6278 = vmatprep.mubr.f32.mxu0 %v5657
        %6279 = vmatmul.mubr.f32.gmra.mxu0 %v5656
        %v6280 = vpop.f32.mrf.mxu0
        %v6281 = vadd.f32 %v6056, %v6280
        %v6282 = vpop.f32.mrf.mxu0
        %6283 = vmatprep.mubr.f32.mxu0 %v5662
        %6284 = vmatmul.mubr.f32.gmra.mxu0 %v5661
        %v6285 = vpop.f32.mrf.mxu0
        %v6286 = vadd.f32 %v6061, %v6285
        %v6287 = vpop.f32.mrf.mxu0
        %6288 = vmatprep.mubr.f32.mxu0 %v5667
        %6289 = vmatmul.mubr.f32.gmra.mxu0 %v5666
        %v6290 = vpop.f32.mrf.mxu0
        %v6291 = vadd.f32 %v6066, %v6290
        %v6292 = vpop.f32.mrf.mxu0
        %6293 = vmatprep.mubr.f32.mxu0 %v5672
        %6294 = vmatmul.mubr.f32.gmra.mxu0 %v5671
        %v6295 = vpop.f32.mrf.mxu0
        %v6296 = vadd.f32 %v6071, %v6295
        %v6297 = vpop.f32.mrf.mxu0
        %6298 = vmatprep.mubr.f32.mxu0 %v5677
        %6299 = vmatmul.mubr.f32.gmra.mxu0 %v5676
        %v6300 = vpop.f32.mrf.mxu0
        %v6301 = vadd.f32 %v6076, %v6300
        %v6302 = vpop.f32.mrf.mxu0
        %6303 = vmatprep.mubr.f32.mxu0 %v5682
        %6304 = vmatmul.mubr.f32.gmra.mxu0 %v5681
        %v6305 = vpop.f32.mrf.mxu0
        %v6306 = vadd.f32 %v6081, %v6305
        %v6307 = vpop.f32.mrf.mxu0
        %6308 = vmatprep.mubr.f32.mxu0 %v5687
        %6309 = vmatmul.mubr.f32.gmra.mxu0 %v5686
        %v6310 = vpop.f32.mrf.mxu0
        %v6311 = vadd.f32 %v6086, %v6310
        %v6312 = vpop.f32.mrf.mxu0
        %6313 = vmatprep.mubr.f32.mxu0 %v5692
        %6314 = vmatmul.mubr.f32.gmra.mxu0 %v5691
        %v6315 = vpop.f32.mrf.mxu0
        %v6316 = vadd.f32 %v6091, %v6315
        %v6317 = vpop.f32.mrf.mxu0
        %6318 = vmatprep.mubr.f32.mxu0 %v5697
        %6319 = vmatmul.mubr.f32.gmra.mxu0 %v5696
        %v6320 = vpop.f32.mrf.mxu0
        %v6321 = vadd.f32 %v6096, %v6320
        %v6322 = vpop.f32.mrf.mxu0
        %6323 = vmatprep.mubr.f32.mxu0 %v5702
        %6324 = vmatmul.mubr.f32.gmra.mxu0 %v5701
        %v6325 = vpop.f32.mrf.mxu0
        %v6326 = vadd.f32 %v6101, %v6325
        %v6327 = vpop.f32.mrf.mxu0
        %6328 = vmatprep.mubr.f32.mxu0 %v5707
        %6329 = vmatmul.mubr.f32.gmra.mxu0 %v5706
        %v6330 = vpop.f32.mrf.mxu0
        %v6331 = vadd.f32 %v6106, %v6330
        %v6332 = vpop.f32.mrf.mxu0
        %6333 = vmatprep.mubr.f32.mxu0 %v5712
        %6334 = vmatmul.mubr.f32.gmra.mxu0 %v5711
        %v6335 = vpop.f32.mrf.mxu0
        %v6336 = vadd.f32 %v6111, %v6335
        %v6337 = vpop.f32.mrf.mxu0
        %6338 = vmatprep.mubr.f32.mxu0 %v5717
        %6339 = vmatmul.mubr.f32.gmra.mxu0 %v5716
        %v6340 = vpop.f32.mrf.mxu0
        %v6341 = vadd.f32 %v6116, %v6340
        %v6342 = vpop.f32.mrf.mxu0
        %6343 = vmatprep.mubr.f32.mxu0 %v5722
        %6344 = vmatmul.mubr.f32.gmra.mxu0 %v5721
        %v6345 = vpop.f32.mrf.mxu0
        %v6346 = vadd.f32 %v6121, %v6345
        %v6347 = vpop.f32.mrf.mxu0
        %6348 = vmatprep.mubr.f32.mxu0 %v5727
        %6349 = vmatmul.mubr.f32.gmra.mxu0 %v5726
        %v6350 = vpop.f32.mrf.mxu0
        %v6351 = vadd.f32 %v6126, %v6350
        %v6352 = vpop.f32.mrf.mxu0
        %6353 = vmatprep.mubr.f32.mxu0 %v5732
        %6354 = vmatmul.mubr.f32.gmra.mxu0 %v5731
        %v6355 = vpop.f32.mrf.mxu0
        %v6356 = vadd.f32 %v6131, %v6355
        %v6357 = vpop.f32.mrf.mxu0
        %6358 = vmatprep.mubr.f32.mxu0 %v5737
        %6359 = vmatmul.mubr.f32.gmra.mxu0 %v5736
        %v6360 = vpop.f32.mrf.mxu0
        %v6361 = vadd.f32 %v6136, %v6360
        %v6362 = vpop.f32.mrf.mxu0
        %6363 = vmatprep.mubr.f32.mxu0 %v5742
        %6364 = vmatmul.mubr.f32.gmra.mxu0 %v5741
        %v6365 = vpop.f32.mrf.mxu0
        %v6366 = vadd.f32 %v6141, %v6365
        %v6367 = vpop.f32.mrf.mxu0
        %6368 = vmatprep.mubr.f32.mxu0 %v5747
        %6369 = vmatmul.mubr.f32.gmra.mxu0 %v5746
        %v6370 = vpop.f32.mrf.mxu0
        %v6371 = vadd.f32 %v6146, %v6370
        %v6372 = vpop.f32.mrf.mxu0
        %6373 = vmatprep.mubr.f32.mxu0 %v5752
        %6374 = vmatmul.mubr.f32.gmra.mxu0 %v5751
        %v6375 = vpop.f32.mrf.mxu0
        %v6376 = vadd.f32 %v6151, %v6375
        %v6377 = vpop.f32.mrf.mxu0
        %6378 = vmatprep.mubr.f32.mxu0 %v5757
        %6379 = vmatmul.mubr.f32.gmra.mxu0 %v5756
        %v6380 = vpop.f32.mrf.mxu0
        %v6381 = vadd.f32 %v6156, %v6380
        %v6382 = vpop.f32.mrf.mxu0
        %6383 = vmatprep.mubr.f32.mxu0 %v5762
        %6384 = vmatmul.mubr.f32.gmra.mxu0 %v5761
        %v6385 = vpop.f32.mrf.mxu0
        %v6386 = vadd.f32 %v6161, %v6385
        %v6387 = vpop.f32.mrf.mxu0
        %6388 = vmatprep.mubr.f32.mxu0 %v5767
        %6389 = vmatmul.mubr.f32.gmra.mxu0 %v5766
        %v6390 = vpop.f32.mrf.mxu0
        %v6391 = vadd.f32 %v6166, %v6390
        %v6392 = vpop.f32.mrf.mxu0
        %6393 = vmatprep.mubr.f32.mxu0 %v5772
        %6394 = vmatmul.mubr.f32.gmra.mxu0 %v5771
        %v6395 = vpop.f32.mrf.mxu0
        %v6396 = vadd.f32 %v6171, %v6395
        %v6397 = vpop.f32.mrf.mxu0
        %6398 = vmatprep.mubr.f32.mxu0 %v5777
        %6399 = vmatmul.mubr.f32.gmra.mxu0 %v5776
        %v6400 = vpop.f32.mrf.mxu0
        %v6401 = vadd.f32 %v6176, %v6400
        %v6402 = vpop.f32.mrf.mxu0
        %6403 = vmatprep.mubr.f32.mxu0 %v5782
        %6404 = vmatmul.mubr.f32.gmra.mxu0 %v5781
        %v6405 = vpop.f32.mrf.mxu0
        %v6406 = vadd.f32 %v6181, %v6405
        %v6407 = vpop.f32.mrf.mxu0
        %6408 = vmatprep.mubr.f32.mxu0 %v5787
        %6409 = vmatmul.mubr.f32.gmra.mxu0 %v5786
        %v6410 = vpop.f32.mrf.mxu0
        %v6411 = vadd.f32 %v6186, %v6410
        %v6412 = vpop.f32.mrf.mxu0
        %6413 = vmatprep.mubr.f32.mxu0 %v5792
        %6414 = vmatmul.mubr.f32.gmra.mxu0 %v5791
        %v6415 = vpop.f32.mrf.mxu0
        %v6416 = vadd.f32 %v6191, %v6415
        %v6417 = vpop.f32.mrf.mxu0
        %6418 = vdwg.mxu0
        %6419 = vmatprep.subr.mxu0 0.0
        %6420 = vmatpush1.msra.mxu0 0.0
        %6421 = vmatprep.subr.mxu0 0.0
        %6422 = vmatpush1.msra.mxu0 0.0
        %6423 = vmatprep.subr.mxu0 0.0
        %6424 = vmatpush1.msra.mxu0 0.0
        %6425 = vmatprep.subr.mxu0 0.0
        %6426 = vmatpush1.msra.mxu0 0.0
        %6427 = vmatprep.subr.mxu0 0.0
        %6428 = vmatpush1.msra.mxu0 0.0
        %6429 = vmatprep.subr.mxu0 0.0
        %6430 = vmatpush1.msra.mxu0 0.0
        %6431 = vmatprep.subr.mxu0 0.0
        %6432 = vmatpush1.msra.mxu0 0.0
        %6433 = vmatprep.subr.mxu0 0.0
        %6434 = vmatpush1.msra.mxu0 0.0
        %6435 = vmatprep.subr.mxu0 0.0
        %6436 = vmatpush1.msra.mxu0 %v5865
        %6437 = vmatprep.subr.mxu0 0.0
        %6438 = vmatpush1.msra.mxu0 %v5864
        %6439 = vmatprep.subr.mxu0 0.0
        %6440 = vmatpush1.msra.mxu0 %v5863
        %6441 = vmatprep.subr.mxu0 0.0
        %6442 = vmatpush1.msra.mxu0 %v5862
        %6443 = vmatprep.subr.mxu0 0.0
        %6444 = vmatpush1.msra.mxu0 %v5861
        %6445 = vmatprep.subr.mxu0 0.0
        %6446 = vmatpush1.msra.mxu0 %v5860
        %6447 = vmatprep.subr.mxu0 0.0
        %6448 = vmatpush1.msra.mxu0 %v5859
        %6449 = vmatprep.subr.mxu0 0.0
        %6450 = vmatpush1.msra.mxu0 %v5858
        %6451 = vmatprep.subr.mxu0 0.0
        %6452 = vmatpush2.msra.mxu0 0.0
        %6453 = vmatprep.subr.mxu0 0.0
        %6454 = vmatpush2.msra.mxu0 0.0
        %6455 = vmatprep.subr.mxu0 0.0
        %6456 = vmatpush2.msra.mxu0 0.0
        %6457 = vmatprep.subr.mxu0 0.0
        %6458 = vmatpush2.msra.mxu0 0.0
        %6459 = vmatprep.subr.mxu0 0.0
        %6460 = vmatpush2.msra.mxu0 0.0
        %6461 = vmatprep.subr.mxu0 0.0
        %6462 = vmatpush2.msra.mxu0 0.0
        %6463 = vmatprep.subr.mxu0 0.0
        %6464 = vmatpush2.msra.mxu0 0.0
        %6465 = vmatprep.subr.mxu0 0.0
        %6466 = vmatpush2.msra.mxu0 0.0
        %6467 = vmatprep.subr.mxu0 0.0
        %6468 = vmatpush2.msra.mxu0 0.0
        %6469 = vmatprep.subr.mxu0 0.0
        %6470 = vmatpush2.msra.mxu0 0.0
        %6471 = vmatprep.subr.mxu0 0.0
        %6472 = vmatpush2.msra.mxu0 0.0
        %6473 = vmatprep.subr.mxu0 0.0
        %6474 = vmatpush2.msra.mxu0 0.0
        %6475 = vmatprep.subr.mxu0 0.0
        %6476 = vmatpush2.msra.mxu0 0.0
        %6477 = vmatprep.subr.mxu0 0.0
        %6478 = vmatpush2.msra.mxu0 0.0
        %6479 = vmatprep.subr.mxu0 0.0
        %6480 = vmatpush2.msra.mxu0 0.0
        %6481 = vmatprep.subr.mxu0 0.0
        %6482 = vmatpush2.msra.mxu0 0.0
        %6483 = vmatprep.mubr.f32.mxu0 0.0
        %6484 = vmatmul.mubr.f32.gmra.mxu0 %v5874
        %v6485 = vpop.f32.mrf.mxu0
        %v6486 = vadd.f32 %v6261, %v6485
        %v6487 = vpop.f32.mrf.mxu0
        %6488 = vmatprep.mubr.f32.mxu0 0.0
        %6489 = vmatmul.mubr.f32.gmra.mxu0 %v5877
        %v6490 = vpop.f32.mrf.mxu0
        %v6491 = vadd.f32 %v6266, %v6490
        %v6492 = vpop.f32.mrf.mxu0
        %6493 = vmatprep.mubr.f32.mxu0 0.0
        %6494 = vmatmul.mubr.f32.gmra.mxu0 %v5880
        %v6495 = vpop.f32.mrf.mxu0
        %v6496 = vadd.f32 %v6271, %v6495
        %v6497 = vpop.f32.mrf.mxu0
        %6498 = vmatprep.mubr.f32.mxu0 0.0
        %6499 = vmatmul.mubr.f32.gmra.mxu0 %v5883
        %v6500 = vpop.f32.mrf.mxu0
        %v6501 = vadd.f32 %v6276, %v6500
        %v6502 = vpop.f32.mrf.mxu0
        %6503 = vmatprep.mubr.f32.mxu0 0.0
        %6504 = vmatmul.mubr.f32.gmra.mxu0 %v5886
        %v6505 = vpop.f32.mrf.mxu0
        %v6506 = vadd.f32 %v6281, %v6505
        %v6507 = vpop.f32.mrf.mxu0
        %6508 = vmatprep.mubr.f32.mxu0 0.0
        %6509 = vmatmul.mubr.f32.gmra.mxu0 %v5889
        %v6510 = vpop.f32.mrf.mxu0
        %v6511 = vadd.f32 %v6286, %v6510
        %v6512 = vpop.f32.mrf.mxu0
        %6513 = vmatprep.mubr.f32.mxu0 0.0
        %6514 = vmatmul.mubr.f32.gmra.mxu0 %v5892
        %v6515 = vpop.f32.mrf.mxu0
        %v6516 = vadd.f32 %v6291, %v6515
        %v6517 = vpop.f32.mrf.mxu0
        %6518 = vmatprep.mubr.f32.mxu0 0.0
        %6519 = vmatmul.mubr.f32.gmra.mxu0 %v5895
        %v6520 = vpop.f32.mrf.mxu0
        %v6521 = vadd.f32 %v6296, %v6520
        %v6522 = vpop.f32.mrf.mxu0
        %6523 = vmatprep.mubr.f32.mxu0 0.0
        %6524 = vmatmul.mubr.f32.gmra.mxu0 %v5898
        %v6525 = vpop.f32.mrf.mxu0
        %v6526 = vadd.f32 %v6301, %v6525
        %v6527 = vpop.f32.mrf.mxu0
        %6528 = vmatprep.mubr.f32.mxu0 0.0
        %6529 = vmatmul.mubr.f32.gmra.mxu0 %v5901
        %v6530 = vpop.f32.mrf.mxu0
        %v6531 = vadd.f32 %v6306, %v6530
        %v6532 = vpop.f32.mrf.mxu0
        %6533 = vmatprep.mubr.f32.mxu0 0.0
        %6534 = vmatmul.mubr.f32.gmra.mxu0 %v5904
        %v6535 = vpop.f32.mrf.mxu0
        %v6536 = vadd.f32 %v6311, %v6535
        %v6537 = vpop.f32.mrf.mxu0
        %6538 = vmatprep.mubr.f32.mxu0 0.0
        %6539 = vmatmul.mubr.f32.gmra.mxu0 %v5907
        %v6540 = vpop.f32.mrf.mxu0
        %v6541 = vadd.f32 %v6316, %v6540
        %v6542 = vpop.f32.mrf.mxu0
        %6543 = vmatprep.mubr.f32.mxu0 0.0
        %6544 = vmatmul.mubr.f32.gmra.mxu0 %v5910
        %v6545 = vpop.f32.mrf.mxu0
        %v6546 = vadd.f32 %v6321, %v6545
        %v6547 = vpop.f32.mrf.mxu0
        %6548 = vmatprep.mubr.f32.mxu0 0.0
        %6549 = vmatmul.mubr.f32.gmra.mxu0 %v5913
        %v6550 = vpop.f32.mrf.mxu0
        %v6551 = vadd.f32 %v6326, %v6550
        %v6552 = vpop.f32.mrf.mxu0
        %6553 = vmatprep.mubr.f32.mxu0 0.0
        %6554 = vmatmul.mubr.f32.gmra.mxu0 %v5916
        %v6555 = vpop.f32.mrf.mxu0
        %v6556 = vadd.f32 %v6331, %v6555
        %v6557 = vpop.f32.mrf.mxu0
        %6558 = vmatprep.mubr.f32.mxu0 0.0
        %6559 = vmatmul.mubr.f32.gmra.mxu0 %v5919
        %v6560 = vpop.f32.mrf.mxu0
        %v6561 = vadd.f32 %v6336, %v6560
        %v6562 = vpop.f32.mrf.mxu0
        %6563 = vmatprep.mubr.f32.mxu0 0.0
        %6564 = vmatmul.mubr.f32.gmra.mxu0 %v5922
        %v6565 = vpop.f32.mrf.mxu0
        %v6566 = vadd.f32 %v6341, %v6565
        %v6567 = vpop.f32.mrf.mxu0
        %6568 = vmatprep.mubr.f32.mxu0 0.0
        %6569 = vmatmul.mubr.f32.gmra.mxu0 %v5925
        %v6570 = vpop.f32.mrf.mxu0
        %v6571 = vadd.f32 %v6346, %v6570
        %v6572 = vpop.f32.mrf.mxu0
        %6573 = vmatprep.mubr.f32.mxu0 0.0
        %6574 = vmatmul.mubr.f32.gmra.mxu0 %v5928
        %v6575 = vpop.f32.mrf.mxu0
        %v6576 = vadd.f32 %v6351, %v6575
        %v6577 = vpop.f32.mrf.mxu0
        %6578 = vmatprep.mubr.f32.mxu0 0.0
        %6579 = vmatmul.mubr.f32.gmra.mxu0 %v5931
        %v6580 = vpop.f32.mrf.mxu0
        %v6581 = vadd.f32 %v6356, %v6580
        %v6582 = vpop.f32.mrf.mxu0
        %6583 = vmatprep.mubr.f32.mxu0 0.0
        %6584 = vmatmul.mubr.f32.gmra.mxu0 %v5934
        %v6585 = vpop.f32.mrf.mxu0
        %v6586 = vadd.f32 %v6361, %v6585
        %v6587 = vpop.f32.mrf.mxu0
        %6588 = vmatprep.mubr.f32.mxu0 0.0
        %6589 = vmatmul.mubr.f32.gmra.mxu0 %v5937
        %v6590 = vpop.f32.mrf.mxu0
        %v6591 = vadd.f32 %v6366, %v6590
        %v6592 = vpop.f32.mrf.mxu0
        %6593 = vmatprep.mubr.f32.mxu0 0.0
        %6594 = vmatmul.mubr.f32.gmra.mxu0 %v5940
        %v6595 = vpop.f32.mrf.mxu0
        %v6596 = vadd.f32 %v6371, %v6595
        %v6597 = vpop.f32.mrf.mxu0
        %6598 = vmatprep.mubr.f32.mxu0 0.0
        %6599 = vmatmul.mubr.f32.gmra.mxu0 %v5943
        %v6600 = vpop.f32.mrf.mxu0
        %v6601 = vadd.f32 %v6376, %v6600
        %v6602 = vpop.f32.mrf.mxu0
        %6603 = vmatprep.mubr.f32.mxu0 0.0
        %6604 = vmatmul.mubr.f32.gmra.mxu0 %v5946
        %v6605 = vpop.f32.mrf.mxu0
        %v6606 = vadd.f32 %v6381, %v6605
        %v6607 = vpop.f32.mrf.mxu0
        %6608 = vmatprep.mubr.f32.mxu0 0.0
        %6609 = vmatmul.mubr.f32.gmra.mxu0 %v5949
        %v6610 = vpop.f32.mrf.mxu0
        %v6611 = vadd.f32 %v6386, %v6610
        %v6612 = vpop.f32.mrf.mxu0
        %6613 = vmatprep.mubr.f32.mxu0 0.0
        %6614 = vmatmul.mubr.f32.gmra.mxu0 %v5952
        %v6615 = vpop.f32.mrf.mxu0
        %v6616 = vadd.f32 %v6391, %v6615
        %v6617 = vpop.f32.mrf.mxu0
        %6618 = vmatprep.mubr.f32.mxu0 0.0
        %6619 = vmatmul.mubr.f32.gmra.mxu0 %v5955
        %v6620 = vpop.f32.mrf.mxu0
        %v6621 = vadd.f32 %v6396, %v6620
        %v6622 = vpop.f32.mrf.mxu0
        %6623 = vmatprep.mubr.f32.mxu0 0.0
        %6624 = vmatmul.mubr.f32.gmra.mxu0 %v5958
        %v6625 = vpop.f32.mrf.mxu0
        %v6626 = vadd.f32 %v6401, %v6625
        %v6627 = vpop.f32.mrf.mxu0
        %6628 = vmatprep.mubr.f32.mxu0 0.0
        %6629 = vmatmul.mubr.f32.gmra.mxu0 %v5961
        %v6630 = vpop.f32.mrf.mxu0
        %v6631 = vadd.f32 %v6406, %v6630
        %v6632 = vpop.f32.mrf.mxu0
        %6633 = vmatprep.mubr.f32.mxu0 0.0
        %6634 = vmatmul.mubr.f32.gmra.mxu0 %v5964
        %v6635 = vpop.f32.mrf.mxu0
        %v6636 = vadd.f32 %v6411, %v6635
        %v6637 = vpop.f32.mrf.mxu0
        %6638 = vmatprep.mubr.f32.mxu0 0.0
        %6639 = vmatmul.mubr.f32.gmra.mxu0 %v5967
        %v6640 = vpop.f32.mrf.mxu0
        %v6641 = vadd.f32 %v6416, %v6640
        %v6642 = vpop.f32.mrf.mxu0
        %6643 = vdwg.mxu0
        %vm6644 = vcmp.ge.f32.partialorder %v6486, 0.0
        %vm6645 = vcmp.ge.f32.partialorder %v6491, 0.0
        %vm6646 = vcmp.ge.f32.partialorder %v6496, 0.0
        %vm6647 = vcmp.ge.f32.partialorder %v6501, 0.0
        %vm6648 = vcmp.ge.f32.partialorder %v6506, 0.0
        %vm6649 = vcmp.ge.f32.partialorder %v6511, 0.0
        %vm6650 = vcmp.ge.f32.partialorder %v6516, 0.0
        %vm6651 = vcmp.ge.f32.partialorder %v6521, 0.0
        %vm6652 = vcmp.ge.f32.partialorder %v6526, 0.0
        %vm6653 = vcmp.ge.f32.partialorder %v6531, 0.0
        %vm6654 = vcmp.ge.f32.partialorder %v6536, 0.0
        %vm6655 = vcmp.ge.f32.partialorder %v6541, 0.0
        %vm6656 = vcmp.ge.f32.partialorder %v6546, 0.0
        %vm6657 = vcmp.ge.f32.partialorder %v6551, 0.0
        %vm6658 = vcmp.ge.f32.partialorder %v6556, 0.0
        %vm6659 = vcmp.ge.f32.partialorder %v6561, 0.0
        %vm6660 = vcmp.ge.f32.partialorder %v6566, 0.0
        %vm6661 = vcmp.ge.f32.partialorder %v6571, 0.0
        %vm6662 = vcmp.ge.f32.partialorder %v6576, 0.0
        %vm6663 = vcmp.ge.f32.partialorder %v6581, 0.0
        %vm6664 = vcmp.ge.f32.partialorder %v6586, 0.0
        %vm6665 = vcmp.ge.f32.partialorder %v6591, 0.0
        %vm6666 = vcmp.ge.f32.partialorder %v6596, 0.0
        %vm6667 = vcmp.ge.f32.partialorder %v6601, 0.0
        %vm6668 = vcmp.ge.f32.partialorder %v6606, 0.0
        %vm6669 = vcmp.ge.f32.partialorder %v6611, 0.0
        %vm6670 = vcmp.ge.f32.partialorder %v6616, 0.0
        %vm6671 = vcmp.ge.f32.partialorder %v6621, 0.0
        %vm6672 = vcmp.ge.f32.partialorder %v6626, 0.0
        %vm6673 = vcmp.ge.f32.partialorder %v6631, 0.0
        %vm6674 = vcmp.ge.f32.partialorder %v6636, 0.0
        %vm6675 = vcmp.ge.f32.partialorder %v6641, 0.0
        %v6676 = vmul.f32 %v2451, %v6486
        %v6677 = vmul.f32 %v2451, %v6491
        %v6678 = vmul.f32 %v2451, %v6496
        %v6679 = vmul.f32 %v2451, %v6501
        %v6680 = vmul.f32 %v2451, %v6506
        %v6681 = vmul.f32 %v2451, %v6511
        %v6682 = vmul.f32 %v2451, %v6516
        %v6683 = vmul.f32 %v2451, %v6521
        %v6684 = vmul.f32 %v2451, %v6526
        %v6685 = vmul.f32 %v2451, %v6531
        %v6686 = vmul.f32 %v2451, %v6536
        %v6687 = vmul.f32 %v2451, %v6541
        %v6688 = vmul.f32 %v2451, %v6546
        %v6689 = vmul.f32 %v2451, %v6551
        %v6690 = vmul.f32 %v2451, %v6556
        %v6691 = vmul.f32 %v2451, %v6561
        %v6692 = vmul.f32 %v2451, %v6566
        %v6693 = vmul.f32 %v2451, %v6571
        %v6694 = vmul.f32 %v2451, %v6576
        %v6695 = vmul.f32 %v2451, %v6581
        %v6696 = vmul.f32 %v2451, %v6586
        %v6697 = vmul.f32 %v2451, %v6591
        %v6698 = vmul.f32 %v2451, %v6596
        %v6699 = vmul.f32 %v2451, %v6601
        %v6700 = vmul.f32 %v2451, %v6606
        %v6701 = vmul.f32 %v2451, %v6611
        %v6702 = vmul.f32 %v2451, %v6616
        %v6703 = vmul.f32 %v2451, %v6621
        %v6704 = vmul.f32 %v2451, %v6626
        %v6705 = vmul.f32 %v2451, %v6631
        %v6706 = vmul.f32 %v2451, %v6636
        %v6707 = vmul.f32 %v2451, %v6641
        %v6708 = vsel %vm6644, %v6486, %v6676
        %v6709 = vsel %vm6645, %v6491, %v6677
        %v6710 = vsel %vm6646, %v6496, %v6678
        %v6711 = vsel %vm6647, %v6501, %v6679
        %v6712 = vsel %vm6648, %v6506, %v6680
        %v6713 = vsel %vm6649, %v6511, %v6681
        %v6714 = vsel %vm6650, %v6516, %v6682
        %v6715 = vsel %vm6651, %v6521, %v6683
        %v6716 = vsel %vm6652, %v6526, %v6684
        %v6717 = vsel %vm6653, %v6531, %v6685
        %v6718 = vsel %vm6654, %v6536, %v6686
        %v6719 = vsel %vm6655, %v6541, %v6687
        %v6720 = vsel %vm6656, %v6546, %v6688
        %v6721 = vsel %vm6657, %v6551, %v6689
        %v6722 = vsel %vm6658, %v6556, %v6690
        %v6723 = vsel %vm6659, %v6561, %v6691
        %v6724 = vsel %vm6660, %v6566, %v6692
        %v6725 = vsel %vm6661, %v6571, %v6693
        %v6726 = vsel %vm6662, %v6576, %v6694
        %v6727 = vsel %vm6663, %v6581, %v6695
        %v6728 = vsel %vm6664, %v6586, %v6696
        %v6729 = vsel %vm6665, %v6591, %v6697
        %v6730 = vsel %vm6666, %v6596, %v6698
        %v6731 = vsel %vm6667, %v6601, %v6699
        %v6732 = vsel %vm6668, %v6606, %v6700
        %v6733 = vsel %vm6669, %v6611, %v6701
        %v6734 = vsel %vm6670, %v6616, %v6702
        %v6735 = vsel %vm6671, %v6621, %v6703
        %v6736 = vsel %vm6672, %v6626, %v6704
        %v6737 = vsel %vm6673, %v6631, %v6705
        %v6738 = vsel %vm6674, %v6636, %v6706
        %v6739 = vsel %vm6675, %v6641, %v6707
        %6740 = vst.msk [vmem:[%s2572 + $0x1] sm:$0xff] %vm2516, %v6708
        %6741 = vst.msk [vmem:[%s2572 + $0x9] sm:$0xff] %vm2516, %v6709
        %6742 = vst.msk [vmem:[%s2572 + $0x19] sm:$0xff] %vm2516, %v6710
        %6743 = vst.msk [vmem:[%s2572 + $0x21] sm:$0xff] %vm2516, %v6711
        %6744 = vst.msk [vmem:[%s2572 + $0x31] sm:$0xff] %vm2516, %v6712
        %6745 = vst.msk [vmem:[%s2572 + $0x39] sm:$0xff] %vm2516, %v6713
        %6746 = vst.msk [vmem:[%s2572 + $0x49] sm:$0xff] %vm2516, %v6714
        %6747 = vst.msk [vmem:[%s2572 + $0x51] sm:$0xff] %vm2516, %v6715
        %6748 = vst.msk [vmem:[%s2572 + $0x61] sm:$0xff] %vm2516, %v6716
        %6749 = vst.msk [vmem:[%s2572 + $0x69] sm:$0xff] %vm2516, %v6717
        %6750 = vst.msk [vmem:[%s2572 + $0x79] sm:$0xff] %vm2516, %v6718
        %6751 = vst.msk [vmem:[%s2572 + $0x81] sm:$0xff] %vm2516, %v6719
        %6752 = vst.msk [vmem:[%s2572 + $0x91] sm:$0xff] %vm2516, %v6720
        %6753 = vst.msk [vmem:[%s2572 + $0x99] sm:$0xff] %vm2516, %v6721
        %6754 = vst.msk [vmem:[%s2572 + $0xa9] sm:$0xff] %vm2516, %v6722
        %6755 = vst.msk [vmem:[%s2572 + $0xb1] sm:$0xff] %vm2516, %v6723
        %6756 = vst.msk [vmem:[%s2572 + $0xc1] sm:$0xff] %vm2516, %v6724
        %6757 = vst.msk [vmem:[%s2572 + $0xc9] sm:$0xff] %vm2516, %v6725
        %6758 = vst.msk [vmem:[%s2572 + $0xd9] sm:$0xff] %vm2516, %v6726
        %6759 = vst.msk [vmem:[%s2572 + $0xe1] sm:$0xff] %vm2516, %v6727
        %6760 = vst.msk [vmem:[%s2572 + $0xf1] sm:$0xff] %vm2516, %v6728
        %6761 = vst.msk [vmem:[%s2572 + $0xf9] sm:$0xff] %vm2516, %v6729
        %6762 = vst.msk [vmem:[%s2572 + $0x109] sm:$0xff] %vm2516, %v6730
        %6763 = vst.msk [vmem:[%s2572 + $0x111] sm:$0xff] %vm2516, %v6731
        %6764 = vst.msk [vmem:[%s2572 + $0x121] sm:$0xff] %vm2516, %v6732
        %6765 = vst.msk [vmem:[%s2572 + $0x129] sm:$0xff] %vm2516, %v6733
        %6766 = vst.msk [vmem:[%s2572 + $0x139] sm:$0xff] %vm2516, %v6734
        %6767 = vst.msk [vmem:[%s2572 + $0x141] sm:$0xff] %vm2516, %v6735
        %6768 = vst.msk [vmem:[%s2572 + $0x151] sm:$0xff] %vm2516, %v6736
        %6769 = vst.msk [vmem:[%s2572 + $0x159] sm:$0xff] %vm2516, %v6737
        %6770 = vst.msk [vmem:[%s2572 + $0x169] sm:$0xff] %vm2516, %v6738
        %6771 = vst.msk [vmem:[%s2572 + $0x171] sm:$0xff] %vm2516, %v6739
        %v6772 = vld [vmem:[#allocation4] sm:$0xff]
        %v6773 = vld [vmem:[#allocation4 + $0x8] sm:$0xff]
        %v6774 = vld [vmem:[#allocation4 + $0x10] sm:$0x3]
        %v6775 = vld [vmem:[#allocation4 + $0x18] sm:$0xff]
        %v6776 = vld [vmem:[#allocation4 + $0x20] sm:$0xff]
        %v6777 = vld [vmem:[#allocation4 + $0x28] sm:$0x3]
        %v6778 = vld [vmem:[#allocation4 + $0x30] sm:$0xff]
        %v6779 = vld [vmem:[#allocation4 + $0x38] sm:$0xff]
        %v6780 = vld [vmem:[#allocation4 + $0x40] sm:$0x3]
        %v6781 = vld [vmem:[#allocation4 + $0x48] sm:$0xff]
        %v6782 = vld [vmem:[#allocation4 + $0x50] sm:$0xff]
        %v6783 = vld [vmem:[#allocation4 + $0x58] sm:$0x3]
        %v6784 = vld [vmem:[#allocation4 + $0x60] sm:$0xff]
        %v6785 = vld [vmem:[#allocation4 + $0x68] sm:$0xff]
        %v6786 = vld [vmem:[#allocation4 + $0x70] sm:$0x3]
        %v6787 = vld [vmem:[#allocation4 + $0x78] sm:$0xff]
        %v6788 = vld [vmem:[#allocation4 + $0x80] sm:$0xff]
        %v6789 = vld [vmem:[#allocation4 + $0x88] sm:$0x3]
        %v6790 = vld [vmem:[#allocation4 + $0x90] sm:$0xff]
        %v6791 = vld [vmem:[#allocation4 + $0x98] sm:$0xff]
        %v6792 = vld [vmem:[#allocation4 + $0xa0] sm:$0x3]
        %v6793 = vld [vmem:[#allocation4 + $0xa8] sm:$0xff]
        %v6794 = vld [vmem:[#allocation4 + $0xb0] sm:$0xff]
        %v6795 = vld [vmem:[#allocation4 + $0xb8] sm:$0x3]
        %v6796 = vld [vmem:[#allocation4 + $0xc0] sm:$0xff]
        %v6797 = vld [vmem:[#allocation4 + $0xc8] sm:$0xff]
        %v6798 = vld [vmem:[#allocation4 + $0xd0] sm:$0x3]
        %v6799 = vld [vmem:[#allocation4 + $0xd8] sm:$0xff]
        %v6800 = vld [vmem:[#allocation4 + $0xe0] sm:$0xff]
        %v6801 = vld [vmem:[#allocation4 + $0xe8] sm:$0x3]
        %v6802 = vld [vmem:[#allocation4 + $0xf0] sm:$0xff]
        %v6803 = vld [vmem:[#allocation4 + $0xf8] sm:$0xff]
        %v6804 = vld [vmem:[#allocation4 + $0x100] sm:$0x3]
        %v6805 = vld [vmem:[#allocation4 + $0x108] sm:$0xff]
        %v6806 = vld [vmem:[#allocation4 + $0x110] sm:$0xff]
        %v6807 = vld [vmem:[#allocation4 + $0x118] sm:$0x3]
        %v6808 = vld [vmem:[#allocation4 + $0x120] sm:$0xff]
        %v6809 = vld [vmem:[#allocation4 + $0x128] sm:$0xff]
        %v6810 = vld [vmem:[#allocation4 + $0x130] sm:$0x3]
        %v6811 = vld [vmem:[#allocation4 + $0x138] sm:$0xff]
        %v6812 = vld [vmem:[#allocation4 + $0x140] sm:$0xff]
        %v6813 = vld [vmem:[#allocation4 + $0x148] sm:$0x3]
        %v6814 = vld [vmem:[#allocation4 + $0x150] sm:$0xff]
        %v6815 = vld [vmem:[#allocation4 + $0x158] sm:$0xff]
        %v6816 = vld [vmem:[#allocation4 + $0x160] sm:$0x3]
        %v6817 = vld [vmem:[#allocation4 + $0x168] sm:$0xff]
        %v6818 = vld [vmem:[#allocation4 + $0x170] sm:$0xff]
        %v6819 = vld [vmem:[#allocation4 + $0x178] sm:$0x3]
        %v6820 = vld [vmem:[#allocation4 + $0x180] sm:$0xff]
        %v6821 = vld [vmem:[#allocation4 + $0x188] sm:$0xff]
        %v6822 = vld [vmem:[#allocation4 + $0x190] sm:$0x3]
        %v6823 = vld [vmem:[#allocation4 + $0x198] sm:$0xff]
        %v6824 = vld [vmem:[#allocation4 + $0x1a0] sm:$0xff]
        %v6825 = vld [vmem:[#allocation4 + $0x1a8] sm:$0x3]
        %6826 = vst.msk [vmem:[#allocation5] sm:$0xff] %vm2516, %v6772
        %6827 = vst.msk [vmem:[#allocation5 + $0x28] sm:$0xff] %vm2516, %v6773
        %6828 = vst.msk [vmem:[#allocation5 + $0x50] sm:$0xff] %vm2516, %v6775
        %6829 = vst.msk [vmem:[#allocation5 + $0x78] sm:$0xff] %vm2516, %v6776
        %6830 = vst.msk [vmem:[#allocation5 + $0xa0] sm:$0xff] %vm2516, %v6778
        %6831 = vst.msk [vmem:[#allocation5 + $0xc8] sm:$0xff] %vm2516, %v6779
        %6832 = vst.msk [vmem:[#allocation5 + $0xf0] sm:$0xff] %vm2516, %v6781
        %6833 = vst.msk [vmem:[#allocation5 + $0x118] sm:$0xff] %vm2516, %v6782
        %6834 = vst.msk [vmem:[#allocation5 + $0x140] sm:$0xff] %vm2516, %v6784
        %6835 = vst.msk [vmem:[#allocation5 + $0x168] sm:$0xff] %vm2516, %v6785
        %6836 = vst.msk [vmem:[#allocation5 + $0x190] sm:$0xff] %vm2516, %v6787
        %6837 = vst.msk [vmem:[#allocation5 + $0x1b8] sm:$0xff] %vm2516, %v6788
        %6838 = vst.msk [vmem:[#allocation5 + $0x1e0] sm:$0xff] %vm2516, %v6790
        %6839 = vst.msk [vmem:[#allocation5 + $0x208] sm:$0xff] %vm2516, %v6791
        %6840 = vst.msk [vmem:[#allocation5 + $0x230] sm:$0xff] %vm2516, %v6793
        %6841 = vst.msk [vmem:[#allocation5 + $0x258] sm:$0xff] %vm2516, %v6794
        %6842 = vst.msk [vmem:[#allocation5 + $0x280] sm:$0xff] %vm2516, %v6796
        %6843 = vst.msk [vmem:[#allocation5 + $0x2a8] sm:$0xff] %vm2516, %v6797
        %6844 = vst.msk [vmem:[#allocation5 + $0x2d0] sm:$0xff] %vm2516, %v6799
        %6845 = vst.msk [vmem:[#allocation5 + $0x2f8] sm:$0xff] %vm2516, %v6800
        %6846 = vst.msk [vmem:[#allocation5 + $0x320] sm:$0xff] %vm2516, %v6802
        %6847 = vst.msk [vmem:[#allocation5 + $0x348] sm:$0xff] %vm2516, %v6803
        %6848 = vst.msk [vmem:[#allocation5 + $0x370] sm:$0xff] %vm2516, %v6805
        %6849 = vst.msk [vmem:[#allocation5 + $0x398] sm:$0xff] %vm2516, %v6806
        %6850 = vst.msk [vmem:[#allocation5 + $0x3c0] sm:$0xff] %vm2516, %v6808
        %6851 = vst.msk [vmem:[#allocation5 + $0x3e8] sm:$0xff] %vm2516, %v6809
        %6852 = vst.msk [vmem:[#allocation5 + $0x410] sm:$0xff] %vm2516, %v6811
        %6853 = vst.msk [vmem:[#allocation5 + $0x438] sm:$0xff] %vm2516, %v6812
        %6854 = vst.msk [vmem:[#allocation5 + $0x460] sm:$0xff] %vm2516, %v6814
        %6855 = vst.msk [vmem:[#allocation5 + $0x488] sm:$0xff] %vm2516, %v6815
        %6856 = vst.msk [vmem:[#allocation5 + $0x4b0] sm:$0xff] %vm2516, %v6817
        %6857 = vst.msk [vmem:[#allocation5 + $0x4d8] sm:$0xff] %vm2516, %v6818
        %v6906 = vrot.slane %v6772, 1
        %v6907 = vrot.slane %v6773, 1
        %v6908 = vsel %vm2739, %v6906, %v6907
        %v6909 = vrot.slane %v6774, 1
        %v6910 = vsel %vm2739, %v6907, %v6909
        %v6911 = vrot.slane %v6775, 1
        %v6912 = vrot.slane %v6776, 1
        %v6913 = vsel %vm2739, %v6911, %v6912
        %v6914 = vrot.slane %v6777, 1
        %v6915 = vsel %vm2739, %v6912, %v6914
        %v6916 = vrot.slane %v6778, 1
        %v6917 = vrot.slane %v6779, 1
        %v6918 = vsel %vm2739, %v6916, %v6917
        %v6919 = vrot.slane %v6780, 1
        %v6920 = vsel %vm2739, %v6917, %v6919
        %v6921 = vrot.slane %v6781, 1
        %v6922 = vrot.slane %v6782, 1
        %v6923 = vsel %vm2739, %v6921, %v6922
        %v6924 = vrot.slane %v6783, 1
        %v6925 = vsel %vm2739, %v6922, %v6924
        %v6926 = vrot.slane %v6784, 1
        %v6927 = vrot.slane %v6785, 1
        %v6928 = vsel %vm2739, %v6926, %v6927
        %v6929 = vrot.slane %v6786, 1
        %v6930 = vsel %vm2739, %v6927, %v6929
        %v6931 = vrot.slane %v6787, 1
        %v6932 = vrot.slane %v6788, 1
        %v6933 = vsel %vm2739, %v6931, %v6932
        %v6934 = vrot.slane %v6789, 1
        %v6935 = vsel %vm2739, %v6932, %v6934
        %v6936 = vrot.slane %v6790, 1
        %v6937 = vrot.slane %v6791, 1
        %v6938 = vsel %vm2739, %v6936, %v6937
        %v6939 = vrot.slane %v6792, 1
        %v6940 = vsel %vm2739, %v6937, %v6939
        %v6941 = vrot.slane %v6793, 1
        %v6942 = vrot.slane %v6794, 1
        %v6943 = vsel %vm2739, %v6941, %v6942
        %v6944 = vrot.slane %v6795, 1
        %v6945 = vsel %vm2739, %v6942, %v6944
        %v6946 = vrot.slane %v6796, 1
        %v6947 = vrot.slane %v6797, 1
        %v6948 = vsel %vm2739, %v6946, %v6947
        %v6949 = vrot.slane %v6798, 1
        %v6950 = vsel %vm2739, %v6947, %v6949
        %v6951 = vrot.slane %v6799, 1
        %v6952 = vrot.slane %v6800, 1
        %v6953 = vsel %vm2739, %v6951, %v6952
        %v6954 = vrot.slane %v6801, 1
        %v6955 = vsel %vm2739, %v6952, %v6954
        %v6956 = vrot.slane %v6802, 1
        %v6957 = vrot.slane %v6803, 1
        %v6958 = vsel %vm2739, %v6956, %v6957
        %v6959 = vrot.slane %v6804, 1
        %v6960 = vsel %vm2739, %v6957, %v6959
        %v6961 = vrot.slane %v6805, 1
        %v6962 = vrot.slane %v6806, 1
        %v6963 = vsel %vm2739, %v6961, %v6962
        %v6964 = vrot.slane %v6807, 1
        %v6965 = vsel %vm2739, %v6962, %v6964
        %v6966 = vrot.slane %v6808, 1
        %v6967 = vrot.slane %v6809, 1
        %v6968 = vsel %vm2739, %v6966, %v6967
        %v6969 = vrot.slane %v6810, 1
        %v6970 = vsel %vm2739, %v6967, %v6969
        %v6971 = vrot.slane %v6811, 1
        %v6972 = vrot.slane %v6812, 1
        %v6973 = vsel %vm2739, %v6971, %v6972
        %v6974 = vrot.slane %v6813, 1
        %v6975 = vsel %vm2739, %v6972, %v6974
        %v6976 = vrot.slane %v6814, 1
        %v6977 = vrot.slane %v6815, 1
        %v6978 = vsel %vm2739, %v6976, %v6977
        %v6979 = vrot.slane %v6816, 1
        %v6980 = vsel %vm2739, %v6977, %v6979
        %v6981 = vrot.slane %v6817, 1
        %v6982 = vrot.slane %v6818, 1
        %v6983 = vsel %vm2739, %v6981, %v6982
        %v6984 = vrot.slane %v6819, 1
        %v6985 = vsel %vm2739, %v6982, %v6984
        %6986 = vrot.lane.b32.xlu0 %v6908, 64
        %v6987 = vpop.permute.xlu0 %6986
        %6988 = vrot.lane.b32.xlu0 %v6910, 64
        %v6989 = vpop.permute.xlu0 %6988
        %6990 = vrot.lane.b32.xlu0 %v6913, 64
        %v6991 = vpop.permute.xlu0 %6990
        %6992 = vrot.lane.b32.xlu0 %v6915, 64
        %v6993 = vpop.permute.xlu0 %6992
        %6994 = vrot.lane.b32.xlu0 %v6918, 64
        %v6995 = vpop.permute.xlu0 %6994
        %6996 = vrot.lane.b32.xlu0 %v6920, 64
        %v6997 = vpop.permute.xlu0 %6996
        %6998 = vrot.lane.b32.xlu0 %v6923, 64
        %v6999 = vpop.permute.xlu0 %6998
        %7000 = vrot.lane.b32.xlu0 %v6925, 64
        %v7001 = vpop.permute.xlu0 %7000
        %7002 = vrot.lane.b32.xlu0 %v6928, 64
        %v7003 = vpop.permute.xlu0 %7002
        %7004 = vrot.lane.b32.xlu0 %v6930, 64
        %v7005 = vpop.permute.xlu0 %7004
        %7006 = vrot.lane.b32.xlu0 %v6933, 64
        %v7007 = vpop.permute.xlu0 %7006
        %7008 = vrot.lane.b32.xlu0 %v6935, 64
        %v7009 = vpop.permute.xlu0 %7008
        %7010 = vrot.lane.b32.xlu0 %v6938, 64
        %v7011 = vpop.permute.xlu0 %7010
        %7012 = vrot.lane.b32.xlu0 %v6940, 64
        %v7013 = vpop.permute.xlu0 %7012
        %7014 = vrot.lane.b32.xlu0 %v6943, 64
        %v7015 = vpop.permute.xlu0 %7014
        %7016 = vrot.lane.b32.xlu0 %v6945, 64
        %v7017 = vpop.permute.xlu0 %7016
        %7018 = vrot.lane.b32.xlu0 %v6948, 64
        %v7019 = vpop.permute.xlu0 %7018
        %7020 = vrot.lane.b32.xlu0 %v6950, 64
        %v7021 = vpop.permute.xlu0 %7020
        %7022 = vrot.lane.b32.xlu0 %v6953, 64
        %v7023 = vpop.permute.xlu0 %7022
        %7024 = vrot.lane.b32.xlu0 %v6955, 64
        %v7025 = vpop.permute.xlu0 %7024
        %7026 = vrot.lane.b32.xlu0 %v6958, 64
        %v7027 = vpop.permute.xlu0 %7026
        %7028 = vrot.lane.b32.xlu0 %v6960, 64
        %v7029 = vpop.permute.xlu0 %7028
        %7030 = vrot.lane.b32.xlu0 %v6963, 64
        %v7031 = vpop.permute.xlu0 %7030
        %7032 = vrot.lane.b32.xlu0 %v6965, 64
        %v7033 = vpop.permute.xlu0 %7032
        %7034 = vrot.lane.b32.xlu0 %v6968, 64
        %v7035 = vpop.permute.xlu0 %7034
        %7036 = vrot.lane.b32.xlu0 %v6970, 64
        %v7037 = vpop.permute.xlu0 %7036
        %7038 = vrot.lane.b32.xlu0 %v6973, 64
        %v7039 = vpop.permute.xlu0 %7038
        %7040 = vrot.lane.b32.xlu0 %v6975, 64
        %v7041 = vpop.permute.xlu0 %7040
        %7042 = vrot.lane.b32.xlu0 %v6978, 64
        %v7043 = vpop.permute.xlu0 %7042
        %7044 = vrot.lane.b32.xlu0 %v6980, 64
        %v7045 = vpop.permute.xlu0 %7044
        %7046 = vrot.lane.b32.xlu0 %v6983, 64
        %v7047 = vpop.permute.xlu0 %7046
        %7048 = vrot.lane.b32.xlu0 %v6985, 64
        %v7049 = vpop.permute.xlu0 %7048
        %7082 = vst.msk [vmem:[#allocation5] sm:$0xff] %vm2916, %v6987
        %7083 = vst.msk [vmem:[#allocation5 + $0x28] sm:$0xff] %vm2916, %v6989
        %7084 = vst.msk [vmem:[#allocation5 + $0x50] sm:$0xff] %vm2916, %v6991
        %7085 = vst.msk [vmem:[#allocation5 + $0x78] sm:$0xff] %vm2916, %v6993
        %7086 = vst.msk [vmem:[#allocation5 + $0xa0] sm:$0xff] %vm2916, %v6995
        %7087 = vst.msk [vmem:[#allocation5 + $0xc8] sm:$0xff] %vm2916, %v6997
        %7088 = vst.msk [vmem:[#allocation5 + $0xf0] sm:$0xff] %vm2916, %v6999
        %7089 = vst.msk [vmem:[#allocation5 + $0x118] sm:$0xff] %vm2916, %v7001
        %7090 = vst.msk [vmem:[#allocation5 + $0x140] sm:$0xff] %vm2916, %v7003
        %7091 = vst.msk [vmem:[#allocation5 + $0x168] sm:$0xff] %vm2916, %v7005
        %7092 = vst.msk [vmem:[#allocation5 + $0x190] sm:$0xff] %vm2916, %v7007
        %7093 = vst.msk [vmem:[#allocation5 + $0x1b8] sm:$0xff] %vm2916, %v7009
        %7094 = vst.msk [vmem:[#allocation5 + $0x1e0] sm:$0xff] %vm2916, %v7011
        %7095 = vst.msk [vmem:[#allocation5 + $0x208] sm:$0xff] %vm2916, %v7013
        %7096 = vst.msk [vmem:[#allocation5 + $0x230] sm:$0xff] %vm2916, %v7015
        %7097 = vst.msk [vmem:[#allocation5 + $0x258] sm:$0xff] %vm2916, %v7017
        %7098 = vst.msk [vmem:[#allocation5 + $0x280] sm:$0xff] %vm2916, %v7019
        %7099 = vst.msk [vmem:[#allocation5 + $0x2a8] sm:$0xff] %vm2916, %v7021
        %7100 = vst.msk [vmem:[#allocation5 + $0x2d0] sm:$0xff] %vm2916, %v7023
        %7101 = vst.msk [vmem:[#allocation5 + $0x2f8] sm:$0xff] %vm2916, %v7025
        %7102 = vst.msk [vmem:[#allocation5 + $0x320] sm:$0xff] %vm2916, %v7027
        %7103 = vst.msk [vmem:[#allocation5 + $0x348] sm:$0xff] %vm2916, %v7029
        %7104 = vst.msk [vmem:[#allocation5 + $0x370] sm:$0xff] %vm2916, %v7031
        %7105 = vst.msk [vmem:[#allocation5 + $0x398] sm:$0xff] %vm2916, %v7033
        %7106 = vst.msk [vmem:[#allocation5 + $0x3c0] sm:$0xff] %vm2916, %v7035
        %7107 = vst.msk [vmem:[#allocation5 + $0x3e8] sm:$0xff] %vm2916, %v7037
        %7108 = vst.msk [vmem:[#allocation5 + $0x410] sm:$0xff] %vm2916, %v7039
        %7109 = vst.msk [vmem:[#allocation5 + $0x438] sm:$0xff] %vm2916, %v7041
        %7110 = vst.msk [vmem:[#allocation5 + $0x460] sm:$0xff] %vm2916, %v7043
        %7111 = vst.msk [vmem:[#allocation5 + $0x488] sm:$0xff] %vm2916, %v7045
        %7112 = vst.msk [vmem:[#allocation5 + $0x4b0] sm:$0xff] %vm2916, %v7047
        %7113 = vst.msk [vmem:[#allocation5 + $0x4d8] sm:$0xff] %vm2916, %v7049
        %v7114 = vrot.slane %v6772, 2
        %v7115 = vrot.slane %v6773, 2
        %v7116 = vsel %vm2949, %v7114, %v7115
        %v7117 = vrot.slane %v6774, 2
        %v7118 = vsel %vm2949, %v7115, %v7117
        %v7119 = vrot.slane %v6775, 2
        %v7120 = vrot.slane %v6776, 2
        %v7121 = vsel %vm2949, %v7119, %v7120
        %v7122 = vrot.slane %v6777, 2
        %v7123 = vsel %vm2949, %v7120, %v7122
        %v7124 = vrot.slane %v6778, 2
        %v7125 = vrot.slane %v6779, 2
        %v7126 = vsel %vm2949, %v7124, %v7125
        %v7127 = vrot.slane %v6780, 2
        %v7128 = vsel %vm2949, %v7125, %v7127
        %v7129 = vrot.slane %v6781, 2
        %v7130 = vrot.slane %v6782, 2
        %v7131 = vsel %vm2949, %v7129, %v7130
        %v7132 = vrot.slane %v6783, 2
        %v7133 = vsel %vm2949, %v7130, %v7132
        %v7134 = vrot.slane %v6784, 2
        %v7135 = vrot.slane %v6785, 2
        %v7136 = vsel %vm2949, %v7134, %v7135
        %v7137 = vrot.slane %v6786, 2
        %v7138 = vsel %vm2949, %v7135, %v7137
        %v7139 = vrot.slane %v6787, 2
        %v7140 = vrot.slane %v6788, 2
        %v7141 = vsel %vm2949, %v7139, %v7140
        %v7142 = vrot.slane %v6789, 2
        %v7143 = vsel %vm2949, %v7140, %v7142
        %v7144 = vrot.slane %v6790, 2
        %v7145 = vrot.slane %v6791, 2
        %v7146 = vsel %vm2949, %v7144, %v7145
        %v7147 = vrot.slane %v6792, 2
        %v7148 = vsel %vm2949, %v7145, %v7147
        %v7149 = vrot.slane %v6793, 2
        %v7150 = vrot.slane %v6794, 2
        %v7151 = vsel %vm2949, %v7149, %v7150
        %v7152 = vrot.slane %v6795, 2
        %v7153 = vsel %vm2949, %v7150, %v7152
        %v7154 = vrot.slane %v6796, 2
        %v7155 = vrot.slane %v6797, 2
        %v7156 = vsel %vm2949, %v7154, %v7155
        %v7157 = vrot.slane %v6798, 2
        %v7158 = vsel %vm2949, %v7155, %v7157
        %v7159 = vrot.slane %v6799, 2
        %v7160 = vrot.slane %v6800, 2
        %v7161 = vsel %vm2949, %v7159, %v7160
        %v7162 = vrot.slane %v6801, 2
        %v7163 = vsel %vm2949, %v7160, %v7162
        %v7164 = vrot.slane %v6802, 2
        %v7165 = vrot.slane %v6803, 2
        %v7166 = vsel %vm2949, %v7164, %v7165
        %v7167 = vrot.slane %v6804, 2
        %v7168 = vsel %vm2949, %v7165, %v7167
        %v7169 = vrot.slane %v6805, 2
        %v7170 = vrot.slane %v6806, 2
        %v7171 = vsel %vm2949, %v7169, %v7170
        %v7172 = vrot.slane %v6807, 2
        %v7173 = vsel %vm2949, %v7170, %v7172
        %v7174 = vrot.slane %v6808, 2
        %v7175 = vrot.slane %v6809, 2
        %v7176 = vsel %vm2949, %v7174, %v7175
        %v7177 = vrot.slane %v6810, 2
        %v7178 = vsel %vm2949, %v7175, %v7177
        %v7179 = vrot.slane %v6811, 2
        %v7180 = vrot.slane %v6812, 2
        %v7181 = vsel %vm2949, %v7179, %v7180
        %v7182 = vrot.slane %v6813, 2
        %v7183 = vsel %vm2949, %v7180, %v7182
        %v7184 = vrot.slane %v6814, 2
        %v7185 = vrot.slane %v6815, 2
        %v7186 = vsel %vm2949, %v7184, %v7185
        %v7187 = vrot.slane %v6816, 2
        %v7188 = vsel %vm2949, %v7185, %v7187
        %v7189 = vrot.slane %v6817, 2
        %v7190 = vrot.slane %v6818, 2
        %v7191 = vsel %vm2949, %v7189, %v7190
        %v7192 = vrot.slane %v6819, 2
        %v7193 = vsel %vm2949, %v7190, %v7192
        %7226 = vst.msk [vmem:[#allocation5 + $0x8] sm:$0xff] %vm2516, %v7116
        %7227 = vst.msk [vmem:[#allocation5 + $0x30] sm:$0xff] %vm2516, %v7118
        %7228 = vst.msk [vmem:[#allocation5 + $0x58] sm:$0xff] %vm2516, %v7121
        %7229 = vst.msk [vmem:[#allocation5 + $0x80] sm:$0xff] %vm2516, %v7123
        %7230 = vst.msk [vmem:[#allocation5 + $0xa8] sm:$0xff] %vm2516, %v7126
        %7231 = vst.msk [vmem:[#allocation5 + $0xd0] sm:$0xff] %vm2516, %v7128
        %7232 = vst.msk [vmem:[#allocation5 + $0xf8] sm:$0xff] %vm2516, %v7131
        %7233 = vst.msk [vmem:[#allocation5 + $0x120] sm:$0xff] %vm2516, %v7133
        %7234 = vst.msk [vmem:[#allocation5 + $0x148] sm:$0xff] %vm2516, %v7136
        %7235 = vst.msk [vmem:[#allocation5 + $0x170] sm:$0xff] %vm2516, %v7138
        %7236 = vst.msk [vmem:[#allocation5 + $0x198] sm:$0xff] %vm2516, %v7141
        %7237 = vst.msk [vmem:[#allocation5 + $0x1c0] sm:$0xff] %vm2516, %v7143
        %7238 = vst.msk [vmem:[#allocation5 + $0x1e8] sm:$0xff] %vm2516, %v7146
        %7239 = vst.msk [vmem:[#allocation5 + $0x210] sm:$0xff] %vm2516, %v7148
        %7240 = vst.msk [vmem:[#allocation5 + $0x238] sm:$0xff] %vm2516, %v7151
        %7241 = vst.msk [vmem:[#allocation5 + $0x260] sm:$0xff] %vm2516, %v7153
        %7242 = vst.msk [vmem:[#allocation5 + $0x288] sm:$0xff] %vm2516, %v7156
        %7243 = vst.msk [vmem:[#allocation5 + $0x2b0] sm:$0xff] %vm2516, %v7158
        %7244 = vst.msk [vmem:[#allocation5 + $0x2d8] sm:$0xff] %vm2516, %v7161
        %7245 = vst.msk [vmem:[#allocation5 + $0x300] sm:$0xff] %vm2516, %v7163
        %7246 = vst.msk [vmem:[#allocation5 + $0x328] sm:$0xff] %vm2516, %v7166
        %7247 = vst.msk [vmem:[#allocation5 + $0x350] sm:$0xff] %vm2516, %v7168
        %7248 = vst.msk [vmem:[#allocation5 + $0x378] sm:$0xff] %vm2516, %v7171
        %7249 = vst.msk [vmem:[#allocation5 + $0x3a0] sm:$0xff] %vm2516, %v7173
        %7250 = vst.msk [vmem:[#allocation5 + $0x3c8] sm:$0xff] %vm2516, %v7176
        %7251 = vst.msk [vmem:[#allocation5 + $0x3f0] sm:$0xff] %vm2516, %v7178
        %7252 = vst.msk [vmem:[#allocation5 + $0x418] sm:$0xff] %vm2516, %v7181
        %7253 = vst.msk [vmem:[#allocation5 + $0x440] sm:$0xff] %vm2516, %v7183
        %7254 = vst.msk [vmem:[#allocation5 + $0x468] sm:$0xff] %vm2516, %v7186
        %7255 = vst.msk [vmem:[#allocation5 + $0x490] sm:$0xff] %vm2516, %v7188
        %7256 = vst.msk [vmem:[#allocation5 + $0x4b8] sm:$0xff] %vm2516, %v7191
        %7257 = vst.msk [vmem:[#allocation5 + $0x4e0] sm:$0xff] %vm2516, %v7193
        %7260 = vrot.lane.b32.xlu0 %v6775, 64
        %v7261 = vpop.permute.xlu0 %7260
        %7262 = vrot.lane.b32.xlu0 %v6776, 64
        %v7263 = vpop.permute.xlu0 %7262
        %7264 = vrot.lane.b32.xlu0 %v6778, 64
        %v7265 = vpop.permute.xlu0 %7264
        %7266 = vrot.lane.b32.xlu0 %v6779, 64
        %v7267 = vpop.permute.xlu0 %7266
        %7268 = vrot.lane.b32.xlu0 %v6781, 64
        %v7269 = vpop.permute.xlu0 %7268
        %7270 = vrot.lane.b32.xlu0 %v6782, 64
        %v7271 = vpop.permute.xlu0 %7270
        %7272 = vrot.lane.b32.xlu0 %v6784, 64
        %v7273 = vpop.permute.xlu0 %7272
        %7274 = vrot.lane.b32.xlu0 %v6785, 64
        %v7275 = vpop.permute.xlu0 %7274
        %7276 = vrot.lane.b32.xlu0 %v6787, 64
        %v7277 = vpop.permute.xlu0 %7276
        %7278 = vrot.lane.b32.xlu0 %v6788, 64
        %v7279 = vpop.permute.xlu0 %7278
        %7280 = vrot.lane.b32.xlu0 %v6790, 64
        %v7281 = vpop.permute.xlu0 %7280
        %7282 = vrot.lane.b32.xlu0 %v6791, 64
        %v7283 = vpop.permute.xlu0 %7282
        %7284 = vrot.lane.b32.xlu0 %v6793, 64
        %v7285 = vpop.permute.xlu0 %7284
        %7286 = vrot.lane.b32.xlu0 %v6794, 64
        %v7287 = vpop.permute.xlu0 %7286
        %7288 = vrot.lane.b32.xlu0 %v6796, 64
        %v7289 = vpop.permute.xlu0 %7288
        %7290 = vrot.lane.b32.xlu0 %v6797, 64
        %v7291 = vpop.permute.xlu0 %7290
        %7292 = vrot.lane.b32.xlu0 %v6799, 64
        %v7293 = vpop.permute.xlu0 %7292
        %7294 = vrot.lane.b32.xlu0 %v6800, 64
        %v7295 = vpop.permute.xlu0 %7294
        %7296 = vrot.lane.b32.xlu0 %v6802, 64
        %v7297 = vpop.permute.xlu0 %7296
        %7298 = vrot.lane.b32.xlu0 %v6803, 64
        %v7299 = vpop.permute.xlu0 %7298
        %7300 = vrot.lane.b32.xlu0 %v6805, 64
        %v7301 = vpop.permute.xlu0 %7300
        %7302 = vrot.lane.b32.xlu0 %v6806, 64
        %v7303 = vpop.permute.xlu0 %7302
        %7304 = vrot.lane.b32.xlu0 %v6808, 64
        %v7305 = vpop.permute.xlu0 %7304
        %7306 = vrot.lane.b32.xlu0 %v6809, 64
        %v7307 = vpop.permute.xlu0 %7306
        %7308 = vrot.lane.b32.xlu0 %v6811, 64
        %v7309 = vpop.permute.xlu0 %7308
        %7310 = vrot.lane.b32.xlu0 %v6812, 64
        %v7311 = vpop.permute.xlu0 %7310
        %7312 = vrot.lane.b32.xlu0 %v6814, 64
        %v7313 = vpop.permute.xlu0 %7312
        %7314 = vrot.lane.b32.xlu0 %v6815, 64
        %v7315 = vpop.permute.xlu0 %7314
        %7316 = vrot.lane.b32.xlu0 %v6817, 64
        %v7317 = vpop.permute.xlu0 %7316
        %7318 = vrot.lane.b32.xlu0 %v6818, 64
        %v7319 = vpop.permute.xlu0 %7318
        %7320 = vrot.lane.b32.xlu0 %v6820, 64
        %v7321 = vpop.permute.xlu0 %7320
        %7322 = vrot.lane.b32.xlu0 %v6821, 64
        %v7323 = vpop.permute.xlu0 %7322
        %7356 = vst.msk [vmem:[#allocation5 + $0x8] sm:$0xff] %vm2916, %v7261
        %7357 = vst.msk [vmem:[#allocation5 + $0x30] sm:$0xff] %vm2916, %v7263
        %7358 = vst.msk [vmem:[#allocation5 + $0x58] sm:$0xff] %vm2916, %v7265
        %7359 = vst.msk [vmem:[#allocation5 + $0x80] sm:$0xff] %vm2916, %v7267
        %7360 = vst.msk [vmem:[#allocation5 + $0xa8] sm:$0xff] %vm2916, %v7269
        %7361 = vst.msk [vmem:[#allocation5 + $0xd0] sm:$0xff] %vm2916, %v7271
        %7362 = vst.msk [vmem:[#allocation5 + $0xf8] sm:$0xff] %vm2916, %v7273
        %7363 = vst.msk [vmem:[#allocation5 + $0x120] sm:$0xff] %vm2916, %v7275
        %7364 = vst.msk [vmem:[#allocation5 + $0x148] sm:$0xff] %vm2916, %v7277
        %7365 = vst.msk [vmem:[#allocation5 + $0x170] sm:$0xff] %vm2916, %v7279
        %7366 = vst.msk [vmem:[#allocation5 + $0x198] sm:$0xff] %vm2916, %v7281
        %7367 = vst.msk [vmem:[#allocation5 + $0x1c0] sm:$0xff] %vm2916, %v7283
        %7368 = vst.msk [vmem:[#allocation5 + $0x1e8] sm:$0xff] %vm2916, %v7285
        %7369 = vst.msk [vmem:[#allocation5 + $0x210] sm:$0xff] %vm2916, %v7287
        %7370 = vst.msk [vmem:[#allocation5 + $0x238] sm:$0xff] %vm2916, %v7289
        %7371 = vst.msk [vmem:[#allocation5 + $0x260] sm:$0xff] %vm2916, %v7291
        %7372 = vst.msk [vmem:[#allocation5 + $0x288] sm:$0xff] %vm2916, %v7293
        %7373 = vst.msk [vmem:[#allocation5 + $0x2b0] sm:$0xff] %vm2916, %v7295
        %7374 = vst.msk [vmem:[#allocation5 + $0x2d8] sm:$0xff] %vm2916, %v7297
        %7375 = vst.msk [vmem:[#allocation5 + $0x300] sm:$0xff] %vm2916, %v7299
        %7376 = vst.msk [vmem:[#allocation5 + $0x328] sm:$0xff] %vm2916, %v7301
        %7377 = vst.msk [vmem:[#allocation5 + $0x350] sm:$0xff] %vm2916, %v7303
        %7378 = vst.msk [vmem:[#allocation5 + $0x378] sm:$0xff] %vm2916, %v7305
        %7379 = vst.msk [vmem:[#allocation5 + $0x3a0] sm:$0xff] %vm2916, %v7307
        %7380 = vst.msk [vmem:[#allocation5 + $0x3c8] sm:$0xff] %vm2916, %v7309
        %7381 = vst.msk [vmem:[#allocation5 + $0x3f0] sm:$0xff] %vm2916, %v7311
        %7382 = vst.msk [vmem:[#allocation5 + $0x418] sm:$0xff] %vm2916, %v7313
        %7383 = vst.msk [vmem:[#allocation5 + $0x440] sm:$0xff] %vm2916, %v7315
        %7384 = vst.msk [vmem:[#allocation5 + $0x468] sm:$0xff] %vm2916, %v7317
        %7385 = vst.msk [vmem:[#allocation5 + $0x490] sm:$0xff] %vm2916, %v7319
        %7386 = vst.msk [vmem:[#allocation5 + $0x4b8] sm:$0xff] %vm2916, %v7321
        %7387 = vst.msk [vmem:[#allocation5 + $0x4e0] sm:$0xff] %vm2916, %v7323
        %v7389 = vrot.slane %v6820, 1
        %v7390 = vrot.slane %v6821, 1
        %v7391 = vsel %vm2739, %v7389, %v7390
        %v7392 = vrot.slane %v6822, 1
        %v7393 = vsel %vm2739, %v7390, %v7392
        %7426 = vst.msk [vmem:[#allocation5 + $0x10] sm:$0xff] %vm2516, %v6913
        %7427 = vst.msk [vmem:[#allocation5 + $0x38] sm:$0xff] %vm2516, %v6915
        %7428 = vst.msk [vmem:[#allocation5 + $0x60] sm:$0xff] %vm2516, %v6918
        %7429 = vst.msk [vmem:[#allocation5 + $0x88] sm:$0xff] %vm2516, %v6920
        %7430 = vst.msk [vmem:[#allocation5 + $0xb0] sm:$0xff] %vm2516, %v6923
        %7431 = vst.msk [vmem:[#allocation5 + $0xd8] sm:$0xff] %vm2516, %v6925
        %7432 = vst.msk [vmem:[#allocation5 + $0x100] sm:$0xff] %vm2516, %v6928
        %7433 = vst.msk [vmem:[#allocation5 + $0x128] sm:$0xff] %vm2516, %v6930
        %7434 = vst.msk [vmem:[#allocation5 + $0x150] sm:$0xff] %vm2516, %v6933
        %7435 = vst.msk [vmem:[#allocation5 + $0x178] sm:$0xff] %vm2516, %v6935
        %7436 = vst.msk [vmem:[#allocation5 + $0x1a0] sm:$0xff] %vm2516, %v6938
        %7437 = vst.msk [vmem:[#allocation5 + $0x1c8] sm:$0xff] %vm2516, %v6940
        %7438 = vst.msk [vmem:[#allocation5 + $0x1f0] sm:$0xff] %vm2516, %v6943
        %7439 = vst.msk [vmem:[#allocation5 + $0x218] sm:$0xff] %vm2516, %v6945
        %7440 = vst.msk [vmem:[#allocation5 + $0x240] sm:$0xff] %vm2516, %v6948
        %7441 = vst.msk [vmem:[#allocation5 + $0x268] sm:$0xff] %vm2516, %v6950
        %7442 = vst.msk [vmem:[#allocation5 + $0x290] sm:$0xff] %vm2516, %v6953
        %7443 = vst.msk [vmem:[#allocation5 + $0x2b8] sm:$0xff] %vm2516, %v6955
        %7444 = vst.msk [vmem:[#allocation5 + $0x2e0] sm:$0xff] %vm2516, %v6958
        %7445 = vst.msk [vmem:[#allocation5 + $0x308] sm:$0xff] %vm2516, %v6960
        %7446 = vst.msk [vmem:[#allocation5 + $0x330] sm:$0xff] %vm2516, %v6963
        %7447 = vst.msk [vmem:[#allocation5 + $0x358] sm:$0xff] %vm2516, %v6965
        %7448 = vst.msk [vmem:[#allocation5 + $0x380] sm:$0xff] %vm2516, %v6968
        %7449 = vst.msk [vmem:[#allocation5 + $0x3a8] sm:$0xff] %vm2516, %v6970
        %7450 = vst.msk [vmem:[#allocation5 + $0x3d0] sm:$0xff] %vm2516, %v6973
        %7451 = vst.msk [vmem:[#allocation5 + $0x3f8] sm:$0xff] %vm2516, %v6975
        %7452 = vst.msk [vmem:[#allocation5 + $0x420] sm:$0xff] %vm2516, %v6978
        %7453 = vst.msk [vmem:[#allocation5 + $0x448] sm:$0xff] %vm2516, %v6980
        %7454 = vst.msk [vmem:[#allocation5 + $0x470] sm:$0xff] %vm2516, %v6983
        %7455 = vst.msk [vmem:[#allocation5 + $0x498] sm:$0xff] %vm2516, %v6985
        %7456 = vst.msk [vmem:[#allocation5 + $0x4c0] sm:$0xff] %vm2516, %v7391
        %7457 = vst.msk [vmem:[#allocation5 + $0x4e8] sm:$0xff] %vm2516, %v7393
        %v7458 = vrot.slane %v6820, 2
        %v7459 = vrot.slane %v6821, 2
        %v7460 = vsel %vm2949, %v7458, %v7459
        %v7461 = vrot.slane %v6822, 2
        %v7462 = vsel %vm2949, %v7459, %v7461
        %7463 = vrot.lane.b32.xlu0 %v7121, 64
        %v7464 = vpop.permute.xlu0 %7463
        %7465 = vrot.lane.b32.xlu0 %v7123, 64
        %v7466 = vpop.permute.xlu0 %7465
        %7467 = vrot.lane.b32.xlu0 %v7126, 64
        %v7468 = vpop.permute.xlu0 %7467
        %7469 = vrot.lane.b32.xlu0 %v7128, 64
        %v7470 = vpop.permute.xlu0 %7469
        %7471 = vrot.lane.b32.xlu0 %v7131, 64
        %v7472 = vpop.permute.xlu0 %7471
        %7473 = vrot.lane.b32.xlu0 %v7133, 64
        %v7474 = vpop.permute.xlu0 %7473
        %7475 = vrot.lane.b32.xlu0 %v7136, 64
        %v7476 = vpop.permute.xlu0 %7475
        %7477 = vrot.lane.b32.xlu0 %v7138, 64
        %v7478 = vpop.permute.xlu0 %7477
        %7479 = vrot.lane.b32.xlu0 %v7141, 64
        %v7480 = vpop.permute.xlu0 %7479
        %7481 = vrot.lane.b32.xlu0 %v7143, 64
        %v7482 = vpop.permute.xlu0 %7481
        %7483 = vrot.lane.b32.xlu0 %v7146, 64
        %v7484 = vpop.permute.xlu0 %7483
        %7485 = vrot.lane.b32.xlu0 %v7148, 64
        %v7486 = vpop.permute.xlu0 %7485
        %7487 = vrot.lane.b32.xlu0 %v7151, 64
        %v7488 = vpop.permute.xlu0 %7487
        %7489 = vrot.lane.b32.xlu0 %v7153, 64
        %v7490 = vpop.permute.xlu0 %7489
        %7491 = vrot.lane.b32.xlu0 %v7156, 64
        %v7492 = vpop.permute.xlu0 %7491
        %7493 = vrot.lane.b32.xlu0 %v7158, 64
        %v7494 = vpop.permute.xlu0 %7493
        %7495 = vrot.lane.b32.xlu0 %v7161, 64
        %v7496 = vpop.permute.xlu0 %7495
        %7497 = vrot.lane.b32.xlu0 %v7163, 64
        %v7498 = vpop.permute.xlu0 %7497
        %7499 = vrot.lane.b32.xlu0 %v7166, 64
        %v7500 = vpop.permute.xlu0 %7499
        %7501 = vrot.lane.b32.xlu0 %v7168, 64
        %v7502 = vpop.permute.xlu0 %7501
        %7503 = vrot.lane.b32.xlu0 %v7171, 64
        %v7504 = vpop.permute.xlu0 %7503
        %7505 = vrot.lane.b32.xlu0 %v7173, 64
        %v7506 = vpop.permute.xlu0 %7505
        %7507 = vrot.lane.b32.xlu0 %v7176, 64
        %v7508 = vpop.permute.xlu0 %7507
        %7509 = vrot.lane.b32.xlu0 %v7178, 64
        %v7510 = vpop.permute.xlu0 %7509
        %7511 = vrot.lane.b32.xlu0 %v7181, 64
        %v7512 = vpop.permute.xlu0 %7511
        %7513 = vrot.lane.b32.xlu0 %v7183, 64
        %v7514 = vpop.permute.xlu0 %7513
        %7515 = vrot.lane.b32.xlu0 %v7186, 64
        %v7516 = vpop.permute.xlu0 %7515
        %7517 = vrot.lane.b32.xlu0 %v7188, 64
        %v7518 = vpop.permute.xlu0 %7517
        %7519 = vrot.lane.b32.xlu0 %v7191, 64
        %v7520 = vpop.permute.xlu0 %7519
        %7521 = vrot.lane.b32.xlu0 %v7193, 64
        %v7522 = vpop.permute.xlu0 %7521
        %7523 = vrot.lane.b32.xlu0 %v7460, 64
        %v7524 = vpop.permute.xlu0 %7523
        %7525 = vrot.lane.b32.xlu0 %v7462, 64
        %v7526 = vpop.permute.xlu0 %7525
        %7559 = vst.msk [vmem:[#allocation5 + $0x10] sm:$0xff] %vm2916, %v7464
        %7560 = vst.msk [vmem:[#allocation5 + $0x38] sm:$0xff] %vm2916, %v7466
        %7561 = vst.msk [vmem:[#allocation5 + $0x60] sm:$0xff] %vm2916, %v7468
        %7562 = vst.msk [vmem:[#allocation5 + $0x88] sm:$0xff] %vm2916, %v7470
        %7563 = vst.msk [vmem:[#allocation5 + $0xb0] sm:$0xff] %vm2916, %v7472
        %7564 = vst.msk [vmem:[#allocation5 + $0xd8] sm:$0xff] %vm2916, %v7474
        %7565 = vst.msk [vmem:[#allocation5 + $0x100] sm:$0xff] %vm2916, %v7476
        %7566 = vst.msk [vmem:[#allocation5 + $0x128] sm:$0xff] %vm2916, %v7478
        %7567 = vst.msk [vmem:[#allocation5 + $0x150] sm:$0xff] %vm2916, %v7480
        %7568 = vst.msk [vmem:[#allocation5 + $0x178] sm:$0xff] %vm2916, %v7482
        %7569 = vst.msk [vmem:[#allocation5 + $0x1a0] sm:$0xff] %vm2916, %v7484
        %7570 = vst.msk [vmem:[#allocation5 + $0x1c8] sm:$0xff] %vm2916, %v7486
        %7571 = vst.msk [vmem:[#allocation5 + $0x1f0] sm:$0xff] %vm2916, %v7488
        %7572 = vst.msk [vmem:[#allocation5 + $0x218] sm:$0xff] %vm2916, %v7490
        %7573 = vst.msk [vmem:[#allocation5 + $0x240] sm:$0xff] %vm2916, %v7492
        %7574 = vst.msk [vmem:[#allocation5 + $0x268] sm:$0xff] %vm2916, %v7494
        %7575 = vst.msk [vmem:[#allocation5 + $0x290] sm:$0xff] %vm2916, %v7496
        %7576 = vst.msk [vmem:[#allocation5 + $0x2b8] sm:$0xff] %vm2916, %v7498
        %7577 = vst.msk [vmem:[#allocation5 + $0x2e0] sm:$0xff] %vm2916, %v7500
        %7578 = vst.msk [vmem:[#allocation5 + $0x308] sm:$0xff] %vm2916, %v7502
        %7579 = vst.msk [vmem:[#allocation5 + $0x330] sm:$0xff] %vm2916, %v7504
        %7580 = vst.msk [vmem:[#allocation5 + $0x358] sm:$0xff] %vm2916, %v7506
        %7581 = vst.msk [vmem:[#allocation5 + $0x380] sm:$0xff] %vm2916, %v7508
        %7582 = vst.msk [vmem:[#allocation5 + $0x3a8] sm:$0xff] %vm2916, %v7510
        %7583 = vst.msk [vmem:[#allocation5 + $0x3d0] sm:$0xff] %vm2916, %v7512
        %7584 = vst.msk [vmem:[#allocation5 + $0x3f8] sm:$0xff] %vm2916, %v7514
        %7585 = vst.msk [vmem:[#allocation5 + $0x420] sm:$0xff] %vm2916, %v7516
        %7586 = vst.msk [vmem:[#allocation5 + $0x448] sm:$0xff] %vm2916, %v7518
        %7587 = vst.msk [vmem:[#allocation5 + $0x470] sm:$0xff] %vm2916, %v7520
        %7588 = vst.msk [vmem:[#allocation5 + $0x498] sm:$0xff] %vm2916, %v7522
        %7589 = vst.msk [vmem:[#allocation5 + $0x4c0] sm:$0xff] %vm2916, %v7524
        %7590 = vst.msk [vmem:[#allocation5 + $0x4e8] sm:$0xff] %vm2916, %v7526
        %7591 = vst.msk [vmem:[#allocation5 + $0x18] sm:$0xff] %vm2516, %v6778
        %7592 = vst.msk [vmem:[#allocation5 + $0x40] sm:$0xff] %vm2516, %v6779
        %7593 = vst.msk [vmem:[#allocation5 + $0x68] sm:$0xff] %vm2516, %v6781
        %7594 = vst.msk [vmem:[#allocation5 + $0x90] sm:$0xff] %vm2516, %v6782
        %7595 = vst.msk [vmem:[#allocation5 + $0xb8] sm:$0xff] %vm2516, %v6784
        %7596 = vst.msk [vmem:[#allocation5 + $0xe0] sm:$0xff] %vm2516, %v6785
        %7597 = vst.msk [vmem:[#allocation5 + $0x108] sm:$0xff] %vm2516, %v6787
        %7598 = vst.msk [vmem:[#allocation5 + $0x130] sm:$0xff] %vm2516, %v6788
        %7599 = vst.msk [vmem:[#allocation5 + $0x158] sm:$0xff] %vm2516, %v6790
        %7600 = vst.msk [vmem:[#allocation5 + $0x180] sm:$0xff] %vm2516, %v6791
        %7601 = vst.msk [vmem:[#allocation5 + $0x1a8] sm:$0xff] %vm2516, %v6793
        %7602 = vst.msk [vmem:[#allocation5 + $0x1d0] sm:$0xff] %vm2516, %v6794
        %7603 = vst.msk [vmem:[#allocation5 + $0x1f8] sm:$0xff] %vm2516, %v6796
        %7604 = vst.msk [vmem:[#allocation5 + $0x220] sm:$0xff] %vm2516, %v6797
        %7605 = vst.msk [vmem:[#allocation5 + $0x248] sm:$0xff] %vm2516, %v6799
        %7606 = vst.msk [vmem:[#allocation5 + $0x270] sm:$0xff] %vm2516, %v6800
        %7607 = vst.msk [vmem:[#allocation5 + $0x298] sm:$0xff] %vm2516, %v6802
        %7608 = vst.msk [vmem:[#allocation5 + $0x2c0] sm:$0xff] %vm2516, %v6803
        %7609 = vst.msk [vmem:[#allocation5 + $0x2e8] sm:$0xff] %vm2516, %v6805
        %7610 = vst.msk [vmem:[#allocation5 + $0x310] sm:$0xff] %vm2516, %v6806
        %7611 = vst.msk [vmem:[#allocation5 + $0x338] sm:$0xff] %vm2516, %v6808
        %7612 = vst.msk [vmem:[#allocation5 + $0x360] sm:$0xff] %vm2516, %v6809
        %7613 = vst.msk [vmem:[#allocation5 + $0x388] sm:$0xff] %vm2516, %v6811
        %7614 = vst.msk [vmem:[#allocation5 + $0x3b0] sm:$0xff] %vm2516, %v6812
        %7615 = vst.msk [vmem:[#allocation5 + $0x3d8] sm:$0xff] %vm2516, %v6814
        %7616 = vst.msk [vmem:[#allocation5 + $0x400] sm:$0xff] %vm2516, %v6815
        %7617 = vst.msk [vmem:[#allocation5 + $0x428] sm:$0xff] %vm2516, %v6817
        %7618 = vst.msk [vmem:[#allocation5 + $0x450] sm:$0xff] %vm2516, %v6818
        %7619 = vst.msk [vmem:[#allocation5 + $0x478] sm:$0xff] %vm2516, %v6820
        %7620 = vst.msk [vmem:[#allocation5 + $0x4a0] sm:$0xff] %vm2516, %v6821
        %7621 = vst.msk [vmem:[#allocation5 + $0x4c8] sm:$0xff] %vm2516, %v6823
        %7622 = vst.msk [vmem:[#allocation5 + $0x4f0] sm:$0xff] %vm2516, %v6824
        %v7626 = vrot.slane %v6823, 1
        %v7627 = vrot.slane %v6824, 1
        %v7628 = vsel %vm2739, %v7626, %v7627
        %v7629 = vrot.slane %v6825, 1
        %v7630 = vsel %vm2739, %v7627, %v7629
        %7631 = vrot.lane.b32.xlu0 %v7391, 64
        %v7632 = vpop.permute.xlu0 %7631
        %7633 = vrot.lane.b32.xlu0 %v7393, 64
        %v7634 = vpop.permute.xlu0 %7633
        %7635 = vrot.lane.b32.xlu0 %v7628, 64
        %v7636 = vpop.permute.xlu0 %7635
        %7637 = vrot.lane.b32.xlu0 %v7630, 64
        %v7638 = vpop.permute.xlu0 %7637
        %7643 = vst.msk [vmem:[#allocation5 + $0x18] sm:$0xff] %vm2916, %v6995
        %7644 = vst.msk [vmem:[#allocation5 + $0x40] sm:$0xff] %vm2916, %v6997
        %7645 = vst.msk [vmem:[#allocation5 + $0x68] sm:$0xff] %vm2916, %v6999
        %7646 = vst.msk [vmem:[#allocation5 + $0x90] sm:$0xff] %vm2916, %v7001
        %7647 = vst.msk [vmem:[#allocation5 + $0xb8] sm:$0xff] %vm2916, %v7003
        %7648 = vst.msk [vmem:[#allocation5 + $0xe0] sm:$0xff] %vm2916, %v7005
        %7649 = vst.msk [vmem:[#allocation5 + $0x108] sm:$0xff] %vm2916, %v7007
        %7650 = vst.msk [vmem:[#allocation5 + $0x130] sm:$0xff] %vm2916, %v7009
        %7651 = vst.msk [vmem:[#allocation5 + $0x158] sm:$0xff] %vm2916, %v7011
        %7652 = vst.msk [vmem:[#allocation5 + $0x180] sm:$0xff] %vm2916, %v7013
        %7653 = vst.msk [vmem:[#allocation5 + $0x1a8] sm:$0xff] %vm2916, %v7015
        %7654 = vst.msk [vmem:[#allocation5 + $0x1d0] sm:$0xff] %vm2916, %v7017
        %7655 = vst.msk [vmem:[#allocation5 + $0x1f8] sm:$0xff] %vm2916, %v7019
        %7656 = vst.msk [vmem:[#allocation5 + $0x220] sm:$0xff] %vm2916, %v7021
        %7657 = vst.msk [vmem:[#allocation5 + $0x248] sm:$0xff] %vm2916, %v7023
        %7658 = vst.msk [vmem:[#allocation5 + $0x270] sm:$0xff] %vm2916, %v7025
        %7659 = vst.msk [vmem:[#allocation5 + $0x298] sm:$0xff] %vm2916, %v7027
        %7660 = vst.msk [vmem:[#allocation5 + $0x2c0] sm:$0xff] %vm2916, %v7029
        %7661 = vst.msk [vmem:[#allocation5 + $0x2e8] sm:$0xff] %vm2916, %v7031
        %7662 = vst.msk [vmem:[#allocation5 + $0x310] sm:$0xff] %vm2916, %v7033
        %7663 = vst.msk [vmem:[#allocation5 + $0x338] sm:$0xff] %vm2916, %v7035
        %7664 = vst.msk [vmem:[#allocation5 + $0x360] sm:$0xff] %vm2916, %v7037
        %7665 = vst.msk [vmem:[#allocation5 + $0x388] sm:$0xff] %vm2916, %v7039
        %7666 = vst.msk [vmem:[#allocation5 + $0x3b0] sm:$0xff] %vm2916, %v7041
        %7667 = vst.msk [vmem:[#allocation5 + $0x3d8] sm:$0xff] %vm2916, %v7043
        %7668 = vst.msk [vmem:[#allocation5 + $0x400] sm:$0xff] %vm2916, %v7045
        %7669 = vst.msk [vmem:[#allocation5 + $0x428] sm:$0xff] %vm2916, %v7047
        %7670 = vst.msk [vmem:[#allocation5 + $0x450] sm:$0xff] %vm2916, %v7049
        %7671 = vst.msk [vmem:[#allocation5 + $0x478] sm:$0xff] %vm2916, %v7632
        %7672 = vst.msk [vmem:[#allocation5 + $0x4a0] sm:$0xff] %vm2916, %v7634
        %7673 = vst.msk [vmem:[#allocation5 + $0x4c8] sm:$0xff] %vm2916, %v7636
        %7674 = vst.msk [vmem:[#allocation5 + $0x4f0] sm:$0xff] %vm2916, %v7638
        %v7675 = vrot.slane %v6823, 2
        %v7676 = vrot.slane %v6824, 2
        %v7677 = vsel %vm2949, %v7675, %v7676
        %v7678 = vrot.slane %v6825, 2
        %v7679 = vsel %vm2949, %v7676, %v7678
        %7684 = vst.msk [vmem:[#allocation5 + $0x20] sm:$0xff] %vm2516, %v7126
        %7685 = vst.msk [vmem:[#allocation5 + $0x48] sm:$0xff] %vm2516, %v7128
        %7686 = vst.msk [vmem:[#allocation5 + $0x70] sm:$0xff] %vm2516, %v7131
        %7687 = vst.msk [vmem:[#allocation5 + $0x98] sm:$0xff] %vm2516, %v7133
        %7688 = vst.msk [vmem:[#allocation5 + $0xc0] sm:$0xff] %vm2516, %v7136
        %7689 = vst.msk [vmem:[#allocation5 + $0xe8] sm:$0xff] %vm2516, %v7138
        %7690 = vst.msk [vmem:[#allocation5 + $0x110] sm:$0xff] %vm2516, %v7141
        %7691 = vst.msk [vmem:[#allocation5 + $0x138] sm:$0xff] %vm2516, %v7143
        %7692 = vst.msk [vmem:[#allocation5 + $0x160] sm:$0xff] %vm2516, %v7146
        %7693 = vst.msk [vmem:[#allocation5 + $0x188] sm:$0xff] %vm2516, %v7148
        %7694 = vst.msk [vmem:[#allocation5 + $0x1b0] sm:$0xff] %vm2516, %v7151
        %7695 = vst.msk [vmem:[#allocation5 + $0x1d8] sm:$0xff] %vm2516, %v7153
        %7696 = vst.msk [vmem:[#allocation5 + $0x200] sm:$0xff] %vm2516, %v7156
        %7697 = vst.msk [vmem:[#allocation5 + $0x228] sm:$0xff] %vm2516, %v7158
        %7698 = vst.msk [vmem:[#allocation5 + $0x250] sm:$0xff] %vm2516, %v7161
        %7699 = vst.msk [vmem:[#allocation5 + $0x278] sm:$0xff] %vm2516, %v7163
        %7700 = vst.msk [vmem:[#allocation5 + $0x2a0] sm:$0xff] %vm2516, %v7166
        %7701 = vst.msk [vmem:[#allocation5 + $0x2c8] sm:$0xff] %vm2516, %v7168
        %7702 = vst.msk [vmem:[#allocation5 + $0x2f0] sm:$0xff] %vm2516, %v7171
        %7703 = vst.msk [vmem:[#allocation5 + $0x318] sm:$0xff] %vm2516, %v7173
        %7704 = vst.msk [vmem:[#allocation5 + $0x340] sm:$0xff] %vm2516, %v7176
        %7705 = vst.msk [vmem:[#allocation5 + $0x368] sm:$0xff] %vm2516, %v7178
        %7706 = vst.msk [vmem:[#allocation5 + $0x390] sm:$0xff] %vm2516, %v7181
        %7707 = vst.msk [vmem:[#allocation5 + $0x3b8] sm:$0xff] %vm2516, %v7183
        %7708 = vst.msk [vmem:[#allocation5 + $0x3e0] sm:$0xff] %vm2516, %v7186
        %7709 = vst.msk [vmem:[#allocation5 + $0x408] sm:$0xff] %vm2516, %v7188
        %7710 = vst.msk [vmem:[#allocation5 + $0x430] sm:$0xff] %vm2516, %v7191
        %7711 = vst.msk [vmem:[#allocation5 + $0x458] sm:$0xff] %vm2516, %v7193
        %7712 = vst.msk [vmem:[#allocation5 + $0x480] sm:$0xff] %vm2516, %v7460
        %7713 = vst.msk [vmem:[#allocation5 + $0x4a8] sm:$0xff] %vm2516, %v7462
        %7714 = vst.msk [vmem:[#allocation5 + $0x4d0] sm:$0xff] %vm2516, %v7677
        %7715 = vst.msk [vmem:[#allocation5 + $0x4f8] sm:$0xff] %vm2516, %v7679
        %v7716 = vld [vmem:[#allocation5] sm:$0xff]
        %v7717 = vld [vmem:[#allocation5 + $0x8] sm:$0xff]
        %v7718 = vld [vmem:[#allocation5 + $0x10] sm:$0xff]
        %v7719 = vld [vmem:[#allocation5 + $0x18] sm:$0xff]
        %v7720 = vld [vmem:[#allocation5 + $0x20] sm:$0xff]
        %v7721 = vld [vmem:[#allocation5 + $0x28] sm:$0xff]
        %v7722 = vld [vmem:[#allocation5 + $0x30] sm:$0xff]
        %v7723 = vld [vmem:[#allocation5 + $0x38] sm:$0xff]
        %v7724 = vld [vmem:[#allocation5 + $0x40] sm:$0xff]
        %v7725 = vld [vmem:[#allocation5 + $0x48] sm:$0xff]
        %v7726 = vld [vmem:[#allocation5 + $0x50] sm:$0xff]
        %v7727 = vld [vmem:[#allocation5 + $0x58] sm:$0xff]
        %v7728 = vld [vmem:[#allocation5 + $0x60] sm:$0xff]
        %v7729 = vld [vmem:[#allocation5 + $0x68] sm:$0xff]
        %v7730 = vld [vmem:[#allocation5 + $0x70] sm:$0xff]
        %v7731 = vld [vmem:[#allocation5 + $0x78] sm:$0xff]
        %v7732 = vld [vmem:[#allocation5 + $0x80] sm:$0xff]
        %v7733 = vld [vmem:[#allocation5 + $0x88] sm:$0xff]
        %v7734 = vld [vmem:[#allocation5 + $0x90] sm:$0xff]
        %v7735 = vld [vmem:[#allocation5 + $0x98] sm:$0xff]
        %v7736 = vld [vmem:[#allocation5 + $0xa0] sm:$0xff]
        %v7737 = vld [vmem:[#allocation5 + $0xa8] sm:$0xff]
        %v7738 = vld [vmem:[#allocation5 + $0xb0] sm:$0xff]
        %v7739 = vld [vmem:[#allocation5 + $0xb8] sm:$0xff]
        %v7740 = vld [vmem:[#allocation5 + $0xc0] sm:$0xff]
        %v7741 = vld [vmem:[#allocation5 + $0xc8] sm:$0xff]
        %v7742 = vld [vmem:[#allocation5 + $0xd0] sm:$0xff]
        %v7743 = vld [vmem:[#allocation5 + $0xd8] sm:$0xff]
        %v7744 = vld [vmem:[#allocation5 + $0xe0] sm:$0xff]
        %v7745 = vld [vmem:[#allocation5 + $0xe8] sm:$0xff]
        %v7746 = vld [vmem:[#allocation5 + $0xf0] sm:$0xff]
        %v7747 = vld [vmem:[#allocation5 + $0xf8] sm:$0xff]
        %v7748 = vld [vmem:[#allocation5 + $0x100] sm:$0xff]
        %v7749 = vld [vmem:[#allocation5 + $0x108] sm:$0xff]
        %v7750 = vld [vmem:[#allocation5 + $0x110] sm:$0xff]
        %v7751 = vld [vmem:[#allocation5 + $0x118] sm:$0xff]
        %v7752 = vld [vmem:[#allocation5 + $0x120] sm:$0xff]
        %v7753 = vld [vmem:[#allocation5 + $0x128] sm:$0xff]
        %v7754 = vld [vmem:[#allocation5 + $0x130] sm:$0xff]
        %v7755 = vld [vmem:[#allocation5 + $0x138] sm:$0xff]
        %v7756 = vld [vmem:[#allocation5 + $0x140] sm:$0xff]
        %v7757 = vld [vmem:[#allocation5 + $0x148] sm:$0xff]
        %v7758 = vld [vmem:[#allocation5 + $0x150] sm:$0xff]
        %v7759 = vld [vmem:[#allocation5 + $0x158] sm:$0xff]
        %v7760 = vld [vmem:[#allocation5 + $0x160] sm:$0xff]
        %v7761 = vld [vmem:[#allocation5 + $0x168] sm:$0xff]
        %v7762 = vld [vmem:[#allocation5 + $0x170] sm:$0xff]
        %v7763 = vld [vmem:[#allocation5 + $0x178] sm:$0xff]
        %v7764 = vld [vmem:[#allocation5 + $0x180] sm:$0xff]
        %v7765 = vld [vmem:[#allocation5 + $0x188] sm:$0xff]
        %v7766 = vld [vmem:[#allocation5 + $0x190] sm:$0xff]
        %v7767 = vld [vmem:[#allocation5 + $0x198] sm:$0xff]
        %v7768 = vld [vmem:[#allocation5 + $0x1a0] sm:$0xff]
        %v7769 = vld [vmem:[#allocation5 + $0x1a8] sm:$0xff]
        %v7770 = vld [vmem:[#allocation5 + $0x1b0] sm:$0xff]
        %v7771 = vld [vmem:[#allocation5 + $0x1b8] sm:$0xff]
        %v7772 = vld [vmem:[#allocation5 + $0x1c0] sm:$0xff]
        %v7773 = vld [vmem:[#allocation5 + $0x1c8] sm:$0xff]
        %v7774 = vld [vmem:[#allocation5 + $0x1d0] sm:$0xff]
        %v7775 = vld [vmem:[#allocation5 + $0x1d8] sm:$0xff]
        %v7776 = vld [vmem:[#allocation5 + $0x1e0] sm:$0xff]
        %v7777 = vld [vmem:[#allocation5 + $0x1e8] sm:$0xff]
        %v7778 = vld [vmem:[#allocation5 + $0x1f0] sm:$0xff]
        %v7779 = vld [vmem:[#allocation5 + $0x1f8] sm:$0xff]
        %v7780 = vld [vmem:[#allocation5 + $0x200] sm:$0xff]
        %v7781 = vld [vmem:[#allocation5 + $0x208] sm:$0xff]
        %v7782 = vld [vmem:[#allocation5 + $0x210] sm:$0xff]
        %v7783 = vld [vmem:[#allocation5 + $0x218] sm:$0xff]
        %v7784 = vld [vmem:[#allocation5 + $0x220] sm:$0xff]
        %v7785 = vld [vmem:[#allocation5 + $0x228] sm:$0xff]
        %v7786 = vld [vmem:[#allocation5 + $0x230] sm:$0xff]
        %v7787 = vld [vmem:[#allocation5 + $0x238] sm:$0xff]
        %v7788 = vld [vmem:[#allocation5 + $0x240] sm:$0xff]
        %v7789 = vld [vmem:[#allocation5 + $0x248] sm:$0xff]
        %v7790 = vld [vmem:[#allocation5 + $0x250] sm:$0xff]
        %v7791 = vld [vmem:[#allocation5 + $0x258] sm:$0xff]
        %v7792 = vld [vmem:[#allocation5 + $0x260] sm:$0xff]
        %v7793 = vld [vmem:[#allocation5 + $0x268] sm:$0xff]
        %v7794 = vld [vmem:[#allocation5 + $0x270] sm:$0xff]
        %v7795 = vld [vmem:[#allocation5 + $0x278] sm:$0xff]
        %v7796 = vld [vmem:[#allocation5 + $0x280] sm:$0xff]
        %v7797 = vld [vmem:[#allocation5 + $0x288] sm:$0xff]
        %v7798 = vld [vmem:[#allocation5 + $0x290] sm:$0xff]
        %v7799 = vld [vmem:[#allocation5 + $0x298] sm:$0xff]
        %v7800 = vld [vmem:[#allocation5 + $0x2a0] sm:$0xff]
        %v7801 = vld [vmem:[#allocation5 + $0x2a8] sm:$0xff]
        %v7802 = vld [vmem:[#allocation5 + $0x2b0] sm:$0xff]
        %v7803 = vld [vmem:[#allocation5 + $0x2b8] sm:$0xff]
        %v7804 = vld [vmem:[#allocation5 + $0x2c0] sm:$0xff]
        %v7805 = vld [vmem:[#allocation5 + $0x2c8] sm:$0xff]
        %v7806 = vld [vmem:[#allocation5 + $0x2d0] sm:$0xff]
        %v7807 = vld [vmem:[#allocation5 + $0x2d8] sm:$0xff]
        %v7808 = vld [vmem:[#allocation5 + $0x2e0] sm:$0xff]
        %v7809 = vld [vmem:[#allocation5 + $0x2e8] sm:$0xff]
        %v7810 = vld [vmem:[#allocation5 + $0x2f0] sm:$0xff]
        %v7811 = vld [vmem:[#allocation5 + $0x2f8] sm:$0xff]
        %v7812 = vld [vmem:[#allocation5 + $0x300] sm:$0xff]
        %v7813 = vld [vmem:[#allocation5 + $0x308] sm:$0xff]
        %v7814 = vld [vmem:[#allocation5 + $0x310] sm:$0xff]
        %v7815 = vld [vmem:[#allocation5 + $0x318] sm:$0xff]
        %v7816 = vld [vmem:[#allocation5 + $0x320] sm:$0xff]
        %v7817 = vld [vmem:[#allocation5 + $0x328] sm:$0xff]
        %v7818 = vld [vmem:[#allocation5 + $0x330] sm:$0xff]
        %v7819 = vld [vmem:[#allocation5 + $0x338] sm:$0xff]
        %v7820 = vld [vmem:[#allocation5 + $0x340] sm:$0xff]
        %v7821 = vld [vmem:[#allocation5 + $0x348] sm:$0xff]
        %v7822 = vld [vmem:[#allocation5 + $0x350] sm:$0xff]
        %v7823 = vld [vmem:[#allocation5 + $0x358] sm:$0xff]
        %v7824 = vld [vmem:[#allocation5 + $0x360] sm:$0xff]
        %v7825 = vld [vmem:[#allocation5 + $0x368] sm:$0xff]
        %v7826 = vld [vmem:[#allocation5 + $0x370] sm:$0xff]
        %v7827 = vld [vmem:[#allocation5 + $0x378] sm:$0xff]
        %v7828 = vld [vmem:[#allocation5 + $0x380] sm:$0xff]
        %v7829 = vld [vmem:[#allocation5 + $0x388] sm:$0xff]
        %v7830 = vld [vmem:[#allocation5 + $0x390] sm:$0xff]
        %v7831 = vld [vmem:[#allocation5 + $0x398] sm:$0xff]
        %v7832 = vld [vmem:[#allocation5 + $0x3a0] sm:$0xff]
        %v7833 = vld [vmem:[#allocation5 + $0x3a8] sm:$0xff]
        %v7834 = vld [vmem:[#allocation5 + $0x3b0] sm:$0xff]
        %v7835 = vld [vmem:[#allocation5 + $0x3b8] sm:$0xff]
        %v7836 = vld [vmem:[#allocation5 + $0x3c0] sm:$0xff]
        %v7837 = vld [vmem:[#allocation5 + $0x3c8] sm:$0xff]
        %v7838 = vld [vmem:[#allocation5 + $0x3d0] sm:$0xff]
        %v7839 = vld [vmem:[#allocation5 + $0x3d8] sm:$0xff]
        %v7840 = vld [vmem:[#allocation5 + $0x3e0] sm:$0xff]
        %v7841 = vld [vmem:[#allocation5 + $0x3e8] sm:$0xff]
        %v7842 = vld [vmem:[#allocation5 + $0x3f0] sm:$0xff]
        %v7843 = vld [vmem:[#allocation5 + $0x3f8] sm:$0xff]
        %v7844 = vld [vmem:[#allocation5 + $0x400] sm:$0xff]
        %v7845 = vld [vmem:[#allocation5 + $0x408] sm:$0xff]
        %v7846 = vld [vmem:[#allocation5 + $0x410] sm:$0xff]
        %v7847 = vld [vmem:[#allocation5 + $0x418] sm:$0xff]
        %v7848 = vld [vmem:[#allocation5 + $0x420] sm:$0xff]
        %v7849 = vld [vmem:[#allocation5 + $0x428] sm:$0xff]
        %v7850 = vld [vmem:[#allocation5 + $0x430] sm:$0xff]
        %v7851 = vld [vmem:[#allocation5 + $0x438] sm:$0xff]
        %v7852 = vld [vmem:[#allocation5 + $0x440] sm:$0xff]
        %v7853 = vld [vmem:[#allocation5 + $0x448] sm:$0xff]
        %v7854 = vld [vmem:[#allocation5 + $0x450] sm:$0xff]
        %v7855 = vld [vmem:[#allocation5 + $0x458] sm:$0xff]
        %v7856 = vld [vmem:[#allocation5 + $0x460] sm:$0xff]
        %v7857 = vld [vmem:[#allocation5 + $0x468] sm:$0xff]
        %v7858 = vld [vmem:[#allocation5 + $0x470] sm:$0xff]
        %v7859 = vld [vmem:[#allocation5 + $0x478] sm:$0xff]
        %v7860 = vld [vmem:[#allocation5 + $0x480] sm:$0xff]
        %v7861 = vld [vmem:[#allocation5 + $0x488] sm:$0xff]
        %v7862 = vld [vmem:[#allocation5 + $0x490] sm:$0xff]
        %v7863 = vld [vmem:[#allocation5 + $0x498] sm:$0xff]
        %v7864 = vld [vmem:[#allocation5 + $0x4a0] sm:$0xff]
        %v7865 = vld [vmem:[#allocation5 + $0x4a8] sm:$0xff]
        %v7866 = vld [vmem:[#allocation5 + $0x4b0] sm:$0xff]
        %v7867 = vld [vmem:[#allocation5 + $0x4b8] sm:$0xff]
        %v7868 = vld [vmem:[#allocation5 + $0x4c0] sm:$0xff]
        %v7869 = vld [vmem:[#allocation5 + $0x4c8] sm:$0xff]
        %v7870 = vld [vmem:[#allocation5 + $0x4d0] sm:$0xff]
        %v7871 = vld [vmem:[#allocation5 + $0x4d8] sm:$0xff]
        %v7872 = vld [vmem:[#allocation5 + $0x4e0] sm:$0xff]
        %v7873 = vld [vmem:[#allocation5 + $0x4e8] sm:$0xff]
        %v7874 = vld [vmem:[#allocation5 + $0x4f0] sm:$0xff]
        %v7875 = vld [vmem:[#allocation5 + $0x4f8] sm:$0xff]
        %v7876 = vld [vmem:[%s7] sm:$0xff]
        %v7877 = vld [vmem:[%s7 + $0x8] sm:$0xff]
        %v7878 = vld [vmem:[%s7 + $0x10] sm:$0xff]
        %v7879 = vld [vmem:[%s7 + $0x18] sm:$0xff]
        %v7880 = vld [vmem:[%s7 + $0x20] sm:$0xff]
        %v7881 = vld [vmem:[%s7 + $0x28] sm:$0xff]
        %v7882 = vld [vmem:[%s7 + $0x30] sm:$0xff]
        %v7883 = vld [vmem:[%s7 + $0x38] sm:$0xff]
        %v7884 = vld [vmem:[%s7 + $0x40] sm:$0xff]
        %v7885 = vld [vmem:[%s7 + $0x48] sm:$0xff]
        %v7886 = vld [vmem:[%s7 + $0x50] sm:$0xff]
        %v7887 = vld [vmem:[%s7 + $0x58] sm:$0xff]
        %v7888 = vld [vmem:[%s7 + $0x60] sm:$0xff]
        %v7889 = vld [vmem:[%s7 + $0x68] sm:$0xff]
        %v7890 = vld [vmem:[%s7 + $0x70] sm:$0xff]
        %v7891 = vld [vmem:[%s7 + $0x78] sm:$0xff]
        %v7892 = vld [vmem:[%s7 + $0x80] sm:$0xff]
        %v7893 = vld [vmem:[%s7 + $0x88] sm:$0xff]
        %v7894 = vld [vmem:[%s7 + $0x90] sm:$0xff]
        %v7895 = vld [vmem:[%s7 + $0x98] sm:$0xff]
        %v7896 = vld [vmem:[%s7 + $0xa0] sm:$0xff]
        %v7897 = vld [vmem:[%s7 + $0xa8] sm:$0xff]
        %v7898 = vld [vmem:[%s7 + $0xb0] sm:$0xff]
        %v7899 = vld [vmem:[%s7 + $0xb8] sm:$0xff]
        %v7900 = vld [vmem:[%s7 + $0xc0] sm:$0xff]
        %v7901 = vld [vmem:[%s7 + $0xc8] sm:$0xff]
        %v7902 = vld [vmem:[%s7 + $0xd0] sm:$0xff]
        %v7903 = vld [vmem:[%s7 + $0xd8] sm:$0xff]
        %v7904 = vld [vmem:[%s7 + $0xe0] sm:$0xff]
        %v7905 = vld [vmem:[%s7 + $0xe8] sm:$0xff]
        %v7906 = vld [vmem:[%s7 + $0xf0] sm:$0xff]
        %v7907 = vld [vmem:[%s7 + $0xf8] sm:$0xff]
        %v7908 = vld [vmem:[%s7 + $0x100] sm:$0xff]
        %v7909 = vld [vmem:[%s7 + $0x108] sm:$0xff]
        %v7910 = vld [vmem:[%s7 + $0x110] sm:$0xff]
        %v7911 = vld [vmem:[%s7 + $0x118] sm:$0xff]
        %v7912 = vld [vmem:[%s7 + $0x120] sm:$0xff]
        %v7913 = vld [vmem:[%s7 + $0x128] sm:$0xff]
        %v7914 = vld [vmem:[%s7 + $0x130] sm:$0xff]
        %v7915 = vld [vmem:[%s7 + $0x138] sm:$0xff]
        %v7916 = vld [vmem:[%s7 + $0x140] sm:$0xff]
        %v7917 = vld [vmem:[%s7 + $0x148] sm:$0xff]
        %v7918 = vld [vmem:[%s7 + $0x150] sm:$0xff]
        %v7919 = vld [vmem:[%s7 + $0x158] sm:$0xff]
        %v7920 = vld [vmem:[%s7 + $0x160] sm:$0xff]
        %v7921 = vld [vmem:[%s7 + $0x168] sm:$0xff]
        %v7922 = vld [vmem:[%s7 + $0x170] sm:$0xff]
        %v7923 = vld [vmem:[%s7 + $0x178] sm:$0xff]
        %v7924 = vld [vmem:[%s7 + $0x180] sm:$0xff]
        %v7925 = vld [vmem:[%s7 + $0x188] sm:$0xff]
        %v7926 = vld [vmem:[%s7 + $0x190] sm:$0xff]
        %v7927 = vld [vmem:[%s7 + $0x198] sm:$0xff]
        %v7928 = vld [vmem:[%s7 + $0x1a0] sm:$0xff]
        %v7929 = vld [vmem:[%s7 + $0x1a8] sm:$0xff]
        %v7930 = vld [vmem:[%s7 + $0x1b0] sm:$0xff]
        %v7931 = vld [vmem:[%s7 + $0x1b8] sm:$0xff]
        %v7932 = vld [vmem:[%s7 + $0x1c0] sm:$0xff]
        %v7933 = vld [vmem:[%s7 + $0x1c8] sm:$0xff]
        %v7934 = vld [vmem:[%s7 + $0x1d0] sm:$0xff]
        %v7935 = vld [vmem:[%s7 + $0x1d8] sm:$0xff]
        %v7936 = vld [vmem:[%s7 + $0x1e0] sm:$0xff]
        %v7937 = vld [vmem:[%s7 + $0x1e8] sm:$0xff]
        %v7938 = vld [vmem:[%s7 + $0x1f0] sm:$0xff]
        %v7939 = vld [vmem:[%s7 + $0x1f8] sm:$0xff]
        %v7940 = vld [vmem:[%s7 + $0x200] sm:$0xff]
        %v7941 = vld [vmem:[%s7 + $0x208] sm:$0xff]
        %v7942 = vld [vmem:[%s7 + $0x210] sm:$0xff]
        %v7943 = vld [vmem:[%s7 + $0x218] sm:$0xff]
        %v7944 = vld [vmem:[%s7 + $0x220] sm:$0xff]
        %v7945 = vld [vmem:[%s7 + $0x228] sm:$0xff]
        %v7946 = vld [vmem:[%s7 + $0x230] sm:$0xff]
        %v7947 = vld [vmem:[%s7 + $0x238] sm:$0xff]
        %v7948 = vld [vmem:[%s8] sm:$0x1]
        %v7950 = vlaneseq
        %v7951 = vshrl.u32 %v7950, 7
        %v7952 = vsub.s32 0, %v7951
        %v7953 = vrot.slane %v7948, %v7952
        %v7956 = vsel %vm2516, %v7720, 0
        %v7959 = vsel %vm2516, %v7725, 0
        %v7962 = vsel %vm2516, %v7730, 0
        %v7965 = vsel %vm2516, %v7735, 0
        %v7968 = vsel %vm2516, %v7740, 0
        %v7971 = vsel %vm2516, %v7745, 0
        %v7974 = vsel %vm2516, %v7750, 0
        %v7977 = vsel %vm2516, %v7755, 0
        %v7980 = vsel %vm2516, %v7760, 0
        %v7983 = vsel %vm2516, %v7765, 0
        %v7986 = vsel %vm2516, %v7770, 0
        %v7989 = vsel %vm2516, %v7775, 0
        %v7992 = vsel %vm2516, %v7780, 0
        %v7995 = vsel %vm2516, %v7785, 0
        %v7998 = vsel %vm2516, %v7790, 0
        %v8001 = vsel %vm2516, %v7795, 0
        %v8004 = vsel %vm2516, %v7800, 0
        %v8007 = vsel %vm2516, %v7805, 0
        %v8010 = vsel %vm2516, %v7810, 0
        %v8013 = vsel %vm2516, %v7815, 0
        %v8016 = vsel %vm2516, %v7820, 0
        %v8019 = vsel %vm2516, %v7825, 0
        %v8022 = vsel %vm2516, %v7830, 0
        %v8025 = vsel %vm2516, %v7835, 0
        %v8028 = vsel %vm2516, %v7840, 0
        %v8031 = vsel %vm2516, %v7845, 0
        %v8034 = vsel %vm2516, %v7850, 0
        %v8037 = vsel %vm2516, %v7855, 0
        %v8040 = vsel %vm2516, %v7860, 0
        %v8043 = vsel %vm2516, %v7865, 0
        %v8046 = vsel %vm2516, %v7870, 0
        %v8049 = vsel %vm2516, %v7875, 0
        %8051 = vmatprep.subr.mxu0 0.0
        %8052 = vmatpush1.msra.mxu0 %v7891
        %8053 = vmatprep.subr.mxu0 0.0
        %8054 = vmatpush1.msra.mxu0 %v7890
        %8055 = vmatprep.subr.mxu0 0.0
        %8056 = vmatpush1.msra.mxu0 %v7889
        %8057 = vmatprep.subr.mxu0 0.0
        %8058 = vmatpush1.msra.mxu0 %v7888
        %8059 = vmatprep.subr.mxu0 0.0
        %8060 = vmatpush1.msra.mxu0 %v7887
        %8061 = vmatprep.subr.mxu0 0.0
        %8062 = vmatpush1.msra.mxu0 %v7886
        %8063 = vmatprep.subr.mxu0 0.0
        %8064 = vmatpush1.msra.mxu0 %v7885
        %8065 = vmatprep.subr.mxu0 0.0
        %8066 = vmatpush1.msra.mxu0 %v7884
        %8067 = vmatprep.subr.mxu0 0.0
        %8068 = vmatpush1.msra.mxu0 %v7883
        %8069 = vmatprep.subr.mxu0 0.0
        %8070 = vmatpush1.msra.mxu0 %v7882
        %8071 = vmatprep.subr.mxu0 0.0
        %8072 = vmatpush1.msra.mxu0 %v7881
        %8073 = vmatprep.subr.mxu0 0.0
        %8074 = vmatpush1.msra.mxu0 %v7880
        %8075 = vmatprep.subr.mxu0 0.0
        %8076 = vmatpush1.msra.mxu0 %v7879
        %8077 = vmatprep.subr.mxu0 0.0
        %8078 = vmatpush1.msra.mxu0 %v7878
        %8079 = vmatprep.subr.mxu0 0.0
        %8080 = vmatpush1.msra.mxu0 %v7877
        %8081 = vmatprep.subr.mxu0 0.0
        %8082 = vmatpush1.msra.mxu0 %v7876
        %8083 = vmatprep.subr.mxu0 0.0
        %8084 = vmatpush2.msra.mxu0 %v7907
        %8085 = vmatprep.subr.mxu0 0.0
        %8086 = vmatpush2.msra.mxu0 %v7906
        %8087 = vmatprep.subr.mxu0 0.0
        %8088 = vmatpush2.msra.mxu0 %v7905
        %8089 = vmatprep.subr.mxu0 0.0
        %8090 = vmatpush2.msra.mxu0 %v7904
        %8091 = vmatprep.subr.mxu0 0.0
        %8092 = vmatpush2.msra.mxu0 %v7903
        %8093 = vmatprep.subr.mxu0 0.0
        %8094 = vmatpush2.msra.mxu0 %v7902
        %8095 = vmatprep.subr.mxu0 0.0
        %8096 = vmatpush2.msra.mxu0 %v7901
        %8097 = vmatprep.subr.mxu0 0.0
        %8098 = vmatpush2.msra.mxu0 %v7900
        %8099 = vmatprep.subr.mxu0 0.0
        %8100 = vmatpush2.msra.mxu0 %v7899
        %8101 = vmatprep.subr.mxu0 0.0
        %8102 = vmatpush2.msra.mxu0 %v7898
        %8103 = vmatprep.subr.mxu0 0.0
        %8104 = vmatpush2.msra.mxu0 %v7897
        %8105 = vmatprep.subr.mxu0 0.0
        %8106 = vmatpush2.msra.mxu0 %v7896
        %8107 = vmatprep.subr.mxu0 0.0
        %8108 = vmatpush2.msra.mxu0 %v7895
        %8109 = vmatprep.subr.mxu0 0.0
        %8110 = vmatpush2.msra.mxu0 %v7894
        %8111 = vmatprep.subr.mxu0 0.0
        %8112 = vmatpush2.msra.mxu0 %v7893
        %8113 = vmatprep.subr.mxu0 0.0
        %8114 = vmatpush2.msra.mxu0 %v7892
        %8115 = vmatprep.mubr.f32.mxu0 %v7717
        %8116 = vmatmul.mubr.f32.gmra.mxu0 %v7716
        %v8117 = vpop.f32.mrf.mxu0
        %v8118 = vadd.f32 %v7953, %v8117
        %v8119 = vpop.f32.mrf.mxu0
        %8120 = vmatprep.mubr.f32.mxu0 %v7722
        %8121 = vmatmul.mubr.f32.gmra.mxu0 %v7721
        %v8122 = vpop.f32.mrf.mxu0
        %v8123 = vadd.f32 %v7953, %v8122
        %v8124 = vpop.f32.mrf.mxu0
        %8125 = vmatprep.mubr.f32.mxu0 %v7727
        %8126 = vmatmul.mubr.f32.gmra.mxu0 %v7726
        %v8127 = vpop.f32.mrf.mxu0
        %v8128 = vadd.f32 %v7953, %v8127
        %v8129 = vpop.f32.mrf.mxu0
        %8130 = vmatprep.mubr.f32.mxu0 %v7732
        %8131 = vmatmul.mubr.f32.gmra.mxu0 %v7731
        %v8132 = vpop.f32.mrf.mxu0
        %v8133 = vadd.f32 %v7953, %v8132
        %v8134 = vpop.f32.mrf.mxu0
        %8135 = vmatprep.mubr.f32.mxu0 %v7737
        %8136 = vmatmul.mubr.f32.gmra.mxu0 %v7736
        %v8137 = vpop.f32.mrf.mxu0
        %v8138 = vadd.f32 %v7953, %v8137
        %v8139 = vpop.f32.mrf.mxu0
        %8140 = vmatprep.mubr.f32.mxu0 %v7742
        %8141 = vmatmul.mubr.f32.gmra.mxu0 %v7741
        %v8142 = vpop.f32.mrf.mxu0
        %v8143 = vadd.f32 %v7953, %v8142
        %v8144 = vpop.f32.mrf.mxu0
        %8145 = vmatprep.mubr.f32.mxu0 %v7747
        %8146 = vmatmul.mubr.f32.gmra.mxu0 %v7746
        %v8147 = vpop.f32.mrf.mxu0
        %v8148 = vadd.f32 %v7953, %v8147
        %v8149 = vpop.f32.mrf.mxu0
        %8150 = vmatprep.mubr.f32.mxu0 %v7752
        %8151 = vmatmul.mubr.f32.gmra.mxu0 %v7751
        %v8152 = vpop.f32.mrf.mxu0
        %v8153 = vadd.f32 %v7953, %v8152
        %v8154 = vpop.f32.mrf.mxu0
        %8155 = vmatprep.mubr.f32.mxu0 %v7757
        %8156 = vmatmul.mubr.f32.gmra.mxu0 %v7756
        %v8157 = vpop.f32.mrf.mxu0
        %v8158 = vadd.f32 %v7953, %v8157
        %v8159 = vpop.f32.mrf.mxu0
        %8160 = vmatprep.mubr.f32.mxu0 %v7762
        %8161 = vmatmul.mubr.f32.gmra.mxu0 %v7761
        %v8162 = vpop.f32.mrf.mxu0
        %v8163 = vadd.f32 %v7953, %v8162
        %v8164 = vpop.f32.mrf.mxu0
        %8165 = vmatprep.mubr.f32.mxu0 %v7767
        %8166 = vmatmul.mubr.f32.gmra.mxu0 %v7766
        %v8167 = vpop.f32.mrf.mxu0
        %v8168 = vadd.f32 %v7953, %v8167
        %v8169 = vpop.f32.mrf.mxu0
        %8170 = vmatprep.mubr.f32.mxu0 %v7772
        %8171 = vmatmul.mubr.f32.gmra.mxu0 %v7771
        %v8172 = vpop.f32.mrf.mxu0
        %v8173 = vadd.f32 %v7953, %v8172
        %v8174 = vpop.f32.mrf.mxu0
        %8175 = vmatprep.mubr.f32.mxu0 %v7777
        %8176 = vmatmul.mubr.f32.gmra.mxu0 %v7776
        %v8177 = vpop.f32.mrf.mxu0
        %v8178 = vadd.f32 %v7953, %v8177
        %v8179 = vpop.f32.mrf.mxu0
        %8180 = vmatprep.mubr.f32.mxu0 %v7782
        %8181 = vmatmul.mubr.f32.gmra.mxu0 %v7781
        %v8182 = vpop.f32.mrf.mxu0
        %v8183 = vadd.f32 %v7953, %v8182
        %v8184 = vpop.f32.mrf.mxu0
        %8185 = vmatprep.mubr.f32.mxu0 %v7787
        %8186 = vmatmul.mubr.f32.gmra.mxu0 %v7786
        %v8187 = vpop.f32.mrf.mxu0
        %v8188 = vadd.f32 %v7953, %v8187
        %v8189 = vpop.f32.mrf.mxu0
        %8190 = vmatprep.mubr.f32.mxu0 %v7792
        %8191 = vmatmul.mubr.f32.gmra.mxu0 %v7791
        %v8192 = vpop.f32.mrf.mxu0
        %v8193 = vadd.f32 %v7953, %v8192
        %v8194 = vpop.f32.mrf.mxu0
        %8195 = vmatprep.mubr.f32.mxu0 %v7797
        %8196 = vmatmul.mubr.f32.gmra.mxu0 %v7796
        %v8197 = vpop.f32.mrf.mxu0
        %v8198 = vadd.f32 %v7953, %v8197
        %v8199 = vpop.f32.mrf.mxu0
        %8200 = vmatprep.mubr.f32.mxu0 %v7802
        %8201 = vmatmul.mubr.f32.gmra.mxu0 %v7801
        %v8202 = vpop.f32.mrf.mxu0
        %v8203 = vadd.f32 %v7953, %v8202
        %v8204 = vpop.f32.mrf.mxu0
        %8205 = vmatprep.mubr.f32.mxu0 %v7807
        %8206 = vmatmul.mubr.f32.gmra.mxu0 %v7806
        %v8207 = vpop.f32.mrf.mxu0
        %v8208 = vadd.f32 %v7953, %v8207
        %v8209 = vpop.f32.mrf.mxu0
        %8210 = vmatprep.mubr.f32.mxu0 %v7812
        %8211 = vmatmul.mubr.f32.gmra.mxu0 %v7811
        %v8212 = vpop.f32.mrf.mxu0
        %v8213 = vadd.f32 %v7953, %v8212
        %v8214 = vpop.f32.mrf.mxu0
        %8215 = vmatprep.mubr.f32.mxu0 %v7817
        %8216 = vmatmul.mubr.f32.gmra.mxu0 %v7816
        %v8217 = vpop.f32.mrf.mxu0
        %v8218 = vadd.f32 %v7953, %v8217
        %v8219 = vpop.f32.mrf.mxu0
        %8220 = vmatprep.mubr.f32.mxu0 %v7822
        %8221 = vmatmul.mubr.f32.gmra.mxu0 %v7821
        %v8222 = vpop.f32.mrf.mxu0
        %v8223 = vadd.f32 %v7953, %v8222
        %v8224 = vpop.f32.mrf.mxu0
        %8225 = vmatprep.mubr.f32.mxu0 %v7827
        %8226 = vmatmul.mubr.f32.gmra.mxu0 %v7826
        %v8227 = vpop.f32.mrf.mxu0
        %v8228 = vadd.f32 %v7953, %v8227
        %v8229 = vpop.f32.mrf.mxu0
        %8230 = vmatprep.mubr.f32.mxu0 %v7832
        %8231 = vmatmul.mubr.f32.gmra.mxu0 %v7831
        %v8232 = vpop.f32.mrf.mxu0
        %v8233 = vadd.f32 %v7953, %v8232
        %v8234 = vpop.f32.mrf.mxu0
        %8235 = vmatprep.mubr.f32.mxu0 %v7837
        %8236 = vmatmul.mubr.f32.gmra.mxu0 %v7836
        %v8237 = vpop.f32.mrf.mxu0
        %v8238 = vadd.f32 %v7953, %v8237
        %v8239 = vpop.f32.mrf.mxu0
        %8240 = vmatprep.mubr.f32.mxu0 %v7842
        %8241 = vmatmul.mubr.f32.gmra.mxu0 %v7841
        %v8242 = vpop.f32.mrf.mxu0
        %v8243 = vadd.f32 %v7953, %v8242
        %v8244 = vpop.f32.mrf.mxu0
        %8245 = vmatprep.mubr.f32.mxu0 %v7847
        %8246 = vmatmul.mubr.f32.gmra.mxu0 %v7846
        %v8247 = vpop.f32.mrf.mxu0
        %v8248 = vadd.f32 %v7953, %v8247
        %v8249 = vpop.f32.mrf.mxu0
        %8250 = vmatprep.mubr.f32.mxu0 %v7852
        %8251 = vmatmul.mubr.f32.gmra.mxu0 %v7851
        %v8252 = vpop.f32.mrf.mxu0
        %v8253 = vadd.f32 %v7953, %v8252
        %v8254 = vpop.f32.mrf.mxu0
        %8255 = vmatprep.mubr.f32.mxu0 %v7857
        %8256 = vmatmul.mubr.f32.gmra.mxu0 %v7856
        %v8257 = vpop.f32.mrf.mxu0
        %v8258 = vadd.f32 %v7953, %v8257
        %v8259 = vpop.f32.mrf.mxu0
        %8260 = vmatprep.mubr.f32.mxu0 %v7862
        %8261 = vmatmul.mubr.f32.gmra.mxu0 %v7861
        %v8262 = vpop.f32.mrf.mxu0
        %v8263 = vadd.f32 %v7953, %v8262
        %v8264 = vpop.f32.mrf.mxu0
        %8265 = vmatprep.mubr.f32.mxu0 %v7867
        %8266 = vmatmul.mubr.f32.gmra.mxu0 %v7866
        %v8267 = vpop.f32.mrf.mxu0
        %v8268 = vadd.f32 %v7953, %v8267
        %v8269 = vpop.f32.mrf.mxu0
        %8270 = vmatprep.mubr.f32.mxu0 %v7872
        %8271 = vmatmul.mubr.f32.gmra.mxu0 %v7871
        %v8272 = vpop.f32.mrf.mxu0
        %v8273 = vadd.f32 %v7953, %v8272
        %v8274 = vpop.f32.mrf.mxu0
        %8275 = vdwg.mxu0
        %8276 = vmatprep.subr.mxu0 0.0
        %8277 = vmatpush1.msra.mxu0 %v7923
        %8278 = vmatprep.subr.mxu0 0.0
        %8279 = vmatpush1.msra.mxu0 %v7922
        %8280 = vmatprep.subr.mxu0 0.0
        %8281 = vmatpush1.msra.mxu0 %v7921
        %8282 = vmatprep.subr.mxu0 0.0
        %8283 = vmatpush1.msra.mxu0 %v7920
        %8284 = vmatprep.subr.mxu0 0.0
        %8285 = vmatpush1.msra.mxu0 %v7919
        %8286 = vmatprep.subr.mxu0 0.0
        %8287 = vmatpush1.msra.mxu0 %v7918
        %8288 = vmatprep.subr.mxu0 0.0
        %8289 = vmatpush1.msra.mxu0 %v7917
        %8290 = vmatprep.subr.mxu0 0.0
        %8291 = vmatpush1.msra.mxu0 %v7916
        %8292 = vmatprep.subr.mxu0 0.0
        %8293 = vmatpush1.msra.mxu0 %v7915
        %8294 = vmatprep.subr.mxu0 0.0
        %8295 = vmatpush1.msra.mxu0 %v7914
        %8296 = vmatprep.subr.mxu0 0.0
        %8297 = vmatpush1.msra.mxu0 %v7913
        %8298 = vmatprep.subr.mxu0 0.0
        %8299 = vmatpush1.msra.mxu0 %v7912
        %8300 = vmatprep.subr.mxu0 0.0
        %8301 = vmatpush1.msra.mxu0 %v7911
        %8302 = vmatprep.subr.mxu0 0.0
        %8303 = vmatpush1.msra.mxu0 %v7910
        %8304 = vmatprep.subr.mxu0 0.0
        %8305 = vmatpush1.msra.mxu0 %v7909
        %8306 = vmatprep.subr.mxu0 0.0
        %8307 = vmatpush1.msra.mxu0 %v7908
        %8308 = vmatprep.subr.mxu0 0.0
        %8309 = vmatpush2.msra.mxu0 %v7939
        %8310 = vmatprep.subr.mxu0 0.0
        %8311 = vmatpush2.msra.mxu0 %v7938
        %8312 = vmatprep.subr.mxu0 0.0
        %8313 = vmatpush2.msra.mxu0 %v7937
        %8314 = vmatprep.subr.mxu0 0.0
        %8315 = vmatpush2.msra.mxu0 %v7936
        %8316 = vmatprep.subr.mxu0 0.0
        %8317 = vmatpush2.msra.mxu0 %v7935
        %8318 = vmatprep.subr.mxu0 0.0
        %8319 = vmatpush2.msra.mxu0 %v7934
        %8320 = vmatprep.subr.mxu0 0.0
        %8321 = vmatpush2.msra.mxu0 %v7933
        %8322 = vmatprep.subr.mxu0 0.0
        %8323 = vmatpush2.msra.mxu0 %v7932
        %8324 = vmatprep.subr.mxu0 0.0
        %8325 = vmatpush2.msra.mxu0 %v7931
        %8326 = vmatprep.subr.mxu0 0.0
        %8327 = vmatpush2.msra.mxu0 %v7930
        %8328 = vmatprep.subr.mxu0 0.0
        %8329 = vmatpush2.msra.mxu0 %v7929
        %8330 = vmatprep.subr.mxu0 0.0
        %8331 = vmatpush2.msra.mxu0 %v7928
        %8332 = vmatprep.subr.mxu0 0.0
        %8333 = vmatpush2.msra.mxu0 %v7927
        %8334 = vmatprep.subr.mxu0 0.0
        %8335 = vmatpush2.msra.mxu0 %v7926
        %8336 = vmatprep.subr.mxu0 0.0
        %8337 = vmatpush2.msra.mxu0 %v7925
        %8338 = vmatprep.subr.mxu0 0.0
        %8339 = vmatpush2.msra.mxu0 %v7924
        %8340 = vmatprep.mubr.f32.mxu0 %v7719
        %8341 = vmatmul.mubr.f32.gmra.mxu0 %v7718
        %v8342 = vpop.f32.mrf.mxu0
        %v8343 = vadd.f32 %v8118, %v8342
        %v8344 = vpop.f32.mrf.mxu0
        %8345 = vmatprep.mubr.f32.mxu0 %v7724
        %8346 = vmatmul.mubr.f32.gmra.mxu0 %v7723
        %v8347 = vpop.f32.mrf.mxu0
        %v8348 = vadd.f32 %v8123, %v8347
        %v8349 = vpop.f32.mrf.mxu0
        %8350 = vmatprep.mubr.f32.mxu0 %v7729
        %8351 = vmatmul.mubr.f32.gmra.mxu0 %v7728
        %v8352 = vpop.f32.mrf.mxu0
        %v8353 = vadd.f32 %v8128, %v8352
        %v8354 = vpop.f32.mrf.mxu0
        %8355 = vmatprep.mubr.f32.mxu0 %v7734
        %8356 = vmatmul.mubr.f32.gmra.mxu0 %v7733
        %v8357 = vpop.f32.mrf.mxu0
        %v8358 = vadd.f32 %v8133, %v8357
        %v8359 = vpop.f32.mrf.mxu0
        %8360 = vmatprep.mubr.f32.mxu0 %v7739
        %8361 = vmatmul.mubr.f32.gmra.mxu0 %v7738
        %v8362 = vpop.f32.mrf.mxu0
        %v8363 = vadd.f32 %v8138, %v8362
        %v8364 = vpop.f32.mrf.mxu0
        %8365 = vmatprep.mubr.f32.mxu0 %v7744
        %8366 = vmatmul.mubr.f32.gmra.mxu0 %v7743
        %v8367 = vpop.f32.mrf.mxu0
        %v8368 = vadd.f32 %v8143, %v8367
        %v8369 = vpop.f32.mrf.mxu0
        %8370 = vmatprep.mubr.f32.mxu0 %v7749
        %8371 = vmatmul.mubr.f32.gmra.mxu0 %v7748
        %v8372 = vpop.f32.mrf.mxu0
        %v8373 = vadd.f32 %v8148, %v8372
        %v8374 = vpop.f32.mrf.mxu0
        %8375 = vmatprep.mubr.f32.mxu0 %v7754
        %8376 = vmatmul.mubr.f32.gmra.mxu0 %v7753
        %v8377 = vpop.f32.mrf.mxu0
        %v8378 = vadd.f32 %v8153, %v8377
        %v8379 = vpop.f32.mrf.mxu0
        %8380 = vmatprep.mubr.f32.mxu0 %v7759
        %8381 = vmatmul.mubr.f32.gmra.mxu0 %v7758
        %v8382 = vpop.f32.mrf.mxu0
        %v8383 = vadd.f32 %v8158, %v8382
        %v8384 = vpop.f32.mrf.mxu0
        %8385 = vmatprep.mubr.f32.mxu0 %v7764
        %8386 = vmatmul.mubr.f32.gmra.mxu0 %v7763
        %v8387 = vpop.f32.mrf.mxu0
        %v8388 = vadd.f32 %v8163, %v8387
        %v8389 = vpop.f32.mrf.mxu0
        %8390 = vmatprep.mubr.f32.mxu0 %v7769
        %8391 = vmatmul.mubr.f32.gmra.mxu0 %v7768
        %v8392 = vpop.f32.mrf.mxu0
        %v8393 = vadd.f32 %v8168, %v8392
        %v8394 = vpop.f32.mrf.mxu0
        %8395 = vmatprep.mubr.f32.mxu0 %v7774
        %8396 = vmatmul.mubr.f32.gmra.mxu0 %v7773
        %v8397 = vpop.f32.mrf.mxu0
        %v8398 = vadd.f32 %v8173, %v8397
        %v8399 = vpop.f32.mrf.mxu0
        %8400 = vmatprep.mubr.f32.mxu0 %v7779
        %8401 = vmatmul.mubr.f32.gmra.mxu0 %v7778
        %v8402 = vpop.f32.mrf.mxu0
        %v8403 = vadd.f32 %v8178, %v8402
        %v8404 = vpop.f32.mrf.mxu0
        %8405 = vmatprep.mubr.f32.mxu0 %v7784
        %8406 = vmatmul.mubr.f32.gmra.mxu0 %v7783
        %v8407 = vpop.f32.mrf.mxu0
        %v8408 = vadd.f32 %v8183, %v8407
        %v8409 = vpop.f32.mrf.mxu0
        %8410 = vmatprep.mubr.f32.mxu0 %v7789
        %8411 = vmatmul.mubr.f32.gmra.mxu0 %v7788
        %v8412 = vpop.f32.mrf.mxu0
        %v8413 = vadd.f32 %v8188, %v8412
        %v8414 = vpop.f32.mrf.mxu0
        %8415 = vmatprep.mubr.f32.mxu0 %v7794
        %8416 = vmatmul.mubr.f32.gmra.mxu0 %v7793
        %v8417 = vpop.f32.mrf.mxu0
        %v8418 = vadd.f32 %v8193, %v8417
        %v8419 = vpop.f32.mrf.mxu0
        %8420 = vmatprep.mubr.f32.mxu0 %v7799
        %8421 = vmatmul.mubr.f32.gmra.mxu0 %v7798
        %v8422 = vpop.f32.mrf.mxu0
        %v8423 = vadd.f32 %v8198, %v8422
        %v8424 = vpop.f32.mrf.mxu0
        %8425 = vmatprep.mubr.f32.mxu0 %v7804
        %8426 = vmatmul.mubr.f32.gmra.mxu0 %v7803
        %v8427 = vpop.f32.mrf.mxu0
        %v8428 = vadd.f32 %v8203, %v8427
        %v8429 = vpop.f32.mrf.mxu0
        %8430 = vmatprep.mubr.f32.mxu0 %v7809
        %8431 = vmatmul.mubr.f32.gmra.mxu0 %v7808
        %v8432 = vpop.f32.mrf.mxu0
        %v8433 = vadd.f32 %v8208, %v8432
        %v8434 = vpop.f32.mrf.mxu0
        %8435 = vmatprep.mubr.f32.mxu0 %v7814
        %8436 = vmatmul.mubr.f32.gmra.mxu0 %v7813
        %v8437 = vpop.f32.mrf.mxu0
        %v8438 = vadd.f32 %v8213, %v8437
        %v8439 = vpop.f32.mrf.mxu0
        %8440 = vmatprep.mubr.f32.mxu0 %v7819
        %8441 = vmatmul.mubr.f32.gmra.mxu0 %v7818
        %v8442 = vpop.f32.mrf.mxu0
        %v8443 = vadd.f32 %v8218, %v8442
        %v8444 = vpop.f32.mrf.mxu0
        %8445 = vmatprep.mubr.f32.mxu0 %v7824
        %8446 = vmatmul.mubr.f32.gmra.mxu0 %v7823
        %v8447 = vpop.f32.mrf.mxu0
        %v8448 = vadd.f32 %v8223, %v8447
        %v8449 = vpop.f32.mrf.mxu0
        %8450 = vmatprep.mubr.f32.mxu0 %v7829
        %8451 = vmatmul.mubr.f32.gmra.mxu0 %v7828
        %v8452 = vpop.f32.mrf.mxu0
        %v8453 = vadd.f32 %v8228, %v8452
        %v8454 = vpop.f32.mrf.mxu0
        %8455 = vmatprep.mubr.f32.mxu0 %v7834
        %8456 = vmatmul.mubr.f32.gmra.mxu0 %v7833
        %v8457 = vpop.f32.mrf.mxu0
        %v8458 = vadd.f32 %v8233, %v8457
        %v8459 = vpop.f32.mrf.mxu0
        %8460 = vmatprep.mubr.f32.mxu0 %v7839
        %8461 = vmatmul.mubr.f32.gmra.mxu0 %v7838
        %v8462 = vpop.f32.mrf.mxu0
        %v8463 = vadd.f32 %v8238, %v8462
        %v8464 = vpop.f32.mrf.mxu0
        %8465 = vmatprep.mubr.f32.mxu0 %v7844
        %8466 = vmatmul.mubr.f32.gmra.mxu0 %v7843
        %v8467 = vpop.f32.mrf.mxu0
        %v8468 = vadd.f32 %v8243, %v8467
        %v8469 = vpop.f32.mrf.mxu0
        %8470 = vmatprep.mubr.f32.mxu0 %v7849
        %8471 = vmatmul.mubr.f32.gmra.mxu0 %v7848
        %v8472 = vpop.f32.mrf.mxu0
        %v8473 = vadd.f32 %v8248, %v8472
        %v8474 = vpop.f32.mrf.mxu0
        %8475 = vmatprep.mubr.f32.mxu0 %v7854
        %8476 = vmatmul.mubr.f32.gmra.mxu0 %v7853
        %v8477 = vpop.f32.mrf.mxu0
        %v8478 = vadd.f32 %v8253, %v8477
        %v8479 = vpop.f32.mrf.mxu0
        %8480 = vmatprep.mubr.f32.mxu0 %v7859
        %8481 = vmatmul.mubr.f32.gmra.mxu0 %v7858
        %v8482 = vpop.f32.mrf.mxu0
        %v8483 = vadd.f32 %v8258, %v8482
        %v8484 = vpop.f32.mrf.mxu0
        %8485 = vmatprep.mubr.f32.mxu0 %v7864
        %8486 = vmatmul.mubr.f32.gmra.mxu0 %v7863
        %v8487 = vpop.f32.mrf.mxu0
        %v8488 = vadd.f32 %v8263, %v8487
        %v8489 = vpop.f32.mrf.mxu0
        %8490 = vmatprep.mubr.f32.mxu0 %v7869
        %8491 = vmatmul.mubr.f32.gmra.mxu0 %v7868
        %v8492 = vpop.f32.mrf.mxu0
        %v8493 = vadd.f32 %v8268, %v8492
        %v8494 = vpop.f32.mrf.mxu0
        %8495 = vmatprep.mubr.f32.mxu0 %v7874
        %8496 = vmatmul.mubr.f32.gmra.mxu0 %v7873
        %v8497 = vpop.f32.mrf.mxu0
        %v8498 = vadd.f32 %v8273, %v8497
        %v8499 = vpop.f32.mrf.mxu0
        %8500 = vdwg.mxu0
        %8501 = vmatprep.subr.mxu0 0.0
        %8502 = vmatpush1.msra.mxu0 0.0
        %8503 = vmatprep.subr.mxu0 0.0
        %8504 = vmatpush1.msra.mxu0 0.0
        %8505 = vmatprep.subr.mxu0 0.0
        %8506 = vmatpush1.msra.mxu0 0.0
        %8507 = vmatprep.subr.mxu0 0.0
        %8508 = vmatpush1.msra.mxu0 0.0
        %8509 = vmatprep.subr.mxu0 0.0
        %8510 = vmatpush1.msra.mxu0 0.0
        %8511 = vmatprep.subr.mxu0 0.0
        %8512 = vmatpush1.msra.mxu0 0.0
        %8513 = vmatprep.subr.mxu0 0.0
        %8514 = vmatpush1.msra.mxu0 0.0
        %8515 = vmatprep.subr.mxu0 0.0
        %8516 = vmatpush1.msra.mxu0 0.0
        %8517 = vmatprep.subr.mxu0 0.0
        %8518 = vmatpush1.msra.mxu0 %v7947
        %8519 = vmatprep.subr.mxu0 0.0
        %8520 = vmatpush1.msra.mxu0 %v7946
        %8521 = vmatprep.subr.mxu0 0.0
        %8522 = vmatpush1.msra.mxu0 %v7945
        %8523 = vmatprep.subr.mxu0 0.0
        %8524 = vmatpush1.msra.mxu0 %v7944
        %8525 = vmatprep.subr.mxu0 0.0
        %8526 = vmatpush1.msra.mxu0 %v7943
        %8527 = vmatprep.subr.mxu0 0.0
        %8528 = vmatpush1.msra.mxu0 %v7942
        %8529 = vmatprep.subr.mxu0 0.0
        %8530 = vmatpush1.msra.mxu0 %v7941
        %8531 = vmatprep.subr.mxu0 0.0
        %8532 = vmatpush1.msra.mxu0 %v7940
        %8533 = vmatprep.subr.mxu0 0.0
        %8534 = vmatpush2.msra.mxu0 0.0
        %8535 = vmatprep.subr.mxu0 0.0
        %8536 = vmatpush2.msra.mxu0 0.0
        %8537 = vmatprep.subr.mxu0 0.0
        %8538 = vmatpush2.msra.mxu0 0.0
        %8539 = vmatprep.subr.mxu0 0.0
        %8540 = vmatpush2.msra.mxu0 0.0
        %8541 = vmatprep.subr.mxu0 0.0
        %8542 = vmatpush2.msra.mxu0 0.0
        %8543 = vmatprep.subr.mxu0 0.0
        %8544 = vmatpush2.msra.mxu0 0.0
        %8545 = vmatprep.subr.mxu0 0.0
        %8546 = vmatpush2.msra.mxu0 0.0
        %8547 = vmatprep.subr.mxu0 0.0
        %8548 = vmatpush2.msra.mxu0 0.0
        %8549 = vmatprep.subr.mxu0 0.0
        %8550 = vmatpush2.msra.mxu0 0.0
        %8551 = vmatprep.subr.mxu0 0.0
        %8552 = vmatpush2.msra.mxu0 0.0
        %8553 = vmatprep.subr.mxu0 0.0
        %8554 = vmatpush2.msra.mxu0 0.0
        %8555 = vmatprep.subr.mxu0 0.0
        %8556 = vmatpush2.msra.mxu0 0.0
        %8557 = vmatprep.subr.mxu0 0.0
        %8558 = vmatpush2.msra.mxu0 0.0
        %8559 = vmatprep.subr.mxu0 0.0
        %8560 = vmatpush2.msra.mxu0 0.0
        %8561 = vmatprep.subr.mxu0 0.0
        %8562 = vmatpush2.msra.mxu0 0.0
        %8563 = vmatprep.subr.mxu0 0.0
        %8564 = vmatpush2.msra.mxu0 0.0
        %8565 = vmatprep.mubr.f32.mxu0 0.0
        %8566 = vmatmul.mubr.f32.gmra.mxu0 %v7956
        %v8567 = vpop.f32.mrf.mxu0
        %v8568 = vadd.f32 %v8343, %v8567
        %v8569 = vpop.f32.mrf.mxu0
        %8570 = vmatprep.mubr.f32.mxu0 0.0
        %8571 = vmatmul.mubr.f32.gmra.mxu0 %v7959
        %v8572 = vpop.f32.mrf.mxu0
        %v8573 = vadd.f32 %v8348, %v8572
        %v8574 = vpop.f32.mrf.mxu0
        %8575 = vmatprep.mubr.f32.mxu0 0.0
        %8576 = vmatmul.mubr.f32.gmra.mxu0 %v7962
        %v8577 = vpop.f32.mrf.mxu0
        %v8578 = vadd.f32 %v8353, %v8577
        %v8579 = vpop.f32.mrf.mxu0
        %8580 = vmatprep.mubr.f32.mxu0 0.0
        %8581 = vmatmul.mubr.f32.gmra.mxu0 %v7965
        %v8582 = vpop.f32.mrf.mxu0
        %v8583 = vadd.f32 %v8358, %v8582
        %v8584 = vpop.f32.mrf.mxu0
        %8585 = vmatprep.mubr.f32.mxu0 0.0
        %8586 = vmatmul.mubr.f32.gmra.mxu0 %v7968
        %v8587 = vpop.f32.mrf.mxu0
        %v8588 = vadd.f32 %v8363, %v8587
        %v8589 = vpop.f32.mrf.mxu0
        %8590 = vmatprep.mubr.f32.mxu0 0.0
        %8591 = vmatmul.mubr.f32.gmra.mxu0 %v7971
        %v8592 = vpop.f32.mrf.mxu0
        %v8593 = vadd.f32 %v8368, %v8592
        %v8594 = vpop.f32.mrf.mxu0
        %8595 = vmatprep.mubr.f32.mxu0 0.0
        %8596 = vmatmul.mubr.f32.gmra.mxu0 %v7974
        %v8597 = vpop.f32.mrf.mxu0
        %v8598 = vadd.f32 %v8373, %v8597
        %v8599 = vpop.f32.mrf.mxu0
        %8600 = vmatprep.mubr.f32.mxu0 0.0
        %8601 = vmatmul.mubr.f32.gmra.mxu0 %v7977
        %v8602 = vpop.f32.mrf.mxu0
        %v8603 = vadd.f32 %v8378, %v8602
        %v8604 = vpop.f32.mrf.mxu0
        %8605 = vmatprep.mubr.f32.mxu0 0.0
        %8606 = vmatmul.mubr.f32.gmra.mxu0 %v7980
        %v8607 = vpop.f32.mrf.mxu0
        %v8608 = vadd.f32 %v8383, %v8607
        %v8609 = vpop.f32.mrf.mxu0
        %8610 = vmatprep.mubr.f32.mxu0 0.0
        %8611 = vmatmul.mubr.f32.gmra.mxu0 %v7983
        %v8612 = vpop.f32.mrf.mxu0
        %v8613 = vadd.f32 %v8388, %v8612
        %v8614 = vpop.f32.mrf.mxu0
        %8615 = vmatprep.mubr.f32.mxu0 0.0
        %8616 = vmatmul.mubr.f32.gmra.mxu0 %v7986
        %v8617 = vpop.f32.mrf.mxu0
        %v8618 = vadd.f32 %v8393, %v8617
        %v8619 = vpop.f32.mrf.mxu0
        %8620 = vmatprep.mubr.f32.mxu0 0.0
        %8621 = vmatmul.mubr.f32.gmra.mxu0 %v7989
        %v8622 = vpop.f32.mrf.mxu0
        %v8623 = vadd.f32 %v8398, %v8622
        %v8624 = vpop.f32.mrf.mxu0
        %8625 = vmatprep.mubr.f32.mxu0 0.0
        %8626 = vmatmul.mubr.f32.gmra.mxu0 %v7992
        %v8627 = vpop.f32.mrf.mxu0
        %v8628 = vadd.f32 %v8403, %v8627
        %v8629 = vpop.f32.mrf.mxu0
        %8630 = vmatprep.mubr.f32.mxu0 0.0
        %8631 = vmatmul.mubr.f32.gmra.mxu0 %v7995
        %v8632 = vpop.f32.mrf.mxu0
        %v8633 = vadd.f32 %v8408, %v8632
        %v8634 = vpop.f32.mrf.mxu0
        %8635 = vmatprep.mubr.f32.mxu0 0.0
        %8636 = vmatmul.mubr.f32.gmra.mxu0 %v7998
        %v8637 = vpop.f32.mrf.mxu0
        %v8638 = vadd.f32 %v8413, %v8637
        %v8639 = vpop.f32.mrf.mxu0
        %8640 = vmatprep.mubr.f32.mxu0 0.0
        %8641 = vmatmul.mubr.f32.gmra.mxu0 %v8001
        %v8642 = vpop.f32.mrf.mxu0
        %v8643 = vadd.f32 %v8418, %v8642
        %v8644 = vpop.f32.mrf.mxu0
        %8645 = vmatprep.mubr.f32.mxu0 0.0
        %8646 = vmatmul.mubr.f32.gmra.mxu0 %v8004
        %v8647 = vpop.f32.mrf.mxu0
        %v8648 = vadd.f32 %v8423, %v8647
        %v8649 = vpop.f32.mrf.mxu0
        %8650 = vmatprep.mubr.f32.mxu0 0.0
        %8651 = vmatmul.mubr.f32.gmra.mxu0 %v8007
        %v8652 = vpop.f32.mrf.mxu0
        %v8653 = vadd.f32 %v8428, %v8652
        %v8654 = vpop.f32.mrf.mxu0
        %8655 = vmatprep.mubr.f32.mxu0 0.0
        %8656 = vmatmul.mubr.f32.gmra.mxu0 %v8010
        %v8657 = vpop.f32.mrf.mxu0
        %v8658 = vadd.f32 %v8433, %v8657
        %v8659 = vpop.f32.mrf.mxu0
        %8660 = vmatprep.mubr.f32.mxu0 0.0
        %8661 = vmatmul.mubr.f32.gmra.mxu0 %v8013
        %v8662 = vpop.f32.mrf.mxu0
        %v8663 = vadd.f32 %v8438, %v8662
        %v8664 = vpop.f32.mrf.mxu0
        %8665 = vmatprep.mubr.f32.mxu0 0.0
        %8666 = vmatmul.mubr.f32.gmra.mxu0 %v8016
        %v8667 = vpop.f32.mrf.mxu0
        %v8668 = vadd.f32 %v8443, %v8667
        %v8669 = vpop.f32.mrf.mxu0
        %8670 = vmatprep.mubr.f32.mxu0 0.0
        %8671 = vmatmul.mubr.f32.gmra.mxu0 %v8019
        %v8672 = vpop.f32.mrf.mxu0
        %v8673 = vadd.f32 %v8448, %v8672
        %v8674 = vpop.f32.mrf.mxu0
        %8675 = vmatprep.mubr.f32.mxu0 0.0
        %8676 = vmatmul.mubr.f32.gmra.mxu0 %v8022
        %v8677 = vpop.f32.mrf.mxu0
        %v8678 = vadd.f32 %v8453, %v8677
        %v8679 = vpop.f32.mrf.mxu0
        %8680 = vmatprep.mubr.f32.mxu0 0.0
        %8681 = vmatmul.mubr.f32.gmra.mxu0 %v8025
        %v8682 = vpop.f32.mrf.mxu0
        %v8683 = vadd.f32 %v8458, %v8682
        %v8684 = vpop.f32.mrf.mxu0
        %8685 = vmatprep.mubr.f32.mxu0 0.0
        %8686 = vmatmul.mubr.f32.gmra.mxu0 %v8028
        %v8687 = vpop.f32.mrf.mxu0
        %v8688 = vadd.f32 %v8463, %v8687
        %v8689 = vpop.f32.mrf.mxu0
        %8690 = vmatprep.mubr.f32.mxu0 0.0
        %8691 = vmatmul.mubr.f32.gmra.mxu0 %v8031
        %v8692 = vpop.f32.mrf.mxu0
        %v8693 = vadd.f32 %v8468, %v8692
        %v8694 = vpop.f32.mrf.mxu0
        %8695 = vmatprep.mubr.f32.mxu0 0.0
        %8696 = vmatmul.mubr.f32.gmra.mxu0 %v8034
        %v8697 = vpop.f32.mrf.mxu0
        %v8698 = vadd.f32 %v8473, %v8697
        %v8699 = vpop.f32.mrf.mxu0
        %8700 = vmatprep.mubr.f32.mxu0 0.0
        %8701 = vmatmul.mubr.f32.gmra.mxu0 %v8037
        %v8702 = vpop.f32.mrf.mxu0
        %v8703 = vadd.f32 %v8478, %v8702
        %v8704 = vpop.f32.mrf.mxu0
        %8705 = vmatprep.mubr.f32.mxu0 0.0
        %8706 = vmatmul.mubr.f32.gmra.mxu0 %v8040
        %v8707 = vpop.f32.mrf.mxu0
        %v8708 = vadd.f32 %v8483, %v8707
        %v8709 = vpop.f32.mrf.mxu0
        %8710 = vmatprep.mubr.f32.mxu0 0.0
        %8711 = vmatmul.mubr.f32.gmra.mxu0 %v8043
        %v8712 = vpop.f32.mrf.mxu0
        %v8713 = vadd.f32 %v8488, %v8712
        %v8714 = vpop.f32.mrf.mxu0
        %8715 = vmatprep.mubr.f32.mxu0 0.0
        %8716 = vmatmul.mubr.f32.gmra.mxu0 %v8046
        %v8717 = vpop.f32.mrf.mxu0
        %v8718 = vadd.f32 %v8493, %v8717
        %v8719 = vpop.f32.mrf.mxu0
        %8720 = vmatprep.mubr.f32.mxu0 0.0
        %8721 = vmatmul.mubr.f32.gmra.mxu0 %v8049
        %v8722 = vpop.f32.mrf.mxu0
        %v8723 = vadd.f32 %v8498, %v8722
        %v8724 = vpop.f32.mrf.mxu0
        %8725 = vdwg.mxu0
        %8726 = vst [vmem:[%s353] sm:$0xff] %v8568
        %8727 = vst [vmem:[%s353 + $0x8] sm:$0xff] %v8573
        %8728 = vst [vmem:[%s353 + $0x10] sm:$0xff] %v8578
        %8729 = vst [vmem:[%s353 + $0x18] sm:$0xff] %v8583
        %8730 = vst [vmem:[%s353 + $0x20] sm:$0xff] %v8588
        %8731 = vst [vmem:[%s353 + $0x28] sm:$0xff] %v8593
        %8732 = vst [vmem:[%s353 + $0x30] sm:$0xff] %v8598
        %8733 = vst [vmem:[%s353 + $0x38] sm:$0xff] %v8603
        %8734 = vst [vmem:[%s353 + $0x40] sm:$0xff] %v8608
        %8735 = vst [vmem:[%s353 + $0x48] sm:$0xff] %v8613
        %8736 = vst [vmem:[%s353 + $0x50] sm:$0xff] %v8618
        %8737 = vst [vmem:[%s353 + $0x58] sm:$0xff] %v8623
        %8738 = vst [vmem:[%s353 + $0x60] sm:$0xff] %v8628
        %8739 = vst [vmem:[%s353 + $0x68] sm:$0xff] %v8633
        %8740 = vst [vmem:[%s353 + $0x70] sm:$0xff] %v8638
        %8741 = vst [vmem:[%s353 + $0x78] sm:$0xff] %v8643
        %8742 = vst [vmem:[%s353 + $0x80] sm:$0xff] %v8648
        %8743 = vst [vmem:[%s353 + $0x88] sm:$0xff] %v8653
        %8744 = vst [vmem:[%s353 + $0x90] sm:$0xff] %v8658
        %8745 = vst [vmem:[%s353 + $0x98] sm:$0xff] %v8663
        %8746 = vst [vmem:[%s353 + $0xa0] sm:$0xff] %v8668
        %8747 = vst [vmem:[%s353 + $0xa8] sm:$0xff] %v8673
        %8748 = vst [vmem:[%s353 + $0xb0] sm:$0xff] %v8678
        %8749 = vst [vmem:[%s353 + $0xb8] sm:$0xff] %v8683
        %8750 = vst [vmem:[%s353 + $0xc0] sm:$0xff] %v8688
        %8751 = vst [vmem:[%s353 + $0xc8] sm:$0xff] %v8693
        %8752 = vst [vmem:[%s353 + $0xd0] sm:$0xff] %v8698
        %8753 = vst [vmem:[%s353 + $0xd8] sm:$0xff] %v8703
        %8754 = vst [vmem:[%s353 + $0xe0] sm:$0xff] %v8708
        %8755 = vst [vmem:[%s353 + $0xe8] sm:$0xff] %v8713
        %8756 = vst [vmem:[%s353 + $0xf0] sm:$0xff] %v8718
        %8757 = vst [vmem:[%s353 + $0xf8] sm:$0xff] %v8723
        %s8758 = sand.u32 %s248, 1
        %s8759 = scalar_lea.sflag [#allocation8], %s8758
        %s8760 = sand.u32 %s248, 1
        %s8761 = smul.addr %s8760, 256
        %s8762 = scalar_lea.vmem [#allocation7], %s8761
        // Predicated region
        $region61: #{tpu_custom_call.1} parent=59 // pred_check
          %p8763 = pneg %p258
        $region62: #{tpu_custom_call.1} parent=59 // pred_check_branch
          %8765 = sbr.rel (%p8763) target = $region64
        $region63: #{tpu_custom_call.1} parent=59 // pred_region
          %s8767 = ssub.s32 4096, 4096
          %8768 = vsyncadd %s8759, %s8767
          %s8769 = smul.addr %s25, 32
          %s8770 = smul.addr %s8769, 128
          %s8771 = scalar_lea.hbm %s10, %s8770
          %s8772 = sshll.u32 %s8762, 4
          %s8773 = int_to_ptr.vmem [resolvable:$true] %s8772
          %8778 = dma.vmem_to_hbm [thread:$0]  %s8773, 4096, %s8771, %s8759, 128, 128, 8
        $region64: #{tpu_custom_call.1} parent=59 // pred_fallthru
          _
      $region60: #{tpu_custom_call.1} parent=5 // pred_fallthru
        _
      %p8779 = scmp.le.s32.totalorder 2, %s20
      // Predicated region
      $region65: #{tpu_custom_call.1} parent=5 // pred_check
        %p8780 = pneg %p8779
      $region66: #{tpu_custom_call.1} parent=5 // pred_check_branch
        %8782 = sbr.rel (%p8780) target = $region68
      $region67: #{tpu_custom_call.1} parent=5 // pred_region
        %s8783 = ssub.s32 %s20, 2
        // Predicated region
        $region69: #{tpu_custom_call.1} parent=67 // pred_check
          %p8784 = pneg %p264
        $region70: #{tpu_custom_call.1} parent=67 // pred_check_branch
          %8786 = sbr.rel (%p8784) target = $region72
        $region71: #{tpu_custom_call.1} parent=67 // pred_region
          %s8787 = sand.u32 %s249, 1
          %s8788 = scalar_lea.sflag [#allocation8], %s8787
          %s8789 = sand.u32 %s249, 1
          %s8790 = smul.addr %s8789, 256
          %s8791 = scalar_lea.vmem [#allocation7], %s8790
          %8792 = dma.done %s8788, 4096
        $region72: #{tpu_custom_call.1} parent=67 // pred_fallthru
          _
      $region68: #{tpu_custom_call.1} parent=5 // pred_fallthru
        _
    $region6: #{tpu_custom_call.1} parent=1 // loop_footer
      %s24 = sadd.s32 1, %s20
    $region7: #{tpu_custom_call.1} parent=1 // loop_footer_branch
      %19 = sbr.rel target = $region3
    $region8: #{tpu_custom_call.1} parent=1 // loop_exit
      _
    %8793 = vsyncpa [#allocation8], 1
    %s8794 = scalar_lea.sflag [#allocation8], 1
    %8795 = vsyncpa %s8794, 1

</llo_original>
